<compile_context>
chip_gen: v5e
topology: v5e:2x2
jax: 0.10.0
libtpu: 0.0.40
codegen_flags: <defaults>
</compile_context>

<pallas_src>
from functools import partial

import jax
import jax.numpy as jnp
from jax import lax
from jax.experimental import pallas as pl
from jax.experimental.pallas import tpu as pltpu

_EPS = 1e-5   # nn.LayerNorm default
_PAD = 8      # 8-aligned sublane offset for the depthwise-conv halo scratch


def _divisor_tile(m, cap=512):
    """Largest tile <= cap (multiple of 8) dividing m; masked 256 fallback."""
    if m <= cap:
        return m
    for t in range(cap, 7, -8):
        if m % t == 0:
            return t
    return 256  # rows are independent; Pallas masks the partial last block


def _cparams(n_grid):
    return pltpu.CompilerParams(
        dimension_semantics=("parallel",) * n_grid,
        vmem_limit_bytes=32 * 1024 * 1024)


def _hardswish(x):
    return x * jnp.clip(x + 3.0, 0.0, 6.0) * (1.0 / 6.0)


def _layernorm_f32(x, g, b):
    mu = jnp.mean(x, axis=-1, keepdims=True)
    xc = x - mu
    var = jnp.mean(xc * xc, axis=-1, keepdims=True)
    return xc * lax.rsqrt(var + _EPS) * g + b


# ----------------------------------------------------------------------------
# 1) LayerNorm (bf16 output, feeds only the pyramid-pooling branch)
# ----------------------------------------------------------------------------
def _ln_kernel(x_ref, g_ref, b_ref, o_ref):
    x = x_ref[...].astype(jnp.float32)
    o_ref[...] = _layernorm_f32(x, g_ref[...], b_ref[...]).astype(o_ref.dtype)


def layernorm(x2d, gamma, beta, out_dtype=jnp.bfloat16):
    M, K = x2d.shape
    tm = _divisor_tile(M, 512)
    return pl.pallas_call(
        _ln_kernel,
        out_shape=jax.ShapeDtypeStruct((M, K), out_dtype),
        grid=(pl.cdiv(M, tm),),
        in_specs=[pl.BlockSpec((tm, K), lambda i: (i, 0)),
                  pl.BlockSpec((1, K), lambda i: (0, 0)),
                  pl.BlockSpec((1, K), lambda i: (0, 0))],
        out_specs=pl.BlockSpec((tm, K), lambda i: (i, 0)),
        compiler_params=_cparams(1),
    )(x2d, gamma.reshape(1, K), beta.reshape(1, K))


# ----------------------------------------------------------------------------
# 2) Fused attention: LN1(q) + pool-LN + kv + per-head softmax(qk^T)(v@proj)
#    + proj bias + residual.  One (batch, N-tile) block per grid step.
# ----------------------------------------------------------------------------
def _attn_kernel(x_ref, pooled_ref, n1g_ref, n1b_ref, qw_ref, png_ref, pnb_ref,
                 kwh_ref, vpwh_ref, pjb_ref, o_ref, *, num_heads):
    # q from a recomputed norm1(x); the softmax scale is folded into qw host-side.
    x = x_ref[0].astype(jnp.float32)                                    # (tn, C)
    xn = _layernorm_f32(x, n1g_ref[...], n1b_ref[...])
    q = jnp.dot(xn.astype(jnp.bfloat16), qw_ref[...],
                preferred_element_type=jnp.float32).astype(jnp.bfloat16)

    # pooled-branch LayerNorm (tiny: P ~ 10 rows) fused in-kernel
    p = pooled_ref[0].astype(jnp.float32)                               # (P, C)
    pn = _layernorm_f32(p, png_ref[...], pnb_ref[...]).astype(jnp.bfloat16)

    y = jnp.zeros(x.shape, jnp.float32)
    for h in range(num_heads):
        # per-head k; per-head (v @ proj_w) -- both weights pre-masked host-side
        kh = jnp.dot(pn, kwh_ref[h], preferred_element_type=jnp.float32)
        vph = jnp.dot(pn, vpwh_ref[h], preferred_element_type=jnp.float32)
        s = lax.dot_general(q, kh.astype(jnp.bfloat16),
                            (((1,), (1,)), ((), ())),
                            preferred_element_type=jnp.float32)         # (tn, P)
        s = s - jnp.max(s, axis=-1, keepdims=True)
        e = jnp.exp(s)
        att = e * pl.reciprocal(jnp.sum(e, axis=-1, keepdims=True), approx=True)
        y = y + jnp.dot(att.astype(jnp.bfloat16), vph.astype(jnp.bfloat16),
                        preferred_element_type=jnp.float32)
    o_ref[0] = (y + pjb_ref[...] + x).astype(o_ref.dtype)


def attention_fused(x, pooled, n1g, n1b, qw_s, png, pnb, kw_h, vpw_h, proj_b,
                    num_heads):
    B, N, C = x.shape
    P = pooled.shape[1]
    tn = _divisor_tile(N, 512)
    return pl.pallas_call(
        partial(_attn_kernel, num_heads=num_heads),
        out_shape=jax.ShapeDtypeStruct((B, N, C), x.dtype),
        grid=(B, pl.cdiv(N, tn)),
        in_specs=[
            pl.BlockSpec((1, tn, C), lambda b, t: (b, t, 0)),
            pl.BlockSpec((1, P, C), lambda b, t: (b, 0, 0)),
            pl.BlockSpec((1, C), lambda b, t: (0, 0)),
            pl.BlockSpec((1, C), lambda b, t: (0, 0)),
            pl.BlockSpec((C, C), lambda b, t: (0, 0)),
            pl.BlockSpec((1, C), lambda b, t: (0, 0)),
            pl.BlockSpec((1, C), lambda b, t: (0, 0)),
            pl.BlockSpec((num_heads, C, C), lambda b, t: (0, 0, 0)),
            pl.BlockSpec((num_heads, C, C), lambda b, t: (0, 0, 0)),
            pl.BlockSpec((1, C), lambda b, t: (0, 0)),
        ],
        out_specs=pl.BlockSpec((1, tn, C), lambda b, t: (b, t, 0)),
        compiler_params=_cparams(2),
    )(x, pooled, n1g.reshape(1, C), n1b.reshape(1, C), qw_s,
      png.reshape(1, C), pnb.reshape(1, C), kw_h, vpw_h, proj_b.reshape(1, C))


# ----------------------------------------------------------------------------
# 3) Fused IRB: norm2 + fc1 + Hardswish + depthwise3x3 + Hardswish + fc2 + res
# ----------------------------------------------------------------------------
def _irb_kernel(x_ref, g_ref, b_ref, w1_ref, b1_ref, dw_ref, db_ref,
                w2_ref, b2_ref, o_ref, xp_ref, *, H, W):
    x = x_ref[0].astype(jnp.float32)                                    # (N, C)
    xn = _layernorm_f32(x, g_ref[...], b_ref[...])
    h = jnp.dot(xn.astype(jnp.bfloat16), w1_ref[...],
                preferred_element_type=jnp.float32) + b1_ref[...]
    h = _hardswish(h)                                                   # (N, Ch)
    Ch = h.shape[-1]

    # Depthwise 3x3 with a zero halo: the interior lives at an 8-aligned W
    # offset so the store is unmasked; only the 3 hoisted W-shifted tap reads
    # are unaligned (dy offsets ride the free leading axis).
    xp_ref[...] = jnp.zeros(xp_ref.shape, xp_ref.dtype)
    xp_ref[1:H + 1, _PAD:_PAD + W, :] = h.reshape(H, W, Ch)
    xs = tuple(xp_ref[:, _PAD - 1 + dx:_PAD - 1 + dx + W, :] for dx in range(3))
    w = dw_ref[...].astype(jnp.float32)                                 # (9, Ch)
    acc = jnp.zeros((H, W, Ch), jnp.float32)
    for dy in range(3):
        for dx in range(3):
            acc = acc + xs[dx][dy:dy + H] * w[3 * dy + dx:3 * dy + dx + 1, :]
    acc = _hardswish(acc + db_ref[...])

    y = jnp.dot(acc.reshape(H * W, Ch).astype(jnp.bfloat16), w2_ref[...],
                preferred_element_type=jnp.float32)                     # fc2 (1x1)
    o_ref[0] = (y + b2_ref[...] + x).astype(o_ref.dtype)


def irb_fused(x, H, W, n2g, n2b, fc1_w, fc1_b, dw_w, dw_b, fc2_w, fc2_b):
    B, N, C = x.shape
    Ch = fc1_w.shape[1]
    return pl.pallas_call(
        partial(_irb_kernel, H=H, W=W),
        out_shape=jax.ShapeDtypeStruct((B, N, C), x.dtype),
        grid=(B,),
        in_specs=[
            pl.BlockSpec((1, N, C), lambda b: (b, 0, 0)),
            pl.BlockSpec((1, C), lambda b: (0, 0)),
            pl.BlockSpec((1, C), lambda b: (0, 0)),
            pl.BlockSpec((C, Ch), lambda b: (0, 0)),
            pl.BlockSpec((1, Ch), lambda b: (0, 0)),
            pl.BlockSpec((9, Ch), lambda b: (0, 0)),
            pl.BlockSpec((1, Ch), lambda b: (0, 0)),
            pl.BlockSpec((Ch, C), lambda b: (0, 0)),
            pl.BlockSpec((1, C), lambda b: (0, 0)),
        ],
        out_specs=pl.BlockSpec((1, N, C), lambda b: (b, 0, 0)),
        scratch_shapes=[pltpu.VMEM((H + 2, W + _PAD + 1, Ch), jnp.float32)],
        compiler_params=_cparams(1),
    )(x, n2g.reshape(1, C), n2b.reshape(1, C),
      fc1_w.astype(jnp.bfloat16), fc1_b.reshape(1, Ch),
      dw_w.reshape(9, Ch), dw_b.reshape(1, Ch),
      fc2_w.astype(jnp.bfloat16), fc2_b.reshape(1, C))


# ----------------------------------------------------------------------------
# Pyramid-pooling branch helpers (tiny -> plain JAX, XLA fuses them)
# ----------------------------------------------------------------------------
def adaptive_avg_pool(x_nhwc, oh, ow):
    B, H, W, C = x_nhwc.shape
    if H % oh == 0 and W % ow == 0:
        return x_nhwc.reshape(B, oh, H // oh, ow, W // ow, C).mean(axis=(2, 4))
    rows = []
    for i in range(oh):
        hs, he = (i * H) // oh, -((-(i + 1) * H) // oh)
        cols = []
        for j in range(ow):
            ws, we = (j * W) // ow, -((-(j + 1) * W) // ow)
            cols.append(jnp.mean(x_nhwc[:, hs:he, ws:we, :], axis=(1, 2)))
        rows.append(jnp.stack(cols, axis=1))
    return jnp.stack(rows, axis=1)


def dwconv3x3(x_nhwc, w33c, bias):
    B, h, w, C = x_nhwc.shape
    xp = jnp.pad(x_nhwc, ((0, 0), (1, 1), (1, 1), (0, 0)))
    out = jnp.zeros_like(x_nhwc)
    for dy in range(3):
        for dx in range(3):
            out = out + xp[:, dy:dy + h, dx:dx + w, :] * w33c[dy, dx]
    return out + bias


# ----------------------------------------------------------------------------
# Parameters (deterministic synthetic init; qkv_bias=False as in the module)
# ----------------------------------------------------------------------------
def init_params(key, dim, mlp_ratio=4.0, n_pools=4):
    hidden = int(dim * mlp_ratio)
    ks = jax.random.split(key, 20)

    def nrm(k, shape, scale=0.05):
        return jax.random.normal(k, shape, jnp.float32) * scale

    return {
        "norm1_g": jnp.ones((dim,), jnp.float32),
        "norm1_b": jnp.zeros((dim,), jnp.float32),
        "q_w": nrm(ks[0], (dim, dim)),
        "kv_w": nrm(ks[1], (dim, 2 * dim)),
        "proj_w": nrm(ks[2], (dim, dim)),
        "proj_b": nrm(ks[3], (dim,)),
        "pool_norm_g": jnp.ones((dim,), jnp.float32),
        "pool_norm_b": jnp.zeros((dim,), jnp.float32),
        "dconv_w": [nrm(jax.random.fold_in(ks[4], i), (3, 3, dim)) for i in range(n_pools)],
        "dconv_b": [nrm(jax.random.fold_in(ks[5], i), (dim,)) for i in range(n_pools)],
        "norm2_g": jnp.ones((dim,), jnp.float32),
        "norm2_b": jnp.zeros((dim,), jnp.float32),
        "fc1_w": nrm(ks[6], (dim, hidden)),
        "fc1_b": nrm(ks[7], (hidden,)),
        "dw_w": nrm(ks[8], (3, 3, hidden)),
        "dw_b": nrm(ks[9], (hidden,)),
        "fc2_w": nrm(ks[10], (hidden, dim)),
        "fc2_b": nrm(ks[11], (dim,)),
    }


# ----------------------------------------------------------------------------
# Block_self forward
# ----------------------------------------------------------------------------
def block_self_forward(x, H, W, params, num_heads=2, pool_ratios=(12, 16, 20, 24)):
    B, N, C = x.shape
    hd = C // num_heads
    scale = float(hd) ** -0.5

    # ---- attention branch: x + proj(attn(norm1(x))) ----
    # norm1(x) materialised once (bf16) only for the pyramid-pooling branch.
    xn = layernorm(x.reshape(B * N, C), params["norm1_g"], params["norm1_b"])
    xn_nhwc = xn.reshape(B, H, W, C).astype(jnp.float32)   # token n = h*W + w

    pools = []
    for idx, r in enumerate(pool_ratios):
        oh, ow = round(H / r), round(W / r)
        pm = adaptive_avg_pool(xn_nhwc, oh, ow)
        pm = pm + dwconv3x3(pm, params["dconv_w"][idx], params["dconv_b"][idx])
        pools.append(pm.reshape(B, oh * ow, C))
    pooled = jnp.concatenate(pools, axis=1)                # (B, P, C), P ~ 10

    # Host-side weight prep: fold scale into q_w, pre-mask per-head k/v weights,
    # and fold proj_w into the per-head v weights (associativity, P << N).
    hsel = (jnp.arange(C)[None, :] // hd ==
            jnp.arange(num_heads)[:, None]).astype(jnp.float32)         # (heads, C)
    kw = params["kv_w"][:, :C]
    vw = params["kv_w"][:, C:]
    kw_h = (kw[None, :, :] * hsel[:, None, :]).astype(jnp.bfloat16)     # (heads, C, C)
    vpw_h = jnp.einsum("hcd,de->hce", vw[None, :, :] * hsel[:, None, :],
                       params["proj_w"]).astype(jnp.bfloat16)           # (heads, C, C)
    qw_s = (params["q_w"] * scale).astype(jnp.bfloat16)

    x = attention_fused(x, pooled, params["norm1_g"], params["norm1_b"], qw_s,
                        params["pool_norm_g"], params["pool_norm_b"],
                        kw_h, vpw_h, params["proj_b"], num_heads)

    # ---- IRB branch: x + fc2(hswish(dwconv(hswish(fc1(norm2(x)))))) ----
    return irb_fused(x, H, W, params["norm2_g"], params["norm2_b"],
                     params["fc1_w"], params["fc1_b"],
                     params["dw_w"], params["dw_b"],
                     params["fc2_w"], params["fc2_b"])


# ----------------------------------------------------------------------------
if __name__ == "__main__":
    B, H, W = 2, 24, 24
    dim, num_heads = 32, 2
    N = H * W
    pool_ratios = (12, 16, 20, 24)

    key = jax.random.PRNGKey(0)
    kx, kp = jax.random.split(key)
    x = jax.random.normal(kx, (B, N, dim), jnp.float32)
    params = init_params(kp, dim)

    fwd = jax.jit(lambda inp: block_self_forward(
        inp, H, W, params, num_heads=num_heads, pool_ratios=pool_ratios))

    y = jax.block_until_ready(fwd(x))

    assert y.shape == (B, N, dim), y.shape
    assert bool(jnp.all(jnp.isfinite(y)))
    print("KERNEL_OK")
</pallas_src>

<mosaic_0001>
module attributes {stable_mosaic.version = 11 : i64} {
  func.func @_ln_kernel(%arg0: i32, %arg1: memref<384x32xf32, #tpu.memory_space<vmem>>, %arg2: memref<1x32xf32, #tpu.memory_space<vmem>>, %arg3: memref<1x32xf32, #tpu.memory_space<vmem>>, %arg4: memref<384x32xbf16, #tpu.memory_space<vmem>>) attributes {dimension_semantics = [#tpu.dimension_semantics<parallel>], iteration_bounds = array<i64: 3>, scalar_prefetch = 0 : i64, scratch_operands = 0 : i64, tpu.core_type = #tpu.core_type<tc>, window_params = [{transform_indices = @transform_0, window_bounds = array<i64: 384, 32>}, {pipeline_mode = #tpu.pipeline_mode<synchronous>, transform_indices = @transform_1, window_bounds = array<i64: 1, 32>}, {pipeline_mode = #tpu.pipeline_mode<synchronous>, transform_indices = @transform_2, window_bounds = array<i64: 1, 32>}, {transform_indices = @transform_3, window_bounds = array<i64: 384, 32>}]} {
    %c0 = arith.constant 0 : index
    %c0_0 = arith.constant 0 : index
    %0 = vector.load %arg1[%c0, %c0_0] : memref<384x32xf32, #tpu.memory_space<vmem>>, vector<384x32xf32>
    %c0_1 = arith.constant 0 : index
    %c0_2 = arith.constant 0 : index
    %1 = vector.load %arg2[%c0_1, %c0_2] : memref<1x32xf32, #tpu.memory_space<vmem>>, vector<1x32xf32>
    %c0_3 = arith.constant 0 : index
    %c0_4 = arith.constant 0 : index
    %2 = vector.load %arg3[%c0_3, %c0_4] : memref<1x32xf32, #tpu.memory_space<vmem>>, vector<1x32xf32>
    %cst = arith.constant dense<0.000000e+00> : vector<384xf32>
    %3 = vector.multi_reduction <add>, %0, %cst [1] : vector<384x32xf32> to vector<384xf32>
    %4 = vector.shape_cast %3 : vector<384xf32> to vector<384x1xf32>
    %cst_5 = arith.constant 3.200000e+01 : f32
    %5 = vector.broadcast %cst_5 : f32 to vector<384x1xf32>
    %6 = arith.divf %4, %5 : vector<384x1xf32>
    %7 = vector.broadcast %6 : vector<384x1xf32> to vector<384x32xf32>
    %8 = arith.subf %0, %7 : vector<384x32xf32>
    %9 = arith.mulf %8, %8 : vector<384x32xf32>
    %cst_6 = arith.constant dense<0.000000e+00> : vector<384xf32>
    %10 = vector.multi_reduction <add>, %9, %cst_6 [1] : vector<384x32xf32> to vector<384xf32>
    %11 = vector.shape_cast %10 : vector<384xf32> to vector<384x1xf32>
    %cst_7 = arith.constant 3.200000e+01 : f32
    %12 = vector.broadcast %cst_7 : f32 to vector<384x1xf32>
    %13 = arith.divf %11, %12 : vector<384x1xf32>
    %cst_8 = arith.constant 9.99999974E-6 : f32
    %14 = vector.broadcast %cst_8 : f32 to vector<384x1xf32>
    %15 = arith.addf %13, %14 : vector<384x1xf32>
    %16 = math.rsqrt %15 : vector<384x1xf32>
    %17 = vector.broadcast %16 : vector<384x1xf32> to vector<384x32xf32>
    %18 = arith.mulf %8, %17 : vector<384x32xf32>
    %19 = vector.broadcast %1 : vector<1x32xf32> to vector<384x32xf32>
    %20 = arith.mulf %18, %19 : vector<384x32xf32>
    %21 = vector.broadcast %2 : vector<1x32xf32> to vector<384x32xf32>
    %22 = arith.addf %20, %21 : vector<384x32xf32>
    %23 = arith.truncf %22 : vector<384x32xf32> to vector<384x32xbf16>
    %c0_9 = arith.constant 0 : index
    %c0_10 = arith.constant 0 : index
    %24 = vector.load %arg4[%c0_9, %c0_10] : memref<384x32xbf16, #tpu.memory_space<vmem>>, vector<384x32xbf16>
    tpu.vector_store %arg4[%c0_9, %c0_10], %23 {strides = array<i32>} : memref<384x32xbf16, #tpu.memory_space<vmem>>, vector<384x32xbf16>,
    return
  }
  func.func @transform_0(%arg0: i32) -> (i32, i32) {
    %c0_i32 = arith.constant 0 : i32
    %c0_i32_0 = arith.constant 0 : i32
    return %arg0, %c0_i32 : i32, i32
  }
  func.func @transform_1(%arg0: i32) -> (i32, i32) {
    %c0_i32 = arith.constant 0 : i32
    %c0_i32_0 = arith.constant 0 : i32
    %c0_i32_1 = arith.constant 0 : i32
    return %c0_i32, %c0_i32_0 : i32, i32
  }
  func.func @transform_2(%arg0: i32) -> (i32, i32) {
    %c0_i32 = arith.constant 0 : i32
    %c0_i32_0 = arith.constant 0 : i32
    %c0_i32_1 = arith.constant 0 : i32
    return %c0_i32, %c0_i32_0 : i32, i32
  }
  func.func @transform_3(%arg0: i32) -> (i32, i32) {
    %c0_i32 = arith.constant 0 : i32
    %c0_i32_0 = arith.constant 0 : i32
    return %arg0, %c0_i32 : i32, i32
  }
}

module attributes {stable_mosaic.version = 11 : i64} {
  func.func @_attn_kernel(%arg0: i32, %arg1: i32, %arg2: memref<1x288x32xf32, #tpu.memory_space<vmem>>, %arg3: memref<1x10x32xf32, #tpu.memory_space<vmem>>, %arg4: memref<1x32xf32, #tpu.memory_space<vmem>>, %arg5: memref<1x32xf32, #tpu.memory_space<vmem>>, %arg6: memref<32x32xbf16, #tpu.memory_space<vmem>>, %arg7: memref<1x32xf32, #tpu.memory_space<vmem>>, %arg8: memref<1x32xf32, #tpu.memory_space<vmem>>, %arg9: memref<2x32x32xbf16, #tpu.memory_space<vmem>>, %arg10: memref<2x32x32xbf16, #tpu.memory_space<vmem>>, %arg11: memref<1x32xf32, #tpu.memory_space<vmem>>, %arg12: memref<1x288x32xf32, #tpu.memory_space<vmem>>) attributes {dimension_semantics = [#tpu.dimension_semantics<parallel>, #tpu.dimension_semantics<parallel>], iteration_bounds = array<i64: 2, 2>, scalar_prefetch = 0 : i64, scratch_operands = 0 : i64, tpu.core_type = #tpu.core_type<tc>, window_params = [{transform_indices = @transform_0, window_bounds = array<i64: 1, 288, 32>}, {transform_indices = @transform_1, window_bounds = array<i64: 1, 10, 32>}, {pipeline_mode = #tpu.pipeline_mode<synchronous>, transform_indices = @transform_2, window_bounds = array<i64: 1, 32>}, {pipeline_mode = #tpu.pipeline_mode<synchronous>, transform_indices = @transform_3, window_bounds = array<i64: 1, 32>}, {pipeline_mode = #tpu.pipeline_mode<synchronous>, transform_indices = @transform_4, window_bounds = array<i64: 32, 32>}, {pipeline_mode = #tpu.pipeline_mode<synchronous>, transform_indices = @transform_5, window_bounds = array<i64: 1, 32>}, {pipeline_mode = #tpu.pipeline_mode<synchronous>, transform_indices = @transform_6, window_bounds = array<i64: 1, 32>}, {pipeline_mode = #tpu.pipeline_mode<synchronous>, transform_indices = @transform_7, window_bounds = array<i64: 2, 32, 32>}, {pipeline_mode = #tpu.pipeline_mode<synchronous>, transform_indices = @transform_8, window_bounds = array<i64: 2, 32, 32>}, {pipeline_mode = #tpu.pipeline_mode<synchronous>, transform_indices = @transform_9, window_bounds = array<i64: 1, 32>}, {transform_indices = @transform_10, window_bounds = array<i64: 1, 288, 32>}]} {
    %c0 = arith.constant 0 : index
    %c0_0 = arith.constant 0 : index
    %c0_1 = arith.constant 0 : index
    %0 = vector.load %arg2[%c0, %c0_0, %c0_1] : memref<1x288x32xf32, #tpu.memory_space<vmem>>, vector<1x288x32xf32>
    %1 = vector.shape_cast %0 : vector<1x288x32xf32> to vector<288x32xf32>
    %c0_2 = arith.constant 0 : index
    %c0_3 = arith.constant 0 : index
    %2 = vector.load %arg4[%c0_2, %c0_3] : memref<1x32xf32, #tpu.memory_space<vmem>>, vector<1x32xf32>
    %c0_4 = arith.constant 0 : index
    %c0_5 = arith.constant 0 : index
    %3 = vector.load %arg5[%c0_4, %c0_5] : memref<1x32xf32, #tpu.memory_space<vmem>>, vector<1x32xf32>
    %cst = arith.constant dense<0.000000e+00> : vector<288xf32>
    %4 = vector.multi_reduction <add>, %1, %cst [1] : vector<288x32xf32> to vector<288xf32>
    %5 = vector.shape_cast %4 : vector<288xf32> to vector<288x1xf32>
    %cst_6 = arith.constant 3.200000e+01 : f32
    %6 = vector.broadcast %cst_6 : f32 to vector<288x1xf32>
    %7 = arith.divf %5, %6 : vector<288x1xf32>
    %8 = vector.broadcast %7 : vector<288x1xf32> to vector<288x32xf32>
    %9 = arith.subf %1, %8 : vector<288x32xf32>
    %10 = arith.mulf %9, %9 : vector<288x32xf32>
    %cst_7 = arith.constant dense<0.000000e+00> : vector<288xf32>
    %11 = vector.multi_reduction <add>, %10, %cst_7 [1] : vector<288x32xf32> to vector<288xf32>
    %12 = vector.shape_cast %11 : vector<288xf32> to vector<288x1xf32>
    %cst_8 = arith.constant 3.200000e+01 : f32
    %13 = vector.broadcast %cst_8 : f32 to vector<288x1xf32>
    %14 = arith.divf %12, %13 : vector<288x1xf32>
    %cst_9 = arith.constant 9.99999974E-6 : f32
    %15 = vector.broadcast %cst_9 : f32 to vector<288x1xf32>
    %16 = arith.addf %14, %15 : vector<288x1xf32>
    %17 = math.rsqrt %16 : vector<288x1xf32>
    %18 = vector.broadcast %17 : vector<288x1xf32> to vector<288x32xf32>
    %19 = arith.mulf %9, %18 : vector<288x32xf32>
    %20 = vector.broadcast %2 : vector<1x32xf32> to vector<288x32xf32>
    %21 = arith.mulf %19, %20 : vector<288x32xf32>
    %22 = vector.broadcast %3 : vector<1x32xf32> to vector<288x32xf32>
    %23 = arith.addf %21, %22 : vector<288x32xf32>
    %24 = arith.truncf %23 : vector<288x32xf32> to vector<288x32xbf16>
    %c0_10 = arith.constant 0 : index
    %c0_11 = arith.constant 0 : index
    %25 = vector.load %arg6[%c0_10, %c0_11] : memref<32x32xbf16, #tpu.memory_space<vmem>>, vector<32x32xbf16>
    %cst_12 = arith.constant dense<0.000000e+00> : vector<288x32xf32>
    %26 = tpu.matmul %24, %25, %cst_12 {dimension_numbers = #tpu.dot_dimension_numbers<[1], [0], [0], [1], [0, 0, 1, 1], [], []>} : vector<288x32xbf16>, vector<32x32xbf16>, vector<288x32xf32> -> vector<288x32xf32>
    %27 = arith.truncf %26 : vector<288x32xf32> to vector<288x32xbf16>
    %c0_13 = arith.constant 0 : index
    %c0_14 = arith.constant 0 : index
    %c0_15 = arith.constant 0 : index
    %28 = vector.load %arg3[%c0_13, %c0_14, %c0_15] : memref<1x10x32xf32, #tpu.memory_space<vmem>>, vector<1x10x32xf32>
    %29 = vector.shape_cast %28 : vector<1x10x32xf32> to vector<10x32xf32>
    %c0_16 = arith.constant 0 : index
    %c0_17 = arith.constant 0 : index
    %30 = vector.load %arg7[%c0_16, %c0_17] : memref<1x32xf32, #tpu.memory_space<vmem>>, vector<1x32xf32>
    %c0_18 = arith.constant 0 : index
    %c0_19 = arith.constant 0 : index
    %31 = vector.load %arg8[%c0_18, %c0_19] : memref<1x32xf32, #tpu.memory_space<vmem>>, vector<1x32xf32>
    %cst_20 = arith.constant dense<0.000000e+00> : vector<10xf32>
    %32 = vector.multi_reduction <add>, %29, %cst_20 [1] : vector<10x32xf32> to vector<10xf32>
    %33 = vector.shape_cast %32 : vector<10xf32> to vector<10x1xf32>
    %cst_21 = arith.constant 3.200000e+01 : f32
    %34 = vector.broadcast %cst_21 : f32 to vector<10x1xf32>
    %35 = arith.divf %33, %34 : vector<10x1xf32>
    %36 = vector.broadcast %35 : vector<10x1xf32> to vector<10x32xf32>
    %37 = arith.subf %29, %36 : vector<10x32xf32>
    %38 = arith.mulf %37, %37 : vector<10x32xf32>
    %cst_22 = arith.constant dense<0.000000e+00> : vector<10xf32>
    %39 = vector.multi_reduction <add>, %38, %cst_22 [1] : vector<10x32xf32> to vector<10xf32>
    %40 = vector.shape_cast %39 : vector<10xf32> to vector<10x1xf32>
    %cst_23 = arith.constant 3.200000e+01 : f32
    %41 = vector.broadcast %cst_23 : f32 to vector<10x1xf32>
    %42 = arith.divf %40, %41 : vector<10x1xf32>
    %cst_24 = arith.constant 9.99999974E-6 : f32
    %43 = vector.broadcast %cst_24 : f32 to vector<10x1xf32>
    %44 = arith.addf %42, %43 : vector<10x1xf32>
    %45 = math.rsqrt %44 : vector<10x1xf32>
    %46 = vector.broadcast %45 : vector<10x1xf32> to vector<10x32xf32>
    %47 = arith.mulf %37, %46 : vector<10x32xf32>
    %48 = vector.broadcast %30 : vector<1x32xf32> to vector<10x32xf32>
    %49 = arith.mulf %47, %48 : vector<10x32xf32>
    %50 = vector.broadcast %31 : vector<1x32xf32> to vector<10x32xf32>
    %51 = arith.addf %49, %50 : vector<10x32xf32>
    %52 = arith.truncf %51 : vector<10x32xf32> to vector<10x32xbf16>
    %cst_25 = arith.constant 0.000000e+00 : f32
    %53 = vector.broadcast %cst_25 : f32 to vector<288x32xf32>
    %c0_26 = arith.constant 0 : index
    %c0_27 = arith.constant 0 : index
    %c0_28 = arith.constant 0 : index
    %54 = vector.load %arg9[%c0_26, %c0_27, %c0_28] : memref<2x32x32xbf16, #tpu.memory_space<vmem>>, vector<1x32x32xbf16>
    %55 = vector.shape_cast %54 : vector<1x32x32xbf16> to vector<32x32xbf16>
    %cst_29 = arith.constant dense<0.000000e+00> : vector<10x32xf32>
    %56 = tpu.matmul %52, %55, %cst_29 {dimension_numbers = #tpu.dot_dimension_numbers<[1], [0], [0], [1], [0, 0, 1, 1], [], []>} : vector<10x32xbf16>, vector<32x32xbf16>, vector<10x32xf32> -> vector<10x32xf32>
    %c0_30 = arith.constant 0 : index
    %c0_31 = arith.constant 0 : index
    %c0_32 = arith.constant 0 : index
    %57 = vector.load %arg10[%c0_30, %c0_31, %c0_32] : memref<2x32x32xbf16, #tpu.memory_space<vmem>>, vector<1x32x32xbf16>
    %58 = vector.shape_cast %57 : vector<1x32x32xbf16> to vector<32x32xbf16>
    %cst_33 = arith.constant dense<0.000000e+00> : vector<10x32xf32>
    %59 = tpu.matmul %52, %58, %cst_33 {dimension_numbers = #tpu.dot_dimension_numbers<[1], [0], [0], [1], [0, 0, 1, 1], [], []>} : vector<10x32xbf16>, vector<32x32xbf16>, vector<10x32xf32> -> vector<10x32xf32>
    %60 = arith.truncf %56 : vector<10x32xf32> to vector<10x32xbf16>
    %cst_34 = arith.constant dense<0.000000e+00> : vector<288x10xf32>
    %61 = tpu.matmul %27, %60, %cst_34 {dimension_numbers = #tpu.dot_dimension_numbers<[1], [1], [0], [0], [0, 0, 1, 0], [], []>} : vector<288x32xbf16>, vector<10x32xbf16>, vector<288x10xf32> -> vector<288x10xf32>
    %cst_35 = arith.constant dense<0xFF800000> : vector<288xf32>
    %62 = vector.multi_reduction <maximumf>, %61, %cst_35 [1] : vector<288x10xf32> to vector<288xf32>
    %63 = vector.shape_cast %62 : vector<288xf32> to vector<288x1xf32>
    %64 = vector.broadcast %63 : vector<288x1xf32> to vector<288x10xf32>
    %65 = arith.subf %61, %64 : vector<288x10xf32>
    %66 = math.exp %65 : vector<288x10xf32>
    %cst_36 = arith.constant dense<0.000000e+00> : vector<288xf32>
    %67 = vector.multi_reduction <add>, %66, %cst_36 [1] : vector<288x10xf32> to vector<288xf32>
    %68 = vector.shape_cast %67 : vector<288xf32> to vector<288x1xf32>
    %69 = tpu.reciprocal %68 {approx = true} : vector<288x1xf32> -> vector<288x1xf32>
    %70 = vector.broadcast %69 : vector<288x1xf32> to vector<288x10xf32>
    %71 = arith.mulf %66, %70 : vector<288x10xf32>
    %72 = arith.truncf %71 : vector<288x10xf32> to vector<288x10xbf16>
    %73 = arith.truncf %59 : vector<10x32xf32> to vector<10x32xbf16>
    %cst_37 = arith.constant dense<0.000000e+00> : vector<288x32xf32>
    %74 = tpu.matmul %72, %73, %cst_37 {dimension_numbers = #tpu.dot_dimension_numbers<[1], [0], [0], [1], [0, 0, 1, 1], [], []>} : vector<288x10xbf16>, vector<10x32xbf16>, vector<288x32xf32> -> vector<288x32xf32>
    %75 = arith.addf %53, %74 : vector<288x32xf32>
    %c1 = arith.constant 1 : index
    %c0_38 = arith.constant 0 : index
    %c0_39 = arith.constant 0 : index
    %76 = vector.load %arg9[%c1, %c0_38, %c0_39] : memref<2x32x32xbf16, #tpu.memory_space<vmem>>, vector<1x32x32xbf16>
    %77 = vector.shape_cast %76 : vector<1x32x32xbf16> to vector<32x32xbf16>
    %cst_40 = arith.constant dense<0.000000e+00> : vector<10x32xf32>
    %78 = tpu.matmul %52, %77, %cst_40 {dimension_numbers = #tpu.dot_dimension_numbers<[1], [0], [0], [1], [0, 0, 1, 1], [], []>} : vector<10x32xbf16>, vector<32x32xbf16>, vector<10x32xf32> -> vector<10x32xf32>
    %c1_41 = arith.constant 1 : index
    %c0_42 = arith.constant 0 : index
    %c0_43 = arith.constant 0 : index
    %79 = vector.load %arg10[%c1_41, %c0_42, %c0_43] : memref<2x32x32xbf16, #tpu.memory_space<vmem>>, vector<1x32x32xbf16>
    %80 = vector.shape_cast %79 : vector<1x32x32xbf16> to vector<32x32xbf16>
    %cst_44 = arith.constant dense<0.000000e+00> : vector<10x32xf32>
    %81 = tpu.matmul %52, %80, %cst_44 {dimension_numbers = #tpu.dot_dimension_numbers<[1], [0], [0], [1], [0, 0, 1, 1], [], []>} : vector<10x32xbf16>, vector<32x32xbf16>, vector<10x32xf32> -> vector<10x32xf32>
    %82 = arith.truncf %78 : vector<10x32xf32> to vector<10x32xbf16>
    %cst_45 = arith.constant dense<0.000000e+00> : vector<288x10xf32>
    %83 = tpu.matmul %27, %82, %cst_45 {dimension_numbers = #tpu.dot_dimension_numbers<[1], [1], [0], [0], [0, 0, 1, 0], [], []>} : vector<288x32xbf16>, vector<10x32xbf16>, vector<288x10xf32> -> vector<288x10xf32>
    %cst_46 = arith.constant dense<0xFF800000> : vector<288xf32>
    %84 = vector.multi_reduction <maximumf>, %83, %cst_46 [1] : vector<288x10xf32> to vector<288xf32>
    %85 = vector.shape_cast %84 : vector<288xf32> to vector<288x1xf32>
    %86 = vector.broadcast %85 : vector<288x1xf32> to vector<288x10xf32>
    %87 = arith.subf %83, %86 : vector<288x10xf32>
    %88 = math.exp %87 : vector<288x10xf32>
    %cst_47 = arith.constant dense<0.000000e+00> : vector<288xf32>
    %89 = vector.multi_reduction <add>, %88, %cst_47 [1] : vector<288x10xf32> to vector<288xf32>
    %90 = vector.shape_cast %89 : vector<288xf32> to vector<288x1xf32>
    %91 = tpu.reciprocal %90 {approx = true} : vector<288x1xf32> -> vector<288x1xf32>
    %92 = vector.broadcast %91 : vector<288x1xf32> to vector<288x10xf32>
    %93 = arith.mulf %88, %92 : vector<288x10xf32>
    %94 = arith.truncf %93 : vector<288x10xf32> to vector<288x10xbf16>
    %95 = arith.truncf %81 : vector<10x32xf32> to vector<10x32xbf16>
    %cst_48 = arith.constant dense<0.000000e+00> : vector<288x32xf32>
    %96 = tpu.matmul %94, %95, %cst_48 {dimension_numbers = #tpu.dot_dimension_numbers<[1], [0], [0], [1], [0, 0, 1, 1], [], []>} : vector<288x10xbf16>, vector<10x32xbf16>, vector<288x32xf32> -> vector<288x32xf32>
    %97 = arith.addf %75, %96 : vector<288x32xf32>
    %c0_49 = arith.constant 0 : index
    %c0_50 = arith.constant 0 : index
    %98 = vector.load %arg11[%c0_49, %c0_50] : memref<1x32xf32, #tpu.memory_space<vmem>>, vector<1x32xf32>
    %99 = vector.broadcast %98 : vector<1x32xf32> to vector<288x32xf32>
    %100 = arith.addf %97, %99 : vector<288x32xf32>
    %101 = arith.addf %100, %1 : vector<288x32xf32>
    %c0_51 = arith.constant 0 : index
    %c0_52 = arith.constant 0 : index
    %c0_53 = arith.constant 0 : index
    %102 = vector.load %arg12[%c0_51, %c0_52, %c0_53] : memref<1x288x32xf32, #tpu.memory_space<vmem>>, vector<1x288x32xf32>
    %103 = vector.shape_cast %102 : vector<1x288x32xf32> to vector<288x32xf32>
    %104 = vector.shape_cast %101 : vector<288x32xf32> to vector<1x288x32xf32>
    tpu.vector_store %arg12[%c0_51, %c0_52, %c0_53], %104 {strides = array<i32>} : memref<1x288x32xf32, #tpu.memory_space<vmem>>, vector<1x288x32xf32>,
    return
  }
  func.func @transform_0(%arg0: i32, %arg1: i32) -> (i32, i32, i32) {
    %c0_i32 = arith.constant 0 : i32
    %c0_i32_0 = arith.constant 0 : i32
    return %arg0, %arg1, %c0_i32 : i32, i32, i32
  }
  func.func @transform_1(%arg0: i32, %arg1: i32) -> (i32, i32, i32) {
    %c0_i32 = arith.constant 0 : i32
    %c0_i32_0 = arith.constant 0 : i32
    %c0_i32_1 = arith.constant 0 : i32
    return %arg0, %c0_i32, %c0_i32_0 : i32, i32, i32
  }
  func.func @transform_2(%arg0: i32, %arg1: i32) -> (i32, i32) {
    %c0_i32 = arith.constant 0 : i32
    %c0_i32_0 = arith.constant 0 : i32
    %c0_i32_1 = arith.constant 0 : i32
    return %c0_i32, %c0_i32_0 : i32, i32
  }
  func.func @transform_3(%arg0: i32, %arg1: i32) -> (i32, i32) {
    %c0_i32 = arith.constant 0 : i32
    %c0_i32_0 = arith.constant 0 : i32
    %c0_i32_1 = arith.constant 0 : i32
    return %c0_i32, %c0_i32_0 : i32, i32
  }
  func.func @transform_4(%arg0: i32, %arg1: i32) -> (i32, i32) {
    %c0_i32 = arith.constant 0 : i32
    %c0_i32_0 = arith.constant 0 : i32
    %c0_i32_1 = arith.constant 0 : i32
    return %c0_i32, %c0_i32_0 : i32, i32
  }
  func.func @transform_5(%arg0: i32, %arg1: i32) -> (i32, i32) {
    %c0_i32 = arith.constant 0 : i32
    %c0_i32_0 = arith.constant 0 : i32
    %c0_i32_1 = arith.constant 0 : i32
    return %c0_i32, %c0_i32_0 : i32, i32
  }
  func.func @transform_6(%arg0: i32, %arg1: i32) -> (i32, i32) {
    %c0_i32 = arith.constant 0 : i32
    %c0_i32_0 = arith.constant 0 : i32
    %c0_i32_1 = arith.constant 0 : i32
    return %c0_i32, %c0_i32_0 : i32, i32
  }
  func.func @transform_7(%arg0: i32, %arg1: i32) -> (i32, i32, i32) {
    %c0_i32 = arith.constant 0 : i32
    %c0_i32_0 = arith.constant 0 : i32
    %c0_i32_1 = arith.constant 0 : i32
    %c0_i32_2 = arith.constant 0 : i32
    return %c0_i32, %c0_i32_0, %c0_i32_1 : i32, i32, i32
  }
  func.func @transform_8(%arg0: i32, %arg1: i32) -> (i32, i32, i32) {
    %c0_i32 = arith.constant 0 : i32
    %c0_i32_0 = arith.constant 0 : i32
    %c0_i32_1 = arith.constant 0 : i32
    %c0_i32_2 = arith.constant 0 : i32
    return %c0_i32, %c0_i32_0, %c0_i32_1 : i32, i32, i32
  }
  func.func @transform_9(%arg0: i32, %arg1: i32) -> (i32, i32) {
    %c0_i32 = arith.constant 0 : i32
    %c0_i32_0 = arith.constant 0 : i32
    %c0_i32_1 = arith.constant 0 : i32
    return %c0_i32, %c0_i32_0 : i32, i32
  }
  func.func @transform_10(%arg0: i32, %arg1: i32) -> (i32, i32, i32) {
    %c0_i32 = arith.constant 0 : i32
    %c0_i32_0 = arith.constant 0 : i32
    return %arg0, %arg1, %c0_i32 : i32, i32, i32
  }
}

module attributes {stable_mosaic.version = 11 : i64} {
  func.func @_irb_kernel(%arg0: i32, %arg1: memref<1x576x32xf32, #tpu.memory_space<vmem>>, %arg2: memref<1x32xf32, #tpu.memory_space<vmem>>, %arg3: memref<1x32xf32, #tpu.memory_space<vmem>>, %arg4: memref<32x128xbf16, #tpu.memory_space<vmem>>, %arg5: memref<1x128xf32, #tpu.memory_space<vmem>>, %arg6: memref<9x128xf32, #tpu.memory_space<vmem>>, %arg7: memref<1x128xf32, #tpu.memory_space<vmem>>, %arg8: memref<128x32xbf16, #tpu.memory_space<vmem>>, %arg9: memref<1x32xf32, #tpu.memory_space<vmem>>, %arg10: memref<1x576x32xf32, #tpu.memory_space<vmem>>, %arg11: memref<26x33x128xf32, #tpu.memory_space<vmem>>) attributes {dimension_semantics = [#tpu.dimension_semantics<parallel>], iteration_bounds = array<i64: 2>, scalar_prefetch = 0 : i64, scratch_operands = 1 : i64, tpu.core_type = #tpu.core_type<tc>, window_params = [{transform_indices = @transform_0, window_bounds = array<i64: 1, 576, 32>}, {pipeline_mode = #tpu.pipeline_mode<synchronous>, transform_indices = @transform_1, window_bounds = array<i64: 1, 32>}, {pipeline_mode = #tpu.pipeline_mode<synchronous>, transform_indices = @transform_2, window_bounds = array<i64: 1, 32>}, {pipeline_mode = #tpu.pipeline_mode<synchronous>, transform_indices = @transform_3, window_bounds = array<i64: 32, 128>}, {pipeline_mode = #tpu.pipeline_mode<synchronous>, transform_indices = @transform_4, window_bounds = array<i64: 1, 128>}, {pipeline_mode = #tpu.pipeline_mode<synchronous>, transform_indices = @transform_5, window_bounds = array<i64: 9, 128>}, {pipeline_mode = #tpu.pipeline_mode<synchronous>, transform_indices = @transform_6, window_bounds = array<i64: 1, 128>}, {pipeline_mode = #tpu.pipeline_mode<synchronous>, transform_indices = @transform_7, window_bounds = array<i64: 128, 32>}, {pipeline_mode = #tpu.pipeline_mode<synchronous>, transform_indices = @transform_8, window_bounds = array<i64: 1, 32>}, {transform_indices = @transform_9, window_bounds = array<i64: 1, 576, 32>}]} {
    %c0 = arith.constant 0 : index
    %c0_0 = arith.constant 0 : index
    %c0_1 = arith.constant 0 : index
    %0 = vector.load %arg1[%c0, %c0_0, %c0_1] : memref<1x576x32xf32, #tpu.memory_space<vmem>>, vector<1x576x32xf32>
    %1 = vector.shape_cast %0 : vector<1x576x32xf32> to vector<576x32xf32>
    %c0_2 = arith.constant 0 : index
    %c0_3 = arith.constant 0 : index
    %2 = vector.load %arg2[%c0_2, %c0_3] : memref<1x32xf32, #tpu.memory_space<vmem>>, vector<1x32xf32>
    %c0_4 = arith.constant 0 : index
    %c0_5 = arith.constant 0 : index
    %3 = vector.load %arg3[%c0_4, %c0_5] : memref<1x32xf32, #tpu.memory_space<vmem>>, vector<1x32xf32>
    %cst = arith.constant dense<0.000000e+00> : vector<576xf32>
    %4 = vector.multi_reduction <add>, %1, %cst [1] : vector<576x32xf32> to vector<576xf32>
    %5 = vector.shape_cast %4 : vector<576xf32> to vector<576x1xf32>
    %cst_6 = arith.constant 3.200000e+01 : f32
    %6 = vector.broadcast %cst_6 : f32 to vector<576x1xf32>
    %7 = arith.divf %5, %6 : vector<576x1xf32>
    %8 = vector.broadcast %7 : vector<576x1xf32> to vector<576x32xf32>
    %9 = arith.subf %1, %8 : vector<576x32xf32>
    %10 = arith.mulf %9, %9 : vector<576x32xf32>
    %cst_7 = arith.constant dense<0.000000e+00> : vector<576xf32>
    %11 = vector.multi_reduction <add>, %10, %cst_7 [1] : vector<576x32xf32> to vector<576xf32>
    %12 = vector.shape_cast %11 : vector<576xf32> to vector<576x1xf32>
    %cst_8 = arith.constant 3.200000e+01 : f32
    %13 = vector.broadcast %cst_8 : f32 to vector<576x1xf32>
    %14 = arith.divf %12, %13 : vector<576x1xf32>
    %cst_9 = arith.constant 9.99999974E-6 : f32
    %15 = vector.broadcast %cst_9 : f32 to vector<576x1xf32>
    %16 = arith.addf %14, %15 : vector<576x1xf32>
    %17 = math.rsqrt %16 : vector<576x1xf32>
    %18 = vector.broadcast %17 : vector<576x1xf32> to vector<576x32xf32>
    %19 = arith.mulf %9, %18 : vector<576x32xf32>
    %20 = vector.broadcast %2 : vector<1x32xf32> to vector<576x32xf32>
    %21 = arith.mulf %19, %20 : vector<576x32xf32>
    %22 = vector.broadcast %3 : vector<1x32xf32> to vector<576x32xf32>
    %23 = arith.addf %21, %22 : vector<576x32xf32>
    %24 = arith.truncf %23 : vector<576x32xf32> to vector<576x32xbf16>
    %c0_10 = arith.constant 0 : index
    %c0_11 = arith.constant 0 : index
    %25 = vector.load %arg4[%c0_10, %c0_11] : memref<32x128xbf16, #tpu.memory_space<vmem>>, vector<32x128xbf16>
    %cst_12 = arith.constant dense<0.000000e+00> : vector<576x128xf32>
    %26 = tpu.matmul %24, %25, %cst_12 {dimension_numbers = #tpu.dot_dimension_numbers<[1], [0], [0], [1], [0, 0, 1, 1], [], []>} : vector<576x32xbf16>, vector<32x128xbf16>, vector<576x128xf32> -> vector<576x128xf32>
    %c0_13 = arith.constant 0 : index
    %c0_14 = arith.constant 0 : index
    %27 = vector.load %arg5[%c0_13, %c0_14] : memref<1x128xf32, #tpu.memory_space<vmem>>, vector<1x128xf32>
    %28 = vector.broadcast %27 : vector<1x128xf32> to vector<576x128xf32>
    %29 = arith.addf %26, %28 : vector<576x128xf32>
    %cst_15 = arith.constant 3.000000e+00 : f32
    %30 = vector.broadcast %cst_15 : f32 to vector<576x128xf32>
    %31 = arith.addf %29, %30 : vector<576x128xf32>
    %cst_16 = arith.constant 0.000000e+00 : f32
    %cst_17 = arith.constant 6.000000e+00 : f32
    %32 = vector.broadcast %cst_16 : f32 to vector<576x128xf32>
    %33 = arith.maximumf %32, %31 : vector<576x128xf32>
    %34 = vector.broadcast %cst_17 : f32 to vector<576x128xf32>
    %35 = arith.minimumf %34, %33 : vector<576x128xf32>
    %36 = arith.mulf %29, %35 : vector<576x128xf32>
    %cst_18 = arith.constant 0.166666672 : f32
    %37 = vector.broadcast %cst_18 : f32 to vector<576x128xf32>
    %38 = arith.mulf %36, %37 : vector<576x128xf32>
    %cst_19 = arith.constant 0.000000e+00 : f32
    %39 = vector.broadcast %cst_19 : f32 to vector<26x33x128xf32>
    %c0_20 = arith.constant 0 : index
    %c0_21 = arith.constant 0 : index
    %c0_22 = arith.constant 0 : index
    %40 = vector.load %arg11[%c0_20, %c0_21, %c0_22] : memref<26x33x128xf32, #tpu.memory_space<vmem>>, vector<26x33x128xf32>
    tpu.vector_store %arg11[%c0_20, %c0_21, %c0_22], %39 {strides = array<i32>} : memref<26x33x128xf32, #tpu.memory_space<vmem>>, vector<26x33x128xf32>,
    %41 = vector.shape_cast %38 : vector<576x128xf32> to vector<24x24x128xf32>
    %c1 = arith.constant 1 : index
    %c8 = arith.constant 8 : index
    %c0_23 = arith.constant 0 : index
    %42 = vector.load %arg11[%c1, %c8, %c0_23] : memref<26x33x128xf32, #tpu.memory_space<vmem>>, vector<24x24x128xf32>
    tpu.vector_store %arg11[%c1, %c8, %c0_23], %41 {strides = array<i32>} : memref<26x33x128xf32, #tpu.memory_space<vmem>>, vector<24x24x128xf32>,
    %c0_24 = arith.constant 0 : index
    %c7 = arith.constant 7 : index
    %c0_25 = arith.constant 0 : index
    %43 = vector.load %arg11[%c0_24, %c7, %c0_25] : memref<26x33x128xf32, #tpu.memory_space<vmem>>, vector<26x24x128xf32>
    %c0_26 = arith.constant 0 : index
    %c8_27 = arith.constant 8 : index
    %c0_28 = arith.constant 0 : index
    %44 = vector.load %arg11[%c0_26, %c8_27, %c0_28] : memref<26x33x128xf32, #tpu.memory_space<vmem>>, vector<26x24x128xf32>
    %c0_29 = arith.constant 0 : index
    %c9 = arith.constant 9 : index
    %c0_30 = arith.constant 0 : index
    %45 = vector.load %arg11[%c0_29, %c9, %c0_30] : memref<26x33x128xf32, #tpu.memory_space<vmem>>, vector<26x24x128xf32>
    %c0_31 = arith.constant 0 : index
    %c0_32 = arith.constant 0 : index
    %46 = vector.load %arg6[%c0_31, %c0_32] : memref<9x128xf32, #tpu.memory_space<vmem>>, vector<9x128xf32>
    %cst_33 = arith.constant 0.000000e+00 : f32
    %47 = vector.broadcast %cst_33 : f32 to vector<24x24x128xf32>
    %48 = vector.extract_strided_slice %43 {offsets = [0, 0, 0], sizes = [24, 24, 128], strides = [1, 1, 1]} : vector<26x24x128xf32> to vector<24x24x128xf32>
    %49 = vector.extract_strided_slice %46 {offsets = [0, 0], sizes = [1, 128], strides = [1, 1]} : vector<9x128xf32> to vector<1x128xf32>
    %50 = vector.shape_cast %49 : vector<1x128xf32> to vector<1x1x128xf32>
    %51 = vector.broadcast %50 : vector<1x1x128xf32> to vector<24x24x128xf32>
    %52 = arith.mulf %48, %51 : vector<24x24x128xf32>
    %53 = arith.addf %47, %52 : vector<24x24x128xf32>
    %54 = vector.extract_strided_slice %44 {offsets = [0, 0, 0], sizes = [24, 24, 128], strides = [1, 1, 1]} : vector<26x24x128xf32> to vector<24x24x128xf32>
    %55 = vector.extract_strided_slice %46 {offsets = [1, 0], sizes = [1, 128], strides = [1, 1]} : vector<9x128xf32> to vector<1x128xf32>
    %56 = vector.shape_cast %55 : vector<1x128xf32> to vector<1x1x128xf32>
    %57 = vector.broadcast %56 : vector<1x1x128xf32> to vector<24x24x128xf32>
    %58 = arith.mulf %54, %57 : vector<24x24x128xf32>
    %59 = arith.addf %53, %58 : vector<24x24x128xf32>
    %60 = vector.extract_strided_slice %45 {offsets = [0, 0, 0], sizes = [24, 24, 128], strides = [1, 1, 1]} : vector<26x24x128xf32> to vector<24x24x128xf32>
    %61 = vector.extract_strided_slice %46 {offsets = [2, 0], sizes = [1, 128], strides = [1, 1]} : vector<9x128xf32> to vector<1x128xf32>
    %62 = vector.shape_cast %61 : vector<1x128xf32> to vector<1x1x128xf32>
    %63 = vector.broadcast %62 : vector<1x1x128xf32> to vector<24x24x128xf32>
    %64 = arith.mulf %60, %63 : vector<24x24x128xf32>
    %65 = arith.addf %59, %64 : vector<24x24x128xf32>
    %66 = vector.extract_strided_slice %43 {offsets = [1, 0, 0], sizes = [24, 24, 128], strides = [1, 1, 1]} : vector<26x24x128xf32> to vector<24x24x128xf32>
    %67 = vector.extract_strided_slice %46 {offsets = [3, 0], sizes = [1, 128], strides = [1, 1]} : vector<9x128xf32> to vector<1x128xf32>
    %68 = vector.shape_cast %67 : vector<1x128xf32> to vector<1x1x128xf32>
    %69 = vector.broadcast %68 : vector<1x1x128xf32> to vector<24x24x128xf32>
    %70 = arith.mulf %66, %69 : vector<24x24x128xf32>
    %71 = arith.addf %65, %70 : vector<24x24x128xf32>
    %72 = vector.extract_strided_slice %44 {offsets = [1, 0, 0], sizes = [24, 24, 128], strides = [1, 1, 1]} : vector<26x24x128xf32> to vector<24x24x128xf32>
    %73 = vector.extract_strided_slice %46 {offsets = [4, 0], sizes = [1, 128], strides = [1, 1]} : vector<9x128xf32> to vector<1x128xf32>
    %74 = vector.shape_cast %73 : vector<1x128xf32> to vector<1x1x128xf32>
    %75 = vector.broadcast %74 : vector<1x1x128xf32> to vector<24x24x128xf32>
    %76 = arith.mulf %72, %75 : vector<24x24x128xf32>
    %77 = arith.addf %71, %76 : vector<24x24x128xf32>
    %78 = vector.extract_strided_slice %45 {offsets = [1, 0, 0], sizes = [24, 24, 128], strides = [1, 1, 1]} : vector<26x24x128xf32> to vector<24x24x128xf32>
    %79 = vector.extract_strided_slice %46 {offsets = [5, 0], sizes = [1, 128], strides = [1, 1]} : vector<9x128xf32> to vector<1x128xf32>
    %80 = vector.shape_cast %79 : vector<1x128xf32> to vector<1x1x128xf32>
    %81 = vector.broadcast %80 : vector<1x1x128xf32> to vector<24x24x128xf32>
    %82 = arith.mulf %78, %81 : vector<24x24x128xf32>
    %83 = arith.addf %77, %82 : vector<24x24x128xf32>
    %84 = vector.extract_strided_slice %43 {offsets = [2, 0, 0], sizes = [24, 24, 128], strides = [1, 1, 1]} : vector<26x24x128xf32> to vector<24x24x128xf32>
    %85 = vector.extract_strided_slice %46 {offsets = [6, 0], sizes = [1, 128], strides = [1, 1]} : vector<9x128xf32> to vector<1x128xf32>
    %86 = vector.shape_cast %85 : vector<1x128xf32> to vector<1x1x128xf32>
    %87 = vector.broadcast %86 : vector<1x1x128xf32> to vector<24x24x128xf32>
    %88 = arith.mulf %84, %87 : vector<24x24x128xf32>
    %89 = arith.addf %83, %88 : vector<24x24x128xf32>
    %90 = vector.extract_strided_slice %44 {offsets = [2, 0, 0], sizes = [24, 24, 128], strides = [1, 1, 1]} : vector<26x24x128xf32> to vector<24x24x128xf32>
    %91 = vector.extract_strided_slice %46 {offsets = [7, 0], sizes = [1, 128], strides = [1, 1]} : vector<9x128xf32> to vector<1x128xf32>
    %92 = vector.shape_cast %91 : vector<1x128xf32> to vector<1x1x128xf32>
    %93 = vector.broadcast %92 : vector<1x1x128xf32> to vector<24x24x128xf32>
    %94 = arith.mulf %90, %93 : vector<24x24x128xf32>
    %95 = arith.addf %89, %94 : vector<24x24x128xf32>
    %96 = vector.extract_strided_slice %45 {offsets = [2, 0, 0], sizes = [24, 24, 128], strides = [1, 1, 1]} : vector<26x24x128xf32> to vector<24x24x128xf32>
    %97 = vector.extract_strided_slice %46 {offsets = [8, 0], sizes = [1, 128], strides = [1, 1]} : vector<9x128xf32> to vector<1x128xf32>
    %98 = vector.shape_cast %97 : vector<1x128xf32> to vector<1x1x128xf32>
    %99 = vector.broadcast %98 : vector<1x1x128xf32> to vector<24x24x128xf32>
    %100 = arith.mulf %96, %99 : vector<24x24x128xf32>
    %101 = arith.addf %95, %100 : vector<24x24x128xf32>
    %c0_34 = arith.constant 0 : index
    %c0_35 = arith.constant 0 : index
    %102 = vector.load %arg7[%c0_34, %c0_35] : memref<1x128xf32, #tpu.memory_space<vmem>>, vector<1x128xf32>
    %103 = vector.shape_cast %102 : vector<1x128xf32> to vector<1x1x128xf32>
    %104 = vector.broadcast %103 : vector<1x1x128xf32> to vector<24x24x128xf32>
    %105 = arith.addf %101, %104 : vector<24x24x128xf32>
    %cst_36 = arith.constant 3.000000e+00 : f32
    %106 = vector.broadcast %cst_36 : f32 to vector<24x24x128xf32>
    %107 = arith.addf %105, %106 : vector<24x24x128xf32>
    %cst_37 = arith.constant 0.000000e+00 : f32
    %cst_38 = arith.constant 6.000000e+00 : f32
    %108 = vector.broadcast %cst_37 : f32 to vector<24x24x128xf32>
    %109 = arith.maximumf %108, %107 : vector<24x24x128xf32>
    %110 = vector.broadcast %cst_38 : f32 to vector<24x24x128xf32>
    %111 = arith.minimumf %110, %109 : vector<24x24x128xf32>
    %112 = arith.mulf %105, %111 : vector<24x24x128xf32>
    %cst_39 = arith.constant 0.166666672 : f32
    %113 = vector.broadcast %cst_39 : f32 to vector<24x24x128xf32>
    %114 = arith.mulf %112, %113 : vector<24x24x128xf32>
    %115 = vector.shape_cast %114 : vector<24x24x128xf32> to vector<576x128xf32>
    %116 = arith.truncf %115 : vector<576x128xf32> to vector<576x128xbf16>
    %c0_40 = arith.constant 0 : index
    %c0_41 = arith.constant 0 : index
    %117 = vector.load %arg8[%c0_40, %c0_41] : memref<128x32xbf16, #tpu.memory_space<vmem>>, vector<128x32xbf16>
    %cst_42 = arith.constant dense<0.000000e+00> : vector<576x32xf32>
    %118 = tpu.matmul %116, %117, %cst_42 {dimension_numbers = #tpu.dot_dimension_numbers<[1], [0], [0], [1], [0, 0, 1, 1], [], []>} : vector<576x128xbf16>, vector<128x32xbf16>, vector<576x32xf32> -> vector<576x32xf32>
    %c0_43 = arith.constant 0 : index
    %c0_44 = arith.constant 0 : index
    %119 = vector.load %arg9[%c0_43, %c0_44] : memref<1x32xf32, #tpu.memory_space<vmem>>, vector<1x32xf32>
    %120 = vector.broadcast %119 : vector<1x32xf32> to vector<576x32xf32>
    %121 = arith.addf %118, %120 : vector<576x32xf32>
    %122 = arith.addf %121, %1 : vector<576x32xf32>
    %c0_45 = arith.constant 0 : index
    %c0_46 = arith.constant 0 : index
    %c0_47 = arith.constant 0 : index
    %123 = vector.load %arg10[%c0_45, %c0_46, %c0_47] : memref<1x576x32xf32, #tpu.memory_space<vmem>>, vector<1x576x32xf32>
    %124 = vector.shape_cast %123 : vector<1x576x32xf32> to vector<576x32xf32>
    %125 = vector.shape_cast %122 : vector<576x32xf32> to vector<1x576x32xf32>
    tpu.vector_store %arg10[%c0_45, %c0_46, %c0_47], %125 {strides = array<i32>} : memref<1x576x32xf32, #tpu.memory_space<vmem>>, vector<1x576x32xf32>,
    return
  }
  func.func @transform_0(%arg0: i32) -> (i32, i32, i32) {
    %c0_i32 = arith.constant 0 : i32
    %c0_i32_0 = arith.constant 0 : i32
    %c0_i32_1 = arith.constant 0 : i32
    return %arg0, %c0_i32, %c0_i32_0 : i32, i32, i32
  }
  func.func @transform_1(%arg0: i32) -> (i32, i32) {
    %c0_i32 = arith.constant 0 : i32
    %c0_i32_0 = arith.constant 0 : i32
    %c0_i32_1 = arith.constant 0 : i32
    return %c0_i32, %c0_i32_0 : i32, i32
  }
  func.func @transform_2(%arg0: i32) -> (i32, i32) {
    %c0_i32 = arith.constant 0 : i32
    %c0_i32_0 = arith.constant 0 : i32
    %c0_i32_1 = arith.constant 0 : i32
    return %c0_i32, %c0_i32_0 : i32, i32
  }
  func.func @transform_3(%arg0: i32) -> (i32, i32) {
    %c0_i32 = arith.constant 0 : i32
    %c0_i32_0 = arith.constant 0 : i32
    %c0_i32_1 = arith.constant 0 : i32
    return %c0_i32, %c0_i32_0 : i32, i32
  }
  func.func @transform_4(%arg0: i32) -> (i32, i32) {
    %c0_i32 = arith.constant 0 : i32
    %c0_i32_0 = arith.constant 0 : i32
    %c0_i32_1 = arith.constant 0 : i32
    return %c0_i32, %c0_i32_0 : i32, i32
  }
  func.func @transform_5(%arg0: i32) -> (i32, i32) {
    %c0_i32 = arith.constant 0 : i32
    %c0_i32_0 = arith.constant 0 : i32
    %c0_i32_1 = arith.constant 0 : i32
    return %c0_i32, %c0_i32_0 : i32, i32
  }
  func.func @transform_6(%arg0: i32) -> (i32, i32) {
    %c0_i32 = arith.constant 0 : i32
    %c0_i32_0 = arith.constant 0 : i32
    %c0_i32_1 = arith.constant 0 : i32
    return %c0_i32, %c0_i32_0 : i32, i32
  }
  func.func @transform_7(%arg0: i32) -> (i32, i32) {
    %c0_i32 = arith.constant 0 : i32
    %c0_i32_0 = arith.constant 0 : i32
    %c0_i32_1 = arith.constant 0 : i32
    return %c0_i32, %c0_i32_0 : i32, i32
  }
  func.func @transform_8(%arg0: i32) -> (i32, i32) {
    %c0_i32 = arith.constant 0 : i32
    %c0_i32_0 = arith.constant 0 : i32
    %c0_i32_1 = arith.constant 0 : i32
    return %c0_i32, %c0_i32_0 : i32, i32
  }
  func.func @transform_9(%arg0: i32) -> (i32, i32, i32) {
    %c0_i32 = arith.constant 0 : i32
    %c0_i32_0 = arith.constant 0 : i32
    %c0_i32_1 = arith.constant 0 : i32
    return %arg0, %c0_i32, %c0_i32_0 : i32, i32, i32
  }
}

</mosaic_0001>

<llo_original>
// kernel: _lambda_.3
$region0: #{_lambda_.3}
  #allocation0 [shape = 'u32[]', space=smem, size = 0x4, offset = 0x4, fixed_abs, tag = 'smem constant byte address 0x4 - core index']
  #allocation1 [shape = 'u32[72,128]{1,0:T(1,128)}', space=vmem, size = 0x9000, scoped, tag = 'internal scratch']
  %s0 = inlined_call_operand.vmem [shape: f32[1152,32], index: 0, kind: input, shape index: {}]
  %s1 = inlined_call_operand.vmem [shape: f32[1,32], index: 1, kind: input, shape index: {}]
  %s2 = inlined_call_operand.vmem [shape: f32[1,32], index: 2, kind: input, shape index: {}]
  %s3 = inlined_call_operand.vmem [shape: bf16[1152,32], index: 3, kind: output, shape index: {}]
  %s4 = sld [smem:[#allocation0]]
  $region45: #{_lambda_.3} parent=0
    _
  %s6 = ssub.s32 1, %s4
  %s7 = scalar_select 0, %s6, %s4
  loop: start=0, step=1, limit=5
  $region2: #{_lambda_.3} parent=0 // loop_pre_header
    _
  $region3: #{_lambda_.3} parent=0 // loop_header
    %s9 = sphi 0, %s13
    %p10 = scmp.ge.s32.totalorder %s9, 5
    %s19 = sphi 0, %s21
    %s22 = sphi 0, %s19
    %s23 = sphi 0, %s22
    %s39 = sphi 0, %s23
    %s43 = sphi 0, %s43
    %s45 = sphi 0, %s43
    %s46 = sphi 0, %s45
    %s60 = sphi 0, %s46
    %s64 = sphi 0, %s64
    %s66 = sphi 0, %s64
    %s67 = sphi 0, %s66
    %s81 = sphi 0, %s67
    %s87 = sphi 0, %s89
    %s90 = sphi 0, %s87
    %s91 = sphi 0, %s90
    %s107 = sphi 0, %s91
  $region4: #{_lambda_.3} parent=0 // loop_header_branch
    %12 = sbr.rel (%p10) target = $region8
  $region5: #{_lambda_.3} parent=0 // loop_body
    %s14 = ssub.s32 %s9, 1
    %s15 = ssub.s32 %s9, 2
    %s16 = sadd.s32 %s9, 1
    %s17 = ssub.s32 %s9, %s16
    %p18 = scmp.eq.s32.totalorder %s17, 0
    %s20 = sadd.s32 %s19, 1
    %s21 = scalar_select %p18, %s19, %s20
    %p24 = pneg %p18
    %p25 = scmp.eq.s32.totalorder %s9, 2
    %p26 = por %p24, %p25
    %p27 = scmp.ne.s32.totalorder %s19, %s22
    %p28 = scmp.eq.s32.totalorder %s9, 0
    %p29 = por %p27, %p28
    %p30 = scmp.ne.s32.totalorder %s19, %s22
    %p31 = scmp.eq.s32.totalorder %s14, 2
    %p32 = por %p30, %p31
    %p33 = scmp.ne.s32.totalorder %s22, %s23
    %p34 = scmp.eq.s32.totalorder %s14, 0
    %p35 = por %p33, %p34
    %p36 = scmp.ne.s32.totalorder %s22, %s23
    %p37 = scmp.eq.s32.totalorder %s15, 2
    %p38 = por %p36, %p37
    %p40 = scmp.ne.s32.totalorder %s23, %s39
    %p41 = scmp.eq.s32.totalorder %s15, 0
    %p42 = por %p40, %p41
    %s44 = sadd.s32 %s43, 1
    %p47 = scmp.eq.s32.totalorder %s9, 2
    %p48 = scmp.ne.s32.totalorder %s43, %s45
    %p49 = scmp.eq.s32.totalorder %s9, 0
    %p50 = por %p48, %p49
    %p51 = scmp.ne.s32.totalorder %s43, %s45
    %p52 = scmp.eq.s32.totalorder %s14, 2
    %p53 = por %p51, %p52
    %p54 = scmp.ne.s32.totalorder %s45, %s46
    %p55 = scmp.eq.s32.totalorder %s14, 0
    %p56 = por %p54, %p55
    %p57 = scmp.ne.s32.totalorder %s45, %s46
    %p58 = scmp.eq.s32.totalorder %s15, 2
    %p59 = por %p57, %p58
    %p61 = scmp.ne.s32.totalorder %s46, %s60
    %p62 = scmp.eq.s32.totalorder %s15, 0
    %p63 = por %p61, %p62
    %s65 = sadd.s32 %s64, 1
    %p68 = scmp.eq.s32.totalorder %s9, 2
    %p69 = scmp.ne.s32.totalorder %s64, %s66
    %p70 = scmp.eq.s32.totalorder %s9, 0
    %p71 = por %p69, %p70
    %p72 = scmp.ne.s32.totalorder %s64, %s66
    %p73 = scmp.eq.s32.totalorder %s14, 2
    %p74 = por %p72, %p73
    %p75 = scmp.ne.s32.totalorder %s66, %s67
    %p76 = scmp.eq.s32.totalorder %s14, 0
    %p77 = por %p75, %p76
    %p78 = scmp.ne.s32.totalorder %s66, %s67
    %p79 = scmp.eq.s32.totalorder %s15, 2
    %p80 = por %p78, %p79
    %p82 = scmp.ne.s32.totalorder %s67, %s81
    %p83 = scmp.eq.s32.totalorder %s15, 0
    %p84 = por %p82, %p83
    %s85 = ssub.s32 %s9, %s16
    %p86 = scmp.eq.s32.totalorder %s85, 0
    %s88 = sadd.s32 %s87, 1
    %s89 = scalar_select %p86, %s87, %s88
    %p92 = pneg %p86
    %p93 = scmp.eq.s32.totalorder %s9, 2
    %p94 = por %p92, %p93
    %p95 = scmp.ne.s32.totalorder %s87, %s90
    %p96 = scmp.eq.s32.totalorder %s9, 0
    %p97 = por %p95, %p96
    %p98 = scmp.ne.s32.totalorder %s87, %s90
    %p99 = scmp.eq.s32.totalorder %s14, 2
    %p100 = por %p98, %p99
    %p101 = scmp.ne.s32.totalorder %s90, %s91
    %p102 = scmp.eq.s32.totalorder %s14, 0
    %p103 = por %p101, %p102
    %p104 = scmp.ne.s32.totalorder %s90, %s91
    %p105 = scmp.eq.s32.totalorder %s15, 2
    %p106 = por %p104, %p105
    %p108 = scmp.ne.s32.totalorder %s91, %s107
    %p109 = scmp.eq.s32.totalorder %s15, 0
    %p110 = por %p108, %p109
    %p111 = scmp.le.s32.totalorder 1, %s9
    %p112 = scmp.lt.s32.totalorder %s9, 4
    %p113 = pnand %p111, %p112
    %p114 = pneg %p113
    // Predicated region
    $region9: #{_lambda_.3} parent=5 // pred_check
      _
    $region10: #{_lambda_.3} parent=5 // pred_check_branch
      %116 = sbr.rel (%p113) target = $region12
    $region11: #{_lambda_.3} parent=5 // pred_region
      %s117 = ssub.s32 %s9, 1
      // Predicated region
      $region13: #{_lambda_.3} parent=11 // pred_check
        %p118 = pneg %p56
      $region14: #{_lambda_.3} parent=11 // pred_check_branch
        %120 = sbr.rel (%p118) target = $region16
      $region15: #{_lambda_.3} parent=11 // pred_region
        _
      $region16: #{_lambda_.3} parent=11 // pred_fallthru
        _
      // Predicated region
      $region17: #{_lambda_.3} parent=11 // pred_check
        %p121 = pneg %p77
      $region18: #{_lambda_.3} parent=11 // pred_check_branch
        %123 = sbr.rel (%p121) target = $region20
      $region19: #{_lambda_.3} parent=11 // pred_region
        _
      $region20: #{_lambda_.3} parent=11 // pred_fallthru
        _
    $region12: #{_lambda_.3} parent=5 // pred_fallthru
      _
    %p124 = scmp.lt.s32.totalorder %s9, 3
    // Predicated region
    $region21: #{_lambda_.3} parent=5 // pred_check
      %p125 = pneg %p124
    $region22: #{_lambda_.3} parent=5 // pred_check_branch
      %127 = sbr.rel (%p125) target = $region24
    $region23: #{_lambda_.3} parent=5 // pred_region
      // Predicated region
      $region25: #{_lambda_.3} parent=23 // pred_check
        %p128 = pneg %p29
      $region26: #{_lambda_.3} parent=23 // pred_check_branch
        %130 = sbr.rel (%p128) target = $region28
      $region27: #{_lambda_.3} parent=23 // pred_region
        %s131 = smul.u32 48, %s9
        %p132 = scmp.lt.s32.totalorder %s131, 143
        %s133 = scalar_select %p132, %s131, 143
        %s134 = smul.addr %s133, 8
        %s135 = scalar_lea.vmem %s0, %s134
        %s136 = smul.u32 48, %s9
      $region28: #{_lambda_.3} parent=23 // pred_fallthru
        _
    $region24: #{_lambda_.3} parent=5 // pred_fallthru
      _
    %p137 = scmp.le.s32.totalorder 1, %s9
    %p138 = scmp.lt.s32.totalorder %s9, 4
    %p139 = pnand %p137, %p138
    %p140 = pneg %p139
    // Predicated region
    $region29: #{_lambda_.3} parent=5 // pred_check
      _
    $region30: #{_lambda_.3} parent=5 // pred_check_branch
      %142 = sbr.rel (%p139) target = $region32
    $region31: #{_lambda_.3} parent=5 // pred_region
      %s143 = ssub.s32 %s9, 1
      %s144 = smul.u32 48, %s14
      %p145 = scmp.lt.s32.totalorder %s144, 143
      %s146 = scalar_select %p145, %s144, 143
      %s147 = smul.addr %s146, 8
      %s148 = scalar_lea.vmem %s0, %s147
      %p149 = pneg %p35
      %p150 = pneg %p32
      %p151 = pneg %p56
      %p152 = pneg %p53
      %p153 = pneg %p77
      %p154 = pneg %p74
      %p155 = pneg %p103
      %p156 = pneg %p100
      %s157 = smul.u32 48, %s14
      %p158 = scmp.lt.s32.totalorder %s157, 143
      %s159 = scalar_select %p158, %s157, 143
      %s160 = smul.addr %s159, 4
      %s161 = scalar_lea.vmem %s3, %s160
      %s162 = smul.u32 48, %s14
      %p163 = scmp.lt.s32.totalorder %s162, 143
      %s164 = scalar_select %p163, %s162, 143
      %s165 = smul.addr %s164, 8
      %s166 = scalar_lea.vmem %s0, %s165
      %s167 = smul.u32 48, %s14
      %s168 = smul.u32 48, %s14
      %p169 = scmp.lt.s32.totalorder %s168, 143
      %s170 = scalar_select %p169, %s168, 143
      %s171 = smul.addr %s170, 4
      %s172 = scalar_lea.vmem %s3, %s171
      %s173 = smul.u32 48, %s14
      %v174 = vld [vmem:[%s166] sm:$0xff]
      %v175 = vld [vmem:[%s166 + $0x8] sm:$0xff]
      %v176 = vld [vmem:[%s166 + $0x10] sm:$0xff]
      %v177 = vld [vmem:[%s166 + $0x18] sm:$0xff]
      %v178 = vld [vmem:[%s166 + $0x20] sm:$0xff]
      %v179 = vld [vmem:[%s166 + $0x28] sm:$0xff]
      %v180 = vld [vmem:[%s166 + $0x30] sm:$0xff]
      %v181 = vld [vmem:[%s166 + $0x38] sm:$0xff]
      %v182 = vld [vmem:[%s166 + $0x40] sm:$0xff]
      %v183 = vld [vmem:[%s166 + $0x48] sm:$0xff]
      %v184 = vld [vmem:[%s166 + $0x50] sm:$0xff]
      %v185 = vld [vmem:[%s166 + $0x58] sm:$0xff]
      %v186 = vld [vmem:[%s166 + $0x60] sm:$0xff]
      %v187 = vld [vmem:[%s166 + $0x68] sm:$0xff]
      %v188 = vld [vmem:[%s166 + $0x70] sm:$0xff]
      %v189 = vld [vmem:[%s166 + $0x78] sm:$0xff]
      %v190 = vld [vmem:[%s166 + $0x80] sm:$0xff]
      %v191 = vld [vmem:[%s166 + $0x88] sm:$0xff]
      %v192 = vld [vmem:[%s166 + $0x90] sm:$0xff]
      %v193 = vld [vmem:[%s166 + $0x98] sm:$0xff]
      %v194 = vld [vmem:[%s166 + $0xa0] sm:$0xff]
      %v195 = vld [vmem:[%s166 + $0xa8] sm:$0xff]
      %v196 = vld [vmem:[%s166 + $0xb0] sm:$0xff]
      %v197 = vld [vmem:[%s166 + $0xb8] sm:$0xff]
      %v198 = vld [vmem:[%s166 + $0xc0] sm:$0xff]
      %v199 = vld [vmem:[%s166 + $0xc8] sm:$0xff]
      %v200 = vld [vmem:[%s166 + $0xd0] sm:$0xff]
      %v201 = vld [vmem:[%s166 + $0xd8] sm:$0xff]
      %v202 = vld [vmem:[%s166 + $0xe0] sm:$0xff]
      %v203 = vld [vmem:[%s166 + $0xe8] sm:$0xff]
      %v204 = vld [vmem:[%s166 + $0xf0] sm:$0xff]
      %v205 = vld [vmem:[%s166 + $0xf8] sm:$0xff]
      %v206 = vld [vmem:[%s166 + $0x100] sm:$0xff]
      %v207 = vld [vmem:[%s166 + $0x108] sm:$0xff]
      %v208 = vld [vmem:[%s166 + $0x110] sm:$0xff]
      %v209 = vld [vmem:[%s166 + $0x118] sm:$0xff]
      %v210 = vld [vmem:[%s166 + $0x120] sm:$0xff]
      %v211 = vld [vmem:[%s166 + $0x128] sm:$0xff]
      %v212 = vld [vmem:[%s166 + $0x130] sm:$0xff]
      %v213 = vld [vmem:[%s166 + $0x138] sm:$0xff]
      %v214 = vld [vmem:[%s166 + $0x140] sm:$0xff]
      %v215 = vld [vmem:[%s166 + $0x148] sm:$0xff]
      %v216 = vld [vmem:[%s166 + $0x150] sm:$0xff]
      %v217 = vld [vmem:[%s166 + $0x158] sm:$0xff]
      %v218 = vld [vmem:[%s166 + $0x160] sm:$0xff]
      %v219 = vld [vmem:[%s166 + $0x168] sm:$0xff]
      %v220 = vld [vmem:[%s166 + $0x170] sm:$0xff]
      %v221 = vld [vmem:[%s166 + $0x178] sm:$0xff]
      %v222 = vld [vmem:[%s1] sm:$0x1]
      %v223 = vld [vmem:[%s2] sm:$0x1]
      %vm224 = vcmask 261120
      %v225 = vsel %vm224, %v174, 0.0
      %226 = vadd.xlane.f32.xlu0 %v225
      %v227 = vpop.xlane.xlu0 %226
      %v228 = vsel %vm224, %v175, 0.0
      %229 = vadd.xlane.f32.xlu0 %v228
      %v230 = vpop.xlane.xlu0 %229
      %v231 = vsel %vm224, %v176, 0.0
      %232 = vadd.xlane.f32.xlu0 %v231
      %v233 = vpop.xlane.xlu0 %232
      %v234 = vsel %vm224, %v177, 0.0
      %235 = vadd.xlane.f32.xlu0 %v234
      %v236 = vpop.xlane.xlu0 %235
      %v237 = vsel %vm224, %v178, 0.0
      %238 = vadd.xlane.f32.xlu0 %v237
      %v239 = vpop.xlane.xlu0 %238
      %v240 = vsel %vm224, %v179, 0.0
      %241 = vadd.xlane.f32.xlu0 %v240
      %v242 = vpop.xlane.xlu0 %241
      %v243 = vsel %vm224, %v180, 0.0
      %244 = vadd.xlane.f32.xlu0 %v243
      %v245 = vpop.xlane.xlu0 %244
      %v246 = vsel %vm224, %v181, 0.0
      %247 = vadd.xlane.f32.xlu0 %v246
      %v248 = vpop.xlane.xlu0 %247
      %v249 = vsel %vm224, %v182, 0.0
      %250 = vadd.xlane.f32.xlu0 %v249
      %v251 = vpop.xlane.xlu0 %250
      %v252 = vsel %vm224, %v183, 0.0
      %253 = vadd.xlane.f32.xlu0 %v252
      %v254 = vpop.xlane.xlu0 %253
      %v255 = vsel %vm224, %v184, 0.0
      %256 = vadd.xlane.f32.xlu0 %v255
      %v257 = vpop.xlane.xlu0 %256
      %v258 = vsel %vm224, %v185, 0.0
      %259 = vadd.xlane.f32.xlu0 %v258
      %v260 = vpop.xlane.xlu0 %259
      %v261 = vsel %vm224, %v186, 0.0
      %262 = vadd.xlane.f32.xlu0 %v261
      %v263 = vpop.xlane.xlu0 %262
      %v264 = vsel %vm224, %v187, 0.0
      %265 = vadd.xlane.f32.xlu0 %v264
      %v266 = vpop.xlane.xlu0 %265
      %v267 = vsel %vm224, %v188, 0.0
      %268 = vadd.xlane.f32.xlu0 %v267
      %v269 = vpop.xlane.xlu0 %268
      %v270 = vsel %vm224, %v189, 0.0
      %271 = vadd.xlane.f32.xlu0 %v270
      %v272 = vpop.xlane.xlu0 %271
      %v273 = vsel %vm224, %v190, 0.0
      %274 = vadd.xlane.f32.xlu0 %v273
      %v275 = vpop.xlane.xlu0 %274
      %v276 = vsel %vm224, %v191, 0.0
      %277 = vadd.xlane.f32.xlu0 %v276
      %v278 = vpop.xlane.xlu0 %277
      %v279 = vsel %vm224, %v192, 0.0
      %280 = vadd.xlane.f32.xlu0 %v279
      %v281 = vpop.xlane.xlu0 %280
      %v282 = vsel %vm224, %v193, 0.0
      %283 = vadd.xlane.f32.xlu0 %v282
      %v284 = vpop.xlane.xlu0 %283
      %v285 = vsel %vm224, %v194, 0.0
      %286 = vadd.xlane.f32.xlu0 %v285
      %v287 = vpop.xlane.xlu0 %286
      %v288 = vsel %vm224, %v195, 0.0
      %289 = vadd.xlane.f32.xlu0 %v288
      %v290 = vpop.xlane.xlu0 %289
      %v291 = vsel %vm224, %v196, 0.0
      %292 = vadd.xlane.f32.xlu0 %v291
      %v293 = vpop.xlane.xlu0 %292
      %v294 = vsel %vm224, %v197, 0.0
      %295 = vadd.xlane.f32.xlu0 %v294
      %v296 = vpop.xlane.xlu0 %295
      %v297 = vsel %vm224, %v198, 0.0
      %298 = vadd.xlane.f32.xlu0 %v297
      %v299 = vpop.xlane.xlu0 %298
      %v300 = vsel %vm224, %v199, 0.0
      %301 = vadd.xlane.f32.xlu0 %v300
      %v302 = vpop.xlane.xlu0 %301
      %v303 = vsel %vm224, %v200, 0.0
      %304 = vadd.xlane.f32.xlu0 %v303
      %v305 = vpop.xlane.xlu0 %304
      %v306 = vsel %vm224, %v201, 0.0
      %307 = vadd.xlane.f32.xlu0 %v306
      %v308 = vpop.xlane.xlu0 %307
      %v309 = vsel %vm224, %v202, 0.0
      %310 = vadd.xlane.f32.xlu0 %v309
      %v311 = vpop.xlane.xlu0 %310
      %v312 = vsel %vm224, %v203, 0.0
      %313 = vadd.xlane.f32.xlu0 %v312
      %v314 = vpop.xlane.xlu0 %313
      %v315 = vsel %vm224, %v204, 0.0
      %316 = vadd.xlane.f32.xlu0 %v315
      %v317 = vpop.xlane.xlu0 %316
      %v318 = vsel %vm224, %v205, 0.0
      %319 = vadd.xlane.f32.xlu0 %v318
      %v320 = vpop.xlane.xlu0 %319
      %v321 = vsel %vm224, %v206, 0.0
      %322 = vadd.xlane.f32.xlu0 %v321
      %v323 = vpop.xlane.xlu0 %322
      %v324 = vsel %vm224, %v207, 0.0
      %325 = vadd.xlane.f32.xlu0 %v324
      %v326 = vpop.xlane.xlu0 %325
      %v327 = vsel %vm224, %v208, 0.0
      %328 = vadd.xlane.f32.xlu0 %v327
      %v329 = vpop.xlane.xlu0 %328
      %v330 = vsel %vm224, %v209, 0.0
      %331 = vadd.xlane.f32.xlu0 %v330
      %v332 = vpop.xlane.xlu0 %331
      %v333 = vsel %vm224, %v210, 0.0
      %334 = vadd.xlane.f32.xlu0 %v333
      %v335 = vpop.xlane.xlu0 %334
      %v336 = vsel %vm224, %v211, 0.0
      %337 = vadd.xlane.f32.xlu0 %v336
      %v338 = vpop.xlane.xlu0 %337
      %v339 = vsel %vm224, %v212, 0.0
      %340 = vadd.xlane.f32.xlu0 %v339
      %v341 = vpop.xlane.xlu0 %340
      %v342 = vsel %vm224, %v213, 0.0
      %343 = vadd.xlane.f32.xlu0 %v342
      %v344 = vpop.xlane.xlu0 %343
      %v345 = vsel %vm224, %v214, 0.0
      %346 = vadd.xlane.f32.xlu0 %v345
      %v347 = vpop.xlane.xlu0 %346
      %v348 = vsel %vm224, %v215, 0.0
      %349 = vadd.xlane.f32.xlu0 %v348
      %v350 = vpop.xlane.xlu0 %349
      %v351 = vsel %vm224, %v216, 0.0
      %352 = vadd.xlane.f32.xlu0 %v351
      %v353 = vpop.xlane.xlu0 %352
      %v354 = vsel %vm224, %v217, 0.0
      %355 = vadd.xlane.f32.xlu0 %v354
      %v356 = vpop.xlane.xlu0 %355
      %v357 = vsel %vm224, %v218, 0.0
      %358 = vadd.xlane.f32.xlu0 %v357
      %v359 = vpop.xlane.xlu0 %358
      %v360 = vsel %vm224, %v219, 0.0
      %361 = vadd.xlane.f32.xlu0 %v360
      %v362 = vpop.xlane.xlu0 %361
      %v363 = vsel %vm224, %v220, 0.0
      %364 = vadd.xlane.f32.xlu0 %v363
      %v365 = vpop.xlane.xlu0 %364
      %v366 = vsel %vm224, %v221, 0.0
      %367 = vadd.xlane.f32.xlu0 %v366
      %v368 = vpop.xlane.xlu0 %367
      %v369 = vrcp.pop 32.0
      %v370 = vmul.f32 32.0, %v369
      %v371 = vsub.f32 1.0, %v370
      %v372 = vmul.f32 %v369, %v371
      %v373 = vadd.f32 %v369, %v372
      %vm374 = vweird.f32 %v369
      %v375 = vsel %vm374, %v369, %v373
      %v376 = vmul.f32 %v227, %v375
      %v377 = vmul.f32 %v230, %v375
      %v378 = vmul.f32 %v233, %v375
      %v379 = vmul.f32 %v236, %v375
      %v380 = vmul.f32 %v239, %v375
      %v381 = vmul.f32 %v242, %v375
      %v382 = vmul.f32 %v245, %v375
      %v383 = vmul.f32 %v248, %v375
      %v384 = vmul.f32 %v251, %v375
      %v385 = vmul.f32 %v254, %v375
      %v386 = vmul.f32 %v257, %v375
      %v387 = vmul.f32 %v260, %v375
      %v388 = vmul.f32 %v263, %v375
      %v389 = vmul.f32 %v266, %v375
      %v390 = vmul.f32 %v269, %v375
      %v391 = vmul.f32 %v272, %v375
      %v392 = vmul.f32 %v275, %v375
      %v393 = vmul.f32 %v278, %v375
      %v394 = vmul.f32 %v281, %v375
      %v395 = vmul.f32 %v284, %v375
      %v396 = vmul.f32 %v287, %v375
      %v397 = vmul.f32 %v290, %v375
      %v398 = vmul.f32 %v293, %v375
      %v399 = vmul.f32 %v296, %v375
      %v400 = vmul.f32 %v299, %v375
      %v401 = vmul.f32 %v302, %v375
      %v402 = vmul.f32 %v305, %v375
      %v403 = vmul.f32 %v308, %v375
      %v404 = vmul.f32 %v311, %v375
      %v405 = vmul.f32 %v314, %v375
      %v406 = vmul.f32 %v317, %v375
      %v407 = vmul.f32 %v320, %v375
      %v408 = vmul.f32 %v323, %v375
      %v409 = vmul.f32 %v326, %v375
      %v410 = vmul.f32 %v329, %v375
      %v411 = vmul.f32 %v332, %v375
      %v412 = vmul.f32 %v335, %v375
      %v413 = vmul.f32 %v338, %v375
      %v414 = vmul.f32 %v341, %v375
      %v415 = vmul.f32 %v344, %v375
      %v416 = vmul.f32 %v347, %v375
      %v417 = vmul.f32 %v350, %v375
      %v418 = vmul.f32 %v353, %v375
      %v419 = vmul.f32 %v356, %v375
      %v420 = vmul.f32 %v359, %v375
      %v421 = vmul.f32 %v362, %v375
      %v422 = vmul.f32 %v365, %v375
      %v423 = vmul.f32 %v368, %v375
      %v424 = vsub.f32 %v174, %v376
      %v425 = vsub.f32 %v175, %v377
      %v426 = vsub.f32 %v176, %v378
      %v427 = vsub.f32 %v177, %v379
      %v428 = vsub.f32 %v178, %v380
      %v429 = vsub.f32 %v179, %v381
      %v430 = vsub.f32 %v180, %v382
      %v431 = vsub.f32 %v181, %v383
      %v432 = vsub.f32 %v182, %v384
      %v433 = vsub.f32 %v183, %v385
      %v434 = vsub.f32 %v184, %v386
      %v435 = vsub.f32 %v185, %v387
      %v436 = vsub.f32 %v186, %v388
      %v437 = vsub.f32 %v187, %v389
      %v438 = vsub.f32 %v188, %v390
      %v439 = vsub.f32 %v189, %v391
      %v440 = vsub.f32 %v190, %v392
      %v441 = vsub.f32 %v191, %v393
      %v442 = vsub.f32 %v192, %v394
      %v443 = vsub.f32 %v193, %v395
      %v444 = vsub.f32 %v194, %v396
      %v445 = vsub.f32 %v195, %v397
      %v446 = vsub.f32 %v196, %v398
      %v447 = vsub.f32 %v197, %v399
      %v448 = vsub.f32 %v198, %v400
      %v449 = vsub.f32 %v199, %v401
      %v450 = vsub.f32 %v200, %v402
      %v451 = vsub.f32 %v201, %v403
      %v452 = vsub.f32 %v202, %v404
      %v453 = vsub.f32 %v203, %v405
      %v454 = vsub.f32 %v204, %v406
      %v455 = vsub.f32 %v205, %v407
      %v456 = vsub.f32 %v206, %v408
      %v457 = vsub.f32 %v207, %v409
      %v458 = vsub.f32 %v208, %v410
      %v459 = vsub.f32 %v209, %v411
      %v460 = vsub.f32 %v210, %v412
      %v461 = vsub.f32 %v211, %v413
      %v462 = vsub.f32 %v212, %v414
      %v463 = vsub.f32 %v213, %v415
      %v464 = vsub.f32 %v214, %v416
      %v465 = vsub.f32 %v215, %v417
      %v466 = vsub.f32 %v216, %v418
      %v467 = vsub.f32 %v217, %v419
      %v468 = vsub.f32 %v218, %v420
      %v469 = vsub.f32 %v219, %v421
      %v470 = vsub.f32 %v220, %v422
      %v471 = vsub.f32 %v221, %v423
      %v472 = vmul.f32 %v424, %v424
      %v473 = vmul.f32 %v425, %v425
      %v474 = vmul.f32 %v426, %v426
      %v475 = vmul.f32 %v427, %v427
      %v476 = vmul.f32 %v428, %v428
      %v477 = vmul.f32 %v429, %v429
      %v478 = vmul.f32 %v430, %v430
      %v479 = vmul.f32 %v431, %v431
      %v480 = vmul.f32 %v432, %v432
      %v481 = vmul.f32 %v433, %v433
      %v482 = vmul.f32 %v434, %v434
      %v483 = vmul.f32 %v435, %v435
      %v484 = vmul.f32 %v436, %v436
      %v485 = vmul.f32 %v437, %v437
      %v486 = vmul.f32 %v438, %v438
      %v487 = vmul.f32 %v439, %v439
      %v488 = vmul.f32 %v440, %v440
      %v489 = vmul.f32 %v441, %v441
      %v490 = vmul.f32 %v442, %v442
      %v491 = vmul.f32 %v443, %v443
      %v492 = vmul.f32 %v444, %v444
      %v493 = vmul.f32 %v445, %v445
      %v494 = vmul.f32 %v446, %v446
      %v495 = vmul.f32 %v447, %v447
      %v496 = vmul.f32 %v448, %v448
      %v497 = vmul.f32 %v449, %v449
      %v498 = vmul.f32 %v450, %v450
      %v499 = vmul.f32 %v451, %v451
      %v500 = vmul.f32 %v452, %v452
      %v501 = vmul.f32 %v453, %v453
      %v502 = vmul.f32 %v454, %v454
      %v503 = vmul.f32 %v455, %v455
      %v504 = vmul.f32 %v456, %v456
      %v505 = vmul.f32 %v457, %v457
      %v506 = vmul.f32 %v458, %v458
      %v507 = vmul.f32 %v459, %v459
      %v508 = vmul.f32 %v460, %v460
      %v509 = vmul.f32 %v461, %v461
      %v510 = vmul.f32 %v462, %v462
      %v511 = vmul.f32 %v463, %v463
      %v512 = vmul.f32 %v464, %v464
      %v513 = vmul.f32 %v465, %v465
      %v514 = vmul.f32 %v466, %v466
      %v515 = vmul.f32 %v467, %v467
      %v516 = vmul.f32 %v468, %v468
      %v517 = vmul.f32 %v469, %v469
      %v518 = vmul.f32 %v470, %v470
      %v519 = vmul.f32 %v471, %v471
      %v520 = vsel %vm224, %v472, 0.0
      %521 = vadd.xlane.f32.xlu0 %v520
      %v522 = vpop.xlane.xlu0 %521
      %v523 = vsel %vm224, %v473, 0.0
      %524 = vadd.xlane.f32.xlu0 %v523
      %v525 = vpop.xlane.xlu0 %524
      %v526 = vsel %vm224, %v474, 0.0
      %527 = vadd.xlane.f32.xlu0 %v526
      %v528 = vpop.xlane.xlu0 %527
      %v529 = vsel %vm224, %v475, 0.0
      %530 = vadd.xlane.f32.xlu0 %v529
      %v531 = vpop.xlane.xlu0 %530
      %v532 = vsel %vm224, %v476, 0.0
      %533 = vadd.xlane.f32.xlu0 %v532
      %v534 = vpop.xlane.xlu0 %533
      %v535 = vsel %vm224, %v477, 0.0
      %536 = vadd.xlane.f32.xlu0 %v535
      %v537 = vpop.xlane.xlu0 %536
      %v538 = vsel %vm224, %v478, 0.0
      %539 = vadd.xlane.f32.xlu0 %v538
      %v540 = vpop.xlane.xlu0 %539
      %v541 = vsel %vm224, %v479, 0.0
      %542 = vadd.xlane.f32.xlu0 %v541
      %v543 = vpop.xlane.xlu0 %542
      %v544 = vsel %vm224, %v480, 0.0
      %545 = vadd.xlane.f32.xlu0 %v544
      %v546 = vpop.xlane.xlu0 %545
      %v547 = vsel %vm224, %v481, 0.0
      %548 = vadd.xlane.f32.xlu0 %v547
      %v549 = vpop.xlane.xlu0 %548
      %v550 = vsel %vm224, %v482, 0.0
      %551 = vadd.xlane.f32.xlu0 %v550
      %v552 = vpop.xlane.xlu0 %551
      %v553 = vsel %vm224, %v483, 0.0
      %554 = vadd.xlane.f32.xlu0 %v553
      %v555 = vpop.xlane.xlu0 %554
      %v556 = vsel %vm224, %v484, 0.0
      %557 = vadd.xlane.f32.xlu0 %v556
      %v558 = vpop.xlane.xlu0 %557
      %v559 = vsel %vm224, %v485, 0.0
      %560 = vadd.xlane.f32.xlu0 %v559
      %v561 = vpop.xlane.xlu0 %560
      %v562 = vsel %vm224, %v486, 0.0
      %563 = vadd.xlane.f32.xlu0 %v562
      %v564 = vpop.xlane.xlu0 %563
      %v565 = vsel %vm224, %v487, 0.0
      %566 = vadd.xlane.f32.xlu0 %v565
      %v567 = vpop.xlane.xlu0 %566
      %v568 = vsel %vm224, %v488, 0.0
      %569 = vadd.xlane.f32.xlu0 %v568
      %v570 = vpop.xlane.xlu0 %569
      %v571 = vsel %vm224, %v489, 0.0
      %572 = vadd.xlane.f32.xlu0 %v571
      %v573 = vpop.xlane.xlu0 %572
      %v574 = vsel %vm224, %v490, 0.0
      %575 = vadd.xlane.f32.xlu0 %v574
      %v576 = vpop.xlane.xlu0 %575
      %v577 = vsel %vm224, %v491, 0.0
      %578 = vadd.xlane.f32.xlu0 %v577
      %v579 = vpop.xlane.xlu0 %578
      %v580 = vsel %vm224, %v492, 0.0
      %581 = vadd.xlane.f32.xlu0 %v580
      %v582 = vpop.xlane.xlu0 %581
      %v583 = vsel %vm224, %v493, 0.0
      %584 = vadd.xlane.f32.xlu0 %v583
      %v585 = vpop.xlane.xlu0 %584
      %v586 = vsel %vm224, %v494, 0.0
      %587 = vadd.xlane.f32.xlu0 %v586
      %v588 = vpop.xlane.xlu0 %587
      %v589 = vsel %vm224, %v495, 0.0
      %590 = vadd.xlane.f32.xlu0 %v589
      %v591 = vpop.xlane.xlu0 %590
      %v592 = vsel %vm224, %v496, 0.0
      %593 = vadd.xlane.f32.xlu0 %v592
      %v594 = vpop.xlane.xlu0 %593
      %v595 = vsel %vm224, %v497, 0.0
      %596 = vadd.xlane.f32.xlu0 %v595
      %v597 = vpop.xlane.xlu0 %596
      %v598 = vsel %vm224, %v498, 0.0
      %599 = vadd.xlane.f32.xlu0 %v598
      %v600 = vpop.xlane.xlu0 %599
      %v601 = vsel %vm224, %v499, 0.0
      %602 = vadd.xlane.f32.xlu0 %v601
      %v603 = vpop.xlane.xlu0 %602
      %v604 = vsel %vm224, %v500, 0.0
      %605 = vadd.xlane.f32.xlu0 %v604
      %v606 = vpop.xlane.xlu0 %605
      %v607 = vsel %vm224, %v501, 0.0
      %608 = vadd.xlane.f32.xlu0 %v607
      %v609 = vpop.xlane.xlu0 %608
      %v610 = vsel %vm224, %v502, 0.0
      %611 = vadd.xlane.f32.xlu0 %v610
      %v612 = vpop.xlane.xlu0 %611
      %v613 = vsel %vm224, %v503, 0.0
      %614 = vadd.xlane.f32.xlu0 %v613
      %v615 = vpop.xlane.xlu0 %614
      %v616 = vsel %vm224, %v504, 0.0
      %617 = vadd.xlane.f32.xlu0 %v616
      %v618 = vpop.xlane.xlu0 %617
      %v619 = vsel %vm224, %v505, 0.0
      %620 = vadd.xlane.f32.xlu0 %v619
      %v621 = vpop.xlane.xlu0 %620
      %v622 = vsel %vm224, %v506, 0.0
      %623 = vadd.xlane.f32.xlu0 %v622
      %v624 = vpop.xlane.xlu0 %623
      %v625 = vsel %vm224, %v507, 0.0
      %626 = vadd.xlane.f32.xlu0 %v625
      %v627 = vpop.xlane.xlu0 %626
      %v628 = vsel %vm224, %v508, 0.0
      %629 = vadd.xlane.f32.xlu0 %v628
      %v630 = vpop.xlane.xlu0 %629
      %v631 = vsel %vm224, %v509, 0.0
      %632 = vadd.xlane.f32.xlu0 %v631
      %v633 = vpop.xlane.xlu0 %632
      %v634 = vsel %vm224, %v510, 0.0
      %635 = vadd.xlane.f32.xlu0 %v634
      %v636 = vpop.xlane.xlu0 %635
      %v637 = vsel %vm224, %v511, 0.0
      %638 = vadd.xlane.f32.xlu0 %v637
      %v639 = vpop.xlane.xlu0 %638
      %v640 = vsel %vm224, %v512, 0.0
      %641 = vadd.xlane.f32.xlu0 %v640
      %v642 = vpop.xlane.xlu0 %641
      %v643 = vsel %vm224, %v513, 0.0
      %644 = vadd.xlane.f32.xlu0 %v643
      %v645 = vpop.xlane.xlu0 %644
      %v646 = vsel %vm224, %v514, 0.0
      %647 = vadd.xlane.f32.xlu0 %v646
      %v648 = vpop.xlane.xlu0 %647
      %v649 = vsel %vm224, %v515, 0.0
      %650 = vadd.xlane.f32.xlu0 %v649
      %v651 = vpop.xlane.xlu0 %650
      %v652 = vsel %vm224, %v516, 0.0
      %653 = vadd.xlane.f32.xlu0 %v652
      %v654 = vpop.xlane.xlu0 %653
      %v655 = vsel %vm224, %v517, 0.0
      %656 = vadd.xlane.f32.xlu0 %v655
      %v657 = vpop.xlane.xlu0 %656
      %v658 = vsel %vm224, %v518, 0.0
      %659 = vadd.xlane.f32.xlu0 %v658
      %v660 = vpop.xlane.xlu0 %659
      %v661 = vsel %vm224, %v519, 0.0
      %662 = vadd.xlane.f32.xlu0 %v661
      %v663 = vpop.xlane.xlu0 %662
      %v664 = vmul.f32 %v522, %v375
      %v665 = vmul.f32 %v525, %v375
      %v666 = vmul.f32 %v528, %v375
      %v667 = vmul.f32 %v531, %v375
      %v668 = vmul.f32 %v534, %v375
      %v669 = vmul.f32 %v537, %v375
      %v670 = vmul.f32 %v540, %v375
      %v671 = vmul.f32 %v543, %v375
      %v672 = vmul.f32 %v546, %v375
      %v673 = vmul.f32 %v549, %v375
      %v674 = vmul.f32 %v552, %v375
      %v675 = vmul.f32 %v555, %v375
      %v676 = vmul.f32 %v558, %v375
      %v677 = vmul.f32 %v561, %v375
      %v678 = vmul.f32 %v564, %v375
      %v679 = vmul.f32 %v567, %v375
      %v680 = vmul.f32 %v570, %v375
      %v681 = vmul.f32 %v573, %v375
      %v682 = vmul.f32 %v576, %v375
      %v683 = vmul.f32 %v579, %v375
      %v684 = vmul.f32 %v582, %v375
      %v685 = vmul.f32 %v585, %v375
      %v686 = vmul.f32 %v588, %v375
      %v687 = vmul.f32 %v591, %v375
      %v688 = vmul.f32 %v594, %v375
      %v689 = vmul.f32 %v597, %v375
      %v690 = vmul.f32 %v600, %v375
      %v691 = vmul.f32 %v603, %v375
      %v692 = vmul.f32 %v606, %v375
      %v693 = vmul.f32 %v609, %v375
      %v694 = vmul.f32 %v612, %v375
      %v695 = vmul.f32 %v615, %v375
      %v696 = vmul.f32 %v618, %v375
      %v697 = vmul.f32 %v621, %v375
      %v698 = vmul.f32 %v624, %v375
      %v699 = vmul.f32 %v627, %v375
      %v700 = vmul.f32 %v630, %v375
      %v701 = vmul.f32 %v633, %v375
      %v702 = vmul.f32 %v636, %v375
      %v703 = vmul.f32 %v639, %v375
      %v704 = vmul.f32 %v642, %v375
      %v705 = vmul.f32 %v645, %v375
      %v706 = vmul.f32 %v648, %v375
      %v707 = vmul.f32 %v651, %v375
      %v708 = vmul.f32 %v654, %v375
      %v709 = vmul.f32 %v657, %v375
      %v710 = vmul.f32 %v660, %v375
      %v711 = vmul.f32 %v663, %v375
      %v712 = vadd.f32 %v664, 1e-05
      %v713 = vadd.f32 %v665, 1e-05
      %v714 = vadd.f32 %v666, 1e-05
      %v715 = vadd.f32 %v667, 1e-05
      %v716 = vadd.f32 %v668, 1e-05
      %v717 = vadd.f32 %v669, 1e-05
      %v718 = vadd.f32 %v670, 1e-05
      %v719 = vadd.f32 %v671, 1e-05
      %v720 = vadd.f32 %v672, 1e-05
      %v721 = vadd.f32 %v673, 1e-05
      %v722 = vadd.f32 %v674, 1e-05
      %v723 = vadd.f32 %v675, 1e-05
      %v724 = vadd.f32 %v676, 1e-05
      %v725 = vadd.f32 %v677, 1e-05
      %v726 = vadd.f32 %v678, 1e-05
      %v727 = vadd.f32 %v679, 1e-05
      %v728 = vadd.f32 %v680, 1e-05
      %v729 = vadd.f32 %v681, 1e-05
      %v730 = vadd.f32 %v682, 1e-05
      %v731 = vadd.f32 %v683, 1e-05
      %v732 = vadd.f32 %v684, 1e-05
      %v733 = vadd.f32 %v685, 1e-05
      %v734 = vadd.f32 %v686, 1e-05
      %v735 = vadd.f32 %v687, 1e-05
      %v736 = vadd.f32 %v688, 1e-05
      %v737 = vadd.f32 %v689, 1e-05
      %v738 = vadd.f32 %v690, 1e-05
      %v739 = vadd.f32 %v691, 1e-05
      %v740 = vadd.f32 %v692, 1e-05
      %v741 = vadd.f32 %v693, 1e-05
      %v742 = vadd.f32 %v694, 1e-05
      %v743 = vadd.f32 %v695, 1e-05
      %v744 = vadd.f32 %v696, 1e-05
      %v745 = vadd.f32 %v697, 1e-05
      %v746 = vadd.f32 %v698, 1e-05
      %v747 = vadd.f32 %v699, 1e-05
      %v748 = vadd.f32 %v700, 1e-05
      %v749 = vadd.f32 %v701, 1e-05
      %v750 = vadd.f32 %v702, 1e-05
      %v751 = vadd.f32 %v703, 1e-05
      %v752 = vadd.f32 %v704, 1e-05
      %v753 = vadd.f32 %v705, 1e-05
      %v754 = vadd.f32 %v706, 1e-05
      %v755 = vadd.f32 %v707, 1e-05
      %v756 = vadd.f32 %v708, 1e-05
      %v757 = vadd.f32 %v709, 1e-05
      %v758 = vadd.f32 %v710, 1e-05
      %v759 = vadd.f32 %v711, 1e-05
      %v760 = vrsqrt.pop %v712
      %v761 = vmul.f32 %v760, %v712
      %v762 = vmul.f32 %v761, %v760
      %v763 = vmul.f32 0.5, %v762
      %v764 = vsub.f32 1.5, %v763
      %v765 = vmul.f32 %v760, %v764
      %vm766 = vweird.f32 %v712
      %vm767 = vweird.f32 %v760
      %vm768 = vmor %vm766, %vm767
      %v769 = vsel %vm768, %v760, %v765
      %v770 = vrsqrt.pop %v713
      %v771 = vmul.f32 %v770, %v713
      %v772 = vmul.f32 %v771, %v770
      %v773 = vmul.f32 0.5, %v772
      %v774 = vsub.f32 1.5, %v773
      %v775 = vmul.f32 %v770, %v774
      %vm776 = vweird.f32 %v713
      %vm777 = vweird.f32 %v770
      %vm778 = vmor %vm776, %vm777
      %v779 = vsel %vm778, %v770, %v775
      %v780 = vrsqrt.pop %v714
      %v781 = vmul.f32 %v780, %v714
      %v782 = vmul.f32 %v781, %v780
      %v783 = vmul.f32 0.5, %v782
      %v784 = vsub.f32 1.5, %v783
      %v785 = vmul.f32 %v780, %v784
      %vm786 = vweird.f32 %v714
      %vm787 = vweird.f32 %v780
      %vm788 = vmor %vm786, %vm787
      %v789 = vsel %vm788, %v780, %v785
      %v790 = vrsqrt.pop %v715
      %v791 = vmul.f32 %v790, %v715
      %v792 = vmul.f32 %v791, %v790
      %v793 = vmul.f32 0.5, %v792
      %v794 = vsub.f32 1.5, %v793
      %v795 = vmul.f32 %v790, %v794
      %vm796 = vweird.f32 %v715
      %vm797 = vweird.f32 %v790
      %vm798 = vmor %vm796, %vm797
      %v799 = vsel %vm798, %v790, %v795
      %v800 = vrsqrt.pop %v716
      %v801 = vmul.f32 %v800, %v716
      %v802 = vmul.f32 %v801, %v800
      %v803 = vmul.f32 0.5, %v802
      %v804 = vsub.f32 1.5, %v803
      %v805 = vmul.f32 %v800, %v804
      %vm806 = vweird.f32 %v716
      %vm807 = vweird.f32 %v800
      %vm808 = vmor %vm806, %vm807
      %v809 = vsel %vm808, %v800, %v805
      %v810 = vrsqrt.pop %v717
      %v811 = vmul.f32 %v810, %v717
      %v812 = vmul.f32 %v811, %v810
      %v813 = vmul.f32 0.5, %v812
      %v814 = vsub.f32 1.5, %v813
      %v815 = vmul.f32 %v810, %v814
      %vm816 = vweird.f32 %v717
      %vm817 = vweird.f32 %v810
      %vm818 = vmor %vm816, %vm817
      %v819 = vsel %vm818, %v810, %v815
      %v820 = vrsqrt.pop %v718
      %v821 = vmul.f32 %v820, %v718
      %v822 = vmul.f32 %v821, %v820
      %v823 = vmul.f32 0.5, %v822
      %v824 = vsub.f32 1.5, %v823
      %v825 = vmul.f32 %v820, %v824
      %vm826 = vweird.f32 %v718
      %vm827 = vweird.f32 %v820
      %vm828 = vmor %vm826, %vm827
      %v829 = vsel %vm828, %v820, %v825
      %v830 = vrsqrt.pop %v719
      %v831 = vmul.f32 %v830, %v719
      %v832 = vmul.f32 %v831, %v830
      %v833 = vmul.f32 0.5, %v832
      %v834 = vsub.f32 1.5, %v833
      %v835 = vmul.f32 %v830, %v834
      %vm836 = vweird.f32 %v719
      %vm837 = vweird.f32 %v830
      %vm838 = vmor %vm836, %vm837
      %v839 = vsel %vm838, %v830, %v835
      %v840 = vrsqrt.pop %v720
      %v841 = vmul.f32 %v840, %v720
      %v842 = vmul.f32 %v841, %v840
      %v843 = vmul.f32 0.5, %v842
      %v844 = vsub.f32 1.5, %v843
      %v845 = vmul.f32 %v840, %v844
      %vm846 = vweird.f32 %v720
      %vm847 = vweird.f32 %v840
      %vm848 = vmor %vm846, %vm847
      %v849 = vsel %vm848, %v840, %v845
      %v850 = vrsqrt.pop %v721
      %v851 = vmul.f32 %v850, %v721
      %v852 = vmul.f32 %v851, %v850
      %v853 = vmul.f32 0.5, %v852
      %v854 = vsub.f32 1.5, %v853
      %v855 = vmul.f32 %v850, %v854
      %vm856 = vweird.f32 %v721
      %vm857 = vweird.f32 %v850
      %vm858 = vmor %vm856, %vm857
      %v859 = vsel %vm858, %v850, %v855
      %v860 = vrsqrt.pop %v722
      %v861 = vmul.f32 %v860, %v722
      %v862 = vmul.f32 %v861, %v860
      %v863 = vmul.f32 0.5, %v862
      %v864 = vsub.f32 1.5, %v863
      %v865 = vmul.f32 %v860, %v864
      %vm866 = vweird.f32 %v722
      %vm867 = vweird.f32 %v860
      %vm868 = vmor %vm866, %vm867
      %v869 = vsel %vm868, %v860, %v865
      %v870 = vrsqrt.pop %v723
      %v871 = vmul.f32 %v870, %v723
      %v872 = vmul.f32 %v871, %v870
      %v873 = vmul.f32 0.5, %v872
      %v874 = vsub.f32 1.5, %v873
      %v875 = vmul.f32 %v870, %v874
      %vm876 = vweird.f32 %v723
      %vm877 = vweird.f32 %v870
      %vm878 = vmor %vm876, %vm877
      %v879 = vsel %vm878, %v870, %v875
      %v880 = vrsqrt.pop %v724
      %v881 = vmul.f32 %v880, %v724
      %v882 = vmul.f32 %v881, %v880
      %v883 = vmul.f32 0.5, %v882
      %v884 = vsub.f32 1.5, %v883
      %v885 = vmul.f32 %v880, %v884
      %vm886 = vweird.f32 %v724
      %vm887 = vweird.f32 %v880
      %vm888 = vmor %vm886, %vm887
      %v889 = vsel %vm888, %v880, %v885
      %v890 = vrsqrt.pop %v725
      %v891 = vmul.f32 %v890, %v725
      %v892 = vmul.f32 %v891, %v890
      %v893 = vmul.f32 0.5, %v892
      %v894 = vsub.f32 1.5, %v893
      %v895 = vmul.f32 %v890, %v894
      %vm896 = vweird.f32 %v725
      %vm897 = vweird.f32 %v890
      %vm898 = vmor %vm896, %vm897
      %v899 = vsel %vm898, %v890, %v895
      %v900 = vrsqrt.pop %v726
      %v901 = vmul.f32 %v900, %v726
      %v902 = vmul.f32 %v901, %v900
      %v903 = vmul.f32 0.5, %v902
      %v904 = vsub.f32 1.5, %v903
      %v905 = vmul.f32 %v900, %v904
      %vm906 = vweird.f32 %v726
      %vm907 = vweird.f32 %v900
      %vm908 = vmor %vm906, %vm907
      %v909 = vsel %vm908, %v900, %v905
      %v910 = vrsqrt.pop %v727
      %v911 = vmul.f32 %v910, %v727
      %v912 = vmul.f32 %v911, %v910
      %v913 = vmul.f32 0.5, %v912
      %v914 = vsub.f32 1.5, %v913
      %v915 = vmul.f32 %v910, %v914
      %vm916 = vweird.f32 %v727
      %vm917 = vweird.f32 %v910
      %vm918 = vmor %vm916, %vm917
      %v919 = vsel %vm918, %v910, %v915
      %v920 = vrsqrt.pop %v728
      %v921 = vmul.f32 %v920, %v728
      %v922 = vmul.f32 %v921, %v920
      %v923 = vmul.f32 0.5, %v922
      %v924 = vsub.f32 1.5, %v923
      %v925 = vmul.f32 %v920, %v924
      %vm926 = vweird.f32 %v728
      %vm927 = vweird.f32 %v920
      %vm928 = vmor %vm926, %vm927
      %v929 = vsel %vm928, %v920, %v925
      %v930 = vrsqrt.pop %v729
      %v931 = vmul.f32 %v930, %v729
      %v932 = vmul.f32 %v931, %v930
      %v933 = vmul.f32 0.5, %v932
      %v934 = vsub.f32 1.5, %v933
      %v935 = vmul.f32 %v930, %v934
      %vm936 = vweird.f32 %v729
      %vm937 = vweird.f32 %v930
      %vm938 = vmor %vm936, %vm937
      %v939 = vsel %vm938, %v930, %v935
      %v940 = vrsqrt.pop %v730
      %v941 = vmul.f32 %v940, %v730
      %v942 = vmul.f32 %v941, %v940
      %v943 = vmul.f32 0.5, %v942
      %v944 = vsub.f32 1.5, %v943
      %v945 = vmul.f32 %v940, %v944
      %vm946 = vweird.f32 %v730
      %vm947 = vweird.f32 %v940
      %vm948 = vmor %vm946, %vm947
      %v949 = vsel %vm948, %v940, %v945
      %v950 = vrsqrt.pop %v731
      %v951 = vmul.f32 %v950, %v731
      %v952 = vmul.f32 %v951, %v950
      %v953 = vmul.f32 0.5, %v952
      %v954 = vsub.f32 1.5, %v953
      %v955 = vmul.f32 %v950, %v954
      %vm956 = vweird.f32 %v731
      %vm957 = vweird.f32 %v950
      %vm958 = vmor %vm956, %vm957
      %v959 = vsel %vm958, %v950, %v955
      %v960 = vrsqrt.pop %v732
      %v961 = vmul.f32 %v960, %v732
      %v962 = vmul.f32 %v961, %v960
      %v963 = vmul.f32 0.5, %v962
      %v964 = vsub.f32 1.5, %v963
      %v965 = vmul.f32 %v960, %v964
      %vm966 = vweird.f32 %v732
      %vm967 = vweird.f32 %v960
      %vm968 = vmor %vm966, %vm967
      %v969 = vsel %vm968, %v960, %v965
      %v970 = vrsqrt.pop %v733
      %v971 = vmul.f32 %v970, %v733
      %v972 = vmul.f32 %v971, %v970
      %v973 = vmul.f32 0.5, %v972
      %v974 = vsub.f32 1.5, %v973
      %v975 = vmul.f32 %v970, %v974
      %vm976 = vweird.f32 %v733
      %vm977 = vweird.f32 %v970
      %vm978 = vmor %vm976, %vm977
      %v979 = vsel %vm978, %v970, %v975
      %v980 = vrsqrt.pop %v734
      %v981 = vmul.f32 %v980, %v734
      %v982 = vmul.f32 %v981, %v980
      %v983 = vmul.f32 0.5, %v982
      %v984 = vsub.f32 1.5, %v983
      %v985 = vmul.f32 %v980, %v984
      %vm986 = vweird.f32 %v734
      %vm987 = vweird.f32 %v980
      %vm988 = vmor %vm986, %vm987
      %v989 = vsel %vm988, %v980, %v985
      %v990 = vrsqrt.pop %v735
      %v991 = vmul.f32 %v990, %v735
      %v992 = vmul.f32 %v991, %v990
      %v993 = vmul.f32 0.5, %v992
      %v994 = vsub.f32 1.5, %v993
      %v995 = vmul.f32 %v990, %v994
      %vm996 = vweird.f32 %v735
      %vm997 = vweird.f32 %v990
      %vm998 = vmor %vm996, %vm997
      %v999 = vsel %vm998, %v990, %v995
      %v1000 = vrsqrt.pop %v736
      %v1001 = vmul.f32 %v1000, %v736
      %v1002 = vmul.f32 %v1001, %v1000
      %v1003 = vmul.f32 0.5, %v1002
      %v1004 = vsub.f32 1.5, %v1003
      %v1005 = vmul.f32 %v1000, %v1004
      %vm1006 = vweird.f32 %v736
      %vm1007 = vweird.f32 %v1000
      %vm1008 = vmor %vm1006, %vm1007
      %v1009 = vsel %vm1008, %v1000, %v1005
      %v1010 = vrsqrt.pop %v737
      %v1011 = vmul.f32 %v1010, %v737
      %v1012 = vmul.f32 %v1011, %v1010
      %v1013 = vmul.f32 0.5, %v1012
      %v1014 = vsub.f32 1.5, %v1013
      %v1015 = vmul.f32 %v1010, %v1014
      %vm1016 = vweird.f32 %v737
      %vm1017 = vweird.f32 %v1010
      %vm1018 = vmor %vm1016, %vm1017
      %v1019 = vsel %vm1018, %v1010, %v1015
      %v1020 = vrsqrt.pop %v738
      %v1021 = vmul.f32 %v1020, %v738
      %v1022 = vmul.f32 %v1021, %v1020
      %v1023 = vmul.f32 0.5, %v1022
      %v1024 = vsub.f32 1.5, %v1023
      %v1025 = vmul.f32 %v1020, %v1024
      %vm1026 = vweird.f32 %v738
      %vm1027 = vweird.f32 %v1020
      %vm1028 = vmor %vm1026, %vm1027
      %v1029 = vsel %vm1028, %v1020, %v1025
      %v1030 = vrsqrt.pop %v739
      %v1031 = vmul.f32 %v1030, %v739
      %v1032 = vmul.f32 %v1031, %v1030
      %v1033 = vmul.f32 0.5, %v1032
      %v1034 = vsub.f32 1.5, %v1033
      %v1035 = vmul.f32 %v1030, %v1034
      %vm1036 = vweird.f32 %v739
      %vm1037 = vweird.f32 %v1030
      %vm1038 = vmor %vm1036, %vm1037
      %v1039 = vsel %vm1038, %v1030, %v1035
      %v1040 = vrsqrt.pop %v740
      %v1041 = vmul.f32 %v1040, %v740
      %v1042 = vmul.f32 %v1041, %v1040
      %v1043 = vmul.f32 0.5, %v1042
      %v1044 = vsub.f32 1.5, %v1043
      %v1045 = vmul.f32 %v1040, %v1044
      %vm1046 = vweird.f32 %v740
      %vm1047 = vweird.f32 %v1040
      %vm1048 = vmor %vm1046, %vm1047
      %v1049 = vsel %vm1048, %v1040, %v1045
      %v1050 = vrsqrt.pop %v741
      %v1051 = vmul.f32 %v1050, %v741
      %v1052 = vmul.f32 %v1051, %v1050
      %v1053 = vmul.f32 0.5, %v1052
      %v1054 = vsub.f32 1.5, %v1053
      %v1055 = vmul.f32 %v1050, %v1054
      %vm1056 = vweird.f32 %v741
      %vm1057 = vweird.f32 %v1050
      %vm1058 = vmor %vm1056, %vm1057
      %v1059 = vsel %vm1058, %v1050, %v1055
      %v1060 = vrsqrt.pop %v742
      %v1061 = vmul.f32 %v1060, %v742
      %v1062 = vmul.f32 %v1061, %v1060
      %v1063 = vmul.f32 0.5, %v1062
      %v1064 = vsub.f32 1.5, %v1063
      %v1065 = vmul.f32 %v1060, %v1064
      %vm1066 = vweird.f32 %v742
      %vm1067 = vweird.f32 %v1060
      %vm1068 = vmor %vm1066, %vm1067
      %v1069 = vsel %vm1068, %v1060, %v1065
      %v1070 = vrsqrt.pop %v743
      %v1071 = vmul.f32 %v1070, %v743
      %v1072 = vmul.f32 %v1071, %v1070
      %v1073 = vmul.f32 0.5, %v1072
      %v1074 = vsub.f32 1.5, %v1073
      %v1075 = vmul.f32 %v1070, %v1074
      %vm1076 = vweird.f32 %v743
      %vm1077 = vweird.f32 %v1070
      %vm1078 = vmor %vm1076, %vm1077
      %v1079 = vsel %vm1078, %v1070, %v1075
      %v1080 = vrsqrt.pop %v744
      %v1081 = vmul.f32 %v1080, %v744
      %v1082 = vmul.f32 %v1081, %v1080
      %v1083 = vmul.f32 0.5, %v1082
      %v1084 = vsub.f32 1.5, %v1083
      %v1085 = vmul.f32 %v1080, %v1084
      %vm1086 = vweird.f32 %v744
      %vm1087 = vweird.f32 %v1080
      %vm1088 = vmor %vm1086, %vm1087
      %v1089 = vsel %vm1088, %v1080, %v1085
      %v1090 = vrsqrt.pop %v745
      %v1091 = vmul.f32 %v1090, %v745
      %v1092 = vmul.f32 %v1091, %v1090
      %v1093 = vmul.f32 0.5, %v1092
      %v1094 = vsub.f32 1.5, %v1093
      %v1095 = vmul.f32 %v1090, %v1094
      %vm1096 = vweird.f32 %v745
      %vm1097 = vweird.f32 %v1090
      %vm1098 = vmor %vm1096, %vm1097
      %v1099 = vsel %vm1098, %v1090, %v1095
      %v1100 = vrsqrt.pop %v746
      %v1101 = vmul.f32 %v1100, %v746
      %v1102 = vmul.f32 %v1101, %v1100
      %v1103 = vmul.f32 0.5, %v1102
      %v1104 = vsub.f32 1.5, %v1103
      %v1105 = vmul.f32 %v1100, %v1104
      %vm1106 = vweird.f32 %v746
      %vm1107 = vweird.f32 %v1100
      %vm1108 = vmor %vm1106, %vm1107
      %v1109 = vsel %vm1108, %v1100, %v1105
      %v1110 = vrsqrt.pop %v747
      %v1111 = vmul.f32 %v1110, %v747
      %v1112 = vmul.f32 %v1111, %v1110
      %v1113 = vmul.f32 0.5, %v1112
      %v1114 = vsub.f32 1.5, %v1113
      %v1115 = vmul.f32 %v1110, %v1114
      %vm1116 = vweird.f32 %v747
      %vm1117 = vweird.f32 %v1110
      %vm1118 = vmor %vm1116, %vm1117
      %v1119 = vsel %vm1118, %v1110, %v1115
      %v1120 = vrsqrt.pop %v748
      %v1121 = vmul.f32 %v1120, %v748
      %v1122 = vmul.f32 %v1121, %v1120
      %v1123 = vmul.f32 0.5, %v1122
      %v1124 = vsub.f32 1.5, %v1123
      %v1125 = vmul.f32 %v1120, %v1124
      %vm1126 = vweird.f32 %v748
      %vm1127 = vweird.f32 %v1120
      %vm1128 = vmor %vm1126, %vm1127
      %v1129 = vsel %vm1128, %v1120, %v1125
      %v1130 = vrsqrt.pop %v749
      %v1131 = vmul.f32 %v1130, %v749
      %v1132 = vmul.f32 %v1131, %v1130
      %v1133 = vmul.f32 0.5, %v1132
      %v1134 = vsub.f32 1.5, %v1133
      %v1135 = vmul.f32 %v1130, %v1134
      %vm1136 = vweird.f32 %v749
      %vm1137 = vweird.f32 %v1130
      %vm1138 = vmor %vm1136, %vm1137
      %v1139 = vsel %vm1138, %v1130, %v1135
      %v1140 = vrsqrt.pop %v750
      %v1141 = vmul.f32 %v1140, %v750
      %v1142 = vmul.f32 %v1141, %v1140
      %v1143 = vmul.f32 0.5, %v1142
      %v1144 = vsub.f32 1.5, %v1143
      %v1145 = vmul.f32 %v1140, %v1144
      %vm1146 = vweird.f32 %v750
      %vm1147 = vweird.f32 %v1140
      %vm1148 = vmor %vm1146, %vm1147
      %v1149 = vsel %vm1148, %v1140, %v1145
      %v1150 = vrsqrt.pop %v751
      %v1151 = vmul.f32 %v1150, %v751
      %v1152 = vmul.f32 %v1151, %v1150
      %v1153 = vmul.f32 0.5, %v1152
      %v1154 = vsub.f32 1.5, %v1153
      %v1155 = vmul.f32 %v1150, %v1154
      %vm1156 = vweird.f32 %v751
      %vm1157 = vweird.f32 %v1150
      %vm1158 = vmor %vm1156, %vm1157
      %v1159 = vsel %vm1158, %v1150, %v1155
      %v1160 = vrsqrt.pop %v752
      %v1161 = vmul.f32 %v1160, %v752
      %v1162 = vmul.f32 %v1161, %v1160
      %v1163 = vmul.f32 0.5, %v1162
      %v1164 = vsub.f32 1.5, %v1163
      %v1165 = vmul.f32 %v1160, %v1164
      %vm1166 = vweird.f32 %v752
      %vm1167 = vweird.f32 %v1160
      %vm1168 = vmor %vm1166, %vm1167
      %v1169 = vsel %vm1168, %v1160, %v1165
      %v1170 = vrsqrt.pop %v753
      %v1171 = vmul.f32 %v1170, %v753
      %v1172 = vmul.f32 %v1171, %v1170
      %v1173 = vmul.f32 0.5, %v1172
      %v1174 = vsub.f32 1.5, %v1173
      %v1175 = vmul.f32 %v1170, %v1174
      %vm1176 = vweird.f32 %v753
      %vm1177 = vweird.f32 %v1170
      %vm1178 = vmor %vm1176, %vm1177
      %v1179 = vsel %vm1178, %v1170, %v1175
      %v1180 = vrsqrt.pop %v754
      %v1181 = vmul.f32 %v1180, %v754
      %v1182 = vmul.f32 %v1181, %v1180
      %v1183 = vmul.f32 0.5, %v1182
      %v1184 = vsub.f32 1.5, %v1183
      %v1185 = vmul.f32 %v1180, %v1184
      %vm1186 = vweird.f32 %v754
      %vm1187 = vweird.f32 %v1180
      %vm1188 = vmor %vm1186, %vm1187
      %v1189 = vsel %vm1188, %v1180, %v1185
      %v1190 = vrsqrt.pop %v755
      %v1191 = vmul.f32 %v1190, %v755
      %v1192 = vmul.f32 %v1191, %v1190
      %v1193 = vmul.f32 0.5, %v1192
      %v1194 = vsub.f32 1.5, %v1193
      %v1195 = vmul.f32 %v1190, %v1194
      %vm1196 = vweird.f32 %v755
      %vm1197 = vweird.f32 %v1190
      %vm1198 = vmor %vm1196, %vm1197
      %v1199 = vsel %vm1198, %v1190, %v1195
      %v1200 = vrsqrt.pop %v756
      %v1201 = vmul.f32 %v1200, %v756
      %v1202 = vmul.f32 %v1201, %v1200
      %v1203 = vmul.f32 0.5, %v1202
      %v1204 = vsub.f32 1.5, %v1203
      %v1205 = vmul.f32 %v1200, %v1204
      %vm1206 = vweird.f32 %v756
      %vm1207 = vweird.f32 %v1200
      %vm1208 = vmor %vm1206, %vm1207
      %v1209 = vsel %vm1208, %v1200, %v1205
      %v1210 = vrsqrt.pop %v757
      %v1211 = vmul.f32 %v1210, %v757
      %v1212 = vmul.f32 %v1211, %v1210
      %v1213 = vmul.f32 0.5, %v1212
      %v1214 = vsub.f32 1.5, %v1213
      %v1215 = vmul.f32 %v1210, %v1214
      %vm1216 = vweird.f32 %v757
      %vm1217 = vweird.f32 %v1210
      %vm1218 = vmor %vm1216, %vm1217
      %v1219 = vsel %vm1218, %v1210, %v1215
      %v1220 = vrsqrt.pop %v758
      %v1221 = vmul.f32 %v1220, %v758
      %v1222 = vmul.f32 %v1221, %v1220
      %v1223 = vmul.f32 0.5, %v1222
      %v1224 = vsub.f32 1.5, %v1223
      %v1225 = vmul.f32 %v1220, %v1224
      %vm1226 = vweird.f32 %v758
      %vm1227 = vweird.f32 %v1220
      %vm1228 = vmor %vm1226, %vm1227
      %v1229 = vsel %vm1228, %v1220, %v1225
      %v1230 = vrsqrt.pop %v759
      %v1231 = vmul.f32 %v1230, %v759
      %v1232 = vmul.f32 %v1231, %v1230
      %v1233 = vmul.f32 0.5, %v1232
      %v1234 = vsub.f32 1.5, %v1233
      %v1235 = vmul.f32 %v1230, %v1234
      %vm1236 = vweird.f32 %v759
      %vm1237 = vweird.f32 %v1230
      %vm1238 = vmor %vm1236, %vm1237
      %v1239 = vsel %vm1238, %v1230, %v1235
      %v1240 = vmul.f32 %v424, %v769
      %v1241 = vmul.f32 %v425, %v779
      %v1242 = vmul.f32 %v426, %v789
      %v1243 = vmul.f32 %v427, %v799
      %v1244 = vmul.f32 %v428, %v809
      %v1245 = vmul.f32 %v429, %v819
      %v1246 = vmul.f32 %v430, %v829
      %v1247 = vmul.f32 %v431, %v839
      %v1248 = vmul.f32 %v432, %v849
      %v1249 = vmul.f32 %v433, %v859
      %v1250 = vmul.f32 %v434, %v869
      %v1251 = vmul.f32 %v435, %v879
      %v1252 = vmul.f32 %v436, %v889
      %v1253 = vmul.f32 %v437, %v899
      %v1254 = vmul.f32 %v438, %v909
      %v1255 = vmul.f32 %v439, %v919
      %v1256 = vmul.f32 %v440, %v929
      %v1257 = vmul.f32 %v441, %v939
      %v1258 = vmul.f32 %v442, %v949
      %v1259 = vmul.f32 %v443, %v959
      %v1260 = vmul.f32 %v444, %v969
      %v1261 = vmul.f32 %v445, %v979
      %v1262 = vmul.f32 %v446, %v989
      %v1263 = vmul.f32 %v447, %v999
      %v1264 = vmul.f32 %v448, %v1009
      %v1265 = vmul.f32 %v449, %v1019
      %v1266 = vmul.f32 %v450, %v1029
      %v1267 = vmul.f32 %v451, %v1039
      %v1268 = vmul.f32 %v452, %v1049
      %v1269 = vmul.f32 %v453, %v1059
      %v1270 = vmul.f32 %v454, %v1069
      %v1271 = vmul.f32 %v455, %v1079
      %v1272 = vmul.f32 %v456, %v1089
      %v1273 = vmul.f32 %v457, %v1099
      %v1274 = vmul.f32 %v458, %v1109
      %v1275 = vmul.f32 %v459, %v1119
      %v1276 = vmul.f32 %v460, %v1129
      %v1277 = vmul.f32 %v461, %v1139
      %v1278 = vmul.f32 %v462, %v1149
      %v1279 = vmul.f32 %v463, %v1159
      %v1280 = vmul.f32 %v464, %v1169
      %v1281 = vmul.f32 %v465, %v1179
      %v1282 = vmul.f32 %v466, %v1189
      %v1283 = vmul.f32 %v467, %v1199
      %v1284 = vmul.f32 %v468, %v1209
      %v1285 = vmul.f32 %v469, %v1219
      %v1286 = vmul.f32 %v470, %v1229
      %v1287 = vmul.f32 %v471, %v1239
      %v1289 = vperm.slane %v222, 0
      %v1291 = vmul.f32 %v1240, %v1289
      %v1292 = vmul.f32 %v1241, %v1289
      %v1293 = vmul.f32 %v1242, %v1289
      %v1294 = vmul.f32 %v1243, %v1289
      %v1295 = vmul.f32 %v1244, %v1289
      %v1296 = vmul.f32 %v1245, %v1289
      %v1297 = vmul.f32 %v1246, %v1289
      %v1298 = vmul.f32 %v1247, %v1289
      %v1299 = vmul.f32 %v1248, %v1289
      %v1300 = vmul.f32 %v1249, %v1289
      %v1301 = vmul.f32 %v1250, %v1289
      %v1302 = vmul.f32 %v1251, %v1289
      %v1303 = vmul.f32 %v1252, %v1289
      %v1304 = vmul.f32 %v1253, %v1289
      %v1305 = vmul.f32 %v1254, %v1289
      %v1306 = vmul.f32 %v1255, %v1289
      %v1307 = vmul.f32 %v1256, %v1289
      %v1308 = vmul.f32 %v1257, %v1289
      %v1309 = vmul.f32 %v1258, %v1289
      %v1310 = vmul.f32 %v1259, %v1289
      %v1311 = vmul.f32 %v1260, %v1289
      %v1312 = vmul.f32 %v1261, %v1289
      %v1313 = vmul.f32 %v1262, %v1289
      %v1314 = vmul.f32 %v1263, %v1289
      %v1315 = vmul.f32 %v1264, %v1289
      %v1316 = vmul.f32 %v1265, %v1289
      %v1317 = vmul.f32 %v1266, %v1289
      %v1318 = vmul.f32 %v1267, %v1289
      %v1319 = vmul.f32 %v1268, %v1289
      %v1320 = vmul.f32 %v1269, %v1289
      %v1321 = vmul.f32 %v1270, %v1289
      %v1322 = vmul.f32 %v1271, %v1289
      %v1323 = vmul.f32 %v1272, %v1289
      %v1324 = vmul.f32 %v1273, %v1289
      %v1325 = vmul.f32 %v1274, %v1289
      %v1326 = vmul.f32 %v1275, %v1289
      %v1327 = vmul.f32 %v1276, %v1289
      %v1328 = vmul.f32 %v1277, %v1289
      %v1329 = vmul.f32 %v1278, %v1289
      %v1330 = vmul.f32 %v1279, %v1289
      %v1331 = vmul.f32 %v1280, %v1289
      %v1332 = vmul.f32 %v1281, %v1289
      %v1333 = vmul.f32 %v1282, %v1289
      %v1334 = vmul.f32 %v1283, %v1289
      %v1335 = vmul.f32 %v1284, %v1289
      %v1336 = vmul.f32 %v1285, %v1289
      %v1337 = vmul.f32 %v1286, %v1289
      %v1338 = vmul.f32 %v1287, %v1289
      %v1340 = vperm.slane %v223, 0
      %v1342 = vadd.f32 %v1291, %v1340
      %v1343 = vadd.f32 %v1292, %v1340
      %v1344 = vadd.f32 %v1293, %v1340
      %v1345 = vadd.f32 %v1294, %v1340
      %v1346 = vadd.f32 %v1295, %v1340
      %v1347 = vadd.f32 %v1296, %v1340
      %v1348 = vadd.f32 %v1297, %v1340
      %v1349 = vadd.f32 %v1298, %v1340
      %v1350 = vadd.f32 %v1299, %v1340
      %v1351 = vadd.f32 %v1300, %v1340
      %v1352 = vadd.f32 %v1301, %v1340
      %v1353 = vadd.f32 %v1302, %v1340
      %v1354 = vadd.f32 %v1303, %v1340
      %v1355 = vadd.f32 %v1304, %v1340
      %v1356 = vadd.f32 %v1305, %v1340
      %v1357 = vadd.f32 %v1306, %v1340
      %v1358 = vadd.f32 %v1307, %v1340
      %v1359 = vadd.f32 %v1308, %v1340
      %v1360 = vadd.f32 %v1309, %v1340
      %v1361 = vadd.f32 %v1310, %v1340
      %v1362 = vadd.f32 %v1311, %v1340
      %v1363 = vadd.f32 %v1312, %v1340
      %v1364 = vadd.f32 %v1313, %v1340
      %v1365 = vadd.f32 %v1314, %v1340
      %v1366 = vadd.f32 %v1315, %v1340
      %v1367 = vadd.f32 %v1316, %v1340
      %v1368 = vadd.f32 %v1317, %v1340
      %v1369 = vadd.f32 %v1318, %v1340
      %v1370 = vadd.f32 %v1319, %v1340
      %v1371 = vadd.f32 %v1320, %v1340
      %v1372 = vadd.f32 %v1321, %v1340
      %v1373 = vadd.f32 %v1322, %v1340
      %v1374 = vadd.f32 %v1323, %v1340
      %v1375 = vadd.f32 %v1324, %v1340
      %v1376 = vadd.f32 %v1325, %v1340
      %v1377 = vadd.f32 %v1326, %v1340
      %v1378 = vadd.f32 %v1327, %v1340
      %v1379 = vadd.f32 %v1328, %v1340
      %v1380 = vadd.f32 %v1329, %v1340
      %v1381 = vadd.f32 %v1330, %v1340
      %v1382 = vadd.f32 %v1331, %v1340
      %v1383 = vadd.f32 %v1332, %v1340
      %v1384 = vadd.f32 %v1333, %v1340
      %v1385 = vadd.f32 %v1334, %v1340
      %v1386 = vadd.f32 %v1335, %v1340
      %v1387 = vadd.f32 %v1336, %v1340
      %v1388 = vadd.f32 %v1337, %v1340
      %v1389 = vadd.f32 %v1338, %v1340
      %v1390 = vpack.c.bf16 %v1342, %v1342
      %v1391 = vpack.c.bf16 %v1343, %v1343
      %v1392 = vpack.c.bf16 %v1344, %v1344
      %v1393 = vpack.c.bf16 %v1345, %v1345
      %v1394 = vpack.c.bf16 %v1346, %v1346
      %v1395 = vpack.c.bf16 %v1347, %v1347
      %v1396 = vpack.c.bf16 %v1348, %v1348
      %v1397 = vpack.c.bf16 %v1349, %v1349
      %v1398 = vpack.c.bf16 %v1350, %v1350
      %v1399 = vpack.c.bf16 %v1351, %v1351
      %v1400 = vpack.c.bf16 %v1352, %v1352
      %v1401 = vpack.c.bf16 %v1353, %v1353
      %v1402 = vpack.c.bf16 %v1354, %v1354
      %v1403 = vpack.c.bf16 %v1355, %v1355
      %v1404 = vpack.c.bf16 %v1356, %v1356
      %v1405 = vpack.c.bf16 %v1357, %v1357
      %v1406 = vpack.c.bf16 %v1358, %v1358
      %v1407 = vpack.c.bf16 %v1359, %v1359
      %v1408 = vpack.c.bf16 %v1360, %v1360
      %v1409 = vpack.c.bf16 %v1361, %v1361
      %v1410 = vpack.c.bf16 %v1362, %v1362
      %v1411 = vpack.c.bf16 %v1363, %v1363
      %v1412 = vpack.c.bf16 %v1364, %v1364
      %v1413 = vpack.c.bf16 %v1365, %v1365
      %v1414 = vpack.c.bf16 %v1366, %v1366
      %v1415 = vpack.c.bf16 %v1367, %v1367
      %v1416 = vpack.c.bf16 %v1368, %v1368
      %v1417 = vpack.c.bf16 %v1369, %v1369
      %v1418 = vpack.c.bf16 %v1370, %v1370
      %v1419 = vpack.c.bf16 %v1371, %v1371
      %v1420 = vpack.c.bf16 %v1372, %v1372
      %v1421 = vpack.c.bf16 %v1373, %v1373
      %v1422 = vpack.c.bf16 %v1374, %v1374
      %v1423 = vpack.c.bf16 %v1375, %v1375
      %v1424 = vpack.c.bf16 %v1376, %v1376
      %v1425 = vpack.c.bf16 %v1377, %v1377
      %v1426 = vpack.c.bf16 %v1378, %v1378
      %v1427 = vpack.c.bf16 %v1379, %v1379
      %v1428 = vpack.c.bf16 %v1380, %v1380
      %v1429 = vpack.c.bf16 %v1381, %v1381
      %v1430 = vpack.c.bf16 %v1382, %v1382
      %v1431 = vpack.c.bf16 %v1383, %v1383
      %v1432 = vpack.c.bf16 %v1384, %v1384
      %v1433 = vpack.c.bf16 %v1385, %v1385
      %v1434 = vpack.c.bf16 %v1386, %v1386
      %v1435 = vpack.c.bf16 %v1387, %v1387
      %v1436 = vpack.c.bf16 %v1388, %v1388
      %v1437 = vpack.c.bf16 %v1389, %v1389
      %vm1438 = vcmask 257024
      %1439 = vst.msk [vmem:[%s172] sm:$0xf] %vm1438, %v1390
      %1440 = vst.msk [vmem:[%s172 + $0x4] sm:$0xf] %vm1438, %v1391
      %1441 = vst.msk [vmem:[%s172 + $0x8] sm:$0xf] %vm1438, %v1392
      %1442 = vst.msk [vmem:[%s172 + $0xc] sm:$0xf] %vm1438, %v1393
      %1443 = vst.msk [vmem:[%s172 + $0x10] sm:$0xf] %vm1438, %v1394
      %1444 = vst.msk [vmem:[%s172 + $0x14] sm:$0xf] %vm1438, %v1395
      %1445 = vst.msk [vmem:[%s172 + $0x18] sm:$0xf] %vm1438, %v1396
      %1446 = vst.msk [vmem:[%s172 + $0x1c] sm:$0xf] %vm1438, %v1397
      %1447 = vst.msk [vmem:[%s172 + $0x20] sm:$0xf] %vm1438, %v1398
      %1448 = vst.msk [vmem:[%s172 + $0x24] sm:$0xf] %vm1438, %v1399
      %1449 = vst.msk [vmem:[%s172 + $0x28] sm:$0xf] %vm1438, %v1400
      %1450 = vst.msk [vmem:[%s172 + $0x2c] sm:$0xf] %vm1438, %v1401
      %1451 = vst.msk [vmem:[%s172 + $0x30] sm:$0xf] %vm1438, %v1402
      %1452 = vst.msk [vmem:[%s172 + $0x34] sm:$0xf] %vm1438, %v1403
      %1453 = vst.msk [vmem:[%s172 + $0x38] sm:$0xf] %vm1438, %v1404
      %1454 = vst.msk [vmem:[%s172 + $0x3c] sm:$0xf] %vm1438, %v1405
      %1455 = vst.msk [vmem:[%s172 + $0x40] sm:$0xf] %vm1438, %v1406
      %1456 = vst.msk [vmem:[%s172 + $0x44] sm:$0xf] %vm1438, %v1407
      %1457 = vst.msk [vmem:[%s172 + $0x48] sm:$0xf] %vm1438, %v1408
      %1458 = vst.msk [vmem:[%s172 + $0x4c] sm:$0xf] %vm1438, %v1409
      %1459 = vst.msk [vmem:[%s172 + $0x50] sm:$0xf] %vm1438, %v1410
      %1460 = vst.msk [vmem:[%s172 + $0x54] sm:$0xf] %vm1438, %v1411
      %1461 = vst.msk [vmem:[%s172 + $0x58] sm:$0xf] %vm1438, %v1412
      %1462 = vst.msk [vmem:[%s172 + $0x5c] sm:$0xf] %vm1438, %v1413
      %1463 = vst.msk [vmem:[%s172 + $0x60] sm:$0xf] %vm1438, %v1414
      %1464 = vst.msk [vmem:[%s172 + $0x64] sm:$0xf] %vm1438, %v1415
      %1465 = vst.msk [vmem:[%s172 + $0x68] sm:$0xf] %vm1438, %v1416
      %1466 = vst.msk [vmem:[%s172 + $0x6c] sm:$0xf] %vm1438, %v1417
      %1467 = vst.msk [vmem:[%s172 + $0x70] sm:$0xf] %vm1438, %v1418
      %1468 = vst.msk [vmem:[%s172 + $0x74] sm:$0xf] %vm1438, %v1419
      %1469 = vst.msk [vmem:[%s172 + $0x78] sm:$0xf] %vm1438, %v1420
      %1470 = vst.msk [vmem:[%s172 + $0x7c] sm:$0xf] %vm1438, %v1421
      %1471 = vst.msk [vmem:[%s172 + $0x80] sm:$0xf] %vm1438, %v1422
      %1472 = vst.msk [vmem:[%s172 + $0x84] sm:$0xf] %vm1438, %v1423
      %1473 = vst.msk [vmem:[%s172 + $0x88] sm:$0xf] %vm1438, %v1424
      %1474 = vst.msk [vmem:[%s172 + $0x8c] sm:$0xf] %vm1438, %v1425
      %1475 = vst.msk [vmem:[%s172 + $0x90] sm:$0xf] %vm1438, %v1426
      %1476 = vst.msk [vmem:[%s172 + $0x94] sm:$0xf] %vm1438, %v1427
      %1477 = vst.msk [vmem:[%s172 + $0x98] sm:$0xf] %vm1438, %v1428
      %1478 = vst.msk [vmem:[%s172 + $0x9c] sm:$0xf] %vm1438, %v1429
      %1479 = vst.msk [vmem:[%s172 + $0xa0] sm:$0xf] %vm1438, %v1430
      %1480 = vst.msk [vmem:[%s172 + $0xa4] sm:$0xf] %vm1438, %v1431
      %1481 = vst.msk [vmem:[%s172 + $0xa8] sm:$0xf] %vm1438, %v1432
      %1482 = vst.msk [vmem:[%s172 + $0xac] sm:$0xf] %vm1438, %v1433
      %1483 = vst.msk [vmem:[%s172 + $0xb0] sm:$0xf] %vm1438, %v1434
      %1484 = vst.msk [vmem:[%s172 + $0xb4] sm:$0xf] %vm1438, %v1435
      %1485 = vst.msk [vmem:[%s172 + $0xb8] sm:$0xf] %vm1438, %v1436
      %1486 = vst.msk [vmem:[%s172 + $0xbc] sm:$0xf] %vm1438, %v1437
      %s1487 = smul.u32 48, %s14
      %p1488 = scmp.lt.s32.totalorder %s1487, 143
      %s1489 = scalar_select %p1488, %s1487, 143
      %s1490 = smul.addr %s1489, 4
      %s1491 = scalar_lea.vmem %s3, %s1490
      // Predicated region
      $region33: #{_lambda_.3} parent=31 // pred_check
        %p1492 = pneg %p100
      $region34: #{_lambda_.3} parent=31 // pred_check_branch
        %1494 = sbr.rel (%p1492) target = $region36
      $region35: #{_lambda_.3} parent=31 // pred_region
        %s1495 = smul.u32 48, %s14
      $region36: #{_lambda_.3} parent=31 // pred_fallthru
        _
    $region32: #{_lambda_.3} parent=5 // pred_fallthru
      _
    %p1496 = scmp.le.s32.totalorder 2, %s9
    // Predicated region
    $region37: #{_lambda_.3} parent=5 // pred_check
      %p1497 = pneg %p1496
    $region38: #{_lambda_.3} parent=5 // pred_check_branch
      %1499 = sbr.rel (%p1497) target = $region40
    $region39: #{_lambda_.3} parent=5 // pred_region
      %s1500 = ssub.s32 %s9, 2
      // Predicated region
      $region41: #{_lambda_.3} parent=39 // pred_check
        %p1501 = pneg %p106
      $region42: #{_lambda_.3} parent=39 // pred_check_branch
        %1503 = sbr.rel (%p1501) target = $region44
      $region43: #{_lambda_.3} parent=39 // pred_region
        %s1504 = smul.u32 48, %s15
        %p1505 = scmp.lt.s32.totalorder %s1504, 143
        %s1506 = scalar_select %p1505, %s1504, 143
        %s1507 = smul.addr %s1506, 4
        %s1508 = scalar_lea.vmem %s3, %s1507
      $region44: #{_lambda_.3} parent=39 // pred_fallthru
        _
    $region40: #{_lambda_.3} parent=5 // pred_fallthru
      _
  $region6: #{_lambda_.3} parent=0 // loop_footer
    %s13 = sadd.s32 1, %s9
  $region7: #{_lambda_.3} parent=0 // loop_footer_branch
    %8 = sbr.rel target = $region3
  $region8: #{_lambda_.3} parent=0 // loop_exit
    _

// kernel: _lambda_.4
$region0: #{_lambda_.4}
  #allocation0 [shape = 'u32[]', space=smem, size = 0x4, offset = 0x4, fixed_abs, tag = 'smem constant byte address 0x4 - core index']
  #allocation1 [shape = 'u32[72,128]{1,0:T(1,128)}', space=vmem, size = 0x9000, scoped, tag = 'internal scratch']
  %s0 = inlined_call_operand.vmem [shape: f32[2,576,32], index: 0, kind: input, shape index: {}]
  %s1 = inlined_call_operand.vmem [shape: f32[2,10,32], index: 1, kind: input, shape index: {}]
  %s2 = inlined_call_operand.vmem [shape: f32[1,32], index: 2, kind: input, shape index: {}, may-alias: {2,5}]
  %s3 = inlined_call_operand.vmem [shape: f32[1,32], index: 3, kind: input, shape index: {}, may-alias: {3,6}]
  %s4 = inlined_call_operand.vmem [shape: bf16[32,32], index: 4, kind: input, shape index: {}]
  %s5 = inlined_call_operand.vmem [shape: f32[1,32], index: 5, kind: input, shape index: {}, may-alias: {2,5}]
  %s6 = inlined_call_operand.vmem [shape: f32[1,32], index: 6, kind: input, shape index: {}, may-alias: {3,6}]
  %s7 = inlined_call_operand.vmem [shape: bf16[2,32,32], index: 7, kind: input, shape index: {}]
  %s8 = inlined_call_operand.vmem [shape: bf16[2,32,32], index: 8, kind: input, shape index: {}]
  %s9 = inlined_call_operand.vmem [shape: f32[1,32], index: 9, kind: input, shape index: {}]
  %s10 = inlined_call_operand.vmem [shape: f32[2,576,32], index: 10, kind: output, shape index: {}]
  %s11 = sld [smem:[#allocation0]]
  $region73: #{_lambda_.4} parent=0
    _
  %s13 = ssub.s32 1, %s11
  %s14 = scalar_select 0, %s13, %s11
  loop: start=0, step=1, limit=6
  $region2: #{_lambda_.4} parent=0 // loop_pre_header
    _
  $region3: #{_lambda_.4} parent=0 // loop_header
    %s16 = sphi 0, %s20
    %p17 = scmp.ge.s32.totalorder %s16, 6
    %s23 = sphi 0, %s35
    %s24 = sphi 0, %s31
    %s25 = sphi 0, %s23
    %s26 = sphi 0, %s24
    %s27 = sphi 0, %s25
    %s28 = sphi 0, %s26
    %s40 = sphi 0, %s42
    %s43 = sphi 0, %s40
    %s44 = sphi 0, %s43
    %s60 = sphi 0, %s44
    %s66 = sphi 0, %s68
    %s69 = sphi 0, %s66
    %s70 = sphi 0, %s69
    %s86 = sphi 0, %s70
    %s90 = sphi 0, %s90
    %s92 = sphi 0, %s90
    %s93 = sphi 0, %s92
    %s107 = sphi 0, %s93
    %s111 = sphi 0, %s111
    %s113 = sphi 0, %s111
    %s114 = sphi 0, %s113
    %s128 = sphi 0, %s114
    %s132 = sphi 0, %s132
    %s134 = sphi 0, %s132
    %s135 = sphi 0, %s134
    %s149 = sphi 0, %s135
    %s153 = sphi 0, %s153
    %s155 = sphi 0, %s153
    %s156 = sphi 0, %s155
    %s170 = sphi 0, %s156
    %s174 = sphi 0, %s174
    %s176 = sphi 0, %s174
    %s177 = sphi 0, %s176
    %s191 = sphi 0, %s177
    %s195 = sphi 0, %s195
    %s197 = sphi 0, %s195
    %s198 = sphi 0, %s197
    %s212 = sphi 0, %s198
    %s216 = sphi 0, %s216
    %s218 = sphi 0, %s216
    %s219 = sphi 0, %s218
    %s233 = sphi 0, %s219
    %s237 = sphi 0, %s237
    %s239 = sphi 0, %s237
    %s240 = sphi 0, %s239
    %s254 = sphi 0, %s240
    %s262 = sphi 0, %s264
    %s265 = sphi 0, %s262
    %s266 = sphi 0, %s265
    %s282 = sphi 0, %s266
  $region4: #{_lambda_.4} parent=0 // loop_header_branch
    %19 = sbr.rel (%p17) target = $region8
  $region5: #{_lambda_.4} parent=0 // loop_body
    %s21 = ssub.s32 %s16, 1
    %s22 = ssub.s32 %s16, 2
    %s29 = sadd.s32 1, %s24
    %p30 = scmp.ge.s32.totalorder %s29, 2
    %s31 = scalar_select %p30, 0, %s29
    %s32 = sadd.s32 1, %s23
    %s33 = scalar_select %p30, %s32, %s23
    %p34 = scmp.ge.s32.totalorder %s33, 2
    %s35 = scalar_select %p34, 0, %s33
    %s36 = ssub.s32 %s23, %s35
    %s37 = ssub.s32 %s24, %s31
    %s38 = sor.u32 %s36, %s37
    %p39 = scmp.eq.s32.totalorder %s38, 0
    %s41 = sadd.s32 %s40, 1
    %s42 = scalar_select %p39, %s40, %s41
    %p45 = pneg %p39
    %p46 = scmp.eq.s32.totalorder %s16, 3
    %p47 = por %p45, %p46
    %p48 = scmp.ne.s32.totalorder %s40, %s43
    %p49 = scmp.eq.s32.totalorder %s16, 0
    %p50 = por %p48, %p49
    %p51 = scmp.ne.s32.totalorder %s40, %s43
    %p52 = scmp.eq.s32.totalorder %s21, 3
    %p53 = por %p51, %p52
    %p54 = scmp.ne.s32.totalorder %s43, %s44
    %p55 = scmp.eq.s32.totalorder %s21, 0
    %p56 = por %p54, %p55
    %p57 = scmp.ne.s32.totalorder %s43, %s44
    %p58 = scmp.eq.s32.totalorder %s22, 3
    %p59 = por %p57, %p58
    %p61 = scmp.ne.s32.totalorder %s44, %s60
    %p62 = scmp.eq.s32.totalorder %s22, 0
    %p63 = por %p61, %p62
    %s64 = ssub.s32 %s23, %s35
    %p65 = scmp.eq.s32.totalorder %s64, 0
    %s67 = sadd.s32 %s66, 1
    %s68 = scalar_select %p65, %s66, %s67
    %p71 = pneg %p65
    %p72 = scmp.eq.s32.totalorder %s16, 3
    %p73 = por %p71, %p72
    %p74 = scmp.ne.s32.totalorder %s66, %s69
    %p75 = scmp.eq.s32.totalorder %s16, 0
    %p76 = por %p74, %p75
    %p77 = scmp.ne.s32.totalorder %s66, %s69
    %p78 = scmp.eq.s32.totalorder %s21, 3
    %p79 = por %p77, %p78
    %p80 = scmp.ne.s32.totalorder %s69, %s70
    %p81 = scmp.eq.s32.totalorder %s21, 0
    %p82 = por %p80, %p81
    %p83 = scmp.ne.s32.totalorder %s69, %s70
    %p84 = scmp.eq.s32.totalorder %s22, 3
    %p85 = por %p83, %p84
    %p87 = scmp.ne.s32.totalorder %s70, %s86
    %p88 = scmp.eq.s32.totalorder %s22, 0
    %p89 = por %p87, %p88
    %s91 = sadd.s32 %s90, 1
    %p94 = scmp.eq.s32.totalorder %s16, 3
    %p95 = scmp.ne.s32.totalorder %s90, %s92
    %p96 = scmp.eq.s32.totalorder %s16, 0
    %p97 = por %p95, %p96
    %p98 = scmp.ne.s32.totalorder %s90, %s92
    %p99 = scmp.eq.s32.totalorder %s21, 3
    %p100 = por %p98, %p99
    %p101 = scmp.ne.s32.totalorder %s92, %s93
    %p102 = scmp.eq.s32.totalorder %s21, 0
    %p103 = por %p101, %p102
    %p104 = scmp.ne.s32.totalorder %s92, %s93
    %p105 = scmp.eq.s32.totalorder %s22, 3
    %p106 = por %p104, %p105
    %p108 = scmp.ne.s32.totalorder %s93, %s107
    %p109 = scmp.eq.s32.totalorder %s22, 0
    %p110 = por %p108, %p109
    %s112 = sadd.s32 %s111, 1
    %p115 = scmp.eq.s32.totalorder %s16, 3
    %p116 = scmp.ne.s32.totalorder %s111, %s113
    %p117 = scmp.eq.s32.totalorder %s16, 0
    %p118 = por %p116, %p117
    %p119 = scmp.ne.s32.totalorder %s111, %s113
    %p120 = scmp.eq.s32.totalorder %s21, 3
    %p121 = por %p119, %p120
    %p122 = scmp.ne.s32.totalorder %s113, %s114
    %p123 = scmp.eq.s32.totalorder %s21, 0
    %p124 = por %p122, %p123
    %p125 = scmp.ne.s32.totalorder %s113, %s114
    %p126 = scmp.eq.s32.totalorder %s22, 3
    %p127 = por %p125, %p126
    %p129 = scmp.ne.s32.totalorder %s114, %s128
    %p130 = scmp.eq.s32.totalorder %s22, 0
    %p131 = por %p129, %p130
    %s133 = sadd.s32 %s132, 1
    %p136 = scmp.eq.s32.totalorder %s16, 3
    %p137 = scmp.ne.s32.totalorder %s132, %s134
    %p138 = scmp.eq.s32.totalorder %s16, 0
    %p139 = por %p137, %p138
    %p140 = scmp.ne.s32.totalorder %s132, %s134
    %p141 = scmp.eq.s32.totalorder %s21, 3
    %p142 = por %p140, %p141
    %p143 = scmp.ne.s32.totalorder %s134, %s135
    %p144 = scmp.eq.s32.totalorder %s21, 0
    %p145 = por %p143, %p144
    %p146 = scmp.ne.s32.totalorder %s134, %s135
    %p147 = scmp.eq.s32.totalorder %s22, 3
    %p148 = por %p146, %p147
    %p150 = scmp.ne.s32.totalorder %s135, %s149
    %p151 = scmp.eq.s32.totalorder %s22, 0
    %p152 = por %p150, %p151
    %s154 = sadd.s32 %s153, 1
    %p157 = scmp.eq.s32.totalorder %s16, 3
    %p158 = scmp.ne.s32.totalorder %s153, %s155
    %p159 = scmp.eq.s32.totalorder %s16, 0
    %p160 = por %p158, %p159
    %p161 = scmp.ne.s32.totalorder %s153, %s155
    %p162 = scmp.eq.s32.totalorder %s21, 3
    %p163 = por %p161, %p162
    %p164 = scmp.ne.s32.totalorder %s155, %s156
    %p165 = scmp.eq.s32.totalorder %s21, 0
    %p166 = por %p164, %p165
    %p167 = scmp.ne.s32.totalorder %s155, %s156
    %p168 = scmp.eq.s32.totalorder %s22, 3
    %p169 = por %p167, %p168
    %p171 = scmp.ne.s32.totalorder %s156, %s170
    %p172 = scmp.eq.s32.totalorder %s22, 0
    %p173 = por %p171, %p172
    %s175 = sadd.s32 %s174, 1
    %p178 = scmp.eq.s32.totalorder %s16, 3
    %p179 = scmp.ne.s32.totalorder %s174, %s176
    %p180 = scmp.eq.s32.totalorder %s16, 0
    %p181 = por %p179, %p180
    %p182 = scmp.ne.s32.totalorder %s174, %s176
    %p183 = scmp.eq.s32.totalorder %s21, 3
    %p184 = por %p182, %p183
    %p185 = scmp.ne.s32.totalorder %s176, %s177
    %p186 = scmp.eq.s32.totalorder %s21, 0
    %p187 = por %p185, %p186
    %p188 = scmp.ne.s32.totalorder %s176, %s177
    %p189 = scmp.eq.s32.totalorder %s22, 3
    %p190 = por %p188, %p189
    %p192 = scmp.ne.s32.totalorder %s177, %s191
    %p193 = scmp.eq.s32.totalorder %s22, 0
    %p194 = por %p192, %p193
    %s196 = sadd.s32 %s195, 1
    %p199 = scmp.eq.s32.totalorder %s16, 3
    %p200 = scmp.ne.s32.totalorder %s195, %s197
    %p201 = scmp.eq.s32.totalorder %s16, 0
    %p202 = por %p200, %p201
    %p203 = scmp.ne.s32.totalorder %s195, %s197
    %p204 = scmp.eq.s32.totalorder %s21, 3
    %p205 = por %p203, %p204
    %p206 = scmp.ne.s32.totalorder %s197, %s198
    %p207 = scmp.eq.s32.totalorder %s21, 0
    %p208 = por %p206, %p207
    %p209 = scmp.ne.s32.totalorder %s197, %s198
    %p210 = scmp.eq.s32.totalorder %s22, 3
    %p211 = por %p209, %p210
    %p213 = scmp.ne.s32.totalorder %s198, %s212
    %p214 = scmp.eq.s32.totalorder %s22, 0
    %p215 = por %p213, %p214
    %s217 = sadd.s32 %s216, 1
    %p220 = scmp.eq.s32.totalorder %s16, 3
    %p221 = scmp.ne.s32.totalorder %s216, %s218
    %p222 = scmp.eq.s32.totalorder %s16, 0
    %p223 = por %p221, %p222
    %p224 = scmp.ne.s32.totalorder %s216, %s218
    %p225 = scmp.eq.s32.totalorder %s21, 3
    %p226 = por %p224, %p225
    %p227 = scmp.ne.s32.totalorder %s218, %s219
    %p228 = scmp.eq.s32.totalorder %s21, 0
    %p229 = por %p227, %p228
    %p230 = scmp.ne.s32.totalorder %s218, %s219
    %p231 = scmp.eq.s32.totalorder %s22, 3
    %p232 = por %p230, %p231
    %p234 = scmp.ne.s32.totalorder %s219, %s233
    %p235 = scmp.eq.s32.totalorder %s22, 0
    %p236 = por %p234, %p235
    %s238 = sadd.s32 %s237, 1
    %p241 = scmp.eq.s32.totalorder %s16, 3
    %p242 = scmp.ne.s32.totalorder %s237, %s239
    %p243 = scmp.eq.s32.totalorder %s16, 0
    %p244 = por %p242, %p243
    %p245 = scmp.ne.s32.totalorder %s237, %s239
    %p246 = scmp.eq.s32.totalorder %s21, 3
    %p247 = por %p245, %p246
    %p248 = scmp.ne.s32.totalorder %s239, %s240
    %p249 = scmp.eq.s32.totalorder %s21, 0
    %p250 = por %p248, %p249
    %p251 = scmp.ne.s32.totalorder %s239, %s240
    %p252 = scmp.eq.s32.totalorder %s22, 3
    %p253 = por %p251, %p252
    %p255 = scmp.ne.s32.totalorder %s240, %s254
    %p256 = scmp.eq.s32.totalorder %s22, 0
    %p257 = por %p255, %p256
    %s258 = ssub.s32 %s23, %s35
    %s259 = ssub.s32 %s24, %s31
    %s260 = sor.u32 %s258, %s259
    %p261 = scmp.eq.s32.totalorder %s260, 0
    %s263 = sadd.s32 %s262, 1
    %s264 = scalar_select %p261, %s262, %s263
    %p267 = pneg %p261
    %p268 = scmp.eq.s32.totalorder %s16, 3
    %p269 = por %p267, %p268
    %p270 = scmp.ne.s32.totalorder %s262, %s265
    %p271 = scmp.eq.s32.totalorder %s16, 0
    %p272 = por %p270, %p271
    %p273 = scmp.ne.s32.totalorder %s262, %s265
    %p274 = scmp.eq.s32.totalorder %s21, 3
    %p275 = por %p273, %p274
    %p276 = scmp.ne.s32.totalorder %s265, %s266
    %p277 = scmp.eq.s32.totalorder %s21, 0
    %p278 = por %p276, %p277
    %p279 = scmp.ne.s32.totalorder %s265, %s266
    %p280 = scmp.eq.s32.totalorder %s22, 3
    %p281 = por %p279, %p280
    %p283 = scmp.ne.s32.totalorder %s266, %s282
    %p284 = scmp.eq.s32.totalorder %s22, 0
    %p285 = por %p283, %p284
    %p286 = scmp.le.s32.totalorder 1, %s16
    %p287 = scmp.lt.s32.totalorder %s16, 5
    %p288 = pnand %p286, %p287
    %p289 = pneg %p288
    // Predicated region
    $region9: #{_lambda_.4} parent=5 // pred_check
      _
    $region10: #{_lambda_.4} parent=5 // pred_check_branch
      %291 = sbr.rel (%p288) target = $region12
    $region11: #{_lambda_.4} parent=5 // pred_region
      %s292 = ssub.s32 %s16, 1
      // Predicated region
      $region13: #{_lambda_.4} parent=11 // pred_check
        %p293 = pneg %p103
      $region14: #{_lambda_.4} parent=11 // pred_check_branch
        %295 = sbr.rel (%p293) target = $region16
      $region15: #{_lambda_.4} parent=11 // pred_region
        _
      $region16: #{_lambda_.4} parent=11 // pred_fallthru
        _
      // Predicated region
      $region17: #{_lambda_.4} parent=11 // pred_check
        %p296 = pneg %p124
      $region18: #{_lambda_.4} parent=11 // pred_check_branch
        %298 = sbr.rel (%p296) target = $region20
      $region19: #{_lambda_.4} parent=11 // pred_region
        _
      $region20: #{_lambda_.4} parent=11 // pred_fallthru
        _
      // Predicated region
      $region21: #{_lambda_.4} parent=11 // pred_check
        %p299 = pneg %p145
      $region22: #{_lambda_.4} parent=11 // pred_check_branch
        %301 = sbr.rel (%p299) target = $region24
      $region23: #{_lambda_.4} parent=11 // pred_region
        _
      $region24: #{_lambda_.4} parent=11 // pred_fallthru
        _
      // Predicated region
      $region25: #{_lambda_.4} parent=11 // pred_check
        %p302 = pneg %p166
      $region26: #{_lambda_.4} parent=11 // pred_check_branch
        %304 = sbr.rel (%p302) target = $region28
      $region27: #{_lambda_.4} parent=11 // pred_region
        _
      $region28: #{_lambda_.4} parent=11 // pred_fallthru
        _
      // Predicated region
      $region29: #{_lambda_.4} parent=11 // pred_check
        %p305 = pneg %p187
      $region30: #{_lambda_.4} parent=11 // pred_check_branch
        %307 = sbr.rel (%p305) target = $region32
      $region31: #{_lambda_.4} parent=11 // pred_region
        _
      $region32: #{_lambda_.4} parent=11 // pred_fallthru
        _
      // Predicated region
      $region33: #{_lambda_.4} parent=11 // pred_check
        %p308 = pneg %p208
      $region34: #{_lambda_.4} parent=11 // pred_check_branch
        %310 = sbr.rel (%p308) target = $region36
      $region35: #{_lambda_.4} parent=11 // pred_region
        _
      $region36: #{_lambda_.4} parent=11 // pred_fallthru
        _
      // Predicated region
      $region37: #{_lambda_.4} parent=11 // pred_check
        %p311 = pneg %p229
      $region38: #{_lambda_.4} parent=11 // pred_check_branch
        %313 = sbr.rel (%p311) target = $region40
      $region39: #{_lambda_.4} parent=11 // pred_region
        _
      $region40: #{_lambda_.4} parent=11 // pred_fallthru
        _
      // Predicated region
      $region41: #{_lambda_.4} parent=11 // pred_check
        %p314 = pneg %p250
      $region42: #{_lambda_.4} parent=11 // pred_check_branch
        %316 = sbr.rel (%p314) target = $region44
      $region43: #{_lambda_.4} parent=11 // pred_region
        _
      $region44: #{_lambda_.4} parent=11 // pred_fallthru
        _
    $region12: #{_lambda_.4} parent=5 // pred_fallthru
      _
    %p317 = scmp.lt.s32.totalorder %s16, 4
    // Predicated region
    $region45: #{_lambda_.4} parent=5 // pred_check
      %p318 = pneg %p317
    $region46: #{_lambda_.4} parent=5 // pred_check_branch
      %320 = sbr.rel (%p318) target = $region48
    $region47: #{_lambda_.4} parent=5 // pred_region
      // Predicated region
      $region49: #{_lambda_.4} parent=47 // pred_check
        %p321 = pneg %p50
      $region50: #{_lambda_.4} parent=47 // pred_check_branch
        %323 = sbr.rel (%p321) target = $region52
      $region51: #{_lambda_.4} parent=47 // pred_region
        %s324 = smul.u32 36, %s24
        %p325 = scmp.lt.s32.totalorder %s23, 1
        %s326 = scalar_select %p325, %s23, 1
        %p327 = scmp.lt.s32.totalorder %s324, 71
        %s328 = scalar_select %p327, %s324, 71
        %s329 = smul.addr %s326, 72
        %s330 = sadd.s32 %s328, %s329
        %s331 = smul.addr %s330, 8
        %s332 = scalar_lea.vmem %s0, %s331
        %s333 = smul.u32 36, %s24
      $region52: #{_lambda_.4} parent=47 // pred_fallthru
        _
      // Predicated region
      $region53: #{_lambda_.4} parent=47 // pred_check
        %p334 = pneg %p76
      $region54: #{_lambda_.4} parent=47 // pred_check_branch
        %336 = sbr.rel (%p334) target = $region56
      $region55: #{_lambda_.4} parent=47 // pred_region
        %p337 = scmp.lt.s32.totalorder %s23, 1
        %s338 = scalar_select %p337, %s23, 1
        %s339 = smul.addr %s338, 2
        %s340 = smul.addr %s339, 8
        %s341 = scalar_lea.vmem %s1, %s340
      $region56: #{_lambda_.4} parent=47 // pred_fallthru
        _
    $region48: #{_lambda_.4} parent=5 // pred_fallthru
      _
    %p342 = scmp.le.s32.totalorder 1, %s16
    %p343 = scmp.lt.s32.totalorder %s16, 5
    %p344 = pnand %p342, %p343
    %p345 = pneg %p344
    // Predicated region
    $region57: #{_lambda_.4} parent=5 // pred_check
      _
    $region58: #{_lambda_.4} parent=5 // pred_check_branch
      %347 = sbr.rel (%p344) target = $region60
    $region59: #{_lambda_.4} parent=5 // pred_region
      %s348 = ssub.s32 %s16, 1
      %s349 = smul.u32 36, %s26
      %p350 = scmp.lt.s32.totalorder %s25, 1
      %s351 = scalar_select %p350, %s25, 1
      %p352 = scmp.lt.s32.totalorder %s349, 71
      %s353 = scalar_select %p352, %s349, 71
      %s354 = smul.addr %s351, 72
      %s355 = sadd.s32 %s353, %s354
      %s356 = smul.addr %s355, 8
      %s357 = scalar_lea.vmem %s0, %s356
      %p358 = pneg %p56
      %p359 = pneg %p53
      %p360 = scmp.lt.s32.totalorder %s25, 1
      %s361 = scalar_select %p360, %s25, 1
      %s362 = smul.addr %s361, 2
      %s363 = smul.addr %s362, 8
      %s364 = scalar_lea.vmem %s1, %s363
      %p365 = pneg %p82
      %p366 = pneg %p79
      %p367 = pneg %p103
      %p368 = pneg %p100
      %p369 = pneg %p124
      %p370 = pneg %p121
      %p371 = pneg %p145
      %p372 = pneg %p142
      %p373 = pneg %p166
      %p374 = pneg %p163
      %p375 = pneg %p187
      %p376 = pneg %p184
      %p377 = pneg %p208
      %p378 = pneg %p205
      %p379 = pneg %p229
      %p380 = pneg %p226
      %p381 = pneg %p250
      %p382 = pneg %p247
      %p383 = pneg %p278
      %p384 = pneg %p275
      %s385 = smul.u32 36, %s26
      %p386 = scmp.lt.s32.totalorder %s25, 1
      %s387 = scalar_select %p386, %s25, 1
      %p388 = scmp.lt.s32.totalorder %s385, 71
      %s389 = scalar_select %p388, %s385, 71
      %s390 = smul.addr %s387, 72
      %s391 = sadd.s32 %s389, %s390
      %s392 = smul.addr %s391, 8
      %s393 = scalar_lea.vmem %s10, %s392
      %s394 = smul.u32 36, %s26
      %p395 = scmp.lt.s32.totalorder %s25, 1
      %s396 = scalar_select %p395, %s25, 1
      %p397 = scmp.lt.s32.totalorder %s394, 71
      %s398 = scalar_select %p397, %s394, 71
      %s399 = smul.addr %s396, 72
      %s400 = sadd.s32 %s398, %s399
      %s401 = smul.addr %s400, 8
      %s402 = scalar_lea.vmem %s0, %s401
      %s403 = smul.u32 36, %s26
      %p404 = scmp.lt.s32.totalorder %s25, 1
      %s405 = scalar_select %p404, %s25, 1
      %s406 = smul.addr %s405, 2
      %s407 = smul.addr %s406, 8
      %s408 = scalar_lea.vmem %s1, %s407
      %s409 = smul.u32 36, %s26
      %p410 = scmp.lt.s32.totalorder %s25, 1
      %s411 = scalar_select %p410, %s25, 1
      %p412 = scmp.lt.s32.totalorder %s409, 71
      %s413 = scalar_select %p412, %s409, 71
      %s414 = smul.addr %s411, 72
      %s415 = sadd.s32 %s413, %s414
      %s416 = smul.addr %s415, 8
      %s417 = scalar_lea.vmem %s10, %s416
      %s418 = smul.u32 36, %s26
      %v420 = vld [vmem:[%s402] sm:$0xff]
      %v421 = vld [vmem:[%s402 + $0x8] sm:$0xff]
      %v422 = vld [vmem:[%s402 + $0x10] sm:$0xff]
      %v423 = vld [vmem:[%s402 + $0x18] sm:$0xff]
      %v424 = vld [vmem:[%s402 + $0x20] sm:$0xff]
      %v425 = vld [vmem:[%s402 + $0x28] sm:$0xff]
      %v426 = vld [vmem:[%s402 + $0x30] sm:$0xff]
      %v427 = vld [vmem:[%s402 + $0x38] sm:$0xff]
      %v428 = vld [vmem:[%s402 + $0x40] sm:$0xff]
      %v429 = vld [vmem:[%s402 + $0x48] sm:$0xff]
      %v430 = vld [vmem:[%s402 + $0x50] sm:$0xff]
      %v431 = vld [vmem:[%s402 + $0x58] sm:$0xff]
      %v432 = vld [vmem:[%s402 + $0x60] sm:$0xff]
      %v433 = vld [vmem:[%s402 + $0x68] sm:$0xff]
      %v434 = vld [vmem:[%s402 + $0x70] sm:$0xff]
      %v435 = vld [vmem:[%s402 + $0x78] sm:$0xff]
      %v436 = vld [vmem:[%s402 + $0x80] sm:$0xff]
      %v437 = vld [vmem:[%s402 + $0x88] sm:$0xff]
      %v438 = vld [vmem:[%s402 + $0x90] sm:$0xff]
      %v439 = vld [vmem:[%s402 + $0x98] sm:$0xff]
      %v440 = vld [vmem:[%s402 + $0xa0] sm:$0xff]
      %v441 = vld [vmem:[%s402 + $0xa8] sm:$0xff]
      %v442 = vld [vmem:[%s402 + $0xb0] sm:$0xff]
      %v443 = vld [vmem:[%s402 + $0xb8] sm:$0xff]
      %v444 = vld [vmem:[%s402 + $0xc0] sm:$0xff]
      %v445 = vld [vmem:[%s402 + $0xc8] sm:$0xff]
      %v446 = vld [vmem:[%s402 + $0xd0] sm:$0xff]
      %v447 = vld [vmem:[%s402 + $0xd8] sm:$0xff]
      %v448 = vld [vmem:[%s402 + $0xe0] sm:$0xff]
      %v449 = vld [vmem:[%s402 + $0xe8] sm:$0xff]
      %v450 = vld [vmem:[%s402 + $0xf0] sm:$0xff]
      %v451 = vld [vmem:[%s402 + $0xf8] sm:$0xff]
      %v452 = vld [vmem:[%s402 + $0x100] sm:$0xff]
      %v453 = vld [vmem:[%s402 + $0x108] sm:$0xff]
      %v454 = vld [vmem:[%s402 + $0x110] sm:$0xff]
      %v455 = vld [vmem:[%s402 + $0x118] sm:$0xff]
      %v456 = vld [vmem:[%s2] sm:$0x1]
      %v457 = vld [vmem:[%s3] sm:$0x1]
      %vm458 = vcmask 261120
      %v459 = vsel %vm458, %v420, 0.0
      %460 = vadd.xlane.f32.xlu0 %v459
      %v461 = vpop.xlane.xlu0 %460
      %v462 = vsel %vm458, %v421, 0.0
      %463 = vadd.xlane.f32.xlu0 %v462
      %v464 = vpop.xlane.xlu0 %463
      %v465 = vsel %vm458, %v422, 0.0
      %466 = vadd.xlane.f32.xlu0 %v465
      %v467 = vpop.xlane.xlu0 %466
      %v468 = vsel %vm458, %v423, 0.0
      %469 = vadd.xlane.f32.xlu0 %v468
      %v470 = vpop.xlane.xlu0 %469
      %v471 = vsel %vm458, %v424, 0.0
      %472 = vadd.xlane.f32.xlu0 %v471
      %v473 = vpop.xlane.xlu0 %472
      %v474 = vsel %vm458, %v425, 0.0
      %475 = vadd.xlane.f32.xlu0 %v474
      %v476 = vpop.xlane.xlu0 %475
      %v477 = vsel %vm458, %v426, 0.0
      %478 = vadd.xlane.f32.xlu0 %v477
      %v479 = vpop.xlane.xlu0 %478
      %v480 = vsel %vm458, %v427, 0.0
      %481 = vadd.xlane.f32.xlu0 %v480
      %v482 = vpop.xlane.xlu0 %481
      %v483 = vsel %vm458, %v428, 0.0
      %484 = vadd.xlane.f32.xlu0 %v483
      %v485 = vpop.xlane.xlu0 %484
      %v486 = vsel %vm458, %v429, 0.0
      %487 = vadd.xlane.f32.xlu0 %v486
      %v488 = vpop.xlane.xlu0 %487
      %v489 = vsel %vm458, %v430, 0.0
      %490 = vadd.xlane.f32.xlu0 %v489
      %v491 = vpop.xlane.xlu0 %490
      %v492 = vsel %vm458, %v431, 0.0
      %493 = vadd.xlane.f32.xlu0 %v492
      %v494 = vpop.xlane.xlu0 %493
      %v495 = vsel %vm458, %v432, 0.0
      %496 = vadd.xlane.f32.xlu0 %v495
      %v497 = vpop.xlane.xlu0 %496
      %v498 = vsel %vm458, %v433, 0.0
      %499 = vadd.xlane.f32.xlu0 %v498
      %v500 = vpop.xlane.xlu0 %499
      %v501 = vsel %vm458, %v434, 0.0
      %502 = vadd.xlane.f32.xlu0 %v501
      %v503 = vpop.xlane.xlu0 %502
      %v504 = vsel %vm458, %v435, 0.0
      %505 = vadd.xlane.f32.xlu0 %v504
      %v506 = vpop.xlane.xlu0 %505
      %v507 = vsel %vm458, %v436, 0.0
      %508 = vadd.xlane.f32.xlu0 %v507
      %v509 = vpop.xlane.xlu0 %508
      %v510 = vsel %vm458, %v437, 0.0
      %511 = vadd.xlane.f32.xlu0 %v510
      %v512 = vpop.xlane.xlu0 %511
      %v513 = vsel %vm458, %v438, 0.0
      %514 = vadd.xlane.f32.xlu0 %v513
      %v515 = vpop.xlane.xlu0 %514
      %v516 = vsel %vm458, %v439, 0.0
      %517 = vadd.xlane.f32.xlu0 %v516
      %v518 = vpop.xlane.xlu0 %517
      %v519 = vsel %vm458, %v440, 0.0
      %520 = vadd.xlane.f32.xlu0 %v519
      %v521 = vpop.xlane.xlu0 %520
      %v522 = vsel %vm458, %v441, 0.0
      %523 = vadd.xlane.f32.xlu0 %v522
      %v524 = vpop.xlane.xlu0 %523
      %v525 = vsel %vm458, %v442, 0.0
      %526 = vadd.xlane.f32.xlu0 %v525
      %v527 = vpop.xlane.xlu0 %526
      %v528 = vsel %vm458, %v443, 0.0
      %529 = vadd.xlane.f32.xlu0 %v528
      %v530 = vpop.xlane.xlu0 %529
      %v531 = vsel %vm458, %v444, 0.0
      %532 = vadd.xlane.f32.xlu0 %v531
      %v533 = vpop.xlane.xlu0 %532
      %v534 = vsel %vm458, %v445, 0.0
      %535 = vadd.xlane.f32.xlu0 %v534
      %v536 = vpop.xlane.xlu0 %535
      %v537 = vsel %vm458, %v446, 0.0
      %538 = vadd.xlane.f32.xlu0 %v537
      %v539 = vpop.xlane.xlu0 %538
      %v540 = vsel %vm458, %v447, 0.0
      %541 = vadd.xlane.f32.xlu0 %v540
      %v542 = vpop.xlane.xlu0 %541
      %v543 = vsel %vm458, %v448, 0.0
      %544 = vadd.xlane.f32.xlu0 %v543
      %v545 = vpop.xlane.xlu0 %544
      %v546 = vsel %vm458, %v449, 0.0
      %547 = vadd.xlane.f32.xlu0 %v546
      %v548 = vpop.xlane.xlu0 %547
      %v549 = vsel %vm458, %v450, 0.0
      %550 = vadd.xlane.f32.xlu0 %v549
      %v551 = vpop.xlane.xlu0 %550
      %v552 = vsel %vm458, %v451, 0.0
      %553 = vadd.xlane.f32.xlu0 %v552
      %v554 = vpop.xlane.xlu0 %553
      %v555 = vsel %vm458, %v452, 0.0
      %556 = vadd.xlane.f32.xlu0 %v555
      %v557 = vpop.xlane.xlu0 %556
      %v558 = vsel %vm458, %v453, 0.0
      %559 = vadd.xlane.f32.xlu0 %v558
      %v560 = vpop.xlane.xlu0 %559
      %v561 = vsel %vm458, %v454, 0.0
      %562 = vadd.xlane.f32.xlu0 %v561
      %v563 = vpop.xlane.xlu0 %562
      %v564 = vsel %vm458, %v455, 0.0
      %565 = vadd.xlane.f32.xlu0 %v564
      %v566 = vpop.xlane.xlu0 %565
      %v567 = vrcp.pop 32.0
      %v568 = vmul.f32 32.0, %v567
      %v569 = vsub.f32 1.0, %v568
      %v570 = vmul.f32 %v567, %v569
      %v571 = vadd.f32 %v567, %v570
      %vm572 = vweird.f32 %v567
      %v573 = vsel %vm572, %v567, %v571
      %v574 = vmul.f32 %v461, %v573
      %v575 = vmul.f32 %v464, %v573
      %v576 = vmul.f32 %v467, %v573
      %v577 = vmul.f32 %v470, %v573
      %v578 = vmul.f32 %v473, %v573
      %v579 = vmul.f32 %v476, %v573
      %v580 = vmul.f32 %v479, %v573
      %v581 = vmul.f32 %v482, %v573
      %v582 = vmul.f32 %v485, %v573
      %v583 = vmul.f32 %v488, %v573
      %v584 = vmul.f32 %v491, %v573
      %v585 = vmul.f32 %v494, %v573
      %v586 = vmul.f32 %v497, %v573
      %v587 = vmul.f32 %v500, %v573
      %v588 = vmul.f32 %v503, %v573
      %v589 = vmul.f32 %v506, %v573
      %v590 = vmul.f32 %v509, %v573
      %v591 = vmul.f32 %v512, %v573
      %v592 = vmul.f32 %v515, %v573
      %v593 = vmul.f32 %v518, %v573
      %v594 = vmul.f32 %v521, %v573
      %v595 = vmul.f32 %v524, %v573
      %v596 = vmul.f32 %v527, %v573
      %v597 = vmul.f32 %v530, %v573
      %v598 = vmul.f32 %v533, %v573
      %v599 = vmul.f32 %v536, %v573
      %v600 = vmul.f32 %v539, %v573
      %v601 = vmul.f32 %v542, %v573
      %v602 = vmul.f32 %v545, %v573
      %v603 = vmul.f32 %v548, %v573
      %v604 = vmul.f32 %v551, %v573
      %v605 = vmul.f32 %v554, %v573
      %v606 = vmul.f32 %v557, %v573
      %v607 = vmul.f32 %v560, %v573
      %v608 = vmul.f32 %v563, %v573
      %v609 = vmul.f32 %v566, %v573
      %v610 = vsub.f32 %v420, %v574
      %v611 = vsub.f32 %v421, %v575
      %v612 = vsub.f32 %v422, %v576
      %v613 = vsub.f32 %v423, %v577
      %v614 = vsub.f32 %v424, %v578
      %v615 = vsub.f32 %v425, %v579
      %v616 = vsub.f32 %v426, %v580
      %v617 = vsub.f32 %v427, %v581
      %v618 = vsub.f32 %v428, %v582
      %v619 = vsub.f32 %v429, %v583
      %v620 = vsub.f32 %v430, %v584
      %v621 = vsub.f32 %v431, %v585
      %v622 = vsub.f32 %v432, %v586
      %v623 = vsub.f32 %v433, %v587
      %v624 = vsub.f32 %v434, %v588
      %v625 = vsub.f32 %v435, %v589
      %v626 = vsub.f32 %v436, %v590
      %v627 = vsub.f32 %v437, %v591
      %v628 = vsub.f32 %v438, %v592
      %v629 = vsub.f32 %v439, %v593
      %v630 = vsub.f32 %v440, %v594
      %v631 = vsub.f32 %v441, %v595
      %v632 = vsub.f32 %v442, %v596
      %v633 = vsub.f32 %v443, %v597
      %v634 = vsub.f32 %v444, %v598
      %v635 = vsub.f32 %v445, %v599
      %v636 = vsub.f32 %v446, %v600
      %v637 = vsub.f32 %v447, %v601
      %v638 = vsub.f32 %v448, %v602
      %v639 = vsub.f32 %v449, %v603
      %v640 = vsub.f32 %v450, %v604
      %v641 = vsub.f32 %v451, %v605
      %v642 = vsub.f32 %v452, %v606
      %v643 = vsub.f32 %v453, %v607
      %v644 = vsub.f32 %v454, %v608
      %v645 = vsub.f32 %v455, %v609
      %v646 = vmul.f32 %v610, %v610
      %v647 = vmul.f32 %v611, %v611
      %v648 = vmul.f32 %v612, %v612
      %v649 = vmul.f32 %v613, %v613
      %v650 = vmul.f32 %v614, %v614
      %v651 = vmul.f32 %v615, %v615
      %v652 = vmul.f32 %v616, %v616
      %v653 = vmul.f32 %v617, %v617
      %v654 = vmul.f32 %v618, %v618
      %v655 = vmul.f32 %v619, %v619
      %v656 = vmul.f32 %v620, %v620
      %v657 = vmul.f32 %v621, %v621
      %v658 = vmul.f32 %v622, %v622
      %v659 = vmul.f32 %v623, %v623
      %v660 = vmul.f32 %v624, %v624
      %v661 = vmul.f32 %v625, %v625
      %v662 = vmul.f32 %v626, %v626
      %v663 = vmul.f32 %v627, %v627
      %v664 = vmul.f32 %v628, %v628
      %v665 = vmul.f32 %v629, %v629
      %v666 = vmul.f32 %v630, %v630
      %v667 = vmul.f32 %v631, %v631
      %v668 = vmul.f32 %v632, %v632
      %v669 = vmul.f32 %v633, %v633
      %v670 = vmul.f32 %v634, %v634
      %v671 = vmul.f32 %v635, %v635
      %v672 = vmul.f32 %v636, %v636
      %v673 = vmul.f32 %v637, %v637
      %v674 = vmul.f32 %v638, %v638
      %v675 = vmul.f32 %v639, %v639
      %v676 = vmul.f32 %v640, %v640
      %v677 = vmul.f32 %v641, %v641
      %v678 = vmul.f32 %v642, %v642
      %v679 = vmul.f32 %v643, %v643
      %v680 = vmul.f32 %v644, %v644
      %v681 = vmul.f32 %v645, %v645
      %v682 = vsel %vm458, %v646, 0.0
      %683 = vadd.xlane.f32.xlu0 %v682
      %v684 = vpop.xlane.xlu0 %683
      %v685 = vsel %vm458, %v647, 0.0
      %686 = vadd.xlane.f32.xlu0 %v685
      %v687 = vpop.xlane.xlu0 %686
      %v688 = vsel %vm458, %v648, 0.0
      %689 = vadd.xlane.f32.xlu0 %v688
      %v690 = vpop.xlane.xlu0 %689
      %v691 = vsel %vm458, %v649, 0.0
      %692 = vadd.xlane.f32.xlu0 %v691
      %v693 = vpop.xlane.xlu0 %692
      %v694 = vsel %vm458, %v650, 0.0
      %695 = vadd.xlane.f32.xlu0 %v694
      %v696 = vpop.xlane.xlu0 %695
      %v697 = vsel %vm458, %v651, 0.0
      %698 = vadd.xlane.f32.xlu0 %v697
      %v699 = vpop.xlane.xlu0 %698
      %v700 = vsel %vm458, %v652, 0.0
      %701 = vadd.xlane.f32.xlu0 %v700
      %v702 = vpop.xlane.xlu0 %701
      %v703 = vsel %vm458, %v653, 0.0
      %704 = vadd.xlane.f32.xlu0 %v703
      %v705 = vpop.xlane.xlu0 %704
      %v706 = vsel %vm458, %v654, 0.0
      %707 = vadd.xlane.f32.xlu0 %v706
      %v708 = vpop.xlane.xlu0 %707
      %v709 = vsel %vm458, %v655, 0.0
      %710 = vadd.xlane.f32.xlu0 %v709
      %v711 = vpop.xlane.xlu0 %710
      %v712 = vsel %vm458, %v656, 0.0
      %713 = vadd.xlane.f32.xlu0 %v712
      %v714 = vpop.xlane.xlu0 %713
      %v715 = vsel %vm458, %v657, 0.0
      %716 = vadd.xlane.f32.xlu0 %v715
      %v717 = vpop.xlane.xlu0 %716
      %v718 = vsel %vm458, %v658, 0.0
      %719 = vadd.xlane.f32.xlu0 %v718
      %v720 = vpop.xlane.xlu0 %719
      %v721 = vsel %vm458, %v659, 0.0
      %722 = vadd.xlane.f32.xlu0 %v721
      %v723 = vpop.xlane.xlu0 %722
      %v724 = vsel %vm458, %v660, 0.0
      %725 = vadd.xlane.f32.xlu0 %v724
      %v726 = vpop.xlane.xlu0 %725
      %v727 = vsel %vm458, %v661, 0.0
      %728 = vadd.xlane.f32.xlu0 %v727
      %v729 = vpop.xlane.xlu0 %728
      %v730 = vsel %vm458, %v662, 0.0
      %731 = vadd.xlane.f32.xlu0 %v730
      %v732 = vpop.xlane.xlu0 %731
      %v733 = vsel %vm458, %v663, 0.0
      %734 = vadd.xlane.f32.xlu0 %v733
      %v735 = vpop.xlane.xlu0 %734
      %v736 = vsel %vm458, %v664, 0.0
      %737 = vadd.xlane.f32.xlu0 %v736
      %v738 = vpop.xlane.xlu0 %737
      %v739 = vsel %vm458, %v665, 0.0
      %740 = vadd.xlane.f32.xlu0 %v739
      %v741 = vpop.xlane.xlu0 %740
      %v742 = vsel %vm458, %v666, 0.0
      %743 = vadd.xlane.f32.xlu0 %v742
      %v744 = vpop.xlane.xlu0 %743
      %v745 = vsel %vm458, %v667, 0.0
      %746 = vadd.xlane.f32.xlu0 %v745
      %v747 = vpop.xlane.xlu0 %746
      %v748 = vsel %vm458, %v668, 0.0
      %749 = vadd.xlane.f32.xlu0 %v748
      %v750 = vpop.xlane.xlu0 %749
      %v751 = vsel %vm458, %v669, 0.0
      %752 = vadd.xlane.f32.xlu0 %v751
      %v753 = vpop.xlane.xlu0 %752
      %v754 = vsel %vm458, %v670, 0.0
      %755 = vadd.xlane.f32.xlu0 %v754
      %v756 = vpop.xlane.xlu0 %755
      %v757 = vsel %vm458, %v671, 0.0
      %758 = vadd.xlane.f32.xlu0 %v757
      %v759 = vpop.xlane.xlu0 %758
      %v760 = vsel %vm458, %v672, 0.0
      %761 = vadd.xlane.f32.xlu0 %v760
      %v762 = vpop.xlane.xlu0 %761
      %v763 = vsel %vm458, %v673, 0.0
      %764 = vadd.xlane.f32.xlu0 %v763
      %v765 = vpop.xlane.xlu0 %764
      %v766 = vsel %vm458, %v674, 0.0
      %767 = vadd.xlane.f32.xlu0 %v766
      %v768 = vpop.xlane.xlu0 %767
      %v769 = vsel %vm458, %v675, 0.0
      %770 = vadd.xlane.f32.xlu0 %v769
      %v771 = vpop.xlane.xlu0 %770
      %v772 = vsel %vm458, %v676, 0.0
      %773 = vadd.xlane.f32.xlu0 %v772
      %v774 = vpop.xlane.xlu0 %773
      %v775 = vsel %vm458, %v677, 0.0
      %776 = vadd.xlane.f32.xlu0 %v775
      %v777 = vpop.xlane.xlu0 %776
      %v778 = vsel %vm458, %v678, 0.0
      %779 = vadd.xlane.f32.xlu0 %v778
      %v780 = vpop.xlane.xlu0 %779
      %v781 = vsel %vm458, %v679, 0.0
      %782 = vadd.xlane.f32.xlu0 %v781
      %v783 = vpop.xlane.xlu0 %782
      %v784 = vsel %vm458, %v680, 0.0
      %785 = vadd.xlane.f32.xlu0 %v784
      %v786 = vpop.xlane.xlu0 %785
      %v787 = vsel %vm458, %v681, 0.0
      %788 = vadd.xlane.f32.xlu0 %v787
      %v789 = vpop.xlane.xlu0 %788
      %v790 = vmul.f32 %v684, %v573
      %v791 = vmul.f32 %v687, %v573
      %v792 = vmul.f32 %v690, %v573
      %v793 = vmul.f32 %v693, %v573
      %v794 = vmul.f32 %v696, %v573
      %v795 = vmul.f32 %v699, %v573
      %v796 = vmul.f32 %v702, %v573
      %v797 = vmul.f32 %v705, %v573
      %v798 = vmul.f32 %v708, %v573
      %v799 = vmul.f32 %v711, %v573
      %v800 = vmul.f32 %v714, %v573
      %v801 = vmul.f32 %v717, %v573
      %v802 = vmul.f32 %v720, %v573
      %v803 = vmul.f32 %v723, %v573
      %v804 = vmul.f32 %v726, %v573
      %v805 = vmul.f32 %v729, %v573
      %v806 = vmul.f32 %v732, %v573
      %v807 = vmul.f32 %v735, %v573
      %v808 = vmul.f32 %v738, %v573
      %v809 = vmul.f32 %v741, %v573
      %v810 = vmul.f32 %v744, %v573
      %v811 = vmul.f32 %v747, %v573
      %v812 = vmul.f32 %v750, %v573
      %v813 = vmul.f32 %v753, %v573
      %v814 = vmul.f32 %v756, %v573
      %v815 = vmul.f32 %v759, %v573
      %v816 = vmul.f32 %v762, %v573
      %v817 = vmul.f32 %v765, %v573
      %v818 = vmul.f32 %v768, %v573
      %v819 = vmul.f32 %v771, %v573
      %v820 = vmul.f32 %v774, %v573
      %v821 = vmul.f32 %v777, %v573
      %v822 = vmul.f32 %v780, %v573
      %v823 = vmul.f32 %v783, %v573
      %v824 = vmul.f32 %v786, %v573
      %v825 = vmul.f32 %v789, %v573
      %v826 = vadd.f32 %v790, 1e-05
      %v827 = vadd.f32 %v791, 1e-05
      %v828 = vadd.f32 %v792, 1e-05
      %v829 = vadd.f32 %v793, 1e-05
      %v830 = vadd.f32 %v794, 1e-05
      %v831 = vadd.f32 %v795, 1e-05
      %v832 = vadd.f32 %v796, 1e-05
      %v833 = vadd.f32 %v797, 1e-05
      %v834 = vadd.f32 %v798, 1e-05
      %v835 = vadd.f32 %v799, 1e-05
      %v836 = vadd.f32 %v800, 1e-05
      %v837 = vadd.f32 %v801, 1e-05
      %v838 = vadd.f32 %v802, 1e-05
      %v839 = vadd.f32 %v803, 1e-05
      %v840 = vadd.f32 %v804, 1e-05
      %v841 = vadd.f32 %v805, 1e-05
      %v842 = vadd.f32 %v806, 1e-05
      %v843 = vadd.f32 %v807, 1e-05
      %v844 = vadd.f32 %v808, 1e-05
      %v845 = vadd.f32 %v809, 1e-05
      %v846 = vadd.f32 %v810, 1e-05
      %v847 = vadd.f32 %v811, 1e-05
      %v848 = vadd.f32 %v812, 1e-05
      %v849 = vadd.f32 %v813, 1e-05
      %v850 = vadd.f32 %v814, 1e-05
      %v851 = vadd.f32 %v815, 1e-05
      %v852 = vadd.f32 %v816, 1e-05
      %v853 = vadd.f32 %v817, 1e-05
      %v854 = vadd.f32 %v818, 1e-05
      %v855 = vadd.f32 %v819, 1e-05
      %v856 = vadd.f32 %v820, 1e-05
      %v857 = vadd.f32 %v821, 1e-05
      %v858 = vadd.f32 %v822, 1e-05
      %v859 = vadd.f32 %v823, 1e-05
      %v860 = vadd.f32 %v824, 1e-05
      %v861 = vadd.f32 %v825, 1e-05
      %v862 = vrsqrt.pop %v826
      %v863 = vmul.f32 %v862, %v826
      %v864 = vmul.f32 %v863, %v862
      %v865 = vmul.f32 0.5, %v864
      %v866 = vsub.f32 1.5, %v865
      %v867 = vmul.f32 %v862, %v866
      %vm868 = vweird.f32 %v826
      %vm869 = vweird.f32 %v862
      %vm870 = vmor %vm868, %vm869
      %v871 = vsel %vm870, %v862, %v867
      %v872 = vrsqrt.pop %v827
      %v873 = vmul.f32 %v872, %v827
      %v874 = vmul.f32 %v873, %v872
      %v875 = vmul.f32 0.5, %v874
      %v876 = vsub.f32 1.5, %v875
      %v877 = vmul.f32 %v872, %v876
      %vm878 = vweird.f32 %v827
      %vm879 = vweird.f32 %v872
      %vm880 = vmor %vm878, %vm879
      %v881 = vsel %vm880, %v872, %v877
      %v882 = vrsqrt.pop %v828
      %v883 = vmul.f32 %v882, %v828
      %v884 = vmul.f32 %v883, %v882
      %v885 = vmul.f32 0.5, %v884
      %v886 = vsub.f32 1.5, %v885
      %v887 = vmul.f32 %v882, %v886
      %vm888 = vweird.f32 %v828
      %vm889 = vweird.f32 %v882
      %vm890 = vmor %vm888, %vm889
      %v891 = vsel %vm890, %v882, %v887
      %v892 = vrsqrt.pop %v829
      %v893 = vmul.f32 %v892, %v829
      %v894 = vmul.f32 %v893, %v892
      %v895 = vmul.f32 0.5, %v894
      %v896 = vsub.f32 1.5, %v895
      %v897 = vmul.f32 %v892, %v896
      %vm898 = vweird.f32 %v829
      %vm899 = vweird.f32 %v892
      %vm900 = vmor %vm898, %vm899
      %v901 = vsel %vm900, %v892, %v897
      %v902 = vrsqrt.pop %v830
      %v903 = vmul.f32 %v902, %v830
      %v904 = vmul.f32 %v903, %v902
      %v905 = vmul.f32 0.5, %v904
      %v906 = vsub.f32 1.5, %v905
      %v907 = vmul.f32 %v902, %v906
      %vm908 = vweird.f32 %v830
      %vm909 = vweird.f32 %v902
      %vm910 = vmor %vm908, %vm909
      %v911 = vsel %vm910, %v902, %v907
      %v912 = vrsqrt.pop %v831
      %v913 = vmul.f32 %v912, %v831
      %v914 = vmul.f32 %v913, %v912
      %v915 = vmul.f32 0.5, %v914
      %v916 = vsub.f32 1.5, %v915
      %v917 = vmul.f32 %v912, %v916
      %vm918 = vweird.f32 %v831
      %vm919 = vweird.f32 %v912
      %vm920 = vmor %vm918, %vm919
      %v921 = vsel %vm920, %v912, %v917
      %v922 = vrsqrt.pop %v832
      %v923 = vmul.f32 %v922, %v832
      %v924 = vmul.f32 %v923, %v922
      %v925 = vmul.f32 0.5, %v924
      %v926 = vsub.f32 1.5, %v925
      %v927 = vmul.f32 %v922, %v926
      %vm928 = vweird.f32 %v832
      %vm929 = vweird.f32 %v922
      %vm930 = vmor %vm928, %vm929
      %v931 = vsel %vm930, %v922, %v927
      %v932 = vrsqrt.pop %v833
      %v933 = vmul.f32 %v932, %v833
      %v934 = vmul.f32 %v933, %v932
      %v935 = vmul.f32 0.5, %v934
      %v936 = vsub.f32 1.5, %v935
      %v937 = vmul.f32 %v932, %v936
      %vm938 = vweird.f32 %v833
      %vm939 = vweird.f32 %v932
      %vm940 = vmor %vm938, %vm939
      %v941 = vsel %vm940, %v932, %v937
      %v942 = vrsqrt.pop %v834
      %v943 = vmul.f32 %v942, %v834
      %v944 = vmul.f32 %v943, %v942
      %v945 = vmul.f32 0.5, %v944
      %v946 = vsub.f32 1.5, %v945
      %v947 = vmul.f32 %v942, %v946
      %vm948 = vweird.f32 %v834
      %vm949 = vweird.f32 %v942
      %vm950 = vmor %vm948, %vm949
      %v951 = vsel %vm950, %v942, %v947
      %v952 = vrsqrt.pop %v835
      %v953 = vmul.f32 %v952, %v835
      %v954 = vmul.f32 %v953, %v952
      %v955 = vmul.f32 0.5, %v954
      %v956 = vsub.f32 1.5, %v955
      %v957 = vmul.f32 %v952, %v956
      %vm958 = vweird.f32 %v835
      %vm959 = vweird.f32 %v952
      %vm960 = vmor %vm958, %vm959
      %v961 = vsel %vm960, %v952, %v957
      %v962 = vrsqrt.pop %v836
      %v963 = vmul.f32 %v962, %v836
      %v964 = vmul.f32 %v963, %v962
      %v965 = vmul.f32 0.5, %v964
      %v966 = vsub.f32 1.5, %v965
      %v967 = vmul.f32 %v962, %v966
      %vm968 = vweird.f32 %v836
      %vm969 = vweird.f32 %v962
      %vm970 = vmor %vm968, %vm969
      %v971 = vsel %vm970, %v962, %v967
      %v972 = vrsqrt.pop %v837
      %v973 = vmul.f32 %v972, %v837
      %v974 = vmul.f32 %v973, %v972
      %v975 = vmul.f32 0.5, %v974
      %v976 = vsub.f32 1.5, %v975
      %v977 = vmul.f32 %v972, %v976
      %vm978 = vweird.f32 %v837
      %vm979 = vweird.f32 %v972
      %vm980 = vmor %vm978, %vm979
      %v981 = vsel %vm980, %v972, %v977
      %v982 = vrsqrt.pop %v838
      %v983 = vmul.f32 %v982, %v838
      %v984 = vmul.f32 %v983, %v982
      %v985 = vmul.f32 0.5, %v984
      %v986 = vsub.f32 1.5, %v985
      %v987 = vmul.f32 %v982, %v986
      %vm988 = vweird.f32 %v838
      %vm989 = vweird.f32 %v982
      %vm990 = vmor %vm988, %vm989
      %v991 = vsel %vm990, %v982, %v987
      %v992 = vrsqrt.pop %v839
      %v993 = vmul.f32 %v992, %v839
      %v994 = vmul.f32 %v993, %v992
      %v995 = vmul.f32 0.5, %v994
      %v996 = vsub.f32 1.5, %v995
      %v997 = vmul.f32 %v992, %v996
      %vm998 = vweird.f32 %v839
      %vm999 = vweird.f32 %v992
      %vm1000 = vmor %vm998, %vm999
      %v1001 = vsel %vm1000, %v992, %v997
      %v1002 = vrsqrt.pop %v840
      %v1003 = vmul.f32 %v1002, %v840
      %v1004 = vmul.f32 %v1003, %v1002
      %v1005 = vmul.f32 0.5, %v1004
      %v1006 = vsub.f32 1.5, %v1005
      %v1007 = vmul.f32 %v1002, %v1006
      %vm1008 = vweird.f32 %v840
      %vm1009 = vweird.f32 %v1002
      %vm1010 = vmor %vm1008, %vm1009
      %v1011 = vsel %vm1010, %v1002, %v1007
      %v1012 = vrsqrt.pop %v841
      %v1013 = vmul.f32 %v1012, %v841
      %v1014 = vmul.f32 %v1013, %v1012
      %v1015 = vmul.f32 0.5, %v1014
      %v1016 = vsub.f32 1.5, %v1015
      %v1017 = vmul.f32 %v1012, %v1016
      %vm1018 = vweird.f32 %v841
      %vm1019 = vweird.f32 %v1012
      %vm1020 = vmor %vm1018, %vm1019
      %v1021 = vsel %vm1020, %v1012, %v1017
      %v1022 = vrsqrt.pop %v842
      %v1023 = vmul.f32 %v1022, %v842
      %v1024 = vmul.f32 %v1023, %v1022
      %v1025 = vmul.f32 0.5, %v1024
      %v1026 = vsub.f32 1.5, %v1025
      %v1027 = vmul.f32 %v1022, %v1026
      %vm1028 = vweird.f32 %v842
      %vm1029 = vweird.f32 %v1022
      %vm1030 = vmor %vm1028, %vm1029
      %v1031 = vsel %vm1030, %v1022, %v1027
      %v1032 = vrsqrt.pop %v843
      %v1033 = vmul.f32 %v1032, %v843
      %v1034 = vmul.f32 %v1033, %v1032
      %v1035 = vmul.f32 0.5, %v1034
      %v1036 = vsub.f32 1.5, %v1035
      %v1037 = vmul.f32 %v1032, %v1036
      %vm1038 = vweird.f32 %v843
      %vm1039 = vweird.f32 %v1032
      %vm1040 = vmor %vm1038, %vm1039
      %v1041 = vsel %vm1040, %v1032, %v1037
      %v1042 = vrsqrt.pop %v844
      %v1043 = vmul.f32 %v1042, %v844
      %v1044 = vmul.f32 %v1043, %v1042
      %v1045 = vmul.f32 0.5, %v1044
      %v1046 = vsub.f32 1.5, %v1045
      %v1047 = vmul.f32 %v1042, %v1046
      %vm1048 = vweird.f32 %v844
      %vm1049 = vweird.f32 %v1042
      %vm1050 = vmor %vm1048, %vm1049
      %v1051 = vsel %vm1050, %v1042, %v1047
      %v1052 = vrsqrt.pop %v845
      %v1053 = vmul.f32 %v1052, %v845
      %v1054 = vmul.f32 %v1053, %v1052
      %v1055 = vmul.f32 0.5, %v1054
      %v1056 = vsub.f32 1.5, %v1055
      %v1057 = vmul.f32 %v1052, %v1056
      %vm1058 = vweird.f32 %v845
      %vm1059 = vweird.f32 %v1052
      %vm1060 = vmor %vm1058, %vm1059
      %v1061 = vsel %vm1060, %v1052, %v1057
      %v1062 = vrsqrt.pop %v846
      %v1063 = vmul.f32 %v1062, %v846
      %v1064 = vmul.f32 %v1063, %v1062
      %v1065 = vmul.f32 0.5, %v1064
      %v1066 = vsub.f32 1.5, %v1065
      %v1067 = vmul.f32 %v1062, %v1066
      %vm1068 = vweird.f32 %v846
      %vm1069 = vweird.f32 %v1062
      %vm1070 = vmor %vm1068, %vm1069
      %v1071 = vsel %vm1070, %v1062, %v1067
      %v1072 = vrsqrt.pop %v847
      %v1073 = vmul.f32 %v1072, %v847
      %v1074 = vmul.f32 %v1073, %v1072
      %v1075 = vmul.f32 0.5, %v1074
      %v1076 = vsub.f32 1.5, %v1075
      %v1077 = vmul.f32 %v1072, %v1076
      %vm1078 = vweird.f32 %v847
      %vm1079 = vweird.f32 %v1072
      %vm1080 = vmor %vm1078, %vm1079
      %v1081 = vsel %vm1080, %v1072, %v1077
      %v1082 = vrsqrt.pop %v848
      %v1083 = vmul.f32 %v1082, %v848
      %v1084 = vmul.f32 %v1083, %v1082
      %v1085 = vmul.f32 0.5, %v1084
      %v1086 = vsub.f32 1.5, %v1085
      %v1087 = vmul.f32 %v1082, %v1086
      %vm1088 = vweird.f32 %v848
      %vm1089 = vweird.f32 %v1082
      %vm1090 = vmor %vm1088, %vm1089
      %v1091 = vsel %vm1090, %v1082, %v1087
      %v1092 = vrsqrt.pop %v849
      %v1093 = vmul.f32 %v1092, %v849
      %v1094 = vmul.f32 %v1093, %v1092
      %v1095 = vmul.f32 0.5, %v1094
      %v1096 = vsub.f32 1.5, %v1095
      %v1097 = vmul.f32 %v1092, %v1096
      %vm1098 = vweird.f32 %v849
      %vm1099 = vweird.f32 %v1092
      %vm1100 = vmor %vm1098, %vm1099
      %v1101 = vsel %vm1100, %v1092, %v1097
      %v1102 = vrsqrt.pop %v850
      %v1103 = vmul.f32 %v1102, %v850
      %v1104 = vmul.f32 %v1103, %v1102
      %v1105 = vmul.f32 0.5, %v1104
      %v1106 = vsub.f32 1.5, %v1105
      %v1107 = vmul.f32 %v1102, %v1106
      %vm1108 = vweird.f32 %v850
      %vm1109 = vweird.f32 %v1102
      %vm1110 = vmor %vm1108, %vm1109
      %v1111 = vsel %vm1110, %v1102, %v1107
      %v1112 = vrsqrt.pop %v851
      %v1113 = vmul.f32 %v1112, %v851
      %v1114 = vmul.f32 %v1113, %v1112
      %v1115 = vmul.f32 0.5, %v1114
      %v1116 = vsub.f32 1.5, %v1115
      %v1117 = vmul.f32 %v1112, %v1116
      %vm1118 = vweird.f32 %v851
      %vm1119 = vweird.f32 %v1112
      %vm1120 = vmor %vm1118, %vm1119
      %v1121 = vsel %vm1120, %v1112, %v1117
      %v1122 = vrsqrt.pop %v852
      %v1123 = vmul.f32 %v1122, %v852
      %v1124 = vmul.f32 %v1123, %v1122
      %v1125 = vmul.f32 0.5, %v1124
      %v1126 = vsub.f32 1.5, %v1125
      %v1127 = vmul.f32 %v1122, %v1126
      %vm1128 = vweird.f32 %v852
      %vm1129 = vweird.f32 %v1122
      %vm1130 = vmor %vm1128, %vm1129
      %v1131 = vsel %vm1130, %v1122, %v1127
      %v1132 = vrsqrt.pop %v853
      %v1133 = vmul.f32 %v1132, %v853
      %v1134 = vmul.f32 %v1133, %v1132
      %v1135 = vmul.f32 0.5, %v1134
      %v1136 = vsub.f32 1.5, %v1135
      %v1137 = vmul.f32 %v1132, %v1136
      %vm1138 = vweird.f32 %v853
      %vm1139 = vweird.f32 %v1132
      %vm1140 = vmor %vm1138, %vm1139
      %v1141 = vsel %vm1140, %v1132, %v1137
      %v1142 = vrsqrt.pop %v854
      %v1143 = vmul.f32 %v1142, %v854
      %v1144 = vmul.f32 %v1143, %v1142
      %v1145 = vmul.f32 0.5, %v1144
      %v1146 = vsub.f32 1.5, %v1145
      %v1147 = vmul.f32 %v1142, %v1146
      %vm1148 = vweird.f32 %v854
      %vm1149 = vweird.f32 %v1142
      %vm1150 = vmor %vm1148, %vm1149
      %v1151 = vsel %vm1150, %v1142, %v1147
      %v1152 = vrsqrt.pop %v855
      %v1153 = vmul.f32 %v1152, %v855
      %v1154 = vmul.f32 %v1153, %v1152
      %v1155 = vmul.f32 0.5, %v1154
      %v1156 = vsub.f32 1.5, %v1155
      %v1157 = vmul.f32 %v1152, %v1156
      %vm1158 = vweird.f32 %v855
      %vm1159 = vweird.f32 %v1152
      %vm1160 = vmor %vm1158, %vm1159
      %v1161 = vsel %vm1160, %v1152, %v1157
      %v1162 = vrsqrt.pop %v856
      %v1163 = vmul.f32 %v1162, %v856
      %v1164 = vmul.f32 %v1163, %v1162
      %v1165 = vmul.f32 0.5, %v1164
      %v1166 = vsub.f32 1.5, %v1165
      %v1167 = vmul.f32 %v1162, %v1166
      %vm1168 = vweird.f32 %v856
      %vm1169 = vweird.f32 %v1162
      %vm1170 = vmor %vm1168, %vm1169
      %v1171 = vsel %vm1170, %v1162, %v1167
      %v1172 = vrsqrt.pop %v857
      %v1173 = vmul.f32 %v1172, %v857
      %v1174 = vmul.f32 %v1173, %v1172
      %v1175 = vmul.f32 0.5, %v1174
      %v1176 = vsub.f32 1.5, %v1175
      %v1177 = vmul.f32 %v1172, %v1176
      %vm1178 = vweird.f32 %v857
      %vm1179 = vweird.f32 %v1172
      %vm1180 = vmor %vm1178, %vm1179
      %v1181 = vsel %vm1180, %v1172, %v1177
      %v1182 = vrsqrt.pop %v858
      %v1183 = vmul.f32 %v1182, %v858
      %v1184 = vmul.f32 %v1183, %v1182
      %v1185 = vmul.f32 0.5, %v1184
      %v1186 = vsub.f32 1.5, %v1185
      %v1187 = vmul.f32 %v1182, %v1186
      %vm1188 = vweird.f32 %v858
      %vm1189 = vweird.f32 %v1182
      %vm1190 = vmor %vm1188, %vm1189
      %v1191 = vsel %vm1190, %v1182, %v1187
      %v1192 = vrsqrt.pop %v859
      %v1193 = vmul.f32 %v1192, %v859
      %v1194 = vmul.f32 %v1193, %v1192
      %v1195 = vmul.f32 0.5, %v1194
      %v1196 = vsub.f32 1.5, %v1195
      %v1197 = vmul.f32 %v1192, %v1196
      %vm1198 = vweird.f32 %v859
      %vm1199 = vweird.f32 %v1192
      %vm1200 = vmor %vm1198, %vm1199
      %v1201 = vsel %vm1200, %v1192, %v1197
      %v1202 = vrsqrt.pop %v860
      %v1203 = vmul.f32 %v1202, %v860
      %v1204 = vmul.f32 %v1203, %v1202
      %v1205 = vmul.f32 0.5, %v1204
      %v1206 = vsub.f32 1.5, %v1205
      %v1207 = vmul.f32 %v1202, %v1206
      %vm1208 = vweird.f32 %v860
      %vm1209 = vweird.f32 %v1202
      %vm1210 = vmor %vm1208, %vm1209
      %v1211 = vsel %vm1210, %v1202, %v1207
      %v1212 = vrsqrt.pop %v861
      %v1213 = vmul.f32 %v1212, %v861
      %v1214 = vmul.f32 %v1213, %v1212
      %v1215 = vmul.f32 0.5, %v1214
      %v1216 = vsub.f32 1.5, %v1215
      %v1217 = vmul.f32 %v1212, %v1216
      %vm1218 = vweird.f32 %v861
      %vm1219 = vweird.f32 %v1212
      %vm1220 = vmor %vm1218, %vm1219
      %v1221 = vsel %vm1220, %v1212, %v1217
      %v1222 = vmul.f32 %v610, %v871
      %v1223 = vmul.f32 %v611, %v881
      %v1224 = vmul.f32 %v612, %v891
      %v1225 = vmul.f32 %v613, %v901
      %v1226 = vmul.f32 %v614, %v911
      %v1227 = vmul.f32 %v615, %v921
      %v1228 = vmul.f32 %v616, %v931
      %v1229 = vmul.f32 %v617, %v941
      %v1230 = vmul.f32 %v618, %v951
      %v1231 = vmul.f32 %v619, %v961
      %v1232 = vmul.f32 %v620, %v971
      %v1233 = vmul.f32 %v621, %v981
      %v1234 = vmul.f32 %v622, %v991
      %v1235 = vmul.f32 %v623, %v1001
      %v1236 = vmul.f32 %v624, %v1011
      %v1237 = vmul.f32 %v625, %v1021
      %v1238 = vmul.f32 %v626, %v1031
      %v1239 = vmul.f32 %v627, %v1041
      %v1240 = vmul.f32 %v628, %v1051
      %v1241 = vmul.f32 %v629, %v1061
      %v1242 = vmul.f32 %v630, %v1071
      %v1243 = vmul.f32 %v631, %v1081
      %v1244 = vmul.f32 %v632, %v1091
      %v1245 = vmul.f32 %v633, %v1101
      %v1246 = vmul.f32 %v634, %v1111
      %v1247 = vmul.f32 %v635, %v1121
      %v1248 = vmul.f32 %v636, %v1131
      %v1249 = vmul.f32 %v637, %v1141
      %v1250 = vmul.f32 %v638, %v1151
      %v1251 = vmul.f32 %v639, %v1161
      %v1252 = vmul.f32 %v640, %v1171
      %v1253 = vmul.f32 %v641, %v1181
      %v1254 = vmul.f32 %v642, %v1191
      %v1255 = vmul.f32 %v643, %v1201
      %v1256 = vmul.f32 %v644, %v1211
      %v1257 = vmul.f32 %v645, %v1221
      %v1259 = vperm.slane %v456, 0
      %v1261 = vmul.f32 %v1222, %v1259
      %v1262 = vmul.f32 %v1223, %v1259
      %v1263 = vmul.f32 %v1224, %v1259
      %v1264 = vmul.f32 %v1225, %v1259
      %v1265 = vmul.f32 %v1226, %v1259
      %v1266 = vmul.f32 %v1227, %v1259
      %v1267 = vmul.f32 %v1228, %v1259
      %v1268 = vmul.f32 %v1229, %v1259
      %v1269 = vmul.f32 %v1230, %v1259
      %v1270 = vmul.f32 %v1231, %v1259
      %v1271 = vmul.f32 %v1232, %v1259
      %v1272 = vmul.f32 %v1233, %v1259
      %v1273 = vmul.f32 %v1234, %v1259
      %v1274 = vmul.f32 %v1235, %v1259
      %v1275 = vmul.f32 %v1236, %v1259
      %v1276 = vmul.f32 %v1237, %v1259
      %v1277 = vmul.f32 %v1238, %v1259
      %v1278 = vmul.f32 %v1239, %v1259
      %v1279 = vmul.f32 %v1240, %v1259
      %v1280 = vmul.f32 %v1241, %v1259
      %v1281 = vmul.f32 %v1242, %v1259
      %v1282 = vmul.f32 %v1243, %v1259
      %v1283 = vmul.f32 %v1244, %v1259
      %v1284 = vmul.f32 %v1245, %v1259
      %v1285 = vmul.f32 %v1246, %v1259
      %v1286 = vmul.f32 %v1247, %v1259
      %v1287 = vmul.f32 %v1248, %v1259
      %v1288 = vmul.f32 %v1249, %v1259
      %v1289 = vmul.f32 %v1250, %v1259
      %v1290 = vmul.f32 %v1251, %v1259
      %v1291 = vmul.f32 %v1252, %v1259
      %v1292 = vmul.f32 %v1253, %v1259
      %v1293 = vmul.f32 %v1254, %v1259
      %v1294 = vmul.f32 %v1255, %v1259
      %v1295 = vmul.f32 %v1256, %v1259
      %v1296 = vmul.f32 %v1257, %v1259
      %v1298 = vperm.slane %v457, 0
      %v1300 = vadd.f32 %v1261, %v1298
      %v1301 = vadd.f32 %v1262, %v1298
      %v1302 = vadd.f32 %v1263, %v1298
      %v1303 = vadd.f32 %v1264, %v1298
      %v1304 = vadd.f32 %v1265, %v1298
      %v1305 = vadd.f32 %v1266, %v1298
      %v1306 = vadd.f32 %v1267, %v1298
      %v1307 = vadd.f32 %v1268, %v1298
      %v1308 = vadd.f32 %v1269, %v1298
      %v1309 = vadd.f32 %v1270, %v1298
      %v1310 = vadd.f32 %v1271, %v1298
      %v1311 = vadd.f32 %v1272, %v1298
      %v1312 = vadd.f32 %v1273, %v1298
      %v1313 = vadd.f32 %v1274, %v1298
      %v1314 = vadd.f32 %v1275, %v1298
      %v1315 = vadd.f32 %v1276, %v1298
      %v1316 = vadd.f32 %v1277, %v1298
      %v1317 = vadd.f32 %v1278, %v1298
      %v1318 = vadd.f32 %v1279, %v1298
      %v1319 = vadd.f32 %v1280, %v1298
      %v1320 = vadd.f32 %v1281, %v1298
      %v1321 = vadd.f32 %v1282, %v1298
      %v1322 = vadd.f32 %v1283, %v1298
      %v1323 = vadd.f32 %v1284, %v1298
      %v1324 = vadd.f32 %v1285, %v1298
      %v1325 = vadd.f32 %v1286, %v1298
      %v1326 = vadd.f32 %v1287, %v1298
      %v1327 = vadd.f32 %v1288, %v1298
      %v1328 = vadd.f32 %v1289, %v1298
      %v1329 = vadd.f32 %v1290, %v1298
      %v1330 = vadd.f32 %v1291, %v1298
      %v1331 = vadd.f32 %v1292, %v1298
      %v1332 = vadd.f32 %v1293, %v1298
      %v1333 = vadd.f32 %v1294, %v1298
      %v1334 = vadd.f32 %v1295, %v1298
      %v1335 = vadd.f32 %v1296, %v1298
      %v1336 = vpack.c.bf16 %v1301, %v1300
      %v1337 = vpack.c.bf16 %v1303, %v1302
      %v1338 = vpack.c.bf16 %v1305, %v1304
      %v1339 = vpack.c.bf16 %v1307, %v1306
      %v1340 = vpack.c.bf16 %v1309, %v1308
      %v1341 = vpack.c.bf16 %v1311, %v1310
      %v1342 = vpack.c.bf16 %v1313, %v1312
      %v1343 = vpack.c.bf16 %v1315, %v1314
      %v1344 = vpack.c.bf16 %v1317, %v1316
      %v1345 = vpack.c.bf16 %v1319, %v1318
      %v1346 = vpack.c.bf16 %v1321, %v1320
      %v1347 = vpack.c.bf16 %v1323, %v1322
      %v1348 = vpack.c.bf16 %v1325, %v1324
      %v1349 = vpack.c.bf16 %v1327, %v1326
      %v1350 = vpack.c.bf16 %v1329, %v1328
      %v1351 = vpack.c.bf16 %v1331, %v1330
      %v1352 = vpack.c.bf16 %v1333, %v1332
      %v1353 = vpack.c.bf16 %v1335, %v1334
      %v1354 = vld [vmem:[%s4] sm:$0xf]
      %v1355 = vld [vmem:[%s4 + $0x4] sm:$0xf]
      %v1356 = vld [vmem:[%s4 + $0x8] sm:$0xf]
      %v1357 = vld [vmem:[%s4 + $0xc] sm:$0xf]
      %v1362 = vunpack.c.l.b16 %v1354
      %v1363 = vunpack.c.l.b16 %v1355
      %v1364 = vunpack.c.l.b16 %v1356
      %v1365 = vunpack.c.l.b16 %v1357
      %v1366 = vpack.c.b16 %v1363, %v1362
      %v1367 = vpack.c.b16 %v1365, %v1364
      %v1371 = vsel %vm458, %v1336, 0
      %v1374 = vsel %vm458, %v1337, 0
      %v1377 = vsel %vm458, %v1338, 0
      %v1380 = vsel %vm458, %v1339, 0
      %v1383 = vsel %vm458, %v1340, 0
      %v1386 = vsel %vm458, %v1341, 0
      %v1389 = vsel %vm458, %v1342, 0
      %v1392 = vsel %vm458, %v1343, 0
      %v1395 = vsel %vm458, %v1344, 0
      %v1398 = vsel %vm458, %v1345, 0
      %v1401 = vsel %vm458, %v1346, 0
      %v1404 = vsel %vm458, %v1347, 0
      %v1407 = vsel %vm458, %v1348, 0
      %v1410 = vsel %vm458, %v1349, 0
      %v1413 = vsel %vm458, %v1350, 0
      %v1416 = vsel %vm458, %v1351, 0
      %v1419 = vsel %vm458, %v1352, 0
      %v1422 = vsel %vm458, %v1353, 0
      %1424 = vmatpush.bf16.msra.mxu0 0
      %1425 = vmatpush.bf16.msra.mxu0 0
      %1426 = vmatpush.bf16.msra.mxu0 0
      %1427 = vmatpush.bf16.msra.mxu0 0
      %1428 = vmatpush.bf16.msra.mxu0 0
      %1429 = vmatpush.bf16.msra.mxu0 0
      %1430 = vmatpush.bf16.msra.mxu0 %v1367
      %1431 = vmatpush.bf16.msra.mxu0 %v1366
      %1432 = vmatmul.bf16.gmra.mxu0 %v1371
      %v1433 = vpop.f32.mrf.mxu0
      %v1434 = vadd.f32 0.0, %v1433
      %v1435 = vpop.f32.mrf.mxu0
      %v1436 = vadd.f32 0.0, %v1435
      %1437 = vmatmul.bf16.gmra.mxu0 %v1374
      %v1438 = vpop.f32.mrf.mxu0
      %v1439 = vadd.f32 0.0, %v1438
      %v1440 = vpop.f32.mrf.mxu0
      %v1441 = vadd.f32 0.0, %v1440
      %1442 = vmatmul.bf16.gmra.mxu0 %v1377
      %v1443 = vpop.f32.mrf.mxu0
      %v1444 = vadd.f32 0.0, %v1443
      %v1445 = vpop.f32.mrf.mxu0
      %v1446 = vadd.f32 0.0, %v1445
      %1447 = vmatmul.bf16.gmra.mxu0 %v1380
      %v1448 = vpop.f32.mrf.mxu0
      %v1449 = vadd.f32 0.0, %v1448
      %v1450 = vpop.f32.mrf.mxu0
      %v1451 = vadd.f32 0.0, %v1450
      %1452 = vmatmul.bf16.gmra.mxu0 %v1383
      %v1453 = vpop.f32.mrf.mxu0
      %v1454 = vadd.f32 0.0, %v1453
      %v1455 = vpop.f32.mrf.mxu0
      %v1456 = vadd.f32 0.0, %v1455
      %1457 = vmatmul.bf16.gmra.mxu0 %v1386
      %v1458 = vpop.f32.mrf.mxu0
      %v1459 = vadd.f32 0.0, %v1458
      %v1460 = vpop.f32.mrf.mxu0
      %v1461 = vadd.f32 0.0, %v1460
      %1462 = vmatmul.bf16.gmra.mxu0 %v1389
      %v1463 = vpop.f32.mrf.mxu0
      %v1464 = vadd.f32 0.0, %v1463
      %v1465 = vpop.f32.mrf.mxu0
      %v1466 = vadd.f32 0.0, %v1465
      %1467 = vmatmul.bf16.gmra.mxu0 %v1392
      %v1468 = vpop.f32.mrf.mxu0
      %v1469 = vadd.f32 0.0, %v1468
      %v1470 = vpop.f32.mrf.mxu0
      %v1471 = vadd.f32 0.0, %v1470
      %1472 = vmatmul.bf16.gmra.mxu0 %v1395
      %v1473 = vpop.f32.mrf.mxu0
      %v1474 = vadd.f32 0.0, %v1473
      %v1475 = vpop.f32.mrf.mxu0
      %v1476 = vadd.f32 0.0, %v1475
      %1477 = vmatmul.bf16.gmra.mxu0 %v1398
      %v1478 = vpop.f32.mrf.mxu0
      %v1479 = vadd.f32 0.0, %v1478
      %v1480 = vpop.f32.mrf.mxu0
      %v1481 = vadd.f32 0.0, %v1480
      %1482 = vmatmul.bf16.gmra.mxu0 %v1401
      %v1483 = vpop.f32.mrf.mxu0
      %v1484 = vadd.f32 0.0, %v1483
      %v1485 = vpop.f32.mrf.mxu0
      %v1486 = vadd.f32 0.0, %v1485
      %1487 = vmatmul.bf16.gmra.mxu0 %v1404
      %v1488 = vpop.f32.mrf.mxu0
      %v1489 = vadd.f32 0.0, %v1488
      %v1490 = vpop.f32.mrf.mxu0
      %v1491 = vadd.f32 0.0, %v1490
      %1492 = vmatmul.bf16.gmra.mxu0 %v1407
      %v1493 = vpop.f32.mrf.mxu0
      %v1494 = vadd.f32 0.0, %v1493
      %v1495 = vpop.f32.mrf.mxu0
      %v1496 = vadd.f32 0.0, %v1495
      %1497 = vmatmul.bf16.gmra.mxu0 %v1410
      %v1498 = vpop.f32.mrf.mxu0
      %v1499 = vadd.f32 0.0, %v1498
      %v1500 = vpop.f32.mrf.mxu0
      %v1501 = vadd.f32 0.0, %v1500
      %1502 = vmatmul.bf16.gmra.mxu0 %v1413
      %v1503 = vpop.f32.mrf.mxu0
      %v1504 = vadd.f32 0.0, %v1503
      %v1505 = vpop.f32.mrf.mxu0
      %v1506 = vadd.f32 0.0, %v1505
      %1507 = vmatmul.bf16.gmra.mxu0 %v1416
      %v1508 = vpop.f32.mrf.mxu0
      %v1509 = vadd.f32 0.0, %v1508
      %v1510 = vpop.f32.mrf.mxu0
      %v1511 = vadd.f32 0.0, %v1510
      %1512 = vmatmul.bf16.gmra.mxu0 %v1419
      %v1513 = vpop.f32.mrf.mxu0
      %v1514 = vadd.f32 0.0, %v1513
      %v1515 = vpop.f32.mrf.mxu0
      %v1516 = vadd.f32 0.0, %v1515
      %1517 = vmatmul.bf16.gmra.mxu0 %v1422
      %v1518 = vpop.f32.mrf.mxu0
      %v1519 = vadd.f32 0.0, %v1518
      %v1520 = vpop.f32.mrf.mxu0
      %v1521 = vadd.f32 0.0, %v1520
      %1522 = vdwg.mxu0
      %v1523 = vpack.c.bf16 %v1436, %v1434
      %v1524 = vpack.c.bf16 %v1441, %v1439
      %v1525 = vpack.c.bf16 %v1446, %v1444
      %v1526 = vpack.c.bf16 %v1451, %v1449
      %v1527 = vpack.c.bf16 %v1456, %v1454
      %v1528 = vpack.c.bf16 %v1461, %v1459
      %v1529 = vpack.c.bf16 %v1466, %v1464
      %v1530 = vpack.c.bf16 %v1471, %v1469
      %v1531 = vpack.c.bf16 %v1476, %v1474
      %v1532 = vpack.c.bf16 %v1481, %v1479
      %v1533 = vpack.c.bf16 %v1486, %v1484
      %v1534 = vpack.c.bf16 %v1491, %v1489
      %v1535 = vpack.c.bf16 %v1496, %v1494
      %v1536 = vpack.c.bf16 %v1501, %v1499
      %v1537 = vpack.c.bf16 %v1506, %v1504
      %v1538 = vpack.c.bf16 %v1511, %v1509
      %v1539 = vpack.c.bf16 %v1516, %v1514
      %v1540 = vpack.c.bf16 %v1521, %v1519
      %v1541 = vld [vmem:[%s408] sm:$0xff]
      %v1542 = vld [vmem:[%s408 + $0x8] sm:$0x3]
      %v1543 = vld [vmem:[%s5] sm:$0x1]
      %v1544 = vld [vmem:[%s6] sm:$0x1]
      %v1545 = vsel %vm458, %v1541, 0.0
      %1546 = vadd.xlane.f32.xlu0 %v1545
      %v1547 = vpop.xlane.xlu0 %1546
      %vm1548 = vcmask 254976
      %v1549 = vsel %vm1548, %v1542, 0.0
      %1550 = vadd.xlane.f32.xlu0 %v1549
      %v1551 = vpop.xlane.xlu0 %1550
      %v1552 = vmul.f32 %v1547, %v573
      %v1553 = vmul.f32 %v1551, %v573
      %v1554 = vsub.f32 %v1541, %v1552
      %v1555 = vsub.f32 %v1542, %v1553
      %v1556 = vmul.f32 %v1554, %v1554
      %v1557 = vmul.f32 %v1555, %v1555
      %v1558 = vsel %vm458, %v1556, 0.0
      %1559 = vadd.xlane.f32.xlu0 %v1558
      %v1560 = vpop.xlane.xlu0 %1559
      %v1561 = vsel %vm1548, %v1557, 0.0
      %1562 = vadd.xlane.f32.xlu0 %v1561
      %v1563 = vpop.xlane.xlu0 %1562
      %v1564 = vmul.f32 %v1560, %v573
      %v1565 = vmul.f32 %v1563, %v573
      %v1566 = vadd.f32 %v1564, 1e-05
      %v1567 = vadd.f32 %v1565, 1e-05
      %v1568 = vrsqrt.pop %v1566
      %v1569 = vmul.f32 %v1568, %v1566
      %v1570 = vmul.f32 %v1569, %v1568
      %v1571 = vmul.f32 0.5, %v1570
      %v1572 = vsub.f32 1.5, %v1571
      %v1573 = vmul.f32 %v1568, %v1572
      %vm1574 = vweird.f32 %v1566
      %vm1575 = vweird.f32 %v1568
      %vm1576 = vmor %vm1574, %vm1575
      %v1577 = vsel %vm1576, %v1568, %v1573
      %v1578 = vrsqrt.pop %v1567
      %v1579 = vmul.f32 %v1578, %v1567
      %v1580 = vmul.f32 %v1579, %v1578
      %v1581 = vmul.f32 0.5, %v1580
      %v1582 = vsub.f32 1.5, %v1581
      %v1583 = vmul.f32 %v1578, %v1582
      %vm1584 = vweird.f32 %v1567
      %vm1585 = vweird.f32 %v1578
      %vm1586 = vmor %vm1584, %vm1585
      %v1587 = vsel %vm1586, %v1578, %v1583
      %v1588 = vmul.f32 %v1554, %v1577
      %v1589 = vmul.f32 %v1555, %v1587
      %v1591 = vperm.slane %v1543, 0
      %v1593 = vmul.f32 %v1588, %v1591
      %v1594 = vmul.f32 %v1589, %v1591
      %v1596 = vperm.slane %v1544, 0
      %v1598 = vadd.f32 %v1593, %v1596
      %v1599 = vadd.f32 %v1594, %v1596
      %v1600 = vpack.c.bf16 %v1599, %v1598
      %v1601 = vld [vmem:[%s7] sm:$0xf]
      %v1602 = vld [vmem:[%s7 + $0x4] sm:$0xf]
      %v1603 = vld [vmem:[%s7 + $0x8] sm:$0xf]
      %v1604 = vld [vmem:[%s7 + $0xc] sm:$0xf]
      %v1609 = vunpack.c.l.b16 %v1601
      %v1610 = vunpack.c.l.b16 %v1602
      %v1611 = vunpack.c.l.b16 %v1603
      %v1612 = vunpack.c.l.b16 %v1604
      %v1613 = vpack.c.b16 %v1610, %v1609
      %v1614 = vpack.c.b16 %v1612, %v1611
      %v1618 = vsel %vm458, %v1600, 0
      %1620 = vmatpush.bf16.msra.mxu0 0
      %1621 = vmatpush.bf16.msra.mxu0 0
      %1622 = vmatpush.bf16.msra.mxu0 0
      %1623 = vmatpush.bf16.msra.mxu0 0
      %1624 = vmatpush.bf16.msra.mxu0 0
      %1625 = vmatpush.bf16.msra.mxu0 0
      %1626 = vmatpush.bf16.msra.mxu0 %v1614
      %1627 = vmatpush.bf16.msra.mxu0 %v1613
      %1628 = vmatmul.bf16.gmra.mxu0 %v1618
      %v1629 = vpop.f32.mrf.mxu0
      %v1630 = vadd.f32 0.0, %v1629
      %v1631 = vpop.f32.mrf.mxu0
      %v1632 = vadd.f32 0.0, %v1631
      %1633 = vdwg.mxu0
      %v1634 = vld [vmem:[%s8] sm:$0xf]
      %v1635 = vld [vmem:[%s8 + $0x4] sm:$0xf]
      %v1636 = vld [vmem:[%s8 + $0x8] sm:$0xf]
      %v1637 = vld [vmem:[%s8 + $0xc] sm:$0xf]
      %v1642 = vunpack.c.l.b16 %v1634
      %v1643 = vunpack.c.l.b16 %v1635
      %v1644 = vunpack.c.l.b16 %v1636
      %v1645 = vunpack.c.l.b16 %v1637
      %v1646 = vpack.c.b16 %v1643, %v1642
      %v1647 = vpack.c.b16 %v1645, %v1644
      %1650 = vmatpush.bf16.msra.mxu0 0
      %1651 = vmatpush.bf16.msra.mxu0 0
      %1652 = vmatpush.bf16.msra.mxu0 0
      %1653 = vmatpush.bf16.msra.mxu0 0
      %1654 = vmatpush.bf16.msra.mxu0 0
      %1655 = vmatpush.bf16.msra.mxu0 0
      %1656 = vmatpush.bf16.msra.mxu0 %v1647
      %1657 = vmatpush.bf16.msra.mxu0 %v1646
      %1658 = vmatmul.bf16.gmra.mxu0 %v1618
      %v1659 = vpop.f32.mrf.mxu0
      %v1660 = vadd.f32 0.0, %v1659
      %v1661 = vpop.f32.mrf.mxu0
      %v1662 = vadd.f32 0.0, %v1661
      %1663 = vdwg.mxu0
      %v1664 = vpack.c.bf16 %v1632, %v1630
      %v1666 = vsel %vm458, %v1523, 0
      %v1669 = vsel %vm458, %v1524, 0
      %v1672 = vsel %vm458, %v1525, 0
      %v1675 = vsel %vm458, %v1526, 0
      %v1678 = vsel %vm458, %v1527, 0
      %v1681 = vsel %vm458, %v1528, 0
      %v1684 = vsel %vm458, %v1529, 0
      %v1687 = vsel %vm458, %v1530, 0
      %v1690 = vsel %vm458, %v1531, 0
      %v1693 = vsel %vm458, %v1532, 0
      %v1696 = vsel %vm458, %v1533, 0
      %v1699 = vsel %vm458, %v1534, 0
      %v1702 = vsel %vm458, %v1535, 0
      %v1705 = vsel %vm458, %v1536, 0
      %v1708 = vsel %vm458, %v1537, 0
      %v1711 = vsel %vm458, %v1538, 0
      %v1714 = vsel %vm458, %v1539, 0
      %v1717 = vsel %vm458, %v1540, 0
      %v1720 = vsel %vm458, %v1664, 0
      %1722 = vmatpush.bf16.xpose.msra.mxu0 0
      %1723 = vmatpush.bf16.xpose.msra.mxu0 0
      %1724 = vmatpush.bf16.xpose.msra.mxu0 0
      %1725 = vmatpush.bf16.xpose.msra.mxu0 0
      %1726 = vmatpush.bf16.xpose.msra.mxu0 0
      %1727 = vmatpush.bf16.xpose.msra.mxu0 0
      %1728 = vmatpush.bf16.xpose.msra.mxu0 0
      %1729 = vmatpush.bf16.xpose.msra.mxu0 %v1720
      %1730 = vmatmul.bf16.gmra.mxu0 %v1666
      %v1731 = vpop.f32.mrf.mxu0
      %v1732 = vadd.f32 0.0, %v1731
      %v1733 = vpop.f32.mrf.mxu0
      %v1734 = vadd.f32 0.0, %v1733
      %1735 = vmatmul.bf16.gmra.mxu0 %v1669
      %v1736 = vpop.f32.mrf.mxu0
      %v1737 = vadd.f32 0.0, %v1736
      %v1738 = vpop.f32.mrf.mxu0
      %v1739 = vadd.f32 0.0, %v1738
      %1740 = vmatmul.bf16.gmra.mxu0 %v1672
      %v1741 = vpop.f32.mrf.mxu0
      %v1742 = vadd.f32 0.0, %v1741
      %v1743 = vpop.f32.mrf.mxu0
      %v1744 = vadd.f32 0.0, %v1743
      %1745 = vmatmul.bf16.gmra.mxu0 %v1675
      %v1746 = vpop.f32.mrf.mxu0
      %v1747 = vadd.f32 0.0, %v1746
      %v1748 = vpop.f32.mrf.mxu0
      %v1749 = vadd.f32 0.0, %v1748
      %1750 = vmatmul.bf16.gmra.mxu0 %v1678
      %v1751 = vpop.f32.mrf.mxu0
      %v1752 = vadd.f32 0.0, %v1751
      %v1753 = vpop.f32.mrf.mxu0
      %v1754 = vadd.f32 0.0, %v1753
      %1755 = vmatmul.bf16.gmra.mxu0 %v1681
      %v1756 = vpop.f32.mrf.mxu0
      %v1757 = vadd.f32 0.0, %v1756
      %v1758 = vpop.f32.mrf.mxu0
      %v1759 = vadd.f32 0.0, %v1758
      %1760 = vmatmul.bf16.gmra.mxu0 %v1684
      %v1761 = vpop.f32.mrf.mxu0
      %v1762 = vadd.f32 0.0, %v1761
      %v1763 = vpop.f32.mrf.mxu0
      %v1764 = vadd.f32 0.0, %v1763
      %1765 = vmatmul.bf16.gmra.mxu0 %v1687
      %v1766 = vpop.f32.mrf.mxu0
      %v1767 = vadd.f32 0.0, %v1766
      %v1768 = vpop.f32.mrf.mxu0
      %v1769 = vadd.f32 0.0, %v1768
      %1770 = vmatmul.bf16.gmra.mxu0 %v1690
      %v1771 = vpop.f32.mrf.mxu0
      %v1772 = vadd.f32 0.0, %v1771
      %v1773 = vpop.f32.mrf.mxu0
      %v1774 = vadd.f32 0.0, %v1773
      %1775 = vmatmul.bf16.gmra.mxu0 %v1693
      %v1776 = vpop.f32.mrf.mxu0
      %v1777 = vadd.f32 0.0, %v1776
      %v1778 = vpop.f32.mrf.mxu0
      %v1779 = vadd.f32 0.0, %v1778
      %1780 = vmatmul.bf16.gmra.mxu0 %v1696
      %v1781 = vpop.f32.mrf.mxu0
      %v1782 = vadd.f32 0.0, %v1781
      %v1783 = vpop.f32.mrf.mxu0
      %v1784 = vadd.f32 0.0, %v1783
      %1785 = vmatmul.bf16.gmra.mxu0 %v1699
      %v1786 = vpop.f32.mrf.mxu0
      %v1787 = vadd.f32 0.0, %v1786
      %v1788 = vpop.f32.mrf.mxu0
      %v1789 = vadd.f32 0.0, %v1788
      %1790 = vmatmul.bf16.gmra.mxu0 %v1702
      %v1791 = vpop.f32.mrf.mxu0
      %v1792 = vadd.f32 0.0, %v1791
      %v1793 = vpop.f32.mrf.mxu0
      %v1794 = vadd.f32 0.0, %v1793
      %1795 = vmatmul.bf16.gmra.mxu0 %v1705
      %v1796 = vpop.f32.mrf.mxu0
      %v1797 = vadd.f32 0.0, %v1796
      %v1798 = vpop.f32.mrf.mxu0
      %v1799 = vadd.f32 0.0, %v1798
      %1800 = vmatmul.bf16.gmra.mxu0 %v1708
      %v1801 = vpop.f32.mrf.mxu0
      %v1802 = vadd.f32 0.0, %v1801
      %v1803 = vpop.f32.mrf.mxu0
      %v1804 = vadd.f32 0.0, %v1803
      %1805 = vmatmul.bf16.gmra.mxu0 %v1711
      %v1806 = vpop.f32.mrf.mxu0
      %v1807 = vadd.f32 0.0, %v1806
      %v1808 = vpop.f32.mrf.mxu0
      %v1809 = vadd.f32 0.0, %v1808
      %1810 = vmatmul.bf16.gmra.mxu0 %v1714
      %v1811 = vpop.f32.mrf.mxu0
      %v1812 = vadd.f32 0.0, %v1811
      %v1813 = vpop.f32.mrf.mxu0
      %v1814 = vadd.f32 0.0, %v1813
      %1815 = vmatmul.bf16.gmra.mxu0 %v1717
      %v1816 = vpop.f32.mrf.mxu0
      %v1817 = vadd.f32 0.0, %v1816
      %v1818 = vpop.f32.mrf.mxu0
      %v1819 = vadd.f32 0.0, %v1818
      %1820 = vdwg.mxu0
      %vm1821 = vcmask 80896
      %v1822 = vsel %vm1821, %v1732, -inf
      %1823 = vmax.xlane.f32.xlu0 %v1822
      %v1824 = vpop.xlane.xlu0 %1823
      %v1825 = vsel %vm1821, %v1734, -inf
      %1826 = vmax.xlane.f32.xlu0 %v1825
      %v1827 = vpop.xlane.xlu0 %1826
      %v1828 = vsel %vm1821, %v1737, -inf
      %1829 = vmax.xlane.f32.xlu0 %v1828
      %v1830 = vpop.xlane.xlu0 %1829
      %v1831 = vsel %vm1821, %v1739, -inf
      %1832 = vmax.xlane.f32.xlu0 %v1831
      %v1833 = vpop.xlane.xlu0 %1832
      %v1834 = vsel %vm1821, %v1742, -inf
      %1835 = vmax.xlane.f32.xlu0 %v1834
      %v1836 = vpop.xlane.xlu0 %1835
      %v1837 = vsel %vm1821, %v1744, -inf
      %1838 = vmax.xlane.f32.xlu0 %v1837
      %v1839 = vpop.xlane.xlu0 %1838
      %v1840 = vsel %vm1821, %v1747, -inf
      %1841 = vmax.xlane.f32.xlu0 %v1840
      %v1842 = vpop.xlane.xlu0 %1841
      %v1843 = vsel %vm1821, %v1749, -inf
      %1844 = vmax.xlane.f32.xlu0 %v1843
      %v1845 = vpop.xlane.xlu0 %1844
      %v1846 = vsel %vm1821, %v1752, -inf
      %1847 = vmax.xlane.f32.xlu0 %v1846
      %v1848 = vpop.xlane.xlu0 %1847
      %v1849 = vsel %vm1821, %v1754, -inf
      %1850 = vmax.xlane.f32.xlu0 %v1849
      %v1851 = vpop.xlane.xlu0 %1850
      %v1852 = vsel %vm1821, %v1757, -inf
      %1853 = vmax.xlane.f32.xlu0 %v1852
      %v1854 = vpop.xlane.xlu0 %1853
      %v1855 = vsel %vm1821, %v1759, -inf
      %1856 = vmax.xlane.f32.xlu0 %v1855
      %v1857 = vpop.xlane.xlu0 %1856
      %v1858 = vsel %vm1821, %v1762, -inf
      %1859 = vmax.xlane.f32.xlu0 %v1858
      %v1860 = vpop.xlane.xlu0 %1859
      %v1861 = vsel %vm1821, %v1764, -inf
      %1862 = vmax.xlane.f32.xlu0 %v1861
      %v1863 = vpop.xlane.xlu0 %1862
      %v1864 = vsel %vm1821, %v1767, -inf
      %1865 = vmax.xlane.f32.xlu0 %v1864
      %v1866 = vpop.xlane.xlu0 %1865
      %v1867 = vsel %vm1821, %v1769, -inf
      %1868 = vmax.xlane.f32.xlu0 %v1867
      %v1869 = vpop.xlane.xlu0 %1868
      %v1870 = vsel %vm1821, %v1772, -inf
      %1871 = vmax.xlane.f32.xlu0 %v1870
      %v1872 = vpop.xlane.xlu0 %1871
      %v1873 = vsel %vm1821, %v1774, -inf
      %1874 = vmax.xlane.f32.xlu0 %v1873
      %v1875 = vpop.xlane.xlu0 %1874
      %v1876 = vsel %vm1821, %v1777, -inf
      %1877 = vmax.xlane.f32.xlu0 %v1876
      %v1878 = vpop.xlane.xlu0 %1877
      %v1879 = vsel %vm1821, %v1779, -inf
      %1880 = vmax.xlane.f32.xlu0 %v1879
      %v1881 = vpop.xlane.xlu0 %1880
      %v1882 = vsel %vm1821, %v1782, -inf
      %1883 = vmax.xlane.f32.xlu0 %v1882
      %v1884 = vpop.xlane.xlu0 %1883
      %v1885 = vsel %vm1821, %v1784, -inf
      %1886 = vmax.xlane.f32.xlu0 %v1885
      %v1887 = vpop.xlane.xlu0 %1886
      %v1888 = vsel %vm1821, %v1787, -inf
      %1889 = vmax.xlane.f32.xlu0 %v1888
      %v1890 = vpop.xlane.xlu0 %1889
      %v1891 = vsel %vm1821, %v1789, -inf
      %1892 = vmax.xlane.f32.xlu0 %v1891
      %v1893 = vpop.xlane.xlu0 %1892
      %v1894 = vsel %vm1821, %v1792, -inf
      %1895 = vmax.xlane.f32.xlu0 %v1894
      %v1896 = vpop.xlane.xlu0 %1895
      %v1897 = vsel %vm1821, %v1794, -inf
      %1898 = vmax.xlane.f32.xlu0 %v1897
      %v1899 = vpop.xlane.xlu0 %1898
      %v1900 = vsel %vm1821, %v1797, -inf
      %1901 = vmax.xlane.f32.xlu0 %v1900
      %v1902 = vpop.xlane.xlu0 %1901
      %v1903 = vsel %vm1821, %v1799, -inf
      %1904 = vmax.xlane.f32.xlu0 %v1903
      %v1905 = vpop.xlane.xlu0 %1904
      %v1906 = vsel %vm1821, %v1802, -inf
      %1907 = vmax.xlane.f32.xlu0 %v1906
      %v1908 = vpop.xlane.xlu0 %1907
      %v1909 = vsel %vm1821, %v1804, -inf
      %1910 = vmax.xlane.f32.xlu0 %v1909
      %v1911 = vpop.xlane.xlu0 %1910
      %v1912 = vsel %vm1821, %v1807, -inf
      %1913 = vmax.xlane.f32.xlu0 %v1912
      %v1914 = vpop.xlane.xlu0 %1913
      %v1915 = vsel %vm1821, %v1809, -inf
      %1916 = vmax.xlane.f32.xlu0 %v1915
      %v1917 = vpop.xlane.xlu0 %1916
      %v1918 = vsel %vm1821, %v1812, -inf
      %1919 = vmax.xlane.f32.xlu0 %v1918
      %v1920 = vpop.xlane.xlu0 %1919
      %v1921 = vsel %vm1821, %v1814, -inf
      %1922 = vmax.xlane.f32.xlu0 %v1921
      %v1923 = vpop.xlane.xlu0 %1922
      %v1924 = vsel %vm1821, %v1817, -inf
      %1925 = vmax.xlane.f32.xlu0 %v1924
      %v1926 = vpop.xlane.xlu0 %1925
      %v1927 = vsel %vm1821, %v1819, -inf
      %1928 = vmax.xlane.f32.xlu0 %v1927
      %v1929 = vpop.xlane.xlu0 %1928
      %v1930 = vsub.f32 %v1732, %v1824
      %v1931 = vsub.f32 %v1734, %v1827
      %v1932 = vsub.f32 %v1737, %v1830
      %v1933 = vsub.f32 %v1739, %v1833
      %v1934 = vsub.f32 %v1742, %v1836
      %v1935 = vsub.f32 %v1744, %v1839
      %v1936 = vsub.f32 %v1747, %v1842
      %v1937 = vsub.f32 %v1749, %v1845
      %v1938 = vsub.f32 %v1752, %v1848
      %v1939 = vsub.f32 %v1754, %v1851
      %v1940 = vsub.f32 %v1757, %v1854
      %v1941 = vsub.f32 %v1759, %v1857
      %v1942 = vsub.f32 %v1762, %v1860
      %v1943 = vsub.f32 %v1764, %v1863
      %v1944 = vsub.f32 %v1767, %v1866
      %v1945 = vsub.f32 %v1769, %v1869
      %v1946 = vsub.f32 %v1772, %v1872
      %v1947 = vsub.f32 %v1774, %v1875
      %v1948 = vsub.f32 %v1777, %v1878
      %v1949 = vsub.f32 %v1779, %v1881
      %v1950 = vsub.f32 %v1782, %v1884
      %v1951 = vsub.f32 %v1784, %v1887
      %v1952 = vsub.f32 %v1787, %v1890
      %v1953 = vsub.f32 %v1789, %v1893
      %v1954 = vsub.f32 %v1792, %v1896
      %v1955 = vsub.f32 %v1794, %v1899
      %v1956 = vsub.f32 %v1797, %v1902
      %v1957 = vsub.f32 %v1799, %v1905
      %v1958 = vsub.f32 %v1802, %v1908
      %v1959 = vsub.f32 %v1804, %v1911
      %v1960 = vsub.f32 %v1807, %v1914
      %v1961 = vsub.f32 %v1809, %v1917
      %v1962 = vsub.f32 %v1812, %v1920
      %v1963 = vsub.f32 %v1814, %v1923
      %v1964 = vsub.f32 %v1817, %v1926
      %v1965 = vsub.f32 %v1819, %v1929
      %v1966 = vmul.f32 %v1930, 1.442695
      %v1967 = vpow.pop %v1966
      %v1968 = vmul.f32 %v1931, 1.442695
      %v1969 = vpow.pop %v1968
      %v1970 = vmul.f32 %v1932, 1.442695
      %v1971 = vpow.pop %v1970
      %v1972 = vmul.f32 %v1933, 1.442695
      %v1973 = vpow.pop %v1972
      %v1974 = vmul.f32 %v1934, 1.442695
      %v1975 = vpow.pop %v1974
      %v1976 = vmul.f32 %v1935, 1.442695
      %v1977 = vpow.pop %v1976
      %v1978 = vmul.f32 %v1936, 1.442695
      %v1979 = vpow.pop %v1978
      %v1980 = vmul.f32 %v1937, 1.442695
      %v1981 = vpow.pop %v1980
      %v1982 = vmul.f32 %v1938, 1.442695
      %v1983 = vpow.pop %v1982
      %v1984 = vmul.f32 %v1939, 1.442695
      %v1985 = vpow.pop %v1984
      %v1986 = vmul.f32 %v1940, 1.442695
      %v1987 = vpow.pop %v1986
      %v1988 = vmul.f32 %v1941, 1.442695
      %v1989 = vpow.pop %v1988
      %v1990 = vmul.f32 %v1942, 1.442695
      %v1991 = vpow.pop %v1990
      %v1992 = vmul.f32 %v1943, 1.442695
      %v1993 = vpow.pop %v1992
      %v1994 = vmul.f32 %v1944, 1.442695
      %v1995 = vpow.pop %v1994
      %v1996 = vmul.f32 %v1945, 1.442695
      %v1997 = vpow.pop %v1996
      %v1998 = vmul.f32 %v1946, 1.442695
      %v1999 = vpow.pop %v1998
      %v2000 = vmul.f32 %v1947, 1.442695
      %v2001 = vpow.pop %v2000
      %v2002 = vmul.f32 %v1948, 1.442695
      %v2003 = vpow.pop %v2002
      %v2004 = vmul.f32 %v1949, 1.442695
      %v2005 = vpow.pop %v2004
      %v2006 = vmul.f32 %v1950, 1.442695
      %v2007 = vpow.pop %v2006
      %v2008 = vmul.f32 %v1951, 1.442695
      %v2009 = vpow.pop %v2008
      %v2010 = vmul.f32 %v1952, 1.442695
      %v2011 = vpow.pop %v2010
      %v2012 = vmul.f32 %v1953, 1.442695
      %v2013 = vpow.pop %v2012
      %v2014 = vmul.f32 %v1954, 1.442695
      %v2015 = vpow.pop %v2014
      %v2016 = vmul.f32 %v1955, 1.442695
      %v2017 = vpow.pop %v2016
      %v2018 = vmul.f32 %v1956, 1.442695
      %v2019 = vpow.pop %v2018
      %v2020 = vmul.f32 %v1957, 1.442695
      %v2021 = vpow.pop %v2020
      %v2022 = vmul.f32 %v1958, 1.442695
      %v2023 = vpow.pop %v2022
      %v2024 = vmul.f32 %v1959, 1.442695
      %v2025 = vpow.pop %v2024
      %v2026 = vmul.f32 %v1960, 1.442695
      %v2027 = vpow.pop %v2026
      %v2028 = vmul.f32 %v1961, 1.442695
      %v2029 = vpow.pop %v2028
      %v2030 = vmul.f32 %v1962, 1.442695
      %v2031 = vpow.pop %v2030
      %v2032 = vmul.f32 %v1963, 1.442695
      %v2033 = vpow.pop %v2032
      %v2034 = vmul.f32 %v1964, 1.442695
      %v2035 = vpow.pop %v2034
      %v2036 = vmul.f32 %v1965, 1.442695
      %v2037 = vpow.pop %v2036
      %v2038 = vsel %vm1821, %v1967, 0.0
      %2039 = vadd.xlane.f32.xlu0 %v2038
      %v2040 = vpop.xlane.xlu0 %2039
      %v2041 = vsel %vm1821, %v1969, 0.0
      %2042 = vadd.xlane.f32.xlu0 %v2041
      %v2043 = vpop.xlane.xlu0 %2042
      %v2044 = vsel %vm1821, %v1971, 0.0
      %2045 = vadd.xlane.f32.xlu0 %v2044
      %v2046 = vpop.xlane.xlu0 %2045
      %v2047 = vsel %vm1821, %v1973, 0.0
      %2048 = vadd.xlane.f32.xlu0 %v2047
      %v2049 = vpop.xlane.xlu0 %2048
      %v2050 = vsel %vm1821, %v1975, 0.0
      %2051 = vadd.xlane.f32.xlu0 %v2050
      %v2052 = vpop.xlane.xlu0 %2051
      %v2053 = vsel %vm1821, %v1977, 0.0
      %2054 = vadd.xlane.f32.xlu0 %v2053
      %v2055 = vpop.xlane.xlu0 %2054
      %v2056 = vsel %vm1821, %v1979, 0.0
      %2057 = vadd.xlane.f32.xlu0 %v2056
      %v2058 = vpop.xlane.xlu0 %2057
      %v2059 = vsel %vm1821, %v1981, 0.0
      %2060 = vadd.xlane.f32.xlu0 %v2059
      %v2061 = vpop.xlane.xlu0 %2060
      %v2062 = vsel %vm1821, %v1983, 0.0
      %2063 = vadd.xlane.f32.xlu0 %v2062
      %v2064 = vpop.xlane.xlu0 %2063
      %v2065 = vsel %vm1821, %v1985, 0.0
      %2066 = vadd.xlane.f32.xlu0 %v2065
      %v2067 = vpop.xlane.xlu0 %2066
      %v2068 = vsel %vm1821, %v1987, 0.0
      %2069 = vadd.xlane.f32.xlu0 %v2068
      %v2070 = vpop.xlane.xlu0 %2069
      %v2071 = vsel %vm1821, %v1989, 0.0
      %2072 = vadd.xlane.f32.xlu0 %v2071
      %v2073 = vpop.xlane.xlu0 %2072
      %v2074 = vsel %vm1821, %v1991, 0.0
      %2075 = vadd.xlane.f32.xlu0 %v2074
      %v2076 = vpop.xlane.xlu0 %2075
      %v2077 = vsel %vm1821, %v1993, 0.0
      %2078 = vadd.xlane.f32.xlu0 %v2077
      %v2079 = vpop.xlane.xlu0 %2078
      %v2080 = vsel %vm1821, %v1995, 0.0
      %2081 = vadd.xlane.f32.xlu0 %v2080
      %v2082 = vpop.xlane.xlu0 %2081
      %v2083 = vsel %vm1821, %v1997, 0.0
      %2084 = vadd.xlane.f32.xlu0 %v2083
      %v2085 = vpop.xlane.xlu0 %2084
      %v2086 = vsel %vm1821, %v1999, 0.0
      %2087 = vadd.xlane.f32.xlu0 %v2086
      %v2088 = vpop.xlane.xlu0 %2087
      %v2089 = vsel %vm1821, %v2001, 0.0
      %2090 = vadd.xlane.f32.xlu0 %v2089
      %v2091 = vpop.xlane.xlu0 %2090
      %v2092 = vsel %vm1821, %v2003, 0.0
      %2093 = vadd.xlane.f32.xlu0 %v2092
      %v2094 = vpop.xlane.xlu0 %2093
      %v2095 = vsel %vm1821, %v2005, 0.0
      %2096 = vadd.xlane.f32.xlu0 %v2095
      %v2097 = vpop.xlane.xlu0 %2096
      %v2098 = vsel %vm1821, %v2007, 0.0
      %2099 = vadd.xlane.f32.xlu0 %v2098
      %v2100 = vpop.xlane.xlu0 %2099
      %v2101 = vsel %vm1821, %v2009, 0.0
      %2102 = vadd.xlane.f32.xlu0 %v2101
      %v2103 = vpop.xlane.xlu0 %2102
      %v2104 = vsel %vm1821, %v2011, 0.0
      %2105 = vadd.xlane.f32.xlu0 %v2104
      %v2106 = vpop.xlane.xlu0 %2105
      %v2107 = vsel %vm1821, %v2013, 0.0
      %2108 = vadd.xlane.f32.xlu0 %v2107
      %v2109 = vpop.xlane.xlu0 %2108
      %v2110 = vsel %vm1821, %v2015, 0.0
      %2111 = vadd.xlane.f32.xlu0 %v2110
      %v2112 = vpop.xlane.xlu0 %2111
      %v2113 = vsel %vm1821, %v2017, 0.0
      %2114 = vadd.xlane.f32.xlu0 %v2113
      %v2115 = vpop.xlane.xlu0 %2114
      %v2116 = vsel %vm1821, %v2019, 0.0
      %2117 = vadd.xlane.f32.xlu0 %v2116
      %v2118 = vpop.xlane.xlu0 %2117
      %v2119 = vsel %vm1821, %v2021, 0.0
      %2120 = vadd.xlane.f32.xlu0 %v2119
      %v2121 = vpop.xlane.xlu0 %2120
      %v2122 = vsel %vm1821, %v2023, 0.0
      %2123 = vadd.xlane.f32.xlu0 %v2122
      %v2124 = vpop.xlane.xlu0 %2123
      %v2125 = vsel %vm1821, %v2025, 0.0
      %2126 = vadd.xlane.f32.xlu0 %v2125
      %v2127 = vpop.xlane.xlu0 %2126
      %v2128 = vsel %vm1821, %v2027, 0.0
      %2129 = vadd.xlane.f32.xlu0 %v2128
      %v2130 = vpop.xlane.xlu0 %2129
      %v2131 = vsel %vm1821, %v2029, 0.0
      %2132 = vadd.xlane.f32.xlu0 %v2131
      %v2133 = vpop.xlane.xlu0 %2132
      %v2134 = vsel %vm1821, %v2031, 0.0
      %2135 = vadd.xlane.f32.xlu0 %v2134
      %v2136 = vpop.xlane.xlu0 %2135
      %v2137 = vsel %vm1821, %v2033, 0.0
      %2138 = vadd.xlane.f32.xlu0 %v2137
      %v2139 = vpop.xlane.xlu0 %2138
      %v2140 = vsel %vm1821, %v2035, 0.0
      %2141 = vadd.xlane.f32.xlu0 %v2140
      %v2142 = vpop.xlane.xlu0 %2141
      %v2143 = vsel %vm1821, %v2037, 0.0
      %2144 = vadd.xlane.f32.xlu0 %v2143
      %v2145 = vpop.xlane.xlu0 %2144
      %v2146 = vrcp.pop %v2040
      %v2147 = vrcp.pop %v2043
      %v2148 = vrcp.pop %v2046
      %v2149 = vrcp.pop %v2049
      %v2150 = vrcp.pop %v2052
      %v2151 = vrcp.pop %v2055
      %v2152 = vrcp.pop %v2058
      %v2153 = vrcp.pop %v2061
      %v2154 = vrcp.pop %v2064
      %v2155 = vrcp.pop %v2067
      %v2156 = vrcp.pop %v2070
      %v2157 = vrcp.pop %v2073
      %v2158 = vrcp.pop %v2076
      %v2159 = vrcp.pop %v2079
      %v2160 = vrcp.pop %v2082
      %v2161 = vrcp.pop %v2085
      %v2162 = vrcp.pop %v2088
      %v2163 = vrcp.pop %v2091
      %v2164 = vrcp.pop %v2094
      %v2165 = vrcp.pop %v2097
      %v2166 = vrcp.pop %v2100
      %v2167 = vrcp.pop %v2103
      %v2168 = vrcp.pop %v2106
      %v2169 = vrcp.pop %v2109
      %v2170 = vrcp.pop %v2112
      %v2171 = vrcp.pop %v2115
      %v2172 = vrcp.pop %v2118
      %v2173 = vrcp.pop %v2121
      %v2174 = vrcp.pop %v2124
      %v2175 = vrcp.pop %v2127
      %v2176 = vrcp.pop %v2130
      %v2177 = vrcp.pop %v2133
      %v2178 = vrcp.pop %v2136
      %v2179 = vrcp.pop %v2139
      %v2180 = vrcp.pop %v2142
      %v2181 = vrcp.pop %v2145
      %v2182 = vmul.f32 %v1967, %v2146
      %v2183 = vmul.f32 %v1969, %v2147
      %v2184 = vmul.f32 %v1971, %v2148
      %v2185 = vmul.f32 %v1973, %v2149
      %v2186 = vmul.f32 %v1975, %v2150
      %v2187 = vmul.f32 %v1977, %v2151
      %v2188 = vmul.f32 %v1979, %v2152
      %v2189 = vmul.f32 %v1981, %v2153
      %v2190 = vmul.f32 %v1983, %v2154
      %v2191 = vmul.f32 %v1985, %v2155
      %v2192 = vmul.f32 %v1987, %v2156
      %v2193 = vmul.f32 %v1989, %v2157
      %v2194 = vmul.f32 %v1991, %v2158
      %v2195 = vmul.f32 %v1993, %v2159
      %v2196 = vmul.f32 %v1995, %v2160
      %v2197 = vmul.f32 %v1997, %v2161
      %v2198 = vmul.f32 %v1999, %v2162
      %v2199 = vmul.f32 %v2001, %v2163
      %v2200 = vmul.f32 %v2003, %v2164
      %v2201 = vmul.f32 %v2005, %v2165
      %v2202 = vmul.f32 %v2007, %v2166
      %v2203 = vmul.f32 %v2009, %v2167
      %v2204 = vmul.f32 %v2011, %v2168
      %v2205 = vmul.f32 %v2013, %v2169
      %v2206 = vmul.f32 %v2015, %v2170
      %v2207 = vmul.f32 %v2017, %v2171
      %v2208 = vmul.f32 %v2019, %v2172
      %v2209 = vmul.f32 %v2021, %v2173
      %v2210 = vmul.f32 %v2023, %v2174
      %v2211 = vmul.f32 %v2025, %v2175
      %v2212 = vmul.f32 %v2027, %v2176
      %v2213 = vmul.f32 %v2029, %v2177
      %v2214 = vmul.f32 %v2031, %v2178
      %v2215 = vmul.f32 %v2033, %v2179
      %v2216 = vmul.f32 %v2035, %v2180
      %v2217 = vmul.f32 %v2037, %v2181
      %v2218 = vpack.c.bf16 %v2183, %v2182
      %v2219 = vpack.c.bf16 %v2185, %v2184
      %v2220 = vpack.c.bf16 %v2187, %v2186
      %v2221 = vpack.c.bf16 %v2189, %v2188
      %v2222 = vpack.c.bf16 %v2191, %v2190
      %v2223 = vpack.c.bf16 %v2193, %v2192
      %v2224 = vpack.c.bf16 %v2195, %v2194
      %v2225 = vpack.c.bf16 %v2197, %v2196
      %v2226 = vpack.c.bf16 %v2199, %v2198
      %v2227 = vpack.c.bf16 %v2201, %v2200
      %v2228 = vpack.c.bf16 %v2203, %v2202
      %v2229 = vpack.c.bf16 %v2205, %v2204
      %v2230 = vpack.c.bf16 %v2207, %v2206
      %v2231 = vpack.c.bf16 %v2209, %v2208
      %v2232 = vpack.c.bf16 %v2211, %v2210
      %v2233 = vpack.c.bf16 %v2213, %v2212
      %v2234 = vpack.c.bf16 %v2215, %v2214
      %v2235 = vpack.c.bf16 %v2217, %v2216
      %v2236 = vpack.c.bf16 %v1662, %v1660
      %s2237 = scalar_lea.vmem %s7, 16
      %v2238 = vld [vmem:[%s2237] sm:$0xf]
      %v2239 = vld [vmem:[%s2237 + $0x4] sm:$0xf]
      %v2240 = vld [vmem:[%s2237 + $0x8] sm:$0xf]
      %v2241 = vld [vmem:[%s2237 + $0xc] sm:$0xf]
      %v2246 = vunpack.c.l.b16 %v2238
      %v2247 = vunpack.c.l.b16 %v2239
      %v2248 = vunpack.c.l.b16 %v2240
      %v2249 = vunpack.c.l.b16 %v2241
      %v2250 = vpack.c.b16 %v2247, %v2246
      %v2251 = vpack.c.b16 %v2249, %v2248
      %2254 = vmatpush.bf16.msra.mxu0 0
      %2255 = vmatpush.bf16.msra.mxu0 0
      %2256 = vmatpush.bf16.msra.mxu0 0
      %2257 = vmatpush.bf16.msra.mxu0 0
      %2258 = vmatpush.bf16.msra.mxu0 0
      %2259 = vmatpush.bf16.msra.mxu0 0
      %2260 = vmatpush.bf16.msra.mxu0 %v2251
      %2261 = vmatpush.bf16.msra.mxu0 %v2250
      %2262 = vmatmul.bf16.gmra.mxu0 %v1618
      %v2263 = vpop.f32.mrf.mxu0
      %v2264 = vadd.f32 0.0, %v2263
      %v2265 = vpop.f32.mrf.mxu0
      %v2266 = vadd.f32 0.0, %v2265
      %2267 = vdwg.mxu0
      %s2268 = scalar_lea.vmem %s8, 16
      %v2269 = vld [vmem:[%s2268] sm:$0xf]
      %v2270 = vld [vmem:[%s2268 + $0x4] sm:$0xf]
      %v2271 = vld [vmem:[%s2268 + $0x8] sm:$0xf]
      %v2272 = vld [vmem:[%s2268 + $0xc] sm:$0xf]
      %v2277 = vunpack.c.l.b16 %v2269
      %v2278 = vunpack.c.l.b16 %v2270
      %v2279 = vunpack.c.l.b16 %v2271
      %v2280 = vunpack.c.l.b16 %v2272
      %v2281 = vpack.c.b16 %v2278, %v2277
      %v2282 = vpack.c.b16 %v2280, %v2279
      %2285 = vmatpush.bf16.msra.mxu0 0
      %2286 = vmatpush.bf16.msra.mxu0 0
      %2287 = vmatpush.bf16.msra.mxu0 0
      %2288 = vmatpush.bf16.msra.mxu0 0
      %2289 = vmatpush.bf16.msra.mxu0 0
      %2290 = vmatpush.bf16.msra.mxu0 0
      %2291 = vmatpush.bf16.msra.mxu0 %v2282
      %2292 = vmatpush.bf16.msra.mxu0 %v2281
      %2293 = vmatmul.bf16.gmra.mxu0 %v1618
      %v2294 = vpop.f32.mrf.mxu0
      %v2295 = vadd.f32 0.0, %v2294
      %v2296 = vpop.f32.mrf.mxu0
      %v2297 = vadd.f32 0.0, %v2296
      %2298 = vdwg.mxu0
      %v2299 = vpack.c.bf16 %v2266, %v2264
      %v2301 = vsel %vm458, %v2299, 0
      %2303 = vmatpush.bf16.xpose.msra.mxu0 0
      %2304 = vmatpush.bf16.xpose.msra.mxu0 0
      %2305 = vmatpush.bf16.xpose.msra.mxu0 0
      %2306 = vmatpush.bf16.xpose.msra.mxu0 0
      %2307 = vmatpush.bf16.xpose.msra.mxu0 0
      %2308 = vmatpush.bf16.xpose.msra.mxu0 0
      %2309 = vmatpush.bf16.xpose.msra.mxu0 0
      %2310 = vmatpush.bf16.xpose.msra.mxu0 %v2301
      %2311 = vmatmul.bf16.gmra.mxu0 %v1666
      %v2312 = vpop.f32.mrf.mxu0
      %v2313 = vadd.f32 0.0, %v2312
      %v2314 = vpop.f32.mrf.mxu0
      %v2315 = vadd.f32 0.0, %v2314
      %2316 = vmatmul.bf16.gmra.mxu0 %v1669
      %v2317 = vpop.f32.mrf.mxu0
      %v2318 = vadd.f32 0.0, %v2317
      %v2319 = vpop.f32.mrf.mxu0
      %v2320 = vadd.f32 0.0, %v2319
      %2321 = vmatmul.bf16.gmra.mxu0 %v1672
      %v2322 = vpop.f32.mrf.mxu0
      %v2323 = vadd.f32 0.0, %v2322
      %v2324 = vpop.f32.mrf.mxu0
      %v2325 = vadd.f32 0.0, %v2324
      %2326 = vmatmul.bf16.gmra.mxu0 %v1675
      %v2327 = vpop.f32.mrf.mxu0
      %v2328 = vadd.f32 0.0, %v2327
      %v2329 = vpop.f32.mrf.mxu0
      %v2330 = vadd.f32 0.0, %v2329
      %2331 = vmatmul.bf16.gmra.mxu0 %v1678
      %v2332 = vpop.f32.mrf.mxu0
      %v2333 = vadd.f32 0.0, %v2332
      %v2334 = vpop.f32.mrf.mxu0
      %v2335 = vadd.f32 0.0, %v2334
      %2336 = vmatmul.bf16.gmra.mxu0 %v1681
      %v2337 = vpop.f32.mrf.mxu0
      %v2338 = vadd.f32 0.0, %v2337
      %v2339 = vpop.f32.mrf.mxu0
      %v2340 = vadd.f32 0.0, %v2339
      %2341 = vmatmul.bf16.gmra.mxu0 %v1684
      %v2342 = vpop.f32.mrf.mxu0
      %v2343 = vadd.f32 0.0, %v2342
      %v2344 = vpop.f32.mrf.mxu0
      %v2345 = vadd.f32 0.0, %v2344
      %2346 = vmatmul.bf16.gmra.mxu0 %v1687
      %v2347 = vpop.f32.mrf.mxu0
      %v2348 = vadd.f32 0.0, %v2347
      %v2349 = vpop.f32.mrf.mxu0
      %v2350 = vadd.f32 0.0, %v2349
      %2351 = vmatmul.bf16.gmra.mxu0 %v1690
      %v2352 = vpop.f32.mrf.mxu0
      %v2353 = vadd.f32 0.0, %v2352
      %v2354 = vpop.f32.mrf.mxu0
      %v2355 = vadd.f32 0.0, %v2354
      %2356 = vmatmul.bf16.gmra.mxu0 %v1693
      %v2357 = vpop.f32.mrf.mxu0
      %v2358 = vadd.f32 0.0, %v2357
      %v2359 = vpop.f32.mrf.mxu0
      %v2360 = vadd.f32 0.0, %v2359
      %2361 = vmatmul.bf16.gmra.mxu0 %v1696
      %v2362 = vpop.f32.mrf.mxu0
      %v2363 = vadd.f32 0.0, %v2362
      %v2364 = vpop.f32.mrf.mxu0
      %v2365 = vadd.f32 0.0, %v2364
      %2366 = vmatmul.bf16.gmra.mxu0 %v1699
      %v2367 = vpop.f32.mrf.mxu0
      %v2368 = vadd.f32 0.0, %v2367
      %v2369 = vpop.f32.mrf.mxu0
      %v2370 = vadd.f32 0.0, %v2369
      %2371 = vmatmul.bf16.gmra.mxu0 %v1702
      %v2372 = vpop.f32.mrf.mxu0
      %v2373 = vadd.f32 0.0, %v2372
      %v2374 = vpop.f32.mrf.mxu0
      %v2375 = vadd.f32 0.0, %v2374
      %2376 = vmatmul.bf16.gmra.mxu0 %v1705
      %v2377 = vpop.f32.mrf.mxu0
      %v2378 = vadd.f32 0.0, %v2377
      %v2379 = vpop.f32.mrf.mxu0
      %v2380 = vadd.f32 0.0, %v2379
      %2381 = vmatmul.bf16.gmra.mxu0 %v1708
      %v2382 = vpop.f32.mrf.mxu0
      %v2383 = vadd.f32 0.0, %v2382
      %v2384 = vpop.f32.mrf.mxu0
      %v2385 = vadd.f32 0.0, %v2384
      %2386 = vmatmul.bf16.gmra.mxu0 %v1711
      %v2387 = vpop.f32.mrf.mxu0
      %v2388 = vadd.f32 0.0, %v2387
      %v2389 = vpop.f32.mrf.mxu0
      %v2390 = vadd.f32 0.0, %v2389
      %2391 = vmatmul.bf16.gmra.mxu0 %v1714
      %v2392 = vpop.f32.mrf.mxu0
      %v2393 = vadd.f32 0.0, %v2392
      %v2394 = vpop.f32.mrf.mxu0
      %v2395 = vadd.f32 0.0, %v2394
      %2396 = vmatmul.bf16.gmra.mxu0 %v1717
      %v2397 = vpop.f32.mrf.mxu0
      %v2398 = vadd.f32 0.0, %v2397
      %v2399 = vpop.f32.mrf.mxu0
      %v2400 = vadd.f32 0.0, %v2399
      %2401 = vdwg.mxu0
      %v2402 = vsel %vm1821, %v2313, -inf
      %2403 = vmax.xlane.f32.xlu0 %v2402
      %v2404 = vpop.xlane.xlu0 %2403
      %v2405 = vsel %vm1821, %v2315, -inf
      %2406 = vmax.xlane.f32.xlu0 %v2405
      %v2407 = vpop.xlane.xlu0 %2406
      %v2408 = vsel %vm1821, %v2318, -inf
      %2409 = vmax.xlane.f32.xlu0 %v2408
      %v2410 = vpop.xlane.xlu0 %2409
      %v2411 = vsel %vm1821, %v2320, -inf
      %2412 = vmax.xlane.f32.xlu0 %v2411
      %v2413 = vpop.xlane.xlu0 %2412
      %v2414 = vsel %vm1821, %v2323, -inf
      %2415 = vmax.xlane.f32.xlu0 %v2414
      %v2416 = vpop.xlane.xlu0 %2415
      %v2417 = vsel %vm1821, %v2325, -inf
      %2418 = vmax.xlane.f32.xlu0 %v2417
      %v2419 = vpop.xlane.xlu0 %2418
      %v2420 = vsel %vm1821, %v2328, -inf
      %2421 = vmax.xlane.f32.xlu0 %v2420
      %v2422 = vpop.xlane.xlu0 %2421
      %v2423 = vsel %vm1821, %v2330, -inf
      %2424 = vmax.xlane.f32.xlu0 %v2423
      %v2425 = vpop.xlane.xlu0 %2424
      %v2426 = vsel %vm1821, %v2333, -inf
      %2427 = vmax.xlane.f32.xlu0 %v2426
      %v2428 = vpop.xlane.xlu0 %2427
      %v2429 = vsel %vm1821, %v2335, -inf
      %2430 = vmax.xlane.f32.xlu0 %v2429
      %v2431 = vpop.xlane.xlu0 %2430
      %v2432 = vsel %vm1821, %v2338, -inf
      %2433 = vmax.xlane.f32.xlu0 %v2432
      %v2434 = vpop.xlane.xlu0 %2433
      %v2435 = vsel %vm1821, %v2340, -inf
      %2436 = vmax.xlane.f32.xlu0 %v2435
      %v2437 = vpop.xlane.xlu0 %2436
      %v2438 = vsel %vm1821, %v2343, -inf
      %2439 = vmax.xlane.f32.xlu0 %v2438
      %v2440 = vpop.xlane.xlu0 %2439
      %v2441 = vsel %vm1821, %v2345, -inf
      %2442 = vmax.xlane.f32.xlu0 %v2441
      %v2443 = vpop.xlane.xlu0 %2442
      %v2444 = vsel %vm1821, %v2348, -inf
      %2445 = vmax.xlane.f32.xlu0 %v2444
      %v2446 = vpop.xlane.xlu0 %2445
      %v2447 = vsel %vm1821, %v2350, -inf
      %2448 = vmax.xlane.f32.xlu0 %v2447
      %v2449 = vpop.xlane.xlu0 %2448
      %v2450 = vsel %vm1821, %v2353, -inf
      %2451 = vmax.xlane.f32.xlu0 %v2450
      %v2452 = vpop.xlane.xlu0 %2451
      %v2453 = vsel %vm1821, %v2355, -inf
      %2454 = vmax.xlane.f32.xlu0 %v2453
      %v2455 = vpop.xlane.xlu0 %2454
      %v2456 = vsel %vm1821, %v2358, -inf
      %2457 = vmax.xlane.f32.xlu0 %v2456
      %v2458 = vpop.xlane.xlu0 %2457
      %v2459 = vsel %vm1821, %v2360, -inf
      %2460 = vmax.xlane.f32.xlu0 %v2459
      %v2461 = vpop.xlane.xlu0 %2460
      %v2462 = vsel %vm1821, %v2363, -inf
      %2463 = vmax.xlane.f32.xlu0 %v2462
      %v2464 = vpop.xlane.xlu0 %2463
      %v2465 = vsel %vm1821, %v2365, -inf
      %2466 = vmax.xlane.f32.xlu0 %v2465
      %v2467 = vpop.xlane.xlu0 %2466
      %v2468 = vsel %vm1821, %v2368, -inf
      %2469 = vmax.xlane.f32.xlu0 %v2468
      %v2470 = vpop.xlane.xlu0 %2469
      %v2471 = vsel %vm1821, %v2370, -inf
      %2472 = vmax.xlane.f32.xlu0 %v2471
      %v2473 = vpop.xlane.xlu0 %2472
      %v2474 = vsel %vm1821, %v2373, -inf
      %2475 = vmax.xlane.f32.xlu0 %v2474
      %v2476 = vpop.xlane.xlu0 %2475
      %v2477 = vsel %vm1821, %v2375, -inf
      %2478 = vmax.xlane.f32.xlu0 %v2477
      %v2479 = vpop.xlane.xlu0 %2478
      %v2480 = vsel %vm1821, %v2378, -inf
      %2481 = vmax.xlane.f32.xlu0 %v2480
      %v2482 = vpop.xlane.xlu0 %2481
      %v2483 = vsel %vm1821, %v2380, -inf
      %2484 = vmax.xlane.f32.xlu0 %v2483
      %v2485 = vpop.xlane.xlu0 %2484
      %v2486 = vsel %vm1821, %v2383, -inf
      %2487 = vmax.xlane.f32.xlu0 %v2486
      %v2488 = vpop.xlane.xlu0 %2487
      %v2489 = vsel %vm1821, %v2385, -inf
      %2490 = vmax.xlane.f32.xlu0 %v2489
      %v2491 = vpop.xlane.xlu0 %2490
      %v2492 = vsel %vm1821, %v2388, -inf
      %2493 = vmax.xlane.f32.xlu0 %v2492
      %v2494 = vpop.xlane.xlu0 %2493
      %v2495 = vsel %vm1821, %v2390, -inf
      %2496 = vmax.xlane.f32.xlu0 %v2495
      %v2497 = vpop.xlane.xlu0 %2496
      %v2498 = vsel %vm1821, %v2393, -inf
      %2499 = vmax.xlane.f32.xlu0 %v2498
      %v2500 = vpop.xlane.xlu0 %2499
      %v2501 = vsel %vm1821, %v2395, -inf
      %2502 = vmax.xlane.f32.xlu0 %v2501
      %v2503 = vpop.xlane.xlu0 %2502
      %v2504 = vsel %vm1821, %v2398, -inf
      %2505 = vmax.xlane.f32.xlu0 %v2504
      %v2506 = vpop.xlane.xlu0 %2505
      %v2507 = vsel %vm1821, %v2400, -inf
      %2508 = vmax.xlane.f32.xlu0 %v2507
      %v2509 = vpop.xlane.xlu0 %2508
      %v2510 = vsub.f32 %v2313, %v2404
      %v2511 = vsub.f32 %v2315, %v2407
      %v2512 = vsub.f32 %v2318, %v2410
      %v2513 = vsub.f32 %v2320, %v2413
      %v2514 = vsub.f32 %v2323, %v2416
      %v2515 = vsub.f32 %v2325, %v2419
      %v2516 = vsub.f32 %v2328, %v2422
      %v2517 = vsub.f32 %v2330, %v2425
      %v2518 = vsub.f32 %v2333, %v2428
      %v2519 = vsub.f32 %v2335, %v2431
      %v2520 = vsub.f32 %v2338, %v2434
      %v2521 = vsub.f32 %v2340, %v2437
      %v2522 = vsub.f32 %v2343, %v2440
      %v2523 = vsub.f32 %v2345, %v2443
      %v2524 = vsub.f32 %v2348, %v2446
      %v2525 = vsub.f32 %v2350, %v2449
      %v2526 = vsub.f32 %v2353, %v2452
      %v2527 = vsub.f32 %v2355, %v2455
      %v2528 = vsub.f32 %v2358, %v2458
      %v2529 = vsub.f32 %v2360, %v2461
      %v2530 = vsub.f32 %v2363, %v2464
      %v2531 = vsub.f32 %v2365, %v2467
      %v2532 = vsub.f32 %v2368, %v2470
      %v2533 = vsub.f32 %v2370, %v2473
      %v2534 = vsub.f32 %v2373, %v2476
      %v2535 = vsub.f32 %v2375, %v2479
      %v2536 = vsub.f32 %v2378, %v2482
      %v2537 = vsub.f32 %v2380, %v2485
      %v2538 = vsub.f32 %v2383, %v2488
      %v2539 = vsub.f32 %v2385, %v2491
      %v2540 = vsub.f32 %v2388, %v2494
      %v2541 = vsub.f32 %v2390, %v2497
      %v2542 = vsub.f32 %v2393, %v2500
      %v2543 = vsub.f32 %v2395, %v2503
      %v2544 = vsub.f32 %v2398, %v2506
      %v2545 = vsub.f32 %v2400, %v2509
      %v2546 = vmul.f32 %v2510, 1.442695
      %v2547 = vpow.pop %v2546
      %v2548 = vmul.f32 %v2511, 1.442695
      %v2549 = vpow.pop %v2548
      %v2550 = vmul.f32 %v2512, 1.442695
      %v2551 = vpow.pop %v2550
      %v2552 = vmul.f32 %v2513, 1.442695
      %v2553 = vpow.pop %v2552
      %v2554 = vmul.f32 %v2514, 1.442695
      %v2555 = vpow.pop %v2554
      %v2556 = vmul.f32 %v2515, 1.442695
      %v2557 = vpow.pop %v2556
      %v2558 = vmul.f32 %v2516, 1.442695
      %v2559 = vpow.pop %v2558
      %v2560 = vmul.f32 %v2517, 1.442695
      %v2561 = vpow.pop %v2560
      %v2562 = vmul.f32 %v2518, 1.442695
      %v2563 = vpow.pop %v2562
      %v2564 = vmul.f32 %v2519, 1.442695
      %v2565 = vpow.pop %v2564
      %v2566 = vmul.f32 %v2520, 1.442695
      %v2567 = vpow.pop %v2566
      %v2568 = vmul.f32 %v2521, 1.442695
      %v2569 = vpow.pop %v2568
      %v2570 = vmul.f32 %v2522, 1.442695
      %v2571 = vpow.pop %v2570
      %v2572 = vmul.f32 %v2523, 1.442695
      %v2573 = vpow.pop %v2572
      %v2574 = vmul.f32 %v2524, 1.442695
      %v2575 = vpow.pop %v2574
      %v2576 = vmul.f32 %v2525, 1.442695
      %v2577 = vpow.pop %v2576
      %v2578 = vmul.f32 %v2526, 1.442695
      %v2579 = vpow.pop %v2578
      %v2580 = vmul.f32 %v2527, 1.442695
      %v2581 = vpow.pop %v2580
      %v2582 = vmul.f32 %v2528, 1.442695
      %v2583 = vpow.pop %v2582
      %v2584 = vmul.f32 %v2529, 1.442695
      %v2585 = vpow.pop %v2584
      %v2586 = vmul.f32 %v2530, 1.442695
      %v2587 = vpow.pop %v2586
      %v2588 = vmul.f32 %v2531, 1.442695
      %v2589 = vpow.pop %v2588
      %v2590 = vmul.f32 %v2532, 1.442695
      %v2591 = vpow.pop %v2590
      %v2592 = vmul.f32 %v2533, 1.442695
      %v2593 = vpow.pop %v2592
      %v2594 = vmul.f32 %v2534, 1.442695
      %v2595 = vpow.pop %v2594
      %v2596 = vmul.f32 %v2535, 1.442695
      %v2597 = vpow.pop %v2596
      %v2598 = vmul.f32 %v2536, 1.442695
      %v2599 = vpow.pop %v2598
      %v2600 = vmul.f32 %v2537, 1.442695
      %v2601 = vpow.pop %v2600
      %v2602 = vmul.f32 %v2538, 1.442695
      %v2603 = vpow.pop %v2602
      %v2604 = vmul.f32 %v2539, 1.442695
      %v2605 = vpow.pop %v2604
      %v2606 = vmul.f32 %v2540, 1.442695
      %v2607 = vpow.pop %v2606
      %v2608 = vmul.f32 %v2541, 1.442695
      %v2609 = vpow.pop %v2608
      %v2610 = vmul.f32 %v2542, 1.442695
      %v2611 = vpow.pop %v2610
      %v2612 = vmul.f32 %v2543, 1.442695
      %v2613 = vpow.pop %v2612
      %v2614 = vmul.f32 %v2544, 1.442695
      %v2615 = vpow.pop %v2614
      %v2616 = vmul.f32 %v2545, 1.442695
      %v2617 = vpow.pop %v2616
      %v2618 = vsel %vm1821, %v2547, 0.0
      %2619 = vadd.xlane.f32.xlu0 %v2618
      %v2620 = vpop.xlane.xlu0 %2619
      %v2621 = vsel %vm1821, %v2549, 0.0
      %2622 = vadd.xlane.f32.xlu0 %v2621
      %v2623 = vpop.xlane.xlu0 %2622
      %v2624 = vsel %vm1821, %v2551, 0.0
      %2625 = vadd.xlane.f32.xlu0 %v2624
      %v2626 = vpop.xlane.xlu0 %2625
      %v2627 = vsel %vm1821, %v2553, 0.0
      %2628 = vadd.xlane.f32.xlu0 %v2627
      %v2629 = vpop.xlane.xlu0 %2628
      %v2630 = vsel %vm1821, %v2555, 0.0
      %2631 = vadd.xlane.f32.xlu0 %v2630
      %v2632 = vpop.xlane.xlu0 %2631
      %v2633 = vsel %vm1821, %v2557, 0.0
      %2634 = vadd.xlane.f32.xlu0 %v2633
      %v2635 = vpop.xlane.xlu0 %2634
      %v2636 = vsel %vm1821, %v2559, 0.0
      %2637 = vadd.xlane.f32.xlu0 %v2636
      %v2638 = vpop.xlane.xlu0 %2637
      %v2639 = vsel %vm1821, %v2561, 0.0
      %2640 = vadd.xlane.f32.xlu0 %v2639
      %v2641 = vpop.xlane.xlu0 %2640
      %v2642 = vsel %vm1821, %v2563, 0.0
      %2643 = vadd.xlane.f32.xlu0 %v2642
      %v2644 = vpop.xlane.xlu0 %2643
      %v2645 = vsel %vm1821, %v2565, 0.0
      %2646 = vadd.xlane.f32.xlu0 %v2645
      %v2647 = vpop.xlane.xlu0 %2646
      %v2648 = vsel %vm1821, %v2567, 0.0
      %2649 = vadd.xlane.f32.xlu0 %v2648
      %v2650 = vpop.xlane.xlu0 %2649
      %v2651 = vsel %vm1821, %v2569, 0.0
      %2652 = vadd.xlane.f32.xlu0 %v2651
      %v2653 = vpop.xlane.xlu0 %2652
      %v2654 = vsel %vm1821, %v2571, 0.0
      %2655 = vadd.xlane.f32.xlu0 %v2654
      %v2656 = vpop.xlane.xlu0 %2655
      %v2657 = vsel %vm1821, %v2573, 0.0
      %2658 = vadd.xlane.f32.xlu0 %v2657
      %v2659 = vpop.xlane.xlu0 %2658
      %v2660 = vsel %vm1821, %v2575, 0.0
      %2661 = vadd.xlane.f32.xlu0 %v2660
      %v2662 = vpop.xlane.xlu0 %2661
      %v2663 = vsel %vm1821, %v2577, 0.0
      %2664 = vadd.xlane.f32.xlu0 %v2663
      %v2665 = vpop.xlane.xlu0 %2664
      %v2666 = vsel %vm1821, %v2579, 0.0
      %2667 = vadd.xlane.f32.xlu0 %v2666
      %v2668 = vpop.xlane.xlu0 %2667
      %v2669 = vsel %vm1821, %v2581, 0.0
      %2670 = vadd.xlane.f32.xlu0 %v2669
      %v2671 = vpop.xlane.xlu0 %2670
      %v2672 = vsel %vm1821, %v2583, 0.0
      %2673 = vadd.xlane.f32.xlu0 %v2672
      %v2674 = vpop.xlane.xlu0 %2673
      %v2675 = vsel %vm1821, %v2585, 0.0
      %2676 = vadd.xlane.f32.xlu0 %v2675
      %v2677 = vpop.xlane.xlu0 %2676
      %v2678 = vsel %vm1821, %v2587, 0.0
      %2679 = vadd.xlane.f32.xlu0 %v2678
      %v2680 = vpop.xlane.xlu0 %2679
      %v2681 = vsel %vm1821, %v2589, 0.0
      %2682 = vadd.xlane.f32.xlu0 %v2681
      %v2683 = vpop.xlane.xlu0 %2682
      %v2684 = vsel %vm1821, %v2591, 0.0
      %2685 = vadd.xlane.f32.xlu0 %v2684
      %v2686 = vpop.xlane.xlu0 %2685
      %v2687 = vsel %vm1821, %v2593, 0.0
      %2688 = vadd.xlane.f32.xlu0 %v2687
      %v2689 = vpop.xlane.xlu0 %2688
      %v2690 = vsel %vm1821, %v2595, 0.0
      %2691 = vadd.xlane.f32.xlu0 %v2690
      %v2692 = vpop.xlane.xlu0 %2691
      %v2693 = vsel %vm1821, %v2597, 0.0
      %2694 = vadd.xlane.f32.xlu0 %v2693
      %v2695 = vpop.xlane.xlu0 %2694
      %v2696 = vsel %vm1821, %v2599, 0.0
      %2697 = vadd.xlane.f32.xlu0 %v2696
      %v2698 = vpop.xlane.xlu0 %2697
      %v2699 = vsel %vm1821, %v2601, 0.0
      %2700 = vadd.xlane.f32.xlu0 %v2699
      %v2701 = vpop.xlane.xlu0 %2700
      %v2702 = vsel %vm1821, %v2603, 0.0
      %2703 = vadd.xlane.f32.xlu0 %v2702
      %v2704 = vpop.xlane.xlu0 %2703
      %v2705 = vsel %vm1821, %v2605, 0.0
      %2706 = vadd.xlane.f32.xlu0 %v2705
      %v2707 = vpop.xlane.xlu0 %2706
      %v2708 = vsel %vm1821, %v2607, 0.0
      %2709 = vadd.xlane.f32.xlu0 %v2708
      %v2710 = vpop.xlane.xlu0 %2709
      %v2711 = vsel %vm1821, %v2609, 0.0
      %2712 = vadd.xlane.f32.xlu0 %v2711
      %v2713 = vpop.xlane.xlu0 %2712
      %v2714 = vsel %vm1821, %v2611, 0.0
      %2715 = vadd.xlane.f32.xlu0 %v2714
      %v2716 = vpop.xlane.xlu0 %2715
      %v2717 = vsel %vm1821, %v2613, 0.0
      %2718 = vadd.xlane.f32.xlu0 %v2717
      %v2719 = vpop.xlane.xlu0 %2718
      %v2720 = vsel %vm1821, %v2615, 0.0
      %2721 = vadd.xlane.f32.xlu0 %v2720
      %v2722 = vpop.xlane.xlu0 %2721
      %v2723 = vsel %vm1821, %v2617, 0.0
      %2724 = vadd.xlane.f32.xlu0 %v2723
      %v2725 = vpop.xlane.xlu0 %2724
      %v2726 = vrcp.pop %v2620
      %v2727 = vrcp.pop %v2623
      %v2728 = vrcp.pop %v2626
      %v2729 = vrcp.pop %v2629
      %v2730 = vrcp.pop %v2632
      %v2731 = vrcp.pop %v2635
      %v2732 = vrcp.pop %v2638
      %v2733 = vrcp.pop %v2641
      %v2734 = vrcp.pop %v2644
      %v2735 = vrcp.pop %v2647
      %v2736 = vrcp.pop %v2650
      %v2737 = vrcp.pop %v2653
      %v2738 = vrcp.pop %v2656
      %v2739 = vrcp.pop %v2659
      %v2740 = vrcp.pop %v2662
      %v2741 = vrcp.pop %v2665
      %v2742 = vrcp.pop %v2668
      %v2743 = vrcp.pop %v2671
      %v2744 = vrcp.pop %v2674
      %v2745 = vrcp.pop %v2677
      %v2746 = vrcp.pop %v2680
      %v2747 = vrcp.pop %v2683
      %v2748 = vrcp.pop %v2686
      %v2749 = vrcp.pop %v2689
      %v2750 = vrcp.pop %v2692
      %v2751 = vrcp.pop %v2695
      %v2752 = vrcp.pop %v2698
      %v2753 = vrcp.pop %v2701
      %v2754 = vrcp.pop %v2704
      %v2755 = vrcp.pop %v2707
      %v2756 = vrcp.pop %v2710
      %v2757 = vrcp.pop %v2713
      %v2758 = vrcp.pop %v2716
      %v2759 = vrcp.pop %v2719
      %v2760 = vrcp.pop %v2722
      %v2761 = vrcp.pop %v2725
      %v2762 = vmul.f32 %v2547, %v2726
      %v2763 = vmul.f32 %v2549, %v2727
      %v2764 = vmul.f32 %v2551, %v2728
      %v2765 = vmul.f32 %v2553, %v2729
      %v2766 = vmul.f32 %v2555, %v2730
      %v2767 = vmul.f32 %v2557, %v2731
      %v2768 = vmul.f32 %v2559, %v2732
      %v2769 = vmul.f32 %v2561, %v2733
      %v2770 = vmul.f32 %v2563, %v2734
      %v2771 = vmul.f32 %v2565, %v2735
      %v2772 = vmul.f32 %v2567, %v2736
      %v2773 = vmul.f32 %v2569, %v2737
      %v2774 = vmul.f32 %v2571, %v2738
      %v2775 = vmul.f32 %v2573, %v2739
      %v2776 = vmul.f32 %v2575, %v2740
      %v2777 = vmul.f32 %v2577, %v2741
      %v2778 = vmul.f32 %v2579, %v2742
      %v2779 = vmul.f32 %v2581, %v2743
      %v2780 = vmul.f32 %v2583, %v2744
      %v2781 = vmul.f32 %v2585, %v2745
      %v2782 = vmul.f32 %v2587, %v2746
      %v2783 = vmul.f32 %v2589, %v2747
      %v2784 = vmul.f32 %v2591, %v2748
      %v2785 = vmul.f32 %v2593, %v2749
      %v2786 = vmul.f32 %v2595, %v2750
      %v2787 = vmul.f32 %v2597, %v2751
      %v2788 = vmul.f32 %v2599, %v2752
      %v2789 = vmul.f32 %v2601, %v2753
      %v2790 = vmul.f32 %v2603, %v2754
      %v2791 = vmul.f32 %v2605, %v2755
      %v2792 = vmul.f32 %v2607, %v2756
      %v2793 = vmul.f32 %v2609, %v2757
      %v2794 = vmul.f32 %v2611, %v2758
      %v2795 = vmul.f32 %v2613, %v2759
      %v2796 = vmul.f32 %v2615, %v2760
      %v2797 = vmul.f32 %v2617, %v2761
      %v2798 = vpack.c.bf16 %v2763, %v2762
      %v2799 = vpack.c.bf16 %v2765, %v2764
      %v2800 = vpack.c.bf16 %v2767, %v2766
      %v2801 = vpack.c.bf16 %v2769, %v2768
      %v2802 = vpack.c.bf16 %v2771, %v2770
      %v2803 = vpack.c.bf16 %v2773, %v2772
      %v2804 = vpack.c.bf16 %v2775, %v2774
      %v2805 = vpack.c.bf16 %v2777, %v2776
      %v2806 = vpack.c.bf16 %v2779, %v2778
      %v2807 = vpack.c.bf16 %v2781, %v2780
      %v2808 = vpack.c.bf16 %v2783, %v2782
      %v2809 = vpack.c.bf16 %v2785, %v2784
      %v2810 = vpack.c.bf16 %v2787, %v2786
      %v2811 = vpack.c.bf16 %v2789, %v2788
      %v2812 = vpack.c.bf16 %v2791, %v2790
      %v2813 = vpack.c.bf16 %v2793, %v2792
      %v2814 = vpack.c.bf16 %v2795, %v2794
      %v2815 = vpack.c.bf16 %v2797, %v2796
      %v2816 = vpack.c.bf16 %v2297, %v2295
      %v2818 = vsel %vm1821, %v2798, 0
      %v2821 = vsel %vm1821, %v2799, 0
      %v2824 = vsel %vm1821, %v2800, 0
      %v2827 = vsel %vm1821, %v2801, 0
      %v2830 = vsel %vm1821, %v2802, 0
      %v2833 = vsel %vm1821, %v2803, 0
      %v2836 = vsel %vm1821, %v2804, 0
      %v2839 = vsel %vm1821, %v2805, 0
      %v2842 = vsel %vm1821, %v2806, 0
      %v2845 = vsel %vm1821, %v2807, 0
      %v2848 = vsel %vm1821, %v2808, 0
      %v2851 = vsel %vm1821, %v2809, 0
      %v2854 = vsel %vm1821, %v2810, 0
      %v2857 = vsel %vm1821, %v2811, 0
      %v2860 = vsel %vm1821, %v2812, 0
      %v2863 = vsel %vm1821, %v2813, 0
      %v2866 = vsel %vm1821, %v2814, 0
      %v2869 = vsel %vm1821, %v2815, 0
      %vm2871 = vcmask 1044480
      %v2873 = vsel %vm2871, %v2816, 0
      %2875 = vmatpush.bf16.msra.mxu0 0
      %2876 = vmatpush.bf16.msra.mxu0 0
      %2877 = vmatpush.bf16.msra.mxu0 0
      %2878 = vmatpush.bf16.msra.mxu0 0
      %2879 = vmatpush.bf16.msra.mxu0 0
      %2880 = vmatpush.bf16.msra.mxu0 0
      %2881 = vmatpush.bf16.msra.mxu0 0
      %2882 = vmatpush.bf16.msra.mxu0 %v2873
      %2883 = vmatmul.bf16.gmra.mxu0 %v2818
      %v2884 = vpop.f32.mrf.mxu0
      %v2885 = vadd.f32 0.0, %v2884
      %v2886 = vpop.f32.mrf.mxu0
      %v2887 = vadd.f32 0.0, %v2886
      %2888 = vmatmul.bf16.gmra.mxu0 %v2821
      %v2889 = vpop.f32.mrf.mxu0
      %v2890 = vadd.f32 0.0, %v2889
      %v2891 = vpop.f32.mrf.mxu0
      %v2892 = vadd.f32 0.0, %v2891
      %2893 = vmatmul.bf16.gmra.mxu0 %v2824
      %v2894 = vpop.f32.mrf.mxu0
      %v2895 = vadd.f32 0.0, %v2894
      %v2896 = vpop.f32.mrf.mxu0
      %v2897 = vadd.f32 0.0, %v2896
      %2898 = vmatmul.bf16.gmra.mxu0 %v2827
      %v2899 = vpop.f32.mrf.mxu0
      %v2900 = vadd.f32 0.0, %v2899
      %v2901 = vpop.f32.mrf.mxu0
      %v2902 = vadd.f32 0.0, %v2901
      %2903 = vmatmul.bf16.gmra.mxu0 %v2830
      %v2904 = vpop.f32.mrf.mxu0
      %v2905 = vadd.f32 0.0, %v2904
      %v2906 = vpop.f32.mrf.mxu0
      %v2907 = vadd.f32 0.0, %v2906
      %2908 = vmatmul.bf16.gmra.mxu0 %v2833
      %v2909 = vpop.f32.mrf.mxu0
      %v2910 = vadd.f32 0.0, %v2909
      %v2911 = vpop.f32.mrf.mxu0
      %v2912 = vadd.f32 0.0, %v2911
      %2913 = vmatmul.bf16.gmra.mxu0 %v2836
      %v2914 = vpop.f32.mrf.mxu0
      %v2915 = vadd.f32 0.0, %v2914
      %v2916 = vpop.f32.mrf.mxu0
      %v2917 = vadd.f32 0.0, %v2916
      %2918 = vmatmul.bf16.gmra.mxu0 %v2839
      %v2919 = vpop.f32.mrf.mxu0
      %v2920 = vadd.f32 0.0, %v2919
      %v2921 = vpop.f32.mrf.mxu0
      %v2922 = vadd.f32 0.0, %v2921
      %2923 = vmatmul.bf16.gmra.mxu0 %v2842
      %v2924 = vpop.f32.mrf.mxu0
      %v2925 = vadd.f32 0.0, %v2924
      %v2926 = vpop.f32.mrf.mxu0
      %v2927 = vadd.f32 0.0, %v2926
      %2928 = vmatmul.bf16.gmra.mxu0 %v2845
      %v2929 = vpop.f32.mrf.mxu0
      %v2930 = vadd.f32 0.0, %v2929
      %v2931 = vpop.f32.mrf.mxu0
      %v2932 = vadd.f32 0.0, %v2931
      %2933 = vmatmul.bf16.gmra.mxu0 %v2848
      %v2934 = vpop.f32.mrf.mxu0
      %v2935 = vadd.f32 0.0, %v2934
      %v2936 = vpop.f32.mrf.mxu0
      %v2937 = vadd.f32 0.0, %v2936
      %2938 = vmatmul.bf16.gmra.mxu0 %v2851
      %v2939 = vpop.f32.mrf.mxu0
      %v2940 = vadd.f32 0.0, %v2939
      %v2941 = vpop.f32.mrf.mxu0
      %v2942 = vadd.f32 0.0, %v2941
      %2943 = vmatmul.bf16.gmra.mxu0 %v2854
      %v2944 = vpop.f32.mrf.mxu0
      %v2945 = vadd.f32 0.0, %v2944
      %v2946 = vpop.f32.mrf.mxu0
      %v2947 = vadd.f32 0.0, %v2946
      %2948 = vmatmul.bf16.gmra.mxu0 %v2857
      %v2949 = vpop.f32.mrf.mxu0
      %v2950 = vadd.f32 0.0, %v2949
      %v2951 = vpop.f32.mrf.mxu0
      %v2952 = vadd.f32 0.0, %v2951
      %2953 = vmatmul.bf16.gmra.mxu0 %v2860
      %v2954 = vpop.f32.mrf.mxu0
      %v2955 = vadd.f32 0.0, %v2954
      %v2956 = vpop.f32.mrf.mxu0
      %v2957 = vadd.f32 0.0, %v2956
      %2958 = vmatmul.bf16.gmra.mxu0 %v2863
      %v2959 = vpop.f32.mrf.mxu0
      %v2960 = vadd.f32 0.0, %v2959
      %v2961 = vpop.f32.mrf.mxu0
      %v2962 = vadd.f32 0.0, %v2961
      %2963 = vmatmul.bf16.gmra.mxu0 %v2866
      %v2964 = vpop.f32.mrf.mxu0
      %v2965 = vadd.f32 0.0, %v2964
      %v2966 = vpop.f32.mrf.mxu0
      %v2967 = vadd.f32 0.0, %v2966
      %2968 = vmatmul.bf16.gmra.mxu0 %v2869
      %v2969 = vpop.f32.mrf.mxu0
      %v2970 = vadd.f32 0.0, %v2969
      %v2971 = vpop.f32.mrf.mxu0
      %v2972 = vadd.f32 0.0, %v2971
      %2973 = vdwg.mxu0
      %v2975 = vsel %vm1821, %v2218, 0
      %v2978 = vsel %vm1821, %v2219, 0
      %v2981 = vsel %vm1821, %v2220, 0
      %v2984 = vsel %vm1821, %v2221, 0
      %v2987 = vsel %vm1821, %v2222, 0
      %v2990 = vsel %vm1821, %v2223, 0
      %v2993 = vsel %vm1821, %v2224, 0
      %v2996 = vsel %vm1821, %v2225, 0
      %v2999 = vsel %vm1821, %v2226, 0
      %v3002 = vsel %vm1821, %v2227, 0
      %v3005 = vsel %vm1821, %v2228, 0
      %v3008 = vsel %vm1821, %v2229, 0
      %v3011 = vsel %vm1821, %v2230, 0
      %v3014 = vsel %vm1821, %v2231, 0
      %v3017 = vsel %vm1821, %v2232, 0
      %v3020 = vsel %vm1821, %v2233, 0
      %v3023 = vsel %vm1821, %v2234, 0
      %v3026 = vsel %vm1821, %v2235, 0
      %v3029 = vsel %vm2871, %v2236, 0
      %3031 = vmatpush.bf16.msra.mxu0 0
      %3032 = vmatpush.bf16.msra.mxu0 0
      %3033 = vmatpush.bf16.msra.mxu0 0
      %3034 = vmatpush.bf16.msra.mxu0 0
      %3035 = vmatpush.bf16.msra.mxu0 0
      %3036 = vmatpush.bf16.msra.mxu0 0
      %3037 = vmatpush.bf16.msra.mxu0 0
      %3038 = vmatpush.bf16.msra.mxu0 %v3029
      %3039 = vmatmul.bf16.gmra.mxu0 %v2975
      %v3040 = vpop.f32.mrf.mxu0
      %v3041 = vadd.f32 %v2885, %v3040
      %v3042 = vpop.f32.mrf.mxu0
      %v3043 = vadd.f32 %v2887, %v3042
      %3044 = vmatmul.bf16.gmra.mxu0 %v2978
      %v3045 = vpop.f32.mrf.mxu0
      %v3046 = vadd.f32 %v2890, %v3045
      %v3047 = vpop.f32.mrf.mxu0
      %v3048 = vadd.f32 %v2892, %v3047
      %3049 = vmatmul.bf16.gmra.mxu0 %v2981
      %v3050 = vpop.f32.mrf.mxu0
      %v3051 = vadd.f32 %v2895, %v3050
      %v3052 = vpop.f32.mrf.mxu0
      %v3053 = vadd.f32 %v2897, %v3052
      %3054 = vmatmul.bf16.gmra.mxu0 %v2984
      %v3055 = vpop.f32.mrf.mxu0
      %v3056 = vadd.f32 %v2900, %v3055
      %v3057 = vpop.f32.mrf.mxu0
      %v3058 = vadd.f32 %v2902, %v3057
      %3059 = vmatmul.bf16.gmra.mxu0 %v2987
      %v3060 = vpop.f32.mrf.mxu0
      %v3061 = vadd.f32 %v2905, %v3060
      %v3062 = vpop.f32.mrf.mxu0
      %v3063 = vadd.f32 %v2907, %v3062
      %3064 = vmatmul.bf16.gmra.mxu0 %v2990
      %v3065 = vpop.f32.mrf.mxu0
      %v3066 = vadd.f32 %v2910, %v3065
      %v3067 = vpop.f32.mrf.mxu0
      %v3068 = vadd.f32 %v2912, %v3067
      %3069 = vmatmul.bf16.gmra.mxu0 %v2993
      %v3070 = vpop.f32.mrf.mxu0
      %v3071 = vadd.f32 %v2915, %v3070
      %v3072 = vpop.f32.mrf.mxu0
      %v3073 = vadd.f32 %v2917, %v3072
      %3074 = vmatmul.bf16.gmra.mxu0 %v2996
      %v3075 = vpop.f32.mrf.mxu0
      %v3076 = vadd.f32 %v2920, %v3075
      %v3077 = vpop.f32.mrf.mxu0
      %v3078 = vadd.f32 %v2922, %v3077
      %3079 = vmatmul.bf16.gmra.mxu0 %v2999
      %v3080 = vpop.f32.mrf.mxu0
      %v3081 = vadd.f32 %v2925, %v3080
      %v3082 = vpop.f32.mrf.mxu0
      %v3083 = vadd.f32 %v2927, %v3082
      %3084 = vmatmul.bf16.gmra.mxu0 %v3002
      %v3085 = vpop.f32.mrf.mxu0
      %v3086 = vadd.f32 %v2930, %v3085
      %v3087 = vpop.f32.mrf.mxu0
      %v3088 = vadd.f32 %v2932, %v3087
      %3089 = vmatmul.bf16.gmra.mxu0 %v3005
      %v3090 = vpop.f32.mrf.mxu0
      %v3091 = vadd.f32 %v2935, %v3090
      %v3092 = vpop.f32.mrf.mxu0
      %v3093 = vadd.f32 %v2937, %v3092
      %3094 = vmatmul.bf16.gmra.mxu0 %v3008
      %v3095 = vpop.f32.mrf.mxu0
      %v3096 = vadd.f32 %v2940, %v3095
      %v3097 = vpop.f32.mrf.mxu0
      %v3098 = vadd.f32 %v2942, %v3097
      %3099 = vmatmul.bf16.gmra.mxu0 %v3011
      %v3100 = vpop.f32.mrf.mxu0
      %v3101 = vadd.f32 %v2945, %v3100
      %v3102 = vpop.f32.mrf.mxu0
      %v3103 = vadd.f32 %v2947, %v3102
      %3104 = vmatmul.bf16.gmra.mxu0 %v3014
      %v3105 = vpop.f32.mrf.mxu0
      %v3106 = vadd.f32 %v2950, %v3105
      %v3107 = vpop.f32.mrf.mxu0
      %v3108 = vadd.f32 %v2952, %v3107
      %3109 = vmatmul.bf16.gmra.mxu0 %v3017
      %v3110 = vpop.f32.mrf.mxu0
      %v3111 = vadd.f32 %v2955, %v3110
      %v3112 = vpop.f32.mrf.mxu0
      %v3113 = vadd.f32 %v2957, %v3112
      %3114 = vmatmul.bf16.gmra.mxu0 %v3020
      %v3115 = vpop.f32.mrf.mxu0
      %v3116 = vadd.f32 %v2960, %v3115
      %v3117 = vpop.f32.mrf.mxu0
      %v3118 = vadd.f32 %v2962, %v3117
      %3119 = vmatmul.bf16.gmra.mxu0 %v3023
      %v3120 = vpop.f32.mrf.mxu0
      %v3121 = vadd.f32 %v2965, %v3120
      %v3122 = vpop.f32.mrf.mxu0
      %v3123 = vadd.f32 %v2967, %v3122
      %3124 = vmatmul.bf16.gmra.mxu0 %v3026
      %v3125 = vpop.f32.mrf.mxu0
      %v3126 = vadd.f32 %v2970, %v3125
      %v3127 = vpop.f32.mrf.mxu0
      %v3128 = vadd.f32 %v2972, %v3127
      %3129 = vdwg.mxu0
      %v3130 = vld [vmem:[%s9] sm:$0x1]
      %v3132 = vperm.slane %v3130, 0
      %v3134 = vadd.f32 %v3041, %v3132
      %v3135 = vadd.f32 %v3043, %v3132
      %v3136 = vadd.f32 %v3046, %v3132
      %v3137 = vadd.f32 %v3048, %v3132
      %v3138 = vadd.f32 %v3051, %v3132
      %v3139 = vadd.f32 %v3053, %v3132
      %v3140 = vadd.f32 %v3056, %v3132
      %v3141 = vadd.f32 %v3058, %v3132
      %v3142 = vadd.f32 %v3061, %v3132
      %v3143 = vadd.f32 %v3063, %v3132
      %v3144 = vadd.f32 %v3066, %v3132
      %v3145 = vadd.f32 %v3068, %v3132
      %v3146 = vadd.f32 %v3071, %v3132
      %v3147 = vadd.f32 %v3073, %v3132
      %v3148 = vadd.f32 %v3076, %v3132
      %v3149 = vadd.f32 %v3078, %v3132
      %v3150 = vadd.f32 %v3081, %v3132
      %v3151 = vadd.f32 %v3083, %v3132
      %v3152 = vadd.f32 %v3086, %v3132
      %v3153 = vadd.f32 %v3088, %v3132
      %v3154 = vadd.f32 %v3091, %v3132
      %v3155 = vadd.f32 %v3093, %v3132
      %v3156 = vadd.f32 %v3096, %v3132
      %v3157 = vadd.f32 %v3098, %v3132
      %v3158 = vadd.f32 %v3101, %v3132
      %v3159 = vadd.f32 %v3103, %v3132
      %v3160 = vadd.f32 %v3106, %v3132
      %v3161 = vadd.f32 %v3108, %v3132
      %v3162 = vadd.f32 %v3111, %v3132
      %v3163 = vadd.f32 %v3113, %v3132
      %v3164 = vadd.f32 %v3116, %v3132
      %v3165 = vadd.f32 %v3118, %v3132
      %v3166 = vadd.f32 %v3121, %v3132
      %v3167 = vadd.f32 %v3123, %v3132
      %v3168 = vadd.f32 %v3126, %v3132
      %v3169 = vadd.f32 %v3128, %v3132
      %v3170 = vadd.f32 %v3134, %v420
      %v3171 = vadd.f32 %v3135, %v421
      %v3172 = vadd.f32 %v3136, %v422
      %v3173 = vadd.f32 %v3137, %v423
      %v3174 = vadd.f32 %v3138, %v424
      %v3175 = vadd.f32 %v3139, %v425
      %v3176 = vadd.f32 %v3140, %v426
      %v3177 = vadd.f32 %v3141, %v427
      %v3178 = vadd.f32 %v3142, %v428
      %v3179 = vadd.f32 %v3143, %v429
      %v3180 = vadd.f32 %v3144, %v430
      %v3181 = vadd.f32 %v3145, %v431
      %v3182 = vadd.f32 %v3146, %v432
      %v3183 = vadd.f32 %v3147, %v433
      %v3184 = vadd.f32 %v3148, %v434
      %v3185 = vadd.f32 %v3149, %v435
      %v3186 = vadd.f32 %v3150, %v436
      %v3187 = vadd.f32 %v3151, %v437
      %v3188 = vadd.f32 %v3152, %v438
      %v3189 = vadd.f32 %v3153, %v439
      %v3190 = vadd.f32 %v3154, %v440
      %v3191 = vadd.f32 %v3155, %v441
      %v3192 = vadd.f32 %v3156, %v442
      %v3193 = vadd.f32 %v3157, %v443
      %v3194 = vadd.f32 %v3158, %v444
      %v3195 = vadd.f32 %v3159, %v445
      %v3196 = vadd.f32 %v3160, %v446
      %v3197 = vadd.f32 %v3161, %v447
      %v3198 = vadd.f32 %v3162, %v448
      %v3199 = vadd.f32 %v3163, %v449
      %v3200 = vadd.f32 %v3164, %v450
      %v3201 = vadd.f32 %v3165, %v451
      %v3202 = vadd.f32 %v3166, %v452
      %v3203 = vadd.f32 %v3167, %v453
      %v3204 = vadd.f32 %v3168, %v454
      %v3205 = vadd.f32 %v3169, %v455
      %3206 = vst.msk [vmem:[%s417] sm:$0xff] %vm458, %v3170
      %3207 = vst.msk [vmem:[%s417 + $0x8] sm:$0xff] %vm458, %v3171
      %3208 = vst.msk [vmem:[%s417 + $0x10] sm:$0xff] %vm458, %v3172
      %3209 = vst.msk [vmem:[%s417 + $0x18] sm:$0xff] %vm458, %v3173
      %3210 = vst.msk [vmem:[%s417 + $0x20] sm:$0xff] %vm458, %v3174
      %3211 = vst.msk [vmem:[%s417 + $0x28] sm:$0xff] %vm458, %v3175
      %3212 = vst.msk [vmem:[%s417 + $0x30] sm:$0xff] %vm458, %v3176
      %3213 = vst.msk [vmem:[%s417 + $0x38] sm:$0xff] %vm458, %v3177
      %3214 = vst.msk [vmem:[%s417 + $0x40] sm:$0xff] %vm458, %v3178
      %3215 = vst.msk [vmem:[%s417 + $0x48] sm:$0xff] %vm458, %v3179
      %3216 = vst.msk [vmem:[%s417 + $0x50] sm:$0xff] %vm458, %v3180
      %3217 = vst.msk [vmem:[%s417 + $0x58] sm:$0xff] %vm458, %v3181
      %3218 = vst.msk [vmem:[%s417 + $0x60] sm:$0xff] %vm458, %v3182
      %3219 = vst.msk [vmem:[%s417 + $0x68] sm:$0xff] %vm458, %v3183
      %3220 = vst.msk [vmem:[%s417 + $0x70] sm:$0xff] %vm458, %v3184
      %3221 = vst.msk [vmem:[%s417 + $0x78] sm:$0xff] %vm458, %v3185
      %3222 = vst.msk [vmem:[%s417 + $0x80] sm:$0xff] %vm458, %v3186
      %3223 = vst.msk [vmem:[%s417 + $0x88] sm:$0xff] %vm458, %v3187
      %3224 = vst.msk [vmem:[%s417 + $0x90] sm:$0xff] %vm458, %v3188
      %3225 = vst.msk [vmem:[%s417 + $0x98] sm:$0xff] %vm458, %v3189
      %3226 = vst.msk [vmem:[%s417 + $0xa0] sm:$0xff] %vm458, %v3190
      %3227 = vst.msk [vmem:[%s417 + $0xa8] sm:$0xff] %vm458, %v3191
      %3228 = vst.msk [vmem:[%s417 + $0xb0] sm:$0xff] %vm458, %v3192
      %3229 = vst.msk [vmem:[%s417 + $0xb8] sm:$0xff] %vm458, %v3193
      %3230 = vst.msk [vmem:[%s417 + $0xc0] sm:$0xff] %vm458, %v3194
      %3231 = vst.msk [vmem:[%s417 + $0xc8] sm:$0xff] %vm458, %v3195
      %3232 = vst.msk [vmem:[%s417 + $0xd0] sm:$0xff] %vm458, %v3196
      %3233 = vst.msk [vmem:[%s417 + $0xd8] sm:$0xff] %vm458, %v3197
      %3234 = vst.msk [vmem:[%s417 + $0xe0] sm:$0xff] %vm458, %v3198
      %3235 = vst.msk [vmem:[%s417 + $0xe8] sm:$0xff] %vm458, %v3199
      %3236 = vst.msk [vmem:[%s417 + $0xf0] sm:$0xff] %vm458, %v3200
      %3237 = vst.msk [vmem:[%s417 + $0xf8] sm:$0xff] %vm458, %v3201
      %3238 = vst.msk [vmem:[%s417 + $0x100] sm:$0xff] %vm458, %v3202
      %3239 = vst.msk [vmem:[%s417 + $0x108] sm:$0xff] %vm458, %v3203
      %3240 = vst.msk [vmem:[%s417 + $0x110] sm:$0xff] %vm458, %v3204
      %3241 = vst.msk [vmem:[%s417 + $0x118] sm:$0xff] %vm458, %v3205
      %s3242 = smul.u32 36, %s26
      %p3243 = scmp.lt.s32.totalorder %s25, 1
      %s3244 = scalar_select %p3243, %s25, 1
      %p3245 = scmp.lt.s32.totalorder %s3242, 71
      %s3246 = scalar_select %p3245, %s3242, 71
      %s3247 = smul.addr %s3244, 72
      %s3248 = sadd.s32 %s3246, %s3247
      %s3249 = smul.addr %s3248, 8
      %s3250 = scalar_lea.vmem %s10, %s3249
      // Predicated region
      $region61: #{_lambda_.4} parent=59 // pred_check
        %p3251 = pneg %p275
      $region62: #{_lambda_.4} parent=59 // pred_check_branch
        %3253 = sbr.rel (%p3251) target = $region64
      $region63: #{_lambda_.4} parent=59 // pred_region
        %s3254 = smul.u32 36, %s26
      $region64: #{_lambda_.4} parent=59 // pred_fallthru
        _
    $region60: #{_lambda_.4} parent=5 // pred_fallthru
      _
    %p3255 = scmp.le.s32.totalorder 2, %s16
    // Predicated region
    $region65: #{_lambda_.4} parent=5 // pred_check
      %p3256 = pneg %p3255
    $region66: #{_lambda_.4} parent=5 // pred_check_branch
      %3258 = sbr.rel (%p3256) target = $region68
    $region67: #{_lambda_.4} parent=5 // pred_region
      %s3259 = ssub.s32 %s16, 2
      // Predicated region
      $region69: #{_lambda_.4} parent=67 // pred_check
        %p3260 = pneg %p281
      $region70: #{_lambda_.4} parent=67 // pred_check_branch
        %3262 = sbr.rel (%p3260) target = $region72
      $region71: #{_lambda_.4} parent=67 // pred_region
        %s3263 = smul.u32 36, %s28
        %p3264 = scmp.lt.s32.totalorder %s27, 1
        %s3265 = scalar_select %p3264, %s27, 1
        %p3266 = scmp.lt.s32.totalorder %s3263, 71
        %s3267 = scalar_select %p3266, %s3263, 71
        %s3268 = smul.addr %s3265, 72
        %s3269 = sadd.s32 %s3267, %s3268
        %s3270 = smul.addr %s3269, 8
        %s3271 = scalar_lea.vmem %s10, %s3270
      $region72: #{_lambda_.4} parent=67 // pred_fallthru
        _
    $region68: #{_lambda_.4} parent=5 // pred_fallthru
      _
  $region6: #{_lambda_.4} parent=0 // loop_footer
    %s20 = sadd.s32 1, %s16
  $region7: #{_lambda_.4} parent=0 // loop_footer_branch
    %15 = sbr.rel target = $region3
  $region8: #{_lambda_.4} parent=0 // loop_exit
    _

// kernel: _lambda_.5
$region0: #{_lambda_.5}
  #allocation0 [shape = 'u32[]', space=smem, size = 0x4, offset = 0x4, fixed_abs, tag = 'smem constant byte address 0x4 - core index']
  #allocation1 [shape = 'u32[72,128]{1,0:T(1,128)}', space=vmem, size = 0x9000, scoped, tag = 'internal scratch']
  #allocation2 [shape = 'f32[26,33,128]{2,1,0:T(8,128)}', space=vmem, size = 0x82000, scoped, tag = 'scratch operand']
  %s0 = inlined_call_operand.vmem [shape: f32[2,576,32], index: 0, kind: input, shape index: {}]
  %s1 = inlined_call_operand.vmem [shape: f32[1,32], index: 1, kind: input, shape index: {}]
  %s2 = inlined_call_operand.vmem [shape: f32[1,32], index: 2, kind: input, shape index: {}]
  %s3 = inlined_call_operand.vmem [shape: bf16[32,128], index: 3, kind: input, shape index: {}]
  %s4 = inlined_call_operand.vmem [shape: f32[1,128], index: 4, kind: input, shape index: {}]
  %s5 = inlined_call_operand.vmem [shape: f32[9,128], index: 5, kind: input, shape index: {}]
  %s6 = inlined_call_operand.vmem [shape: f32[1,128], index: 6, kind: input, shape index: {}]
  %s7 = inlined_call_operand.vmem [shape: bf16[128,32], index: 7, kind: input, shape index: {}]
  %s8 = inlined_call_operand.vmem [shape: f32[1,32], index: 8, kind: input, shape index: {}]
  %s9 = inlined_call_operand.vmem [shape: f32[2,576,32], index: 9, kind: output, shape index: {}]
  %s10 = sld [smem:[#allocation0]]
  $region69: #{_lambda_.5} parent=0
    _
  %s12 = ssub.s32 1, %s10
  %s13 = scalar_select 0, %s12, %s10
  loop: start=0, step=1, limit=4
  $region2: #{_lambda_.5} parent=0 // loop_pre_header
    _
  $region3: #{_lambda_.5} parent=0 // loop_header
    %s15 = sphi 0, %s19
    %p16 = scmp.ge.s32.totalorder %s15, 4
    %s25 = sphi 0, %s27
    %s28 = sphi 0, %s25
    %s29 = sphi 0, %s28
    %s45 = sphi 0, %s29
    %s49 = sphi 0, %s49
    %s51 = sphi 0, %s49
    %s52 = sphi 0, %s51
    %s66 = sphi 0, %s52
    %s70 = sphi 0, %s70
    %s72 = sphi 0, %s70
    %s73 = sphi 0, %s72
    %s87 = sphi 0, %s73
    %s91 = sphi 0, %s91
    %s93 = sphi 0, %s91
    %s94 = sphi 0, %s93
    %s108 = sphi 0, %s94
    %s112 = sphi 0, %s112
    %s114 = sphi 0, %s112
    %s115 = sphi 0, %s114
    %s129 = sphi 0, %s115
    %s133 = sphi 0, %s133
    %s135 = sphi 0, %s133
    %s136 = sphi 0, %s135
    %s150 = sphi 0, %s136
    %s154 = sphi 0, %s154
    %s156 = sphi 0, %s154
    %s157 = sphi 0, %s156
    %s171 = sphi 0, %s157
    %s175 = sphi 0, %s175
    %s177 = sphi 0, %s175
    %s178 = sphi 0, %s177
    %s192 = sphi 0, %s178
    %s196 = sphi 0, %s196
    %s198 = sphi 0, %s196
    %s199 = sphi 0, %s198
    %s213 = sphi 0, %s199
    %s219 = sphi 0, %s221
    %s222 = sphi 0, %s219
    %s223 = sphi 0, %s222
    %s239 = sphi 0, %s223
  $region4: #{_lambda_.5} parent=0 // loop_header_branch
    %18 = sbr.rel (%p16) target = $region8
  $region5: #{_lambda_.5} parent=0 // loop_body
    %s20 = ssub.s32 %s15, 1
    %s21 = ssub.s32 %s15, 2
    %s22 = sadd.s32 %s15, 1
    %s23 = ssub.s32 %s15, %s22
    %p24 = scmp.eq.s32.totalorder %s23, 0
    %s26 = sadd.s32 %s25, 1
    %s27 = scalar_select %p24, %s25, %s26
    %p30 = pneg %p24
    %p31 = scmp.eq.s32.totalorder %s15, 1
    %p32 = por %p30, %p31
    %p33 = scmp.ne.s32.totalorder %s25, %s28
    %p34 = scmp.eq.s32.totalorder %s15, 0
    %p35 = por %p33, %p34
    %p36 = scmp.ne.s32.totalorder %s25, %s28
    %p37 = scmp.eq.s32.totalorder %s20, 1
    %p38 = por %p36, %p37
    %p39 = scmp.ne.s32.totalorder %s28, %s29
    %p40 = scmp.eq.s32.totalorder %s20, 0
    %p41 = por %p39, %p40
    %p42 = scmp.ne.s32.totalorder %s28, %s29
    %p43 = scmp.eq.s32.totalorder %s21, 1
    %p44 = por %p42, %p43
    %p46 = scmp.ne.s32.totalorder %s29, %s45
    %p47 = scmp.eq.s32.totalorder %s21, 0
    %p48 = por %p46, %p47
    %s50 = sadd.s32 %s49, 1
    %p53 = scmp.eq.s32.totalorder %s15, 1
    %p54 = scmp.ne.s32.totalorder %s49, %s51
    %p55 = scmp.eq.s32.totalorder %s15, 0
    %p56 = por %p54, %p55
    %p57 = scmp.ne.s32.totalorder %s49, %s51
    %p58 = scmp.eq.s32.totalorder %s20, 1
    %p59 = por %p57, %p58
    %p60 = scmp.ne.s32.totalorder %s51, %s52
    %p61 = scmp.eq.s32.totalorder %s20, 0
    %p62 = por %p60, %p61
    %p63 = scmp.ne.s32.totalorder %s51, %s52
    %p64 = scmp.eq.s32.totalorder %s21, 1
    %p65 = por %p63, %p64
    %p67 = scmp.ne.s32.totalorder %s52, %s66
    %p68 = scmp.eq.s32.totalorder %s21, 0
    %p69 = por %p67, %p68
    %s71 = sadd.s32 %s70, 1
    %p74 = scmp.eq.s32.totalorder %s15, 1
    %p75 = scmp.ne.s32.totalorder %s70, %s72
    %p76 = scmp.eq.s32.totalorder %s15, 0
    %p77 = por %p75, %p76
    %p78 = scmp.ne.s32.totalorder %s70, %s72
    %p79 = scmp.eq.s32.totalorder %s20, 1
    %p80 = por %p78, %p79
    %p81 = scmp.ne.s32.totalorder %s72, %s73
    %p82 = scmp.eq.s32.totalorder %s20, 0
    %p83 = por %p81, %p82
    %p84 = scmp.ne.s32.totalorder %s72, %s73
    %p85 = scmp.eq.s32.totalorder %s21, 1
    %p86 = por %p84, %p85
    %p88 = scmp.ne.s32.totalorder %s73, %s87
    %p89 = scmp.eq.s32.totalorder %s21, 0
    %p90 = por %p88, %p89
    %s92 = sadd.s32 %s91, 1
    %p95 = scmp.eq.s32.totalorder %s15, 1
    %p96 = scmp.ne.s32.totalorder %s91, %s93
    %p97 = scmp.eq.s32.totalorder %s15, 0
    %p98 = por %p96, %p97
    %p99 = scmp.ne.s32.totalorder %s91, %s93
    %p100 = scmp.eq.s32.totalorder %s20, 1
    %p101 = por %p99, %p100
    %p102 = scmp.ne.s32.totalorder %s93, %s94
    %p103 = scmp.eq.s32.totalorder %s20, 0
    %p104 = por %p102, %p103
    %p105 = scmp.ne.s32.totalorder %s93, %s94
    %p106 = scmp.eq.s32.totalorder %s21, 1
    %p107 = por %p105, %p106
    %p109 = scmp.ne.s32.totalorder %s94, %s108
    %p110 = scmp.eq.s32.totalorder %s21, 0
    %p111 = por %p109, %p110
    %s113 = sadd.s32 %s112, 1
    %p116 = scmp.eq.s32.totalorder %s15, 1
    %p117 = scmp.ne.s32.totalorder %s112, %s114
    %p118 = scmp.eq.s32.totalorder %s15, 0
    %p119 = por %p117, %p118
    %p120 = scmp.ne.s32.totalorder %s112, %s114
    %p121 = scmp.eq.s32.totalorder %s20, 1
    %p122 = por %p120, %p121
    %p123 = scmp.ne.s32.totalorder %s114, %s115
    %p124 = scmp.eq.s32.totalorder %s20, 0
    %p125 = por %p123, %p124
    %p126 = scmp.ne.s32.totalorder %s114, %s115
    %p127 = scmp.eq.s32.totalorder %s21, 1
    %p128 = por %p126, %p127
    %p130 = scmp.ne.s32.totalorder %s115, %s129
    %p131 = scmp.eq.s32.totalorder %s21, 0
    %p132 = por %p130, %p131
    %s134 = sadd.s32 %s133, 1
    %p137 = scmp.eq.s32.totalorder %s15, 1
    %p138 = scmp.ne.s32.totalorder %s133, %s135
    %p139 = scmp.eq.s32.totalorder %s15, 0
    %p140 = por %p138, %p139
    %p141 = scmp.ne.s32.totalorder %s133, %s135
    %p142 = scmp.eq.s32.totalorder %s20, 1
    %p143 = por %p141, %p142
    %p144 = scmp.ne.s32.totalorder %s135, %s136
    %p145 = scmp.eq.s32.totalorder %s20, 0
    %p146 = por %p144, %p145
    %p147 = scmp.ne.s32.totalorder %s135, %s136
    %p148 = scmp.eq.s32.totalorder %s21, 1
    %p149 = por %p147, %p148
    %p151 = scmp.ne.s32.totalorder %s136, %s150
    %p152 = scmp.eq.s32.totalorder %s21, 0
    %p153 = por %p151, %p152
    %s155 = sadd.s32 %s154, 1
    %p158 = scmp.eq.s32.totalorder %s15, 1
    %p159 = scmp.ne.s32.totalorder %s154, %s156
    %p160 = scmp.eq.s32.totalorder %s15, 0
    %p161 = por %p159, %p160
    %p162 = scmp.ne.s32.totalorder %s154, %s156
    %p163 = scmp.eq.s32.totalorder %s20, 1
    %p164 = por %p162, %p163
    %p165 = scmp.ne.s32.totalorder %s156, %s157
    %p166 = scmp.eq.s32.totalorder %s20, 0
    %p167 = por %p165, %p166
    %p168 = scmp.ne.s32.totalorder %s156, %s157
    %p169 = scmp.eq.s32.totalorder %s21, 1
    %p170 = por %p168, %p169
    %p172 = scmp.ne.s32.totalorder %s157, %s171
    %p173 = scmp.eq.s32.totalorder %s21, 0
    %p174 = por %p172, %p173
    %s176 = sadd.s32 %s175, 1
    %p179 = scmp.eq.s32.totalorder %s15, 1
    %p180 = scmp.ne.s32.totalorder %s175, %s177
    %p181 = scmp.eq.s32.totalorder %s15, 0
    %p182 = por %p180, %p181
    %p183 = scmp.ne.s32.totalorder %s175, %s177
    %p184 = scmp.eq.s32.totalorder %s20, 1
    %p185 = por %p183, %p184
    %p186 = scmp.ne.s32.totalorder %s177, %s178
    %p187 = scmp.eq.s32.totalorder %s20, 0
    %p188 = por %p186, %p187
    %p189 = scmp.ne.s32.totalorder %s177, %s178
    %p190 = scmp.eq.s32.totalorder %s21, 1
    %p191 = por %p189, %p190
    %p193 = scmp.ne.s32.totalorder %s178, %s192
    %p194 = scmp.eq.s32.totalorder %s21, 0
    %p195 = por %p193, %p194
    %s197 = sadd.s32 %s196, 1
    %p200 = scmp.eq.s32.totalorder %s15, 1
    %p201 = scmp.ne.s32.totalorder %s196, %s198
    %p202 = scmp.eq.s32.totalorder %s15, 0
    %p203 = por %p201, %p202
    %p204 = scmp.ne.s32.totalorder %s196, %s198
    %p205 = scmp.eq.s32.totalorder %s20, 1
    %p206 = por %p204, %p205
    %p207 = scmp.ne.s32.totalorder %s198, %s199
    %p208 = scmp.eq.s32.totalorder %s20, 0
    %p209 = por %p207, %p208
    %p210 = scmp.ne.s32.totalorder %s198, %s199
    %p211 = scmp.eq.s32.totalorder %s21, 1
    %p212 = por %p210, %p211
    %p214 = scmp.ne.s32.totalorder %s199, %s213
    %p215 = scmp.eq.s32.totalorder %s21, 0
    %p216 = por %p214, %p215
    %s217 = ssub.s32 %s15, %s22
    %p218 = scmp.eq.s32.totalorder %s217, 0
    %s220 = sadd.s32 %s219, 1
    %s221 = scalar_select %p218, %s219, %s220
    %p224 = pneg %p218
    %p225 = scmp.eq.s32.totalorder %s15, 1
    %p226 = por %p224, %p225
    %p227 = scmp.ne.s32.totalorder %s219, %s222
    %p228 = scmp.eq.s32.totalorder %s15, 0
    %p229 = por %p227, %p228
    %p230 = scmp.ne.s32.totalorder %s219, %s222
    %p231 = scmp.eq.s32.totalorder %s20, 1
    %p232 = por %p230, %p231
    %p233 = scmp.ne.s32.totalorder %s222, %s223
    %p234 = scmp.eq.s32.totalorder %s20, 0
    %p235 = por %p233, %p234
    %p236 = scmp.ne.s32.totalorder %s222, %s223
    %p237 = scmp.eq.s32.totalorder %s21, 1
    %p238 = por %p236, %p237
    %p240 = scmp.ne.s32.totalorder %s223, %s239
    %p241 = scmp.eq.s32.totalorder %s21, 0
    %p242 = por %p240, %p241
    %p243 = scmp.le.s32.totalorder 1, %s15
    %p244 = scmp.lt.s32.totalorder %s15, 3
    %p245 = pnand %p243, %p244
    %p246 = pneg %p245
    // Predicated region
    $region9: #{_lambda_.5} parent=5 // pred_check
      _
    $region10: #{_lambda_.5} parent=5 // pred_check_branch
      %248 = sbr.rel (%p245) target = $region12
    $region11: #{_lambda_.5} parent=5 // pred_region
      %s249 = ssub.s32 %s15, 1
      // Predicated region
      $region13: #{_lambda_.5} parent=11 // pred_check
        %p250 = pneg %p62
      $region14: #{_lambda_.5} parent=11 // pred_check_branch
        %252 = sbr.rel (%p250) target = $region16
      $region15: #{_lambda_.5} parent=11 // pred_region
        _
      $region16: #{_lambda_.5} parent=11 // pred_fallthru
        _
      // Predicated region
      $region17: #{_lambda_.5} parent=11 // pred_check
        %p253 = pneg %p83
      $region18: #{_lambda_.5} parent=11 // pred_check_branch
        %255 = sbr.rel (%p253) target = $region20
      $region19: #{_lambda_.5} parent=11 // pred_region
        _
      $region20: #{_lambda_.5} parent=11 // pred_fallthru
        _
      // Predicated region
      $region21: #{_lambda_.5} parent=11 // pred_check
        %p256 = pneg %p104
      $region22: #{_lambda_.5} parent=11 // pred_check_branch
        %258 = sbr.rel (%p256) target = $region24
      $region23: #{_lambda_.5} parent=11 // pred_region
        _
      $region24: #{_lambda_.5} parent=11 // pred_fallthru
        _
      // Predicated region
      $region25: #{_lambda_.5} parent=11 // pred_check
        %p259 = pneg %p125
      $region26: #{_lambda_.5} parent=11 // pred_check_branch
        %261 = sbr.rel (%p259) target = $region28
      $region27: #{_lambda_.5} parent=11 // pred_region
        _
      $region28: #{_lambda_.5} parent=11 // pred_fallthru
        _
      // Predicated region
      $region29: #{_lambda_.5} parent=11 // pred_check
        %p262 = pneg %p146
      $region30: #{_lambda_.5} parent=11 // pred_check_branch
        %264 = sbr.rel (%p262) target = $region32
      $region31: #{_lambda_.5} parent=11 // pred_region
        _
      $region32: #{_lambda_.5} parent=11 // pred_fallthru
        _
      // Predicated region
      $region33: #{_lambda_.5} parent=11 // pred_check
        %p265 = pneg %p167
      $region34: #{_lambda_.5} parent=11 // pred_check_branch
        %267 = sbr.rel (%p265) target = $region36
      $region35: #{_lambda_.5} parent=11 // pred_region
        _
      $region36: #{_lambda_.5} parent=11 // pred_fallthru
        _
      // Predicated region
      $region37: #{_lambda_.5} parent=11 // pred_check
        %p268 = pneg %p188
      $region38: #{_lambda_.5} parent=11 // pred_check_branch
        %270 = sbr.rel (%p268) target = $region40
      $region39: #{_lambda_.5} parent=11 // pred_region
        _
      $region40: #{_lambda_.5} parent=11 // pred_fallthru
        _
      // Predicated region
      $region41: #{_lambda_.5} parent=11 // pred_check
        %p271 = pneg %p209
      $region42: #{_lambda_.5} parent=11 // pred_check_branch
        %273 = sbr.rel (%p271) target = $region44
      $region43: #{_lambda_.5} parent=11 // pred_region
        _
      $region44: #{_lambda_.5} parent=11 // pred_fallthru
        _
    $region12: #{_lambda_.5} parent=5 // pred_fallthru
      _
    %p274 = scmp.lt.s32.totalorder %s15, 2
    // Predicated region
    $region45: #{_lambda_.5} parent=5 // pred_check
      %p275 = pneg %p274
    $region46: #{_lambda_.5} parent=5 // pred_check_branch
      %277 = sbr.rel (%p275) target = $region48
    $region47: #{_lambda_.5} parent=5 // pred_region
      // Predicated region
      $region49: #{_lambda_.5} parent=47 // pred_check
        %p278 = pneg %p35
      $region50: #{_lambda_.5} parent=47 // pred_check_branch
        %280 = sbr.rel (%p278) target = $region52
      $region51: #{_lambda_.5} parent=47 // pred_region
        %p281 = scmp.lt.s32.totalorder %s15, 1
        %s282 = scalar_select %p281, %s15, 1
        %s283 = smul.addr %s282, 72
        %s284 = smul.addr %s283, 8
        %s285 = scalar_lea.vmem %s0, %s284
      $region52: #{_lambda_.5} parent=47 // pred_fallthru
        _
    $region48: #{_lambda_.5} parent=5 // pred_fallthru
      _
    %p286 = scmp.le.s32.totalorder 1, %s15
    %p287 = scmp.lt.s32.totalorder %s15, 3
    %p288 = pnand %p286, %p287
    %p289 = pneg %p288
    // Predicated region
    $region53: #{_lambda_.5} parent=5 // pred_check
      _
    $region54: #{_lambda_.5} parent=5 // pred_check_branch
      %291 = sbr.rel (%p288) target = $region56
    $region55: #{_lambda_.5} parent=5 // pred_region
      %s292 = ssub.s32 %s15, 1
      %p293 = scmp.lt.s32.totalorder %s20, 1
      %s294 = scalar_select %p293, %s20, 1
      %s295 = smul.addr %s294, 72
      %s296 = smul.addr %s295, 8
      %s297 = scalar_lea.vmem %s0, %s296
      %p298 = pneg %p41
      %p299 = pneg %p38
      %p300 = pneg %p62
      %p301 = pneg %p59
      %p302 = pneg %p83
      %p303 = pneg %p80
      %p304 = pneg %p104
      %p305 = pneg %p101
      %p306 = pneg %p125
      %p307 = pneg %p122
      %p308 = pneg %p146
      %p309 = pneg %p143
      %p310 = pneg %p167
      %p311 = pneg %p164
      %p312 = pneg %p188
      %p313 = pneg %p185
      %p314 = pneg %p209
      %p315 = pneg %p206
      %p316 = pneg %p235
      %p317 = pneg %p232
      %p318 = scmp.lt.s32.totalorder %s20, 1
      %s319 = scalar_select %p318, %s20, 1
      %s320 = smul.addr %s319, 72
      %s321 = smul.addr %s320, 8
      %s322 = scalar_lea.vmem %s9, %s321
      %p323 = scmp.lt.s32.totalorder %s20, 1
      %s324 = scalar_select %p323, %s20, 1
      %s325 = smul.addr %s324, 72
      %s326 = smul.addr %s325, 8
      %s327 = scalar_lea.vmem %s0, %s326
      %p328 = scmp.lt.s32.totalorder %s20, 1
      %s329 = scalar_select %p328, %s20, 1
      %s330 = smul.addr %s329, 72
      %s331 = smul.addr %s330, 8
      %s332 = scalar_lea.vmem %s9, %s331
      %v334 = vld [vmem:[%s327] sm:$0xff]
      %v335 = vld [vmem:[%s327 + $0x8] sm:$0xff]
      %v336 = vld [vmem:[%s327 + $0x10] sm:$0xff]
      %v337 = vld [vmem:[%s327 + $0x18] sm:$0xff]
      %v338 = vld [vmem:[%s327 + $0x20] sm:$0xff]
      %v339 = vld [vmem:[%s327 + $0x28] sm:$0xff]
      %v340 = vld [vmem:[%s327 + $0x30] sm:$0xff]
      %v341 = vld [vmem:[%s327 + $0x38] sm:$0xff]
      %v342 = vld [vmem:[%s327 + $0x40] sm:$0xff]
      %v343 = vld [vmem:[%s327 + $0x48] sm:$0xff]
      %v344 = vld [vmem:[%s327 + $0x50] sm:$0xff]
      %v345 = vld [vmem:[%s327 + $0x58] sm:$0xff]
      %v346 = vld [vmem:[%s327 + $0x60] sm:$0xff]
      %v347 = vld [vmem:[%s327 + $0x68] sm:$0xff]
      %v348 = vld [vmem:[%s327 + $0x70] sm:$0xff]
      %v349 = vld [vmem:[%s327 + $0x78] sm:$0xff]
      %v350 = vld [vmem:[%s327 + $0x80] sm:$0xff]
      %v351 = vld [vmem:[%s327 + $0x88] sm:$0xff]
      %v352 = vld [vmem:[%s327 + $0x90] sm:$0xff]
      %v353 = vld [vmem:[%s327 + $0x98] sm:$0xff]
      %v354 = vld [vmem:[%s327 + $0xa0] sm:$0xff]
      %v355 = vld [vmem:[%s327 + $0xa8] sm:$0xff]
      %v356 = vld [vmem:[%s327 + $0xb0] sm:$0xff]
      %v357 = vld [vmem:[%s327 + $0xb8] sm:$0xff]
      %v358 = vld [vmem:[%s327 + $0xc0] sm:$0xff]
      %v359 = vld [vmem:[%s327 + $0xc8] sm:$0xff]
      %v360 = vld [vmem:[%s327 + $0xd0] sm:$0xff]
      %v361 = vld [vmem:[%s327 + $0xd8] sm:$0xff]
      %v362 = vld [vmem:[%s327 + $0xe0] sm:$0xff]
      %v363 = vld [vmem:[%s327 + $0xe8] sm:$0xff]
      %v364 = vld [vmem:[%s327 + $0xf0] sm:$0xff]
      %v365 = vld [vmem:[%s327 + $0xf8] sm:$0xff]
      %v366 = vld [vmem:[%s327 + $0x100] sm:$0xff]
      %v367 = vld [vmem:[%s327 + $0x108] sm:$0xff]
      %v368 = vld [vmem:[%s327 + $0x110] sm:$0xff]
      %v369 = vld [vmem:[%s327 + $0x118] sm:$0xff]
      %v370 = vld [vmem:[%s327 + $0x120] sm:$0xff]
      %v371 = vld [vmem:[%s327 + $0x128] sm:$0xff]
      %v372 = vld [vmem:[%s327 + $0x130] sm:$0xff]
      %v373 = vld [vmem:[%s327 + $0x138] sm:$0xff]
      %v374 = vld [vmem:[%s327 + $0x140] sm:$0xff]
      %v375 = vld [vmem:[%s327 + $0x148] sm:$0xff]
      %v376 = vld [vmem:[%s327 + $0x150] sm:$0xff]
      %v377 = vld [vmem:[%s327 + $0x158] sm:$0xff]
      %v378 = vld [vmem:[%s327 + $0x160] sm:$0xff]
      %v379 = vld [vmem:[%s327 + $0x168] sm:$0xff]
      %v380 = vld [vmem:[%s327 + $0x170] sm:$0xff]
      %v381 = vld [vmem:[%s327 + $0x178] sm:$0xff]
      %v382 = vld [vmem:[%s327 + $0x180] sm:$0xff]
      %v383 = vld [vmem:[%s327 + $0x188] sm:$0xff]
      %v384 = vld [vmem:[%s327 + $0x190] sm:$0xff]
      %v385 = vld [vmem:[%s327 + $0x198] sm:$0xff]
      %v386 = vld [vmem:[%s327 + $0x1a0] sm:$0xff]
      %v387 = vld [vmem:[%s327 + $0x1a8] sm:$0xff]
      %v388 = vld [vmem:[%s327 + $0x1b0] sm:$0xff]
      %v389 = vld [vmem:[%s327 + $0x1b8] sm:$0xff]
      %v390 = vld [vmem:[%s327 + $0x1c0] sm:$0xff]
      %v391 = vld [vmem:[%s327 + $0x1c8] sm:$0xff]
      %v392 = vld [vmem:[%s327 + $0x1d0] sm:$0xff]
      %v393 = vld [vmem:[%s327 + $0x1d8] sm:$0xff]
      %v394 = vld [vmem:[%s327 + $0x1e0] sm:$0xff]
      %v395 = vld [vmem:[%s327 + $0x1e8] sm:$0xff]
      %v396 = vld [vmem:[%s327 + $0x1f0] sm:$0xff]
      %v397 = vld [vmem:[%s327 + $0x1f8] sm:$0xff]
      %v398 = vld [vmem:[%s327 + $0x200] sm:$0xff]
      %v399 = vld [vmem:[%s327 + $0x208] sm:$0xff]
      %v400 = vld [vmem:[%s327 + $0x210] sm:$0xff]
      %v401 = vld [vmem:[%s327 + $0x218] sm:$0xff]
      %v402 = vld [vmem:[%s327 + $0x220] sm:$0xff]
      %v403 = vld [vmem:[%s327 + $0x228] sm:$0xff]
      %v404 = vld [vmem:[%s327 + $0x230] sm:$0xff]
      %v405 = vld [vmem:[%s327 + $0x238] sm:$0xff]
      %v406 = vld [vmem:[%s1] sm:$0x1]
      %v407 = vld [vmem:[%s2] sm:$0x1]
      %vm408 = vcmask 261120
      %v409 = vsel %vm408, %v334, 0.0
      %410 = vadd.xlane.f32.xlu0 %v409
      %v411 = vpop.xlane.xlu0 %410
      %v412 = vsel %vm408, %v335, 0.0
      %413 = vadd.xlane.f32.xlu0 %v412
      %v414 = vpop.xlane.xlu0 %413
      %v415 = vsel %vm408, %v336, 0.0
      %416 = vadd.xlane.f32.xlu0 %v415
      %v417 = vpop.xlane.xlu0 %416
      %v418 = vsel %vm408, %v337, 0.0
      %419 = vadd.xlane.f32.xlu0 %v418
      %v420 = vpop.xlane.xlu0 %419
      %v421 = vsel %vm408, %v338, 0.0
      %422 = vadd.xlane.f32.xlu0 %v421
      %v423 = vpop.xlane.xlu0 %422
      %v424 = vsel %vm408, %v339, 0.0
      %425 = vadd.xlane.f32.xlu0 %v424
      %v426 = vpop.xlane.xlu0 %425
      %v427 = vsel %vm408, %v340, 0.0
      %428 = vadd.xlane.f32.xlu0 %v427
      %v429 = vpop.xlane.xlu0 %428
      %v430 = vsel %vm408, %v341, 0.0
      %431 = vadd.xlane.f32.xlu0 %v430
      %v432 = vpop.xlane.xlu0 %431
      %v433 = vsel %vm408, %v342, 0.0
      %434 = vadd.xlane.f32.xlu0 %v433
      %v435 = vpop.xlane.xlu0 %434
      %v436 = vsel %vm408, %v343, 0.0
      %437 = vadd.xlane.f32.xlu0 %v436
      %v438 = vpop.xlane.xlu0 %437
      %v439 = vsel %vm408, %v344, 0.0
      %440 = vadd.xlane.f32.xlu0 %v439
      %v441 = vpop.xlane.xlu0 %440
      %v442 = vsel %vm408, %v345, 0.0
      %443 = vadd.xlane.f32.xlu0 %v442
      %v444 = vpop.xlane.xlu0 %443
      %v445 = vsel %vm408, %v346, 0.0
      %446 = vadd.xlane.f32.xlu0 %v445
      %v447 = vpop.xlane.xlu0 %446
      %v448 = vsel %vm408, %v347, 0.0
      %449 = vadd.xlane.f32.xlu0 %v448
      %v450 = vpop.xlane.xlu0 %449
      %v451 = vsel %vm408, %v348, 0.0
      %452 = vadd.xlane.f32.xlu0 %v451
      %v453 = vpop.xlane.xlu0 %452
      %v454 = vsel %vm408, %v349, 0.0
      %455 = vadd.xlane.f32.xlu0 %v454
      %v456 = vpop.xlane.xlu0 %455
      %v457 = vsel %vm408, %v350, 0.0
      %458 = vadd.xlane.f32.xlu0 %v457
      %v459 = vpop.xlane.xlu0 %458
      %v460 = vsel %vm408, %v351, 0.0
      %461 = vadd.xlane.f32.xlu0 %v460
      %v462 = vpop.xlane.xlu0 %461
      %v463 = vsel %vm408, %v352, 0.0
      %464 = vadd.xlane.f32.xlu0 %v463
      %v465 = vpop.xlane.xlu0 %464
      %v466 = vsel %vm408, %v353, 0.0
      %467 = vadd.xlane.f32.xlu0 %v466
      %v468 = vpop.xlane.xlu0 %467
      %v469 = vsel %vm408, %v354, 0.0
      %470 = vadd.xlane.f32.xlu0 %v469
      %v471 = vpop.xlane.xlu0 %470
      %v472 = vsel %vm408, %v355, 0.0
      %473 = vadd.xlane.f32.xlu0 %v472
      %v474 = vpop.xlane.xlu0 %473
      %v475 = vsel %vm408, %v356, 0.0
      %476 = vadd.xlane.f32.xlu0 %v475
      %v477 = vpop.xlane.xlu0 %476
      %v478 = vsel %vm408, %v357, 0.0
      %479 = vadd.xlane.f32.xlu0 %v478
      %v480 = vpop.xlane.xlu0 %479
      %v481 = vsel %vm408, %v358, 0.0
      %482 = vadd.xlane.f32.xlu0 %v481
      %v483 = vpop.xlane.xlu0 %482
      %v484 = vsel %vm408, %v359, 0.0
      %485 = vadd.xlane.f32.xlu0 %v484
      %v486 = vpop.xlane.xlu0 %485
      %v487 = vsel %vm408, %v360, 0.0
      %488 = vadd.xlane.f32.xlu0 %v487
      %v489 = vpop.xlane.xlu0 %488
      %v490 = vsel %vm408, %v361, 0.0
      %491 = vadd.xlane.f32.xlu0 %v490
      %v492 = vpop.xlane.xlu0 %491
      %v493 = vsel %vm408, %v362, 0.0
      %494 = vadd.xlane.f32.xlu0 %v493
      %v495 = vpop.xlane.xlu0 %494
      %v496 = vsel %vm408, %v363, 0.0
      %497 = vadd.xlane.f32.xlu0 %v496
      %v498 = vpop.xlane.xlu0 %497
      %v499 = vsel %vm408, %v364, 0.0
      %500 = vadd.xlane.f32.xlu0 %v499
      %v501 = vpop.xlane.xlu0 %500
      %v502 = vsel %vm408, %v365, 0.0
      %503 = vadd.xlane.f32.xlu0 %v502
      %v504 = vpop.xlane.xlu0 %503
      %v505 = vsel %vm408, %v366, 0.0
      %506 = vadd.xlane.f32.xlu0 %v505
      %v507 = vpop.xlane.xlu0 %506
      %v508 = vsel %vm408, %v367, 0.0
      %509 = vadd.xlane.f32.xlu0 %v508
      %v510 = vpop.xlane.xlu0 %509
      %v511 = vsel %vm408, %v368, 0.0
      %512 = vadd.xlane.f32.xlu0 %v511
      %v513 = vpop.xlane.xlu0 %512
      %v514 = vsel %vm408, %v369, 0.0
      %515 = vadd.xlane.f32.xlu0 %v514
      %v516 = vpop.xlane.xlu0 %515
      %v517 = vsel %vm408, %v370, 0.0
      %518 = vadd.xlane.f32.xlu0 %v517
      %v519 = vpop.xlane.xlu0 %518
      %v520 = vsel %vm408, %v371, 0.0
      %521 = vadd.xlane.f32.xlu0 %v520
      %v522 = vpop.xlane.xlu0 %521
      %v523 = vsel %vm408, %v372, 0.0
      %524 = vadd.xlane.f32.xlu0 %v523
      %v525 = vpop.xlane.xlu0 %524
      %v526 = vsel %vm408, %v373, 0.0
      %527 = vadd.xlane.f32.xlu0 %v526
      %v528 = vpop.xlane.xlu0 %527
      %v529 = vsel %vm408, %v374, 0.0
      %530 = vadd.xlane.f32.xlu0 %v529
      %v531 = vpop.xlane.xlu0 %530
      %v532 = vsel %vm408, %v375, 0.0
      %533 = vadd.xlane.f32.xlu0 %v532
      %v534 = vpop.xlane.xlu0 %533
      %v535 = vsel %vm408, %v376, 0.0
      %536 = vadd.xlane.f32.xlu0 %v535
      %v537 = vpop.xlane.xlu0 %536
      %v538 = vsel %vm408, %v377, 0.0
      %539 = vadd.xlane.f32.xlu0 %v538
      %v540 = vpop.xlane.xlu0 %539
      %v541 = vsel %vm408, %v378, 0.0
      %542 = vadd.xlane.f32.xlu0 %v541
      %v543 = vpop.xlane.xlu0 %542
      %v544 = vsel %vm408, %v379, 0.0
      %545 = vadd.xlane.f32.xlu0 %v544
      %v546 = vpop.xlane.xlu0 %545
      %v547 = vsel %vm408, %v380, 0.0
      %548 = vadd.xlane.f32.xlu0 %v547
      %v549 = vpop.xlane.xlu0 %548
      %v550 = vsel %vm408, %v381, 0.0
      %551 = vadd.xlane.f32.xlu0 %v550
      %v552 = vpop.xlane.xlu0 %551
      %v553 = vsel %vm408, %v382, 0.0
      %554 = vadd.xlane.f32.xlu0 %v553
      %v555 = vpop.xlane.xlu0 %554
      %v556 = vsel %vm408, %v383, 0.0
      %557 = vadd.xlane.f32.xlu0 %v556
      %v558 = vpop.xlane.xlu0 %557
      %v559 = vsel %vm408, %v384, 0.0
      %560 = vadd.xlane.f32.xlu0 %v559
      %v561 = vpop.xlane.xlu0 %560
      %v562 = vsel %vm408, %v385, 0.0
      %563 = vadd.xlane.f32.xlu0 %v562
      %v564 = vpop.xlane.xlu0 %563
      %v565 = vsel %vm408, %v386, 0.0
      %566 = vadd.xlane.f32.xlu0 %v565
      %v567 = vpop.xlane.xlu0 %566
      %v568 = vsel %vm408, %v387, 0.0
      %569 = vadd.xlane.f32.xlu0 %v568
      %v570 = vpop.xlane.xlu0 %569
      %v571 = vsel %vm408, %v388, 0.0
      %572 = vadd.xlane.f32.xlu0 %v571
      %v573 = vpop.xlane.xlu0 %572
      %v574 = vsel %vm408, %v389, 0.0
      %575 = vadd.xlane.f32.xlu0 %v574
      %v576 = vpop.xlane.xlu0 %575
      %v577 = vsel %vm408, %v390, 0.0
      %578 = vadd.xlane.f32.xlu0 %v577
      %v579 = vpop.xlane.xlu0 %578
      %v580 = vsel %vm408, %v391, 0.0
      %581 = vadd.xlane.f32.xlu0 %v580
      %v582 = vpop.xlane.xlu0 %581
      %v583 = vsel %vm408, %v392, 0.0
      %584 = vadd.xlane.f32.xlu0 %v583
      %v585 = vpop.xlane.xlu0 %584
      %v586 = vsel %vm408, %v393, 0.0
      %587 = vadd.xlane.f32.xlu0 %v586
      %v588 = vpop.xlane.xlu0 %587
      %v589 = vsel %vm408, %v394, 0.0
      %590 = vadd.xlane.f32.xlu0 %v589
      %v591 = vpop.xlane.xlu0 %590
      %v592 = vsel %vm408, %v395, 0.0
      %593 = vadd.xlane.f32.xlu0 %v592
      %v594 = vpop.xlane.xlu0 %593
      %v595 = vsel %vm408, %v396, 0.0
      %596 = vadd.xlane.f32.xlu0 %v595
      %v597 = vpop.xlane.xlu0 %596
      %v598 = vsel %vm408, %v397, 0.0
      %599 = vadd.xlane.f32.xlu0 %v598
      %v600 = vpop.xlane.xlu0 %599
      %v601 = vsel %vm408, %v398, 0.0
      %602 = vadd.xlane.f32.xlu0 %v601
      %v603 = vpop.xlane.xlu0 %602
      %v604 = vsel %vm408, %v399, 0.0
      %605 = vadd.xlane.f32.xlu0 %v604
      %v606 = vpop.xlane.xlu0 %605
      %v607 = vsel %vm408, %v400, 0.0
      %608 = vadd.xlane.f32.xlu0 %v607
      %v609 = vpop.xlane.xlu0 %608
      %v610 = vsel %vm408, %v401, 0.0
      %611 = vadd.xlane.f32.xlu0 %v610
      %v612 = vpop.xlane.xlu0 %611
      %v613 = vsel %vm408, %v402, 0.0
      %614 = vadd.xlane.f32.xlu0 %v613
      %v615 = vpop.xlane.xlu0 %614
      %v616 = vsel %vm408, %v403, 0.0
      %617 = vadd.xlane.f32.xlu0 %v616
      %v618 = vpop.xlane.xlu0 %617
      %v619 = vsel %vm408, %v404, 0.0
      %620 = vadd.xlane.f32.xlu0 %v619
      %v621 = vpop.xlane.xlu0 %620
      %v622 = vsel %vm408, %v405, 0.0
      %623 = vadd.xlane.f32.xlu0 %v622
      %v624 = vpop.xlane.xlu0 %623
      %v625 = vrcp.pop 32.0
      %v626 = vmul.f32 32.0, %v625
      %v627 = vsub.f32 1.0, %v626
      %v628 = vmul.f32 %v625, %v627
      %v629 = vadd.f32 %v625, %v628
      %vm630 = vweird.f32 %v625
      %v631 = vsel %vm630, %v625, %v629
      %v632 = vmul.f32 %v411, %v631
      %v633 = vmul.f32 %v414, %v631
      %v634 = vmul.f32 %v417, %v631
      %v635 = vmul.f32 %v420, %v631
      %v636 = vmul.f32 %v423, %v631
      %v637 = vmul.f32 %v426, %v631
      %v638 = vmul.f32 %v429, %v631
      %v639 = vmul.f32 %v432, %v631
      %v640 = vmul.f32 %v435, %v631
      %v641 = vmul.f32 %v438, %v631
      %v642 = vmul.f32 %v441, %v631
      %v643 = vmul.f32 %v444, %v631
      %v644 = vmul.f32 %v447, %v631
      %v645 = vmul.f32 %v450, %v631
      %v646 = vmul.f32 %v453, %v631
      %v647 = vmul.f32 %v456, %v631
      %v648 = vmul.f32 %v459, %v631
      %v649 = vmul.f32 %v462, %v631
      %v650 = vmul.f32 %v465, %v631
      %v651 = vmul.f32 %v468, %v631
      %v652 = vmul.f32 %v471, %v631
      %v653 = vmul.f32 %v474, %v631
      %v654 = vmul.f32 %v477, %v631
      %v655 = vmul.f32 %v480, %v631
      %v656 = vmul.f32 %v483, %v631
      %v657 = vmul.f32 %v486, %v631
      %v658 = vmul.f32 %v489, %v631
      %v659 = vmul.f32 %v492, %v631
      %v660 = vmul.f32 %v495, %v631
      %v661 = vmul.f32 %v498, %v631
      %v662 = vmul.f32 %v501, %v631
      %v663 = vmul.f32 %v504, %v631
      %v664 = vmul.f32 %v507, %v631
      %v665 = vmul.f32 %v510, %v631
      %v666 = vmul.f32 %v513, %v631
      %v667 = vmul.f32 %v516, %v631
      %v668 = vmul.f32 %v519, %v631
      %v669 = vmul.f32 %v522, %v631
      %v670 = vmul.f32 %v525, %v631
      %v671 = vmul.f32 %v528, %v631
      %v672 = vmul.f32 %v531, %v631
      %v673 = vmul.f32 %v534, %v631
      %v674 = vmul.f32 %v537, %v631
      %v675 = vmul.f32 %v540, %v631
      %v676 = vmul.f32 %v543, %v631
      %v677 = vmul.f32 %v546, %v631
      %v678 = vmul.f32 %v549, %v631
      %v679 = vmul.f32 %v552, %v631
      %v680 = vmul.f32 %v555, %v631
      %v681 = vmul.f32 %v558, %v631
      %v682 = vmul.f32 %v561, %v631
      %v683 = vmul.f32 %v564, %v631
      %v684 = vmul.f32 %v567, %v631
      %v685 = vmul.f32 %v570, %v631
      %v686 = vmul.f32 %v573, %v631
      %v687 = vmul.f32 %v576, %v631
      %v688 = vmul.f32 %v579, %v631
      %v689 = vmul.f32 %v582, %v631
      %v690 = vmul.f32 %v585, %v631
      %v691 = vmul.f32 %v588, %v631
      %v692 = vmul.f32 %v591, %v631
      %v693 = vmul.f32 %v594, %v631
      %v694 = vmul.f32 %v597, %v631
      %v695 = vmul.f32 %v600, %v631
      %v696 = vmul.f32 %v603, %v631
      %v697 = vmul.f32 %v606, %v631
      %v698 = vmul.f32 %v609, %v631
      %v699 = vmul.f32 %v612, %v631
      %v700 = vmul.f32 %v615, %v631
      %v701 = vmul.f32 %v618, %v631
      %v702 = vmul.f32 %v621, %v631
      %v703 = vmul.f32 %v624, %v631
      %v704 = vsub.f32 %v334, %v632
      %v705 = vsub.f32 %v335, %v633
      %v706 = vsub.f32 %v336, %v634
      %v707 = vsub.f32 %v337, %v635
      %v708 = vsub.f32 %v338, %v636
      %v709 = vsub.f32 %v339, %v637
      %v710 = vsub.f32 %v340, %v638
      %v711 = vsub.f32 %v341, %v639
      %v712 = vsub.f32 %v342, %v640
      %v713 = vsub.f32 %v343, %v641
      %v714 = vsub.f32 %v344, %v642
      %v715 = vsub.f32 %v345, %v643
      %v716 = vsub.f32 %v346, %v644
      %v717 = vsub.f32 %v347, %v645
      %v718 = vsub.f32 %v348, %v646
      %v719 = vsub.f32 %v349, %v647
      %v720 = vsub.f32 %v350, %v648
      %v721 = vsub.f32 %v351, %v649
      %v722 = vsub.f32 %v352, %v650
      %v723 = vsub.f32 %v353, %v651
      %v724 = vsub.f32 %v354, %v652
      %v725 = vsub.f32 %v355, %v653
      %v726 = vsub.f32 %v356, %v654
      %v727 = vsub.f32 %v357, %v655
      %v728 = vsub.f32 %v358, %v656
      %v729 = vsub.f32 %v359, %v657
      %v730 = vsub.f32 %v360, %v658
      %v731 = vsub.f32 %v361, %v659
      %v732 = vsub.f32 %v362, %v660
      %v733 = vsub.f32 %v363, %v661
      %v734 = vsub.f32 %v364, %v662
      %v735 = vsub.f32 %v365, %v663
      %v736 = vsub.f32 %v366, %v664
      %v737 = vsub.f32 %v367, %v665
      %v738 = vsub.f32 %v368, %v666
      %v739 = vsub.f32 %v369, %v667
      %v740 = vsub.f32 %v370, %v668
      %v741 = vsub.f32 %v371, %v669
      %v742 = vsub.f32 %v372, %v670
      %v743 = vsub.f32 %v373, %v671
      %v744 = vsub.f32 %v374, %v672
      %v745 = vsub.f32 %v375, %v673
      %v746 = vsub.f32 %v376, %v674
      %v747 = vsub.f32 %v377, %v675
      %v748 = vsub.f32 %v378, %v676
      %v749 = vsub.f32 %v379, %v677
      %v750 = vsub.f32 %v380, %v678
      %v751 = vsub.f32 %v381, %v679
      %v752 = vsub.f32 %v382, %v680
      %v753 = vsub.f32 %v383, %v681
      %v754 = vsub.f32 %v384, %v682
      %v755 = vsub.f32 %v385, %v683
      %v756 = vsub.f32 %v386, %v684
      %v757 = vsub.f32 %v387, %v685
      %v758 = vsub.f32 %v388, %v686
      %v759 = vsub.f32 %v389, %v687
      %v760 = vsub.f32 %v390, %v688
      %v761 = vsub.f32 %v391, %v689
      %v762 = vsub.f32 %v392, %v690
      %v763 = vsub.f32 %v393, %v691
      %v764 = vsub.f32 %v394, %v692
      %v765 = vsub.f32 %v395, %v693
      %v766 = vsub.f32 %v396, %v694
      %v767 = vsub.f32 %v397, %v695
      %v768 = vsub.f32 %v398, %v696
      %v769 = vsub.f32 %v399, %v697
      %v770 = vsub.f32 %v400, %v698
      %v771 = vsub.f32 %v401, %v699
      %v772 = vsub.f32 %v402, %v700
      %v773 = vsub.f32 %v403, %v701
      %v774 = vsub.f32 %v404, %v702
      %v775 = vsub.f32 %v405, %v703
      %v776 = vmul.f32 %v704, %v704
      %v777 = vmul.f32 %v705, %v705
      %v778 = vmul.f32 %v706, %v706
      %v779 = vmul.f32 %v707, %v707
      %v780 = vmul.f32 %v708, %v708
      %v781 = vmul.f32 %v709, %v709
      %v782 = vmul.f32 %v710, %v710
      %v783 = vmul.f32 %v711, %v711
      %v784 = vmul.f32 %v712, %v712
      %v785 = vmul.f32 %v713, %v713
      %v786 = vmul.f32 %v714, %v714
      %v787 = vmul.f32 %v715, %v715
      %v788 = vmul.f32 %v716, %v716
      %v789 = vmul.f32 %v717, %v717
      %v790 = vmul.f32 %v718, %v718
      %v791 = vmul.f32 %v719, %v719
      %v792 = vmul.f32 %v720, %v720
      %v793 = vmul.f32 %v721, %v721
      %v794 = vmul.f32 %v722, %v722
      %v795 = vmul.f32 %v723, %v723
      %v796 = vmul.f32 %v724, %v724
      %v797 = vmul.f32 %v725, %v725
      %v798 = vmul.f32 %v726, %v726
      %v799 = vmul.f32 %v727, %v727
      %v800 = vmul.f32 %v728, %v728
      %v801 = vmul.f32 %v729, %v729
      %v802 = vmul.f32 %v730, %v730
      %v803 = vmul.f32 %v731, %v731
      %v804 = vmul.f32 %v732, %v732
      %v805 = vmul.f32 %v733, %v733
      %v806 = vmul.f32 %v734, %v734
      %v807 = vmul.f32 %v735, %v735
      %v808 = vmul.f32 %v736, %v736
      %v809 = vmul.f32 %v737, %v737
      %v810 = vmul.f32 %v738, %v738
      %v811 = vmul.f32 %v739, %v739
      %v812 = vmul.f32 %v740, %v740
      %v813 = vmul.f32 %v741, %v741
      %v814 = vmul.f32 %v742, %v742
      %v815 = vmul.f32 %v743, %v743
      %v816 = vmul.f32 %v744, %v744
      %v817 = vmul.f32 %v745, %v745
      %v818 = vmul.f32 %v746, %v746
      %v819 = vmul.f32 %v747, %v747
      %v820 = vmul.f32 %v748, %v748
      %v821 = vmul.f32 %v749, %v749
      %v822 = vmul.f32 %v750, %v750
      %v823 = vmul.f32 %v751, %v751
      %v824 = vmul.f32 %v752, %v752
      %v825 = vmul.f32 %v753, %v753
      %v826 = vmul.f32 %v754, %v754
      %v827 = vmul.f32 %v755, %v755
      %v828 = vmul.f32 %v756, %v756
      %v829 = vmul.f32 %v757, %v757
      %v830 = vmul.f32 %v758, %v758
      %v831 = vmul.f32 %v759, %v759
      %v832 = vmul.f32 %v760, %v760
      %v833 = vmul.f32 %v761, %v761
      %v834 = vmul.f32 %v762, %v762
      %v835 = vmul.f32 %v763, %v763
      %v836 = vmul.f32 %v764, %v764
      %v837 = vmul.f32 %v765, %v765
      %v838 = vmul.f32 %v766, %v766
      %v839 = vmul.f32 %v767, %v767
      %v840 = vmul.f32 %v768, %v768
      %v841 = vmul.f32 %v769, %v769
      %v842 = vmul.f32 %v770, %v770
      %v843 = vmul.f32 %v771, %v771
      %v844 = vmul.f32 %v772, %v772
      %v845 = vmul.f32 %v773, %v773
      %v846 = vmul.f32 %v774, %v774
      %v847 = vmul.f32 %v775, %v775
      %v848 = vsel %vm408, %v776, 0.0
      %849 = vadd.xlane.f32.xlu0 %v848
      %v850 = vpop.xlane.xlu0 %849
      %v851 = vsel %vm408, %v777, 0.0
      %852 = vadd.xlane.f32.xlu0 %v851
      %v853 = vpop.xlane.xlu0 %852
      %v854 = vsel %vm408, %v778, 0.0
      %855 = vadd.xlane.f32.xlu0 %v854
      %v856 = vpop.xlane.xlu0 %855
      %v857 = vsel %vm408, %v779, 0.0
      %858 = vadd.xlane.f32.xlu0 %v857
      %v859 = vpop.xlane.xlu0 %858
      %v860 = vsel %vm408, %v780, 0.0
      %861 = vadd.xlane.f32.xlu0 %v860
      %v862 = vpop.xlane.xlu0 %861
      %v863 = vsel %vm408, %v781, 0.0
      %864 = vadd.xlane.f32.xlu0 %v863
      %v865 = vpop.xlane.xlu0 %864
      %v866 = vsel %vm408, %v782, 0.0
      %867 = vadd.xlane.f32.xlu0 %v866
      %v868 = vpop.xlane.xlu0 %867
      %v869 = vsel %vm408, %v783, 0.0
      %870 = vadd.xlane.f32.xlu0 %v869
      %v871 = vpop.xlane.xlu0 %870
      %v872 = vsel %vm408, %v784, 0.0
      %873 = vadd.xlane.f32.xlu0 %v872
      %v874 = vpop.xlane.xlu0 %873
      %v875 = vsel %vm408, %v785, 0.0
      %876 = vadd.xlane.f32.xlu0 %v875
      %v877 = vpop.xlane.xlu0 %876
      %v878 = vsel %vm408, %v786, 0.0
      %879 = vadd.xlane.f32.xlu0 %v878
      %v880 = vpop.xlane.xlu0 %879
      %v881 = vsel %vm408, %v787, 0.0
      %882 = vadd.xlane.f32.xlu0 %v881
      %v883 = vpop.xlane.xlu0 %882
      %v884 = vsel %vm408, %v788, 0.0
      %885 = vadd.xlane.f32.xlu0 %v884
      %v886 = vpop.xlane.xlu0 %885
      %v887 = vsel %vm408, %v789, 0.0
      %888 = vadd.xlane.f32.xlu0 %v887
      %v889 = vpop.xlane.xlu0 %888
      %v890 = vsel %vm408, %v790, 0.0
      %891 = vadd.xlane.f32.xlu0 %v890
      %v892 = vpop.xlane.xlu0 %891
      %v893 = vsel %vm408, %v791, 0.0
      %894 = vadd.xlane.f32.xlu0 %v893
      %v895 = vpop.xlane.xlu0 %894
      %v896 = vsel %vm408, %v792, 0.0
      %897 = vadd.xlane.f32.xlu0 %v896
      %v898 = vpop.xlane.xlu0 %897
      %v899 = vsel %vm408, %v793, 0.0
      %900 = vadd.xlane.f32.xlu0 %v899
      %v901 = vpop.xlane.xlu0 %900
      %v902 = vsel %vm408, %v794, 0.0
      %903 = vadd.xlane.f32.xlu0 %v902
      %v904 = vpop.xlane.xlu0 %903
      %v905 = vsel %vm408, %v795, 0.0
      %906 = vadd.xlane.f32.xlu0 %v905
      %v907 = vpop.xlane.xlu0 %906
      %v908 = vsel %vm408, %v796, 0.0
      %909 = vadd.xlane.f32.xlu0 %v908
      %v910 = vpop.xlane.xlu0 %909
      %v911 = vsel %vm408, %v797, 0.0
      %912 = vadd.xlane.f32.xlu0 %v911
      %v913 = vpop.xlane.xlu0 %912
      %v914 = vsel %vm408, %v798, 0.0
      %915 = vadd.xlane.f32.xlu0 %v914
      %v916 = vpop.xlane.xlu0 %915
      %v917 = vsel %vm408, %v799, 0.0
      %918 = vadd.xlane.f32.xlu0 %v917
      %v919 = vpop.xlane.xlu0 %918
      %v920 = vsel %vm408, %v800, 0.0
      %921 = vadd.xlane.f32.xlu0 %v920
      %v922 = vpop.xlane.xlu0 %921
      %v923 = vsel %vm408, %v801, 0.0
      %924 = vadd.xlane.f32.xlu0 %v923
      %v925 = vpop.xlane.xlu0 %924
      %v926 = vsel %vm408, %v802, 0.0
      %927 = vadd.xlane.f32.xlu0 %v926
      %v928 = vpop.xlane.xlu0 %927
      %v929 = vsel %vm408, %v803, 0.0
      %930 = vadd.xlane.f32.xlu0 %v929
      %v931 = vpop.xlane.xlu0 %930
      %v932 = vsel %vm408, %v804, 0.0
      %933 = vadd.xlane.f32.xlu0 %v932
      %v934 = vpop.xlane.xlu0 %933
      %v935 = vsel %vm408, %v805, 0.0
      %936 = vadd.xlane.f32.xlu0 %v935
      %v937 = vpop.xlane.xlu0 %936
      %v938 = vsel %vm408, %v806, 0.0
      %939 = vadd.xlane.f32.xlu0 %v938
      %v940 = vpop.xlane.xlu0 %939
      %v941 = vsel %vm408, %v807, 0.0
      %942 = vadd.xlane.f32.xlu0 %v941
      %v943 = vpop.xlane.xlu0 %942
      %v944 = vsel %vm408, %v808, 0.0
      %945 = vadd.xlane.f32.xlu0 %v944
      %v946 = vpop.xlane.xlu0 %945
      %v947 = vsel %vm408, %v809, 0.0
      %948 = vadd.xlane.f32.xlu0 %v947
      %v949 = vpop.xlane.xlu0 %948
      %v950 = vsel %vm408, %v810, 0.0
      %951 = vadd.xlane.f32.xlu0 %v950
      %v952 = vpop.xlane.xlu0 %951
      %v953 = vsel %vm408, %v811, 0.0
      %954 = vadd.xlane.f32.xlu0 %v953
      %v955 = vpop.xlane.xlu0 %954
      %v956 = vsel %vm408, %v812, 0.0
      %957 = vadd.xlane.f32.xlu0 %v956
      %v958 = vpop.xlane.xlu0 %957
      %v959 = vsel %vm408, %v813, 0.0
      %960 = vadd.xlane.f32.xlu0 %v959
      %v961 = vpop.xlane.xlu0 %960
      %v962 = vsel %vm408, %v814, 0.0
      %963 = vadd.xlane.f32.xlu0 %v962
      %v964 = vpop.xlane.xlu0 %963
      %v965 = vsel %vm408, %v815, 0.0
      %966 = vadd.xlane.f32.xlu0 %v965
      %v967 = vpop.xlane.xlu0 %966
      %v968 = vsel %vm408, %v816, 0.0
      %969 = vadd.xlane.f32.xlu0 %v968
      %v970 = vpop.xlane.xlu0 %969
      %v971 = vsel %vm408, %v817, 0.0
      %972 = vadd.xlane.f32.xlu0 %v971
      %v973 = vpop.xlane.xlu0 %972
      %v974 = vsel %vm408, %v818, 0.0
      %975 = vadd.xlane.f32.xlu0 %v974
      %v976 = vpop.xlane.xlu0 %975
      %v977 = vsel %vm408, %v819, 0.0
      %978 = vadd.xlane.f32.xlu0 %v977
      %v979 = vpop.xlane.xlu0 %978
      %v980 = vsel %vm408, %v820, 0.0
      %981 = vadd.xlane.f32.xlu0 %v980
      %v982 = vpop.xlane.xlu0 %981
      %v983 = vsel %vm408, %v821, 0.0
      %984 = vadd.xlane.f32.xlu0 %v983
      %v985 = vpop.xlane.xlu0 %984
      %v986 = vsel %vm408, %v822, 0.0
      %987 = vadd.xlane.f32.xlu0 %v986
      %v988 = vpop.xlane.xlu0 %987
      %v989 = vsel %vm408, %v823, 0.0
      %990 = vadd.xlane.f32.xlu0 %v989
      %v991 = vpop.xlane.xlu0 %990
      %v992 = vsel %vm408, %v824, 0.0
      %993 = vadd.xlane.f32.xlu0 %v992
      %v994 = vpop.xlane.xlu0 %993
      %v995 = vsel %vm408, %v825, 0.0
      %996 = vadd.xlane.f32.xlu0 %v995
      %v997 = vpop.xlane.xlu0 %996
      %v998 = vsel %vm408, %v826, 0.0
      %999 = vadd.xlane.f32.xlu0 %v998
      %v1000 = vpop.xlane.xlu0 %999
      %v1001 = vsel %vm408, %v827, 0.0
      %1002 = vadd.xlane.f32.xlu0 %v1001
      %v1003 = vpop.xlane.xlu0 %1002
      %v1004 = vsel %vm408, %v828, 0.0
      %1005 = vadd.xlane.f32.xlu0 %v1004
      %v1006 = vpop.xlane.xlu0 %1005
      %v1007 = vsel %vm408, %v829, 0.0
      %1008 = vadd.xlane.f32.xlu0 %v1007
      %v1009 = vpop.xlane.xlu0 %1008
      %v1010 = vsel %vm408, %v830, 0.0
      %1011 = vadd.xlane.f32.xlu0 %v1010
      %v1012 = vpop.xlane.xlu0 %1011
      %v1013 = vsel %vm408, %v831, 0.0
      %1014 = vadd.xlane.f32.xlu0 %v1013
      %v1015 = vpop.xlane.xlu0 %1014
      %v1016 = vsel %vm408, %v832, 0.0
      %1017 = vadd.xlane.f32.xlu0 %v1016
      %v1018 = vpop.xlane.xlu0 %1017
      %v1019 = vsel %vm408, %v833, 0.0
      %1020 = vadd.xlane.f32.xlu0 %v1019
      %v1021 = vpop.xlane.xlu0 %1020
      %v1022 = vsel %vm408, %v834, 0.0
      %1023 = vadd.xlane.f32.xlu0 %v1022
      %v1024 = vpop.xlane.xlu0 %1023
      %v1025 = vsel %vm408, %v835, 0.0
      %1026 = vadd.xlane.f32.xlu0 %v1025
      %v1027 = vpop.xlane.xlu0 %1026
      %v1028 = vsel %vm408, %v836, 0.0
      %1029 = vadd.xlane.f32.xlu0 %v1028
      %v1030 = vpop.xlane.xlu0 %1029
      %v1031 = vsel %vm408, %v837, 0.0
      %1032 = vadd.xlane.f32.xlu0 %v1031
      %v1033 = vpop.xlane.xlu0 %1032
      %v1034 = vsel %vm408, %v838, 0.0
      %1035 = vadd.xlane.f32.xlu0 %v1034
      %v1036 = vpop.xlane.xlu0 %1035
      %v1037 = vsel %vm408, %v839, 0.0
      %1038 = vadd.xlane.f32.xlu0 %v1037
      %v1039 = vpop.xlane.xlu0 %1038
      %v1040 = vsel %vm408, %v840, 0.0
      %1041 = vadd.xlane.f32.xlu0 %v1040
      %v1042 = vpop.xlane.xlu0 %1041
      %v1043 = vsel %vm408, %v841, 0.0
      %1044 = vadd.xlane.f32.xlu0 %v1043
      %v1045 = vpop.xlane.xlu0 %1044
      %v1046 = vsel %vm408, %v842, 0.0
      %1047 = vadd.xlane.f32.xlu0 %v1046
      %v1048 = vpop.xlane.xlu0 %1047
      %v1049 = vsel %vm408, %v843, 0.0
      %1050 = vadd.xlane.f32.xlu0 %v1049
      %v1051 = vpop.xlane.xlu0 %1050
      %v1052 = vsel %vm408, %v844, 0.0
      %1053 = vadd.xlane.f32.xlu0 %v1052
      %v1054 = vpop.xlane.xlu0 %1053
      %v1055 = vsel %vm408, %v845, 0.0
      %1056 = vadd.xlane.f32.xlu0 %v1055
      %v1057 = vpop.xlane.xlu0 %1056
      %v1058 = vsel %vm408, %v846, 0.0
      %1059 = vadd.xlane.f32.xlu0 %v1058
      %v1060 = vpop.xlane.xlu0 %1059
      %v1061 = vsel %vm408, %v847, 0.0
      %1062 = vadd.xlane.f32.xlu0 %v1061
      %v1063 = vpop.xlane.xlu0 %1062
      %v1064 = vmul.f32 %v850, %v631
      %v1065 = vmul.f32 %v853, %v631
      %v1066 = vmul.f32 %v856, %v631
      %v1067 = vmul.f32 %v859, %v631
      %v1068 = vmul.f32 %v862, %v631
      %v1069 = vmul.f32 %v865, %v631
      %v1070 = vmul.f32 %v868, %v631
      %v1071 = vmul.f32 %v871, %v631
      %v1072 = vmul.f32 %v874, %v631
      %v1073 = vmul.f32 %v877, %v631
      %v1074 = vmul.f32 %v880, %v631
      %v1075 = vmul.f32 %v883, %v631
      %v1076 = vmul.f32 %v886, %v631
      %v1077 = vmul.f32 %v889, %v631
      %v1078 = vmul.f32 %v892, %v631
      %v1079 = vmul.f32 %v895, %v631
      %v1080 = vmul.f32 %v898, %v631
      %v1081 = vmul.f32 %v901, %v631
      %v1082 = vmul.f32 %v904, %v631
      %v1083 = vmul.f32 %v907, %v631
      %v1084 = vmul.f32 %v910, %v631
      %v1085 = vmul.f32 %v913, %v631
      %v1086 = vmul.f32 %v916, %v631
      %v1087 = vmul.f32 %v919, %v631
      %v1088 = vmul.f32 %v922, %v631
      %v1089 = vmul.f32 %v925, %v631
      %v1090 = vmul.f32 %v928, %v631
      %v1091 = vmul.f32 %v931, %v631
      %v1092 = vmul.f32 %v934, %v631
      %v1093 = vmul.f32 %v937, %v631
      %v1094 = vmul.f32 %v940, %v631
      %v1095 = vmul.f32 %v943, %v631
      %v1096 = vmul.f32 %v946, %v631
      %v1097 = vmul.f32 %v949, %v631
      %v1098 = vmul.f32 %v952, %v631
      %v1099 = vmul.f32 %v955, %v631
      %v1100 = vmul.f32 %v958, %v631
      %v1101 = vmul.f32 %v961, %v631
      %v1102 = vmul.f32 %v964, %v631
      %v1103 = vmul.f32 %v967, %v631
      %v1104 = vmul.f32 %v970, %v631
      %v1105 = vmul.f32 %v973, %v631
      %v1106 = vmul.f32 %v976, %v631
      %v1107 = vmul.f32 %v979, %v631
      %v1108 = vmul.f32 %v982, %v631
      %v1109 = vmul.f32 %v985, %v631
      %v1110 = vmul.f32 %v988, %v631
      %v1111 = vmul.f32 %v991, %v631
      %v1112 = vmul.f32 %v994, %v631
      %v1113 = vmul.f32 %v997, %v631
      %v1114 = vmul.f32 %v1000, %v631
      %v1115 = vmul.f32 %v1003, %v631
      %v1116 = vmul.f32 %v1006, %v631
      %v1117 = vmul.f32 %v1009, %v631
      %v1118 = vmul.f32 %v1012, %v631
      %v1119 = vmul.f32 %v1015, %v631
      %v1120 = vmul.f32 %v1018, %v631
      %v1121 = vmul.f32 %v1021, %v631
      %v1122 = vmul.f32 %v1024, %v631
      %v1123 = vmul.f32 %v1027, %v631
      %v1124 = vmul.f32 %v1030, %v631
      %v1125 = vmul.f32 %v1033, %v631
      %v1126 = vmul.f32 %v1036, %v631
      %v1127 = vmul.f32 %v1039, %v631
      %v1128 = vmul.f32 %v1042, %v631
      %v1129 = vmul.f32 %v1045, %v631
      %v1130 = vmul.f32 %v1048, %v631
      %v1131 = vmul.f32 %v1051, %v631
      %v1132 = vmul.f32 %v1054, %v631
      %v1133 = vmul.f32 %v1057, %v631
      %v1134 = vmul.f32 %v1060, %v631
      %v1135 = vmul.f32 %v1063, %v631
      %v1136 = vadd.f32 %v1064, 1e-05
      %v1137 = vadd.f32 %v1065, 1e-05
      %v1138 = vadd.f32 %v1066, 1e-05
      %v1139 = vadd.f32 %v1067, 1e-05
      %v1140 = vadd.f32 %v1068, 1e-05
      %v1141 = vadd.f32 %v1069, 1e-05
      %v1142 = vadd.f32 %v1070, 1e-05
      %v1143 = vadd.f32 %v1071, 1e-05
      %v1144 = vadd.f32 %v1072, 1e-05
      %v1145 = vadd.f32 %v1073, 1e-05
      %v1146 = vadd.f32 %v1074, 1e-05
      %v1147 = vadd.f32 %v1075, 1e-05
      %v1148 = vadd.f32 %v1076, 1e-05
      %v1149 = vadd.f32 %v1077, 1e-05
      %v1150 = vadd.f32 %v1078, 1e-05
      %v1151 = vadd.f32 %v1079, 1e-05
      %v1152 = vadd.f32 %v1080, 1e-05
      %v1153 = vadd.f32 %v1081, 1e-05
      %v1154 = vadd.f32 %v1082, 1e-05
      %v1155 = vadd.f32 %v1083, 1e-05
      %v1156 = vadd.f32 %v1084, 1e-05
      %v1157 = vadd.f32 %v1085, 1e-05
      %v1158 = vadd.f32 %v1086, 1e-05
      %v1159 = vadd.f32 %v1087, 1e-05
      %v1160 = vadd.f32 %v1088, 1e-05
      %v1161 = vadd.f32 %v1089, 1e-05
      %v1162 = vadd.f32 %v1090, 1e-05
      %v1163 = vadd.f32 %v1091, 1e-05
      %v1164 = vadd.f32 %v1092, 1e-05
      %v1165 = vadd.f32 %v1093, 1e-05
      %v1166 = vadd.f32 %v1094, 1e-05
      %v1167 = vadd.f32 %v1095, 1e-05
      %v1168 = vadd.f32 %v1096, 1e-05
      %v1169 = vadd.f32 %v1097, 1e-05
      %v1170 = vadd.f32 %v1098, 1e-05
      %v1171 = vadd.f32 %v1099, 1e-05
      %v1172 = vadd.f32 %v1100, 1e-05
      %v1173 = vadd.f32 %v1101, 1e-05
      %v1174 = vadd.f32 %v1102, 1e-05
      %v1175 = vadd.f32 %v1103, 1e-05
      %v1176 = vadd.f32 %v1104, 1e-05
      %v1177 = vadd.f32 %v1105, 1e-05
      %v1178 = vadd.f32 %v1106, 1e-05
      %v1179 = vadd.f32 %v1107, 1e-05
      %v1180 = vadd.f32 %v1108, 1e-05
      %v1181 = vadd.f32 %v1109, 1e-05
      %v1182 = vadd.f32 %v1110, 1e-05
      %v1183 = vadd.f32 %v1111, 1e-05
      %v1184 = vadd.f32 %v1112, 1e-05
      %v1185 = vadd.f32 %v1113, 1e-05
      %v1186 = vadd.f32 %v1114, 1e-05
      %v1187 = vadd.f32 %v1115, 1e-05
      %v1188 = vadd.f32 %v1116, 1e-05
      %v1189 = vadd.f32 %v1117, 1e-05
      %v1190 = vadd.f32 %v1118, 1e-05
      %v1191 = vadd.f32 %v1119, 1e-05
      %v1192 = vadd.f32 %v1120, 1e-05
      %v1193 = vadd.f32 %v1121, 1e-05
      %v1194 = vadd.f32 %v1122, 1e-05
      %v1195 = vadd.f32 %v1123, 1e-05
      %v1196 = vadd.f32 %v1124, 1e-05
      %v1197 = vadd.f32 %v1125, 1e-05
      %v1198 = vadd.f32 %v1126, 1e-05
      %v1199 = vadd.f32 %v1127, 1e-05
      %v1200 = vadd.f32 %v1128, 1e-05
      %v1201 = vadd.f32 %v1129, 1e-05
      %v1202 = vadd.f32 %v1130, 1e-05
      %v1203 = vadd.f32 %v1131, 1e-05
      %v1204 = vadd.f32 %v1132, 1e-05
      %v1205 = vadd.f32 %v1133, 1e-05
      %v1206 = vadd.f32 %v1134, 1e-05
      %v1207 = vadd.f32 %v1135, 1e-05
      %v1208 = vrsqrt.pop %v1136
      %v1209 = vmul.f32 %v1208, %v1136
      %v1210 = vmul.f32 %v1209, %v1208
      %v1211 = vmul.f32 0.5, %v1210
      %v1212 = vsub.f32 1.5, %v1211
      %v1213 = vmul.f32 %v1208, %v1212
      %vm1214 = vweird.f32 %v1136
      %vm1215 = vweird.f32 %v1208
      %vm1216 = vmor %vm1214, %vm1215
      %v1217 = vsel %vm1216, %v1208, %v1213
      %v1218 = vrsqrt.pop %v1137
      %v1219 = vmul.f32 %v1218, %v1137
      %v1220 = vmul.f32 %v1219, %v1218
      %v1221 = vmul.f32 0.5, %v1220
      %v1222 = vsub.f32 1.5, %v1221
      %v1223 = vmul.f32 %v1218, %v1222
      %vm1224 = vweird.f32 %v1137
      %vm1225 = vweird.f32 %v1218
      %vm1226 = vmor %vm1224, %vm1225
      %v1227 = vsel %vm1226, %v1218, %v1223
      %v1228 = vrsqrt.pop %v1138
      %v1229 = vmul.f32 %v1228, %v1138
      %v1230 = vmul.f32 %v1229, %v1228
      %v1231 = vmul.f32 0.5, %v1230
      %v1232 = vsub.f32 1.5, %v1231
      %v1233 = vmul.f32 %v1228, %v1232
      %vm1234 = vweird.f32 %v1138
      %vm1235 = vweird.f32 %v1228
      %vm1236 = vmor %vm1234, %vm1235
      %v1237 = vsel %vm1236, %v1228, %v1233
      %v1238 = vrsqrt.pop %v1139
      %v1239 = vmul.f32 %v1238, %v1139
      %v1240 = vmul.f32 %v1239, %v1238
      %v1241 = vmul.f32 0.5, %v1240
      %v1242 = vsub.f32 1.5, %v1241
      %v1243 = vmul.f32 %v1238, %v1242
      %vm1244 = vweird.f32 %v1139
      %vm1245 = vweird.f32 %v1238
      %vm1246 = vmor %vm1244, %vm1245
      %v1247 = vsel %vm1246, %v1238, %v1243
      %v1248 = vrsqrt.pop %v1140
      %v1249 = vmul.f32 %v1248, %v1140
      %v1250 = vmul.f32 %v1249, %v1248
      %v1251 = vmul.f32 0.5, %v1250
      %v1252 = vsub.f32 1.5, %v1251
      %v1253 = vmul.f32 %v1248, %v1252
      %vm1254 = vweird.f32 %v1140
      %vm1255 = vweird.f32 %v1248
      %vm1256 = vmor %vm1254, %vm1255
      %v1257 = vsel %vm1256, %v1248, %v1253
      %v1258 = vrsqrt.pop %v1141
      %v1259 = vmul.f32 %v1258, %v1141
      %v1260 = vmul.f32 %v1259, %v1258
      %v1261 = vmul.f32 0.5, %v1260
      %v1262 = vsub.f32 1.5, %v1261
      %v1263 = vmul.f32 %v1258, %v1262
      %vm1264 = vweird.f32 %v1141
      %vm1265 = vweird.f32 %v1258
      %vm1266 = vmor %vm1264, %vm1265
      %v1267 = vsel %vm1266, %v1258, %v1263
      %v1268 = vrsqrt.pop %v1142
      %v1269 = vmul.f32 %v1268, %v1142
      %v1270 = vmul.f32 %v1269, %v1268
      %v1271 = vmul.f32 0.5, %v1270
      %v1272 = vsub.f32 1.5, %v1271
      %v1273 = vmul.f32 %v1268, %v1272
      %vm1274 = vweird.f32 %v1142
      %vm1275 = vweird.f32 %v1268
      %vm1276 = vmor %vm1274, %vm1275
      %v1277 = vsel %vm1276, %v1268, %v1273
      %v1278 = vrsqrt.pop %v1143
      %v1279 = vmul.f32 %v1278, %v1143
      %v1280 = vmul.f32 %v1279, %v1278
      %v1281 = vmul.f32 0.5, %v1280
      %v1282 = vsub.f32 1.5, %v1281
      %v1283 = vmul.f32 %v1278, %v1282
      %vm1284 = vweird.f32 %v1143
      %vm1285 = vweird.f32 %v1278
      %vm1286 = vmor %vm1284, %vm1285
      %v1287 = vsel %vm1286, %v1278, %v1283
      %v1288 = vrsqrt.pop %v1144
      %v1289 = vmul.f32 %v1288, %v1144
      %v1290 = vmul.f32 %v1289, %v1288
      %v1291 = vmul.f32 0.5, %v1290
      %v1292 = vsub.f32 1.5, %v1291
      %v1293 = vmul.f32 %v1288, %v1292
      %vm1294 = vweird.f32 %v1144
      %vm1295 = vweird.f32 %v1288
      %vm1296 = vmor %vm1294, %vm1295
      %v1297 = vsel %vm1296, %v1288, %v1293
      %v1298 = vrsqrt.pop %v1145
      %v1299 = vmul.f32 %v1298, %v1145
      %v1300 = vmul.f32 %v1299, %v1298
      %v1301 = vmul.f32 0.5, %v1300
      %v1302 = vsub.f32 1.5, %v1301
      %v1303 = vmul.f32 %v1298, %v1302
      %vm1304 = vweird.f32 %v1145
      %vm1305 = vweird.f32 %v1298
      %vm1306 = vmor %vm1304, %vm1305
      %v1307 = vsel %vm1306, %v1298, %v1303
      %v1308 = vrsqrt.pop %v1146
      %v1309 = vmul.f32 %v1308, %v1146
      %v1310 = vmul.f32 %v1309, %v1308
      %v1311 = vmul.f32 0.5, %v1310
      %v1312 = vsub.f32 1.5, %v1311
      %v1313 = vmul.f32 %v1308, %v1312
      %vm1314 = vweird.f32 %v1146
      %vm1315 = vweird.f32 %v1308
      %vm1316 = vmor %vm1314, %vm1315
      %v1317 = vsel %vm1316, %v1308, %v1313
      %v1318 = vrsqrt.pop %v1147
      %v1319 = vmul.f32 %v1318, %v1147
      %v1320 = vmul.f32 %v1319, %v1318
      %v1321 = vmul.f32 0.5, %v1320
      %v1322 = vsub.f32 1.5, %v1321
      %v1323 = vmul.f32 %v1318, %v1322
      %vm1324 = vweird.f32 %v1147
      %vm1325 = vweird.f32 %v1318
      %vm1326 = vmor %vm1324, %vm1325
      %v1327 = vsel %vm1326, %v1318, %v1323
      %v1328 = vrsqrt.pop %v1148
      %v1329 = vmul.f32 %v1328, %v1148
      %v1330 = vmul.f32 %v1329, %v1328
      %v1331 = vmul.f32 0.5, %v1330
      %v1332 = vsub.f32 1.5, %v1331
      %v1333 = vmul.f32 %v1328, %v1332
      %vm1334 = vweird.f32 %v1148
      %vm1335 = vweird.f32 %v1328
      %vm1336 = vmor %vm1334, %vm1335
      %v1337 = vsel %vm1336, %v1328, %v1333
      %v1338 = vrsqrt.pop %v1149
      %v1339 = vmul.f32 %v1338, %v1149
      %v1340 = vmul.f32 %v1339, %v1338
      %v1341 = vmul.f32 0.5, %v1340
      %v1342 = vsub.f32 1.5, %v1341
      %v1343 = vmul.f32 %v1338, %v1342
      %vm1344 = vweird.f32 %v1149
      %vm1345 = vweird.f32 %v1338
      %vm1346 = vmor %vm1344, %vm1345
      %v1347 = vsel %vm1346, %v1338, %v1343
      %v1348 = vrsqrt.pop %v1150
      %v1349 = vmul.f32 %v1348, %v1150
      %v1350 = vmul.f32 %v1349, %v1348
      %v1351 = vmul.f32 0.5, %v1350
      %v1352 = vsub.f32 1.5, %v1351
      %v1353 = vmul.f32 %v1348, %v1352
      %vm1354 = vweird.f32 %v1150
      %vm1355 = vweird.f32 %v1348
      %vm1356 = vmor %vm1354, %vm1355
      %v1357 = vsel %vm1356, %v1348, %v1353
      %v1358 = vrsqrt.pop %v1151
      %v1359 = vmul.f32 %v1358, %v1151
      %v1360 = vmul.f32 %v1359, %v1358
      %v1361 = vmul.f32 0.5, %v1360
      %v1362 = vsub.f32 1.5, %v1361
      %v1363 = vmul.f32 %v1358, %v1362
      %vm1364 = vweird.f32 %v1151
      %vm1365 = vweird.f32 %v1358
      %vm1366 = vmor %vm1364, %vm1365
      %v1367 = vsel %vm1366, %v1358, %v1363
      %v1368 = vrsqrt.pop %v1152
      %v1369 = vmul.f32 %v1368, %v1152
      %v1370 = vmul.f32 %v1369, %v1368
      %v1371 = vmul.f32 0.5, %v1370
      %v1372 = vsub.f32 1.5, %v1371
      %v1373 = vmul.f32 %v1368, %v1372
      %vm1374 = vweird.f32 %v1152
      %vm1375 = vweird.f32 %v1368
      %vm1376 = vmor %vm1374, %vm1375
      %v1377 = vsel %vm1376, %v1368, %v1373
      %v1378 = vrsqrt.pop %v1153
      %v1379 = vmul.f32 %v1378, %v1153
      %v1380 = vmul.f32 %v1379, %v1378
      %v1381 = vmul.f32 0.5, %v1380
      %v1382 = vsub.f32 1.5, %v1381
      %v1383 = vmul.f32 %v1378, %v1382
      %vm1384 = vweird.f32 %v1153
      %vm1385 = vweird.f32 %v1378
      %vm1386 = vmor %vm1384, %vm1385
      %v1387 = vsel %vm1386, %v1378, %v1383
      %v1388 = vrsqrt.pop %v1154
      %v1389 = vmul.f32 %v1388, %v1154
      %v1390 = vmul.f32 %v1389, %v1388
      %v1391 = vmul.f32 0.5, %v1390
      %v1392 = vsub.f32 1.5, %v1391
      %v1393 = vmul.f32 %v1388, %v1392
      %vm1394 = vweird.f32 %v1154
      %vm1395 = vweird.f32 %v1388
      %vm1396 = vmor %vm1394, %vm1395
      %v1397 = vsel %vm1396, %v1388, %v1393
      %v1398 = vrsqrt.pop %v1155
      %v1399 = vmul.f32 %v1398, %v1155
      %v1400 = vmul.f32 %v1399, %v1398
      %v1401 = vmul.f32 0.5, %v1400
      %v1402 = vsub.f32 1.5, %v1401
      %v1403 = vmul.f32 %v1398, %v1402
      %vm1404 = vweird.f32 %v1155
      %vm1405 = vweird.f32 %v1398
      %vm1406 = vmor %vm1404, %vm1405
      %v1407 = vsel %vm1406, %v1398, %v1403
      %v1408 = vrsqrt.pop %v1156
      %v1409 = vmul.f32 %v1408, %v1156
      %v1410 = vmul.f32 %v1409, %v1408
      %v1411 = vmul.f32 0.5, %v1410
      %v1412 = vsub.f32 1.5, %v1411
      %v1413 = vmul.f32 %v1408, %v1412
      %vm1414 = vweird.f32 %v1156
      %vm1415 = vweird.f32 %v1408
      %vm1416 = vmor %vm1414, %vm1415
      %v1417 = vsel %vm1416, %v1408, %v1413
      %v1418 = vrsqrt.pop %v1157
      %v1419 = vmul.f32 %v1418, %v1157
      %v1420 = vmul.f32 %v1419, %v1418
      %v1421 = vmul.f32 0.5, %v1420
      %v1422 = vsub.f32 1.5, %v1421
      %v1423 = vmul.f32 %v1418, %v1422
      %vm1424 = vweird.f32 %v1157
      %vm1425 = vweird.f32 %v1418
      %vm1426 = vmor %vm1424, %vm1425
      %v1427 = vsel %vm1426, %v1418, %v1423
      %v1428 = vrsqrt.pop %v1158
      %v1429 = vmul.f32 %v1428, %v1158
      %v1430 = vmul.f32 %v1429, %v1428
      %v1431 = vmul.f32 0.5, %v1430
      %v1432 = vsub.f32 1.5, %v1431
      %v1433 = vmul.f32 %v1428, %v1432
      %vm1434 = vweird.f32 %v1158
      %vm1435 = vweird.f32 %v1428
      %vm1436 = vmor %vm1434, %vm1435
      %v1437 = vsel %vm1436, %v1428, %v1433
      %v1438 = vrsqrt.pop %v1159
      %v1439 = vmul.f32 %v1438, %v1159
      %v1440 = vmul.f32 %v1439, %v1438
      %v1441 = vmul.f32 0.5, %v1440
      %v1442 = vsub.f32 1.5, %v1441
      %v1443 = vmul.f32 %v1438, %v1442
      %vm1444 = vweird.f32 %v1159
      %vm1445 = vweird.f32 %v1438
      %vm1446 = vmor %vm1444, %vm1445
      %v1447 = vsel %vm1446, %v1438, %v1443
      %v1448 = vrsqrt.pop %v1160
      %v1449 = vmul.f32 %v1448, %v1160
      %v1450 = vmul.f32 %v1449, %v1448
      %v1451 = vmul.f32 0.5, %v1450
      %v1452 = vsub.f32 1.5, %v1451
      %v1453 = vmul.f32 %v1448, %v1452
      %vm1454 = vweird.f32 %v1160
      %vm1455 = vweird.f32 %v1448
      %vm1456 = vmor %vm1454, %vm1455
      %v1457 = vsel %vm1456, %v1448, %v1453
      %v1458 = vrsqrt.pop %v1161
      %v1459 = vmul.f32 %v1458, %v1161
      %v1460 = vmul.f32 %v1459, %v1458
      %v1461 = vmul.f32 0.5, %v1460
      %v1462 = vsub.f32 1.5, %v1461
      %v1463 = vmul.f32 %v1458, %v1462
      %vm1464 = vweird.f32 %v1161
      %vm1465 = vweird.f32 %v1458
      %vm1466 = vmor %vm1464, %vm1465
      %v1467 = vsel %vm1466, %v1458, %v1463
      %v1468 = vrsqrt.pop %v1162
      %v1469 = vmul.f32 %v1468, %v1162
      %v1470 = vmul.f32 %v1469, %v1468
      %v1471 = vmul.f32 0.5, %v1470
      %v1472 = vsub.f32 1.5, %v1471
      %v1473 = vmul.f32 %v1468, %v1472
      %vm1474 = vweird.f32 %v1162
      %vm1475 = vweird.f32 %v1468
      %vm1476 = vmor %vm1474, %vm1475
      %v1477 = vsel %vm1476, %v1468, %v1473
      %v1478 = vrsqrt.pop %v1163
      %v1479 = vmul.f32 %v1478, %v1163
      %v1480 = vmul.f32 %v1479, %v1478
      %v1481 = vmul.f32 0.5, %v1480
      %v1482 = vsub.f32 1.5, %v1481
      %v1483 = vmul.f32 %v1478, %v1482
      %vm1484 = vweird.f32 %v1163
      %vm1485 = vweird.f32 %v1478
      %vm1486 = vmor %vm1484, %vm1485
      %v1487 = vsel %vm1486, %v1478, %v1483
      %v1488 = vrsqrt.pop %v1164
      %v1489 = vmul.f32 %v1488, %v1164
      %v1490 = vmul.f32 %v1489, %v1488
      %v1491 = vmul.f32 0.5, %v1490
      %v1492 = vsub.f32 1.5, %v1491
      %v1493 = vmul.f32 %v1488, %v1492
      %vm1494 = vweird.f32 %v1164
      %vm1495 = vweird.f32 %v1488
      %vm1496 = vmor %vm1494, %vm1495
      %v1497 = vsel %vm1496, %v1488, %v1493
      %v1498 = vrsqrt.pop %v1165
      %v1499 = vmul.f32 %v1498, %v1165
      %v1500 = vmul.f32 %v1499, %v1498
      %v1501 = vmul.f32 0.5, %v1500
      %v1502 = vsub.f32 1.5, %v1501
      %v1503 = vmul.f32 %v1498, %v1502
      %vm1504 = vweird.f32 %v1165
      %vm1505 = vweird.f32 %v1498
      %vm1506 = vmor %vm1504, %vm1505
      %v1507 = vsel %vm1506, %v1498, %v1503
      %v1508 = vrsqrt.pop %v1166
      %v1509 = vmul.f32 %v1508, %v1166
      %v1510 = vmul.f32 %v1509, %v1508
      %v1511 = vmul.f32 0.5, %v1510
      %v1512 = vsub.f32 1.5, %v1511
      %v1513 = vmul.f32 %v1508, %v1512
      %vm1514 = vweird.f32 %v1166
      %vm1515 = vweird.f32 %v1508
      %vm1516 = vmor %vm1514, %vm1515
      %v1517 = vsel %vm1516, %v1508, %v1513
      %v1518 = vrsqrt.pop %v1167
      %v1519 = vmul.f32 %v1518, %v1167
      %v1520 = vmul.f32 %v1519, %v1518
      %v1521 = vmul.f32 0.5, %v1520
      %v1522 = vsub.f32 1.5, %v1521
      %v1523 = vmul.f32 %v1518, %v1522
      %vm1524 = vweird.f32 %v1167
      %vm1525 = vweird.f32 %v1518
      %vm1526 = vmor %vm1524, %vm1525
      %v1527 = vsel %vm1526, %v1518, %v1523
      %v1528 = vrsqrt.pop %v1168
      %v1529 = vmul.f32 %v1528, %v1168
      %v1530 = vmul.f32 %v1529, %v1528
      %v1531 = vmul.f32 0.5, %v1530
      %v1532 = vsub.f32 1.5, %v1531
      %v1533 = vmul.f32 %v1528, %v1532
      %vm1534 = vweird.f32 %v1168
      %vm1535 = vweird.f32 %v1528
      %vm1536 = vmor %vm1534, %vm1535
      %v1537 = vsel %vm1536, %v1528, %v1533
      %v1538 = vrsqrt.pop %v1169
      %v1539 = vmul.f32 %v1538, %v1169
      %v1540 = vmul.f32 %v1539, %v1538
      %v1541 = vmul.f32 0.5, %v1540
      %v1542 = vsub.f32 1.5, %v1541
      %v1543 = vmul.f32 %v1538, %v1542
      %vm1544 = vweird.f32 %v1169
      %vm1545 = vweird.f32 %v1538
      %vm1546 = vmor %vm1544, %vm1545
      %v1547 = vsel %vm1546, %v1538, %v1543
      %v1548 = vrsqrt.pop %v1170
      %v1549 = vmul.f32 %v1548, %v1170
      %v1550 = vmul.f32 %v1549, %v1548
      %v1551 = vmul.f32 0.5, %v1550
      %v1552 = vsub.f32 1.5, %v1551
      %v1553 = vmul.f32 %v1548, %v1552
      %vm1554 = vweird.f32 %v1170
      %vm1555 = vweird.f32 %v1548
      %vm1556 = vmor %vm1554, %vm1555
      %v1557 = vsel %vm1556, %v1548, %v1553
      %v1558 = vrsqrt.pop %v1171
      %v1559 = vmul.f32 %v1558, %v1171
      %v1560 = vmul.f32 %v1559, %v1558
      %v1561 = vmul.f32 0.5, %v1560
      %v1562 = vsub.f32 1.5, %v1561
      %v1563 = vmul.f32 %v1558, %v1562
      %vm1564 = vweird.f32 %v1171
      %vm1565 = vweird.f32 %v1558
      %vm1566 = vmor %vm1564, %vm1565
      %v1567 = vsel %vm1566, %v1558, %v1563
      %v1568 = vrsqrt.pop %v1172
      %v1569 = vmul.f32 %v1568, %v1172
      %v1570 = vmul.f32 %v1569, %v1568
      %v1571 = vmul.f32 0.5, %v1570
      %v1572 = vsub.f32 1.5, %v1571
      %v1573 = vmul.f32 %v1568, %v1572
      %vm1574 = vweird.f32 %v1172
      %vm1575 = vweird.f32 %v1568
      %vm1576 = vmor %vm1574, %vm1575
      %v1577 = vsel %vm1576, %v1568, %v1573
      %v1578 = vrsqrt.pop %v1173
      %v1579 = vmul.f32 %v1578, %v1173
      %v1580 = vmul.f32 %v1579, %v1578
      %v1581 = vmul.f32 0.5, %v1580
      %v1582 = vsub.f32 1.5, %v1581
      %v1583 = vmul.f32 %v1578, %v1582
      %vm1584 = vweird.f32 %v1173
      %vm1585 = vweird.f32 %v1578
      %vm1586 = vmor %vm1584, %vm1585
      %v1587 = vsel %vm1586, %v1578, %v1583
      %v1588 = vrsqrt.pop %v1174
      %v1589 = vmul.f32 %v1588, %v1174
      %v1590 = vmul.f32 %v1589, %v1588
      %v1591 = vmul.f32 0.5, %v1590
      %v1592 = vsub.f32 1.5, %v1591
      %v1593 = vmul.f32 %v1588, %v1592
      %vm1594 = vweird.f32 %v1174
      %vm1595 = vweird.f32 %v1588
      %vm1596 = vmor %vm1594, %vm1595
      %v1597 = vsel %vm1596, %v1588, %v1593
      %v1598 = vrsqrt.pop %v1175
      %v1599 = vmul.f32 %v1598, %v1175
      %v1600 = vmul.f32 %v1599, %v1598
      %v1601 = vmul.f32 0.5, %v1600
      %v1602 = vsub.f32 1.5, %v1601
      %v1603 = vmul.f32 %v1598, %v1602
      %vm1604 = vweird.f32 %v1175
      %vm1605 = vweird.f32 %v1598
      %vm1606 = vmor %vm1604, %vm1605
      %v1607 = vsel %vm1606, %v1598, %v1603
      %v1608 = vrsqrt.pop %v1176
      %v1609 = vmul.f32 %v1608, %v1176
      %v1610 = vmul.f32 %v1609, %v1608
      %v1611 = vmul.f32 0.5, %v1610
      %v1612 = vsub.f32 1.5, %v1611
      %v1613 = vmul.f32 %v1608, %v1612
      %vm1614 = vweird.f32 %v1176
      %vm1615 = vweird.f32 %v1608
      %vm1616 = vmor %vm1614, %vm1615
      %v1617 = vsel %vm1616, %v1608, %v1613
      %v1618 = vrsqrt.pop %v1177
      %v1619 = vmul.f32 %v1618, %v1177
      %v1620 = vmul.f32 %v1619, %v1618
      %v1621 = vmul.f32 0.5, %v1620
      %v1622 = vsub.f32 1.5, %v1621
      %v1623 = vmul.f32 %v1618, %v1622
      %vm1624 = vweird.f32 %v1177
      %vm1625 = vweird.f32 %v1618
      %vm1626 = vmor %vm1624, %vm1625
      %v1627 = vsel %vm1626, %v1618, %v1623
      %v1628 = vrsqrt.pop %v1178
      %v1629 = vmul.f32 %v1628, %v1178
      %v1630 = vmul.f32 %v1629, %v1628
      %v1631 = vmul.f32 0.5, %v1630
      %v1632 = vsub.f32 1.5, %v1631
      %v1633 = vmul.f32 %v1628, %v1632
      %vm1634 = vweird.f32 %v1178
      %vm1635 = vweird.f32 %v1628
      %vm1636 = vmor %vm1634, %vm1635
      %v1637 = vsel %vm1636, %v1628, %v1633
      %v1638 = vrsqrt.pop %v1179
      %v1639 = vmul.f32 %v1638, %v1179
      %v1640 = vmul.f32 %v1639, %v1638
      %v1641 = vmul.f32 0.5, %v1640
      %v1642 = vsub.f32 1.5, %v1641
      %v1643 = vmul.f32 %v1638, %v1642
      %vm1644 = vweird.f32 %v1179
      %vm1645 = vweird.f32 %v1638
      %vm1646 = vmor %vm1644, %vm1645
      %v1647 = vsel %vm1646, %v1638, %v1643
      %v1648 = vrsqrt.pop %v1180
      %v1649 = vmul.f32 %v1648, %v1180
      %v1650 = vmul.f32 %v1649, %v1648
      %v1651 = vmul.f32 0.5, %v1650
      %v1652 = vsub.f32 1.5, %v1651
      %v1653 = vmul.f32 %v1648, %v1652
      %vm1654 = vweird.f32 %v1180
      %vm1655 = vweird.f32 %v1648
      %vm1656 = vmor %vm1654, %vm1655
      %v1657 = vsel %vm1656, %v1648, %v1653
      %v1658 = vrsqrt.pop %v1181
      %v1659 = vmul.f32 %v1658, %v1181
      %v1660 = vmul.f32 %v1659, %v1658
      %v1661 = vmul.f32 0.5, %v1660
      %v1662 = vsub.f32 1.5, %v1661
      %v1663 = vmul.f32 %v1658, %v1662
      %vm1664 = vweird.f32 %v1181
      %vm1665 = vweird.f32 %v1658
      %vm1666 = vmor %vm1664, %vm1665
      %v1667 = vsel %vm1666, %v1658, %v1663
      %v1668 = vrsqrt.pop %v1182
      %v1669 = vmul.f32 %v1668, %v1182
      %v1670 = vmul.f32 %v1669, %v1668
      %v1671 = vmul.f32 0.5, %v1670
      %v1672 = vsub.f32 1.5, %v1671
      %v1673 = vmul.f32 %v1668, %v1672
      %vm1674 = vweird.f32 %v1182
      %vm1675 = vweird.f32 %v1668
      %vm1676 = vmor %vm1674, %vm1675
      %v1677 = vsel %vm1676, %v1668, %v1673
      %v1678 = vrsqrt.pop %v1183
      %v1679 = vmul.f32 %v1678, %v1183
      %v1680 = vmul.f32 %v1679, %v1678
      %v1681 = vmul.f32 0.5, %v1680
      %v1682 = vsub.f32 1.5, %v1681
      %v1683 = vmul.f32 %v1678, %v1682
      %vm1684 = vweird.f32 %v1183
      %vm1685 = vweird.f32 %v1678
      %vm1686 = vmor %vm1684, %vm1685
      %v1687 = vsel %vm1686, %v1678, %v1683
      %v1688 = vrsqrt.pop %v1184
      %v1689 = vmul.f32 %v1688, %v1184
      %v1690 = vmul.f32 %v1689, %v1688
      %v1691 = vmul.f32 0.5, %v1690
      %v1692 = vsub.f32 1.5, %v1691
      %v1693 = vmul.f32 %v1688, %v1692
      %vm1694 = vweird.f32 %v1184
      %vm1695 = vweird.f32 %v1688
      %vm1696 = vmor %vm1694, %vm1695
      %v1697 = vsel %vm1696, %v1688, %v1693
      %v1698 = vrsqrt.pop %v1185
      %v1699 = vmul.f32 %v1698, %v1185
      %v1700 = vmul.f32 %v1699, %v1698
      %v1701 = vmul.f32 0.5, %v1700
      %v1702 = vsub.f32 1.5, %v1701
      %v1703 = vmul.f32 %v1698, %v1702
      %vm1704 = vweird.f32 %v1185
      %vm1705 = vweird.f32 %v1698
      %vm1706 = vmor %vm1704, %vm1705
      %v1707 = vsel %vm1706, %v1698, %v1703
      %v1708 = vrsqrt.pop %v1186
      %v1709 = vmul.f32 %v1708, %v1186
      %v1710 = vmul.f32 %v1709, %v1708
      %v1711 = vmul.f32 0.5, %v1710
      %v1712 = vsub.f32 1.5, %v1711
      %v1713 = vmul.f32 %v1708, %v1712
      %vm1714 = vweird.f32 %v1186
      %vm1715 = vweird.f32 %v1708
      %vm1716 = vmor %vm1714, %vm1715
      %v1717 = vsel %vm1716, %v1708, %v1713
      %v1718 = vrsqrt.pop %v1187
      %v1719 = vmul.f32 %v1718, %v1187
      %v1720 = vmul.f32 %v1719, %v1718
      %v1721 = vmul.f32 0.5, %v1720
      %v1722 = vsub.f32 1.5, %v1721
      %v1723 = vmul.f32 %v1718, %v1722
      %vm1724 = vweird.f32 %v1187
      %vm1725 = vweird.f32 %v1718
      %vm1726 = vmor %vm1724, %vm1725
      %v1727 = vsel %vm1726, %v1718, %v1723
      %v1728 = vrsqrt.pop %v1188
      %v1729 = vmul.f32 %v1728, %v1188
      %v1730 = vmul.f32 %v1729, %v1728
      %v1731 = vmul.f32 0.5, %v1730
      %v1732 = vsub.f32 1.5, %v1731
      %v1733 = vmul.f32 %v1728, %v1732
      %vm1734 = vweird.f32 %v1188
      %vm1735 = vweird.f32 %v1728
      %vm1736 = vmor %vm1734, %vm1735
      %v1737 = vsel %vm1736, %v1728, %v1733
      %v1738 = vrsqrt.pop %v1189
      %v1739 = vmul.f32 %v1738, %v1189
      %v1740 = vmul.f32 %v1739, %v1738
      %v1741 = vmul.f32 0.5, %v1740
      %v1742 = vsub.f32 1.5, %v1741
      %v1743 = vmul.f32 %v1738, %v1742
      %vm1744 = vweird.f32 %v1189
      %vm1745 = vweird.f32 %v1738
      %vm1746 = vmor %vm1744, %vm1745
      %v1747 = vsel %vm1746, %v1738, %v1743
      %v1748 = vrsqrt.pop %v1190
      %v1749 = vmul.f32 %v1748, %v1190
      %v1750 = vmul.f32 %v1749, %v1748
      %v1751 = vmul.f32 0.5, %v1750
      %v1752 = vsub.f32 1.5, %v1751
      %v1753 = vmul.f32 %v1748, %v1752
      %vm1754 = vweird.f32 %v1190
      %vm1755 = vweird.f32 %v1748
      %vm1756 = vmor %vm1754, %vm1755
      %v1757 = vsel %vm1756, %v1748, %v1753
      %v1758 = vrsqrt.pop %v1191
      %v1759 = vmul.f32 %v1758, %v1191
      %v1760 = vmul.f32 %v1759, %v1758
      %v1761 = vmul.f32 0.5, %v1760
      %v1762 = vsub.f32 1.5, %v1761
      %v1763 = vmul.f32 %v1758, %v1762
      %vm1764 = vweird.f32 %v1191
      %vm1765 = vweird.f32 %v1758
      %vm1766 = vmor %vm1764, %vm1765
      %v1767 = vsel %vm1766, %v1758, %v1763
      %v1768 = vrsqrt.pop %v1192
      %v1769 = vmul.f32 %v1768, %v1192
      %v1770 = vmul.f32 %v1769, %v1768
      %v1771 = vmul.f32 0.5, %v1770
      %v1772 = vsub.f32 1.5, %v1771
      %v1773 = vmul.f32 %v1768, %v1772
      %vm1774 = vweird.f32 %v1192
      %vm1775 = vweird.f32 %v1768
      %vm1776 = vmor %vm1774, %vm1775
      %v1777 = vsel %vm1776, %v1768, %v1773
      %v1778 = vrsqrt.pop %v1193
      %v1779 = vmul.f32 %v1778, %v1193
      %v1780 = vmul.f32 %v1779, %v1778
      %v1781 = vmul.f32 0.5, %v1780
      %v1782 = vsub.f32 1.5, %v1781
      %v1783 = vmul.f32 %v1778, %v1782
      %vm1784 = vweird.f32 %v1193
      %vm1785 = vweird.f32 %v1778
      %vm1786 = vmor %vm1784, %vm1785
      %v1787 = vsel %vm1786, %v1778, %v1783
      %v1788 = vrsqrt.pop %v1194
      %v1789 = vmul.f32 %v1788, %v1194
      %v1790 = vmul.f32 %v1789, %v1788
      %v1791 = vmul.f32 0.5, %v1790
      %v1792 = vsub.f32 1.5, %v1791
      %v1793 = vmul.f32 %v1788, %v1792
      %vm1794 = vweird.f32 %v1194
      %vm1795 = vweird.f32 %v1788
      %vm1796 = vmor %vm1794, %vm1795
      %v1797 = vsel %vm1796, %v1788, %v1793
      %v1798 = vrsqrt.pop %v1195
      %v1799 = vmul.f32 %v1798, %v1195
      %v1800 = vmul.f32 %v1799, %v1798
      %v1801 = vmul.f32 0.5, %v1800
      %v1802 = vsub.f32 1.5, %v1801
      %v1803 = vmul.f32 %v1798, %v1802
      %vm1804 = vweird.f32 %v1195
      %vm1805 = vweird.f32 %v1798
      %vm1806 = vmor %vm1804, %vm1805
      %v1807 = vsel %vm1806, %v1798, %v1803
      %v1808 = vrsqrt.pop %v1196
      %v1809 = vmul.f32 %v1808, %v1196
      %v1810 = vmul.f32 %v1809, %v1808
      %v1811 = vmul.f32 0.5, %v1810
      %v1812 = vsub.f32 1.5, %v1811
      %v1813 = vmul.f32 %v1808, %v1812
      %vm1814 = vweird.f32 %v1196
      %vm1815 = vweird.f32 %v1808
      %vm1816 = vmor %vm1814, %vm1815
      %v1817 = vsel %vm1816, %v1808, %v1813
      %v1818 = vrsqrt.pop %v1197
      %v1819 = vmul.f32 %v1818, %v1197
      %v1820 = vmul.f32 %v1819, %v1818
      %v1821 = vmul.f32 0.5, %v1820
      %v1822 = vsub.f32 1.5, %v1821
      %v1823 = vmul.f32 %v1818, %v1822
      %vm1824 = vweird.f32 %v1197
      %vm1825 = vweird.f32 %v1818
      %vm1826 = vmor %vm1824, %vm1825
      %v1827 = vsel %vm1826, %v1818, %v1823
      %v1828 = vrsqrt.pop %v1198
      %v1829 = vmul.f32 %v1828, %v1198
      %v1830 = vmul.f32 %v1829, %v1828
      %v1831 = vmul.f32 0.5, %v1830
      %v1832 = vsub.f32 1.5, %v1831
      %v1833 = vmul.f32 %v1828, %v1832
      %vm1834 = vweird.f32 %v1198
      %vm1835 = vweird.f32 %v1828
      %vm1836 = vmor %vm1834, %vm1835
      %v1837 = vsel %vm1836, %v1828, %v1833
      %v1838 = vrsqrt.pop %v1199
      %v1839 = vmul.f32 %v1838, %v1199
      %v1840 = vmul.f32 %v1839, %v1838
      %v1841 = vmul.f32 0.5, %v1840
      %v1842 = vsub.f32 1.5, %v1841
      %v1843 = vmul.f32 %v1838, %v1842
      %vm1844 = vweird.f32 %v1199
      %vm1845 = vweird.f32 %v1838
      %vm1846 = vmor %vm1844, %vm1845
      %v1847 = vsel %vm1846, %v1838, %v1843
      %v1848 = vrsqrt.pop %v1200
      %v1849 = vmul.f32 %v1848, %v1200
      %v1850 = vmul.f32 %v1849, %v1848
      %v1851 = vmul.f32 0.5, %v1850
      %v1852 = vsub.f32 1.5, %v1851
      %v1853 = vmul.f32 %v1848, %v1852
      %vm1854 = vweird.f32 %v1200
      %vm1855 = vweird.f32 %v1848
      %vm1856 = vmor %vm1854, %vm1855
      %v1857 = vsel %vm1856, %v1848, %v1853
      %v1858 = vrsqrt.pop %v1201
      %v1859 = vmul.f32 %v1858, %v1201
      %v1860 = vmul.f32 %v1859, %v1858
      %v1861 = vmul.f32 0.5, %v1860
      %v1862 = vsub.f32 1.5, %v1861
      %v1863 = vmul.f32 %v1858, %v1862
      %vm1864 = vweird.f32 %v1201
      %vm1865 = vweird.f32 %v1858
      %vm1866 = vmor %vm1864, %vm1865
      %v1867 = vsel %vm1866, %v1858, %v1863
      %v1868 = vrsqrt.pop %v1202
      %v1869 = vmul.f32 %v1868, %v1202
      %v1870 = vmul.f32 %v1869, %v1868
      %v1871 = vmul.f32 0.5, %v1870
      %v1872 = vsub.f32 1.5, %v1871
      %v1873 = vmul.f32 %v1868, %v1872
      %vm1874 = vweird.f32 %v1202
      %vm1875 = vweird.f32 %v1868
      %vm1876 = vmor %vm1874, %vm1875
      %v1877 = vsel %vm1876, %v1868, %v1873
      %v1878 = vrsqrt.pop %v1203
      %v1879 = vmul.f32 %v1878, %v1203
      %v1880 = vmul.f32 %v1879, %v1878
      %v1881 = vmul.f32 0.5, %v1880
      %v1882 = vsub.f32 1.5, %v1881
      %v1883 = vmul.f32 %v1878, %v1882
      %vm1884 = vweird.f32 %v1203
      %vm1885 = vweird.f32 %v1878
      %vm1886 = vmor %vm1884, %vm1885
      %v1887 = vsel %vm1886, %v1878, %v1883
      %v1888 = vrsqrt.pop %v1204
      %v1889 = vmul.f32 %v1888, %v1204
      %v1890 = vmul.f32 %v1889, %v1888
      %v1891 = vmul.f32 0.5, %v1890
      %v1892 = vsub.f32 1.5, %v1891
      %v1893 = vmul.f32 %v1888, %v1892
      %vm1894 = vweird.f32 %v1204
      %vm1895 = vweird.f32 %v1888
      %vm1896 = vmor %vm1894, %vm1895
      %v1897 = vsel %vm1896, %v1888, %v1893
      %v1898 = vrsqrt.pop %v1205
      %v1899 = vmul.f32 %v1898, %v1205
      %v1900 = vmul.f32 %v1899, %v1898
      %v1901 = vmul.f32 0.5, %v1900
      %v1902 = vsub.f32 1.5, %v1901
      %v1903 = vmul.f32 %v1898, %v1902
      %vm1904 = vweird.f32 %v1205
      %vm1905 = vweird.f32 %v1898
      %vm1906 = vmor %vm1904, %vm1905
      %v1907 = vsel %vm1906, %v1898, %v1903
      %v1908 = vrsqrt.pop %v1206
      %v1909 = vmul.f32 %v1908, %v1206
      %v1910 = vmul.f32 %v1909, %v1908
      %v1911 = vmul.f32 0.5, %v1910
      %v1912 = vsub.f32 1.5, %v1911
      %v1913 = vmul.f32 %v1908, %v1912
      %vm1914 = vweird.f32 %v1206
      %vm1915 = vweird.f32 %v1908
      %vm1916 = vmor %vm1914, %vm1915
      %v1917 = vsel %vm1916, %v1908, %v1913
      %v1918 = vrsqrt.pop %v1207
      %v1919 = vmul.f32 %v1918, %v1207
      %v1920 = vmul.f32 %v1919, %v1918
      %v1921 = vmul.f32 0.5, %v1920
      %v1922 = vsub.f32 1.5, %v1921
      %v1923 = vmul.f32 %v1918, %v1922
      %vm1924 = vweird.f32 %v1207
      %vm1925 = vweird.f32 %v1918
      %vm1926 = vmor %vm1924, %vm1925
      %v1927 = vsel %vm1926, %v1918, %v1923
      %v1928 = vmul.f32 %v704, %v1217
      %v1929 = vmul.f32 %v705, %v1227
      %v1930 = vmul.f32 %v706, %v1237
      %v1931 = vmul.f32 %v707, %v1247
      %v1932 = vmul.f32 %v708, %v1257
      %v1933 = vmul.f32 %v709, %v1267
      %v1934 = vmul.f32 %v710, %v1277
      %v1935 = vmul.f32 %v711, %v1287
      %v1936 = vmul.f32 %v712, %v1297
      %v1937 = vmul.f32 %v713, %v1307
      %v1938 = vmul.f32 %v714, %v1317
      %v1939 = vmul.f32 %v715, %v1327
      %v1940 = vmul.f32 %v716, %v1337
      %v1941 = vmul.f32 %v717, %v1347
      %v1942 = vmul.f32 %v718, %v1357
      %v1943 = vmul.f32 %v719, %v1367
      %v1944 = vmul.f32 %v720, %v1377
      %v1945 = vmul.f32 %v721, %v1387
      %v1946 = vmul.f32 %v722, %v1397
      %v1947 = vmul.f32 %v723, %v1407
      %v1948 = vmul.f32 %v724, %v1417
      %v1949 = vmul.f32 %v725, %v1427
      %v1950 = vmul.f32 %v726, %v1437
      %v1951 = vmul.f32 %v727, %v1447
      %v1952 = vmul.f32 %v728, %v1457
      %v1953 = vmul.f32 %v729, %v1467
      %v1954 = vmul.f32 %v730, %v1477
      %v1955 = vmul.f32 %v731, %v1487
      %v1956 = vmul.f32 %v732, %v1497
      %v1957 = vmul.f32 %v733, %v1507
      %v1958 = vmul.f32 %v734, %v1517
      %v1959 = vmul.f32 %v735, %v1527
      %v1960 = vmul.f32 %v736, %v1537
      %v1961 = vmul.f32 %v737, %v1547
      %v1962 = vmul.f32 %v738, %v1557
      %v1963 = vmul.f32 %v739, %v1567
      %v1964 = vmul.f32 %v740, %v1577
      %v1965 = vmul.f32 %v741, %v1587
      %v1966 = vmul.f32 %v742, %v1597
      %v1967 = vmul.f32 %v743, %v1607
      %v1968 = vmul.f32 %v744, %v1617
      %v1969 = vmul.f32 %v745, %v1627
      %v1970 = vmul.f32 %v746, %v1637
      %v1971 = vmul.f32 %v747, %v1647
      %v1972 = vmul.f32 %v748, %v1657
      %v1973 = vmul.f32 %v749, %v1667
      %v1974 = vmul.f32 %v750, %v1677
      %v1975 = vmul.f32 %v751, %v1687
      %v1976 = vmul.f32 %v752, %v1697
      %v1977 = vmul.f32 %v753, %v1707
      %v1978 = vmul.f32 %v754, %v1717
      %v1979 = vmul.f32 %v755, %v1727
      %v1980 = vmul.f32 %v756, %v1737
      %v1981 = vmul.f32 %v757, %v1747
      %v1982 = vmul.f32 %v758, %v1757
      %v1983 = vmul.f32 %v759, %v1767
      %v1984 = vmul.f32 %v760, %v1777
      %v1985 = vmul.f32 %v761, %v1787
      %v1986 = vmul.f32 %v762, %v1797
      %v1987 = vmul.f32 %v763, %v1807
      %v1988 = vmul.f32 %v764, %v1817
      %v1989 = vmul.f32 %v765, %v1827
      %v1990 = vmul.f32 %v766, %v1837
      %v1991 = vmul.f32 %v767, %v1847
      %v1992 = vmul.f32 %v768, %v1857
      %v1993 = vmul.f32 %v769, %v1867
      %v1994 = vmul.f32 %v770, %v1877
      %v1995 = vmul.f32 %v771, %v1887
      %v1996 = vmul.f32 %v772, %v1897
      %v1997 = vmul.f32 %v773, %v1907
      %v1998 = vmul.f32 %v774, %v1917
      %v1999 = vmul.f32 %v775, %v1927
      %v2001 = vperm.slane %v406, 0
      %v2003 = vmul.f32 %v1928, %v2001
      %v2004 = vmul.f32 %v1929, %v2001
      %v2005 = vmul.f32 %v1930, %v2001
      %v2006 = vmul.f32 %v1931, %v2001
      %v2007 = vmul.f32 %v1932, %v2001
      %v2008 = vmul.f32 %v1933, %v2001
      %v2009 = vmul.f32 %v1934, %v2001
      %v2010 = vmul.f32 %v1935, %v2001
      %v2011 = vmul.f32 %v1936, %v2001
      %v2012 = vmul.f32 %v1937, %v2001
      %v2013 = vmul.f32 %v1938, %v2001
      %v2014 = vmul.f32 %v1939, %v2001
      %v2015 = vmul.f32 %v1940, %v2001
      %v2016 = vmul.f32 %v1941, %v2001
      %v2017 = vmul.f32 %v1942, %v2001
      %v2018 = vmul.f32 %v1943, %v2001
      %v2019 = vmul.f32 %v1944, %v2001
      %v2020 = vmul.f32 %v1945, %v2001
      %v2021 = vmul.f32 %v1946, %v2001
      %v2022 = vmul.f32 %v1947, %v2001
      %v2023 = vmul.f32 %v1948, %v2001
      %v2024 = vmul.f32 %v1949, %v2001
      %v2025 = vmul.f32 %v1950, %v2001
      %v2026 = vmul.f32 %v1951, %v2001
      %v2027 = vmul.f32 %v1952, %v2001
      %v2028 = vmul.f32 %v1953, %v2001
      %v2029 = vmul.f32 %v1954, %v2001
      %v2030 = vmul.f32 %v1955, %v2001
      %v2031 = vmul.f32 %v1956, %v2001
      %v2032 = vmul.f32 %v1957, %v2001
      %v2033 = vmul.f32 %v1958, %v2001
      %v2034 = vmul.f32 %v1959, %v2001
      %v2035 = vmul.f32 %v1960, %v2001
      %v2036 = vmul.f32 %v1961, %v2001
      %v2037 = vmul.f32 %v1962, %v2001
      %v2038 = vmul.f32 %v1963, %v2001
      %v2039 = vmul.f32 %v1964, %v2001
      %v2040 = vmul.f32 %v1965, %v2001
      %v2041 = vmul.f32 %v1966, %v2001
      %v2042 = vmul.f32 %v1967, %v2001
      %v2043 = vmul.f32 %v1968, %v2001
      %v2044 = vmul.f32 %v1969, %v2001
      %v2045 = vmul.f32 %v1970, %v2001
      %v2046 = vmul.f32 %v1971, %v2001
      %v2047 = vmul.f32 %v1972, %v2001
      %v2048 = vmul.f32 %v1973, %v2001
      %v2049 = vmul.f32 %v1974, %v2001
      %v2050 = vmul.f32 %v1975, %v2001
      %v2051 = vmul.f32 %v1976, %v2001
      %v2052 = vmul.f32 %v1977, %v2001
      %v2053 = vmul.f32 %v1978, %v2001
      %v2054 = vmul.f32 %v1979, %v2001
      %v2055 = vmul.f32 %v1980, %v2001
      %v2056 = vmul.f32 %v1981, %v2001
      %v2057 = vmul.f32 %v1982, %v2001
      %v2058 = vmul.f32 %v1983, %v2001
      %v2059 = vmul.f32 %v1984, %v2001
      %v2060 = vmul.f32 %v1985, %v2001
      %v2061 = vmul.f32 %v1986, %v2001
      %v2062 = vmul.f32 %v1987, %v2001
      %v2063 = vmul.f32 %v1988, %v2001
      %v2064 = vmul.f32 %v1989, %v2001
      %v2065 = vmul.f32 %v1990, %v2001
      %v2066 = vmul.f32 %v1991, %v2001
      %v2067 = vmul.f32 %v1992, %v2001
      %v2068 = vmul.f32 %v1993, %v2001
      %v2069 = vmul.f32 %v1994, %v2001
      %v2070 = vmul.f32 %v1995, %v2001
      %v2071 = vmul.f32 %v1996, %v2001
      %v2072 = vmul.f32 %v1997, %v2001
      %v2073 = vmul.f32 %v1998, %v2001
      %v2074 = vmul.f32 %v1999, %v2001
      %v2076 = vperm.slane %v407, 0
      %v2078 = vadd.f32 %v2003, %v2076
      %v2079 = vadd.f32 %v2004, %v2076
      %v2080 = vadd.f32 %v2005, %v2076
      %v2081 = vadd.f32 %v2006, %v2076
      %v2082 = vadd.f32 %v2007, %v2076
      %v2083 = vadd.f32 %v2008, %v2076
      %v2084 = vadd.f32 %v2009, %v2076
      %v2085 = vadd.f32 %v2010, %v2076
      %v2086 = vadd.f32 %v2011, %v2076
      %v2087 = vadd.f32 %v2012, %v2076
      %v2088 = vadd.f32 %v2013, %v2076
      %v2089 = vadd.f32 %v2014, %v2076
      %v2090 = vadd.f32 %v2015, %v2076
      %v2091 = vadd.f32 %v2016, %v2076
      %v2092 = vadd.f32 %v2017, %v2076
      %v2093 = vadd.f32 %v2018, %v2076
      %v2094 = vadd.f32 %v2019, %v2076
      %v2095 = vadd.f32 %v2020, %v2076
      %v2096 = vadd.f32 %v2021, %v2076
      %v2097 = vadd.f32 %v2022, %v2076
      %v2098 = vadd.f32 %v2023, %v2076
      %v2099 = vadd.f32 %v2024, %v2076
      %v2100 = vadd.f32 %v2025, %v2076
      %v2101 = vadd.f32 %v2026, %v2076
      %v2102 = vadd.f32 %v2027, %v2076
      %v2103 = vadd.f32 %v2028, %v2076
      %v2104 = vadd.f32 %v2029, %v2076
      %v2105 = vadd.f32 %v2030, %v2076
      %v2106 = vadd.f32 %v2031, %v2076
      %v2107 = vadd.f32 %v2032, %v2076
      %v2108 = vadd.f32 %v2033, %v2076
      %v2109 = vadd.f32 %v2034, %v2076
      %v2110 = vadd.f32 %v2035, %v2076
      %v2111 = vadd.f32 %v2036, %v2076
      %v2112 = vadd.f32 %v2037, %v2076
      %v2113 = vadd.f32 %v2038, %v2076
      %v2114 = vadd.f32 %v2039, %v2076
      %v2115 = vadd.f32 %v2040, %v2076
      %v2116 = vadd.f32 %v2041, %v2076
      %v2117 = vadd.f32 %v2042, %v2076
      %v2118 = vadd.f32 %v2043, %v2076
      %v2119 = vadd.f32 %v2044, %v2076
      %v2120 = vadd.f32 %v2045, %v2076
      %v2121 = vadd.f32 %v2046, %v2076
      %v2122 = vadd.f32 %v2047, %v2076
      %v2123 = vadd.f32 %v2048, %v2076
      %v2124 = vadd.f32 %v2049, %v2076
      %v2125 = vadd.f32 %v2050, %v2076
      %v2126 = vadd.f32 %v2051, %v2076
      %v2127 = vadd.f32 %v2052, %v2076
      %v2128 = vadd.f32 %v2053, %v2076
      %v2129 = vadd.f32 %v2054, %v2076
      %v2130 = vadd.f32 %v2055, %v2076
      %v2131 = vadd.f32 %v2056, %v2076
      %v2132 = vadd.f32 %v2057, %v2076
      %v2133 = vadd.f32 %v2058, %v2076
      %v2134 = vadd.f32 %v2059, %v2076
      %v2135 = vadd.f32 %v2060, %v2076
      %v2136 = vadd.f32 %v2061, %v2076
      %v2137 = vadd.f32 %v2062, %v2076
      %v2138 = vadd.f32 %v2063, %v2076
      %v2139 = vadd.f32 %v2064, %v2076
      %v2140 = vadd.f32 %v2065, %v2076
      %v2141 = vadd.f32 %v2066, %v2076
      %v2142 = vadd.f32 %v2067, %v2076
      %v2143 = vadd.f32 %v2068, %v2076
      %v2144 = vadd.f32 %v2069, %v2076
      %v2145 = vadd.f32 %v2070, %v2076
      %v2146 = vadd.f32 %v2071, %v2076
      %v2147 = vadd.f32 %v2072, %v2076
      %v2148 = vadd.f32 %v2073, %v2076
      %v2149 = vadd.f32 %v2074, %v2076
      %v2150 = vpack.c.bf16 %v2079, %v2078
      %v2151 = vpack.c.bf16 %v2081, %v2080
      %v2152 = vpack.c.bf16 %v2083, %v2082
      %v2153 = vpack.c.bf16 %v2085, %v2084
      %v2154 = vpack.c.bf16 %v2087, %v2086
      %v2155 = vpack.c.bf16 %v2089, %v2088
      %v2156 = vpack.c.bf16 %v2091, %v2090
      %v2157 = vpack.c.bf16 %v2093, %v2092
      %v2158 = vpack.c.bf16 %v2095, %v2094
      %v2159 = vpack.c.bf16 %v2097, %v2096
      %v2160 = vpack.c.bf16 %v2099, %v2098
      %v2161 = vpack.c.bf16 %v2101, %v2100
      %v2162 = vpack.c.bf16 %v2103, %v2102
      %v2163 = vpack.c.bf16 %v2105, %v2104
      %v2164 = vpack.c.bf16 %v2107, %v2106
      %v2165 = vpack.c.bf16 %v2109, %v2108
      %v2166 = vpack.c.bf16 %v2111, %v2110
      %v2167 = vpack.c.bf16 %v2113, %v2112
      %v2168 = vpack.c.bf16 %v2115, %v2114
      %v2169 = vpack.c.bf16 %v2117, %v2116
      %v2170 = vpack.c.bf16 %v2119, %v2118
      %v2171 = vpack.c.bf16 %v2121, %v2120
      %v2172 = vpack.c.bf16 %v2123, %v2122
      %v2173 = vpack.c.bf16 %v2125, %v2124
      %v2174 = vpack.c.bf16 %v2127, %v2126
      %v2175 = vpack.c.bf16 %v2129, %v2128
      %v2176 = vpack.c.bf16 %v2131, %v2130
      %v2177 = vpack.c.bf16 %v2133, %v2132
      %v2178 = vpack.c.bf16 %v2135, %v2134
      %v2179 = vpack.c.bf16 %v2137, %v2136
      %v2180 = vpack.c.bf16 %v2139, %v2138
      %v2181 = vpack.c.bf16 %v2141, %v2140
      %v2182 = vpack.c.bf16 %v2143, %v2142
      %v2183 = vpack.c.bf16 %v2145, %v2144
      %v2184 = vpack.c.bf16 %v2147, %v2146
      %v2185 = vpack.c.bf16 %v2149, %v2148
      %v2186 = vld [vmem:[%s3] sm:$0xf]
      %v2187 = vld [vmem:[%s3 + $0x4] sm:$0xf]
      %v2188 = vld [vmem:[%s3 + $0x8] sm:$0xf]
      %v2189 = vld [vmem:[%s3 + $0xc] sm:$0xf]
      %v2190 = vld [vmem:[%s4] sm:$0x1]
      %v2192 = vperm.slane %v2190, 0
      %v2198 = vunpack.c.l.b16 %v2186
      %v2199 = vunpack.c.l.b16 %v2187
      %v2200 = vunpack.c.l.b16 %v2188
      %v2201 = vunpack.c.l.b16 %v2189
      %v2202 = vpack.c.b16 %v2199, %v2198
      %v2203 = vpack.c.b16 %v2201, %v2200
      %v2207 = vsel %vm408, %v2150, 0
      %v2210 = vsel %vm408, %v2151, 0
      %v2213 = vsel %vm408, %v2152, 0
      %v2216 = vsel %vm408, %v2153, 0
      %v2219 = vsel %vm408, %v2154, 0
      %v2222 = vsel %vm408, %v2155, 0
      %v2225 = vsel %vm408, %v2156, 0
      %v2228 = vsel %vm408, %v2157, 0
      %v2231 = vsel %vm408, %v2158, 0
      %v2234 = vsel %vm408, %v2159, 0
      %v2237 = vsel %vm408, %v2160, 0
      %v2240 = vsel %vm408, %v2161, 0
      %v2243 = vsel %vm408, %v2162, 0
      %v2246 = vsel %vm408, %v2163, 0
      %v2249 = vsel %vm408, %v2164, 0
      %v2252 = vsel %vm408, %v2165, 0
      %v2255 = vsel %vm408, %v2166, 0
      %v2258 = vsel %vm408, %v2167, 0
      %v2261 = vsel %vm408, %v2168, 0
      %v2264 = vsel %vm408, %v2169, 0
      %v2267 = vsel %vm408, %v2170, 0
      %v2270 = vsel %vm408, %v2171, 0
      %v2273 = vsel %vm408, %v2172, 0
      %v2276 = vsel %vm408, %v2173, 0
      %v2279 = vsel %vm408, %v2174, 0
      %v2282 = vsel %vm408, %v2175, 0
      %v2285 = vsel %vm408, %v2176, 0
      %v2288 = vsel %vm408, %v2177, 0
      %v2291 = vsel %vm408, %v2178, 0
      %v2294 = vsel %vm408, %v2179, 0
      %v2297 = vsel %vm408, %v2180, 0
      %v2300 = vsel %vm408, %v2181, 0
      %v2303 = vsel %vm408, %v2182, 0
      %v2306 = vsel %vm408, %v2183, 0
      %v2309 = vsel %vm408, %v2184, 0
      %v2312 = vsel %vm408, %v2185, 0
      %2314 = vmatpush.bf16.msra.mxu0 0
      %2315 = vmatpush.bf16.msra.mxu0 0
      %2316 = vmatpush.bf16.msra.mxu0 0
      %2317 = vmatpush.bf16.msra.mxu0 0
      %2318 = vmatpush.bf16.msra.mxu0 0
      %2319 = vmatpush.bf16.msra.mxu0 0
      %2320 = vmatpush.bf16.msra.mxu0 %v2203
      %2321 = vmatpush.bf16.msra.mxu0 %v2202
      %2322 = vmatmul.bf16.gmra.mxu0 %v2207
      %v2323 = vpop.f32.mrf.mxu0
      %v2324 = vadd.f32 %v2192, %v2323
      %v2325 = vpop.f32.mrf.mxu0
      %v2326 = vadd.f32 %v2192, %v2325
      %2327 = vmatmul.bf16.gmra.mxu0 %v2210
      %v2328 = vpop.f32.mrf.mxu0
      %v2329 = vadd.f32 %v2192, %v2328
      %v2330 = vpop.f32.mrf.mxu0
      %v2331 = vadd.f32 %v2192, %v2330
      %2332 = vmatmul.bf16.gmra.mxu0 %v2213
      %v2333 = vpop.f32.mrf.mxu0
      %v2334 = vadd.f32 %v2192, %v2333
      %v2335 = vpop.f32.mrf.mxu0
      %v2336 = vadd.f32 %v2192, %v2335
      %2337 = vmatmul.bf16.gmra.mxu0 %v2216
      %v2338 = vpop.f32.mrf.mxu0
      %v2339 = vadd.f32 %v2192, %v2338
      %v2340 = vpop.f32.mrf.mxu0
      %v2341 = vadd.f32 %v2192, %v2340
      %2342 = vmatmul.bf16.gmra.mxu0 %v2219
      %v2343 = vpop.f32.mrf.mxu0
      %v2344 = vadd.f32 %v2192, %v2343
      %v2345 = vpop.f32.mrf.mxu0
      %v2346 = vadd.f32 %v2192, %v2345
      %2347 = vmatmul.bf16.gmra.mxu0 %v2222
      %v2348 = vpop.f32.mrf.mxu0
      %v2349 = vadd.f32 %v2192, %v2348
      %v2350 = vpop.f32.mrf.mxu0
      %v2351 = vadd.f32 %v2192, %v2350
      %2352 = vmatmul.bf16.gmra.mxu0 %v2225
      %v2353 = vpop.f32.mrf.mxu0
      %v2354 = vadd.f32 %v2192, %v2353
      %v2355 = vpop.f32.mrf.mxu0
      %v2356 = vadd.f32 %v2192, %v2355
      %2357 = vmatmul.bf16.gmra.mxu0 %v2228
      %v2358 = vpop.f32.mrf.mxu0
      %v2359 = vadd.f32 %v2192, %v2358
      %v2360 = vpop.f32.mrf.mxu0
      %v2361 = vadd.f32 %v2192, %v2360
      %2362 = vmatmul.bf16.gmra.mxu0 %v2231
      %v2363 = vpop.f32.mrf.mxu0
      %v2364 = vadd.f32 %v2192, %v2363
      %v2365 = vpop.f32.mrf.mxu0
      %v2366 = vadd.f32 %v2192, %v2365
      %2367 = vmatmul.bf16.gmra.mxu0 %v2234
      %v2368 = vpop.f32.mrf.mxu0
      %v2369 = vadd.f32 %v2192, %v2368
      %v2370 = vpop.f32.mrf.mxu0
      %v2371 = vadd.f32 %v2192, %v2370
      %2372 = vmatmul.bf16.gmra.mxu0 %v2237
      %v2373 = vpop.f32.mrf.mxu0
      %v2374 = vadd.f32 %v2192, %v2373
      %v2375 = vpop.f32.mrf.mxu0
      %v2376 = vadd.f32 %v2192, %v2375
      %2377 = vmatmul.bf16.gmra.mxu0 %v2240
      %v2378 = vpop.f32.mrf.mxu0
      %v2379 = vadd.f32 %v2192, %v2378
      %v2380 = vpop.f32.mrf.mxu0
      %v2381 = vadd.f32 %v2192, %v2380
      %2382 = vmatmul.bf16.gmra.mxu0 %v2243
      %v2383 = vpop.f32.mrf.mxu0
      %v2384 = vadd.f32 %v2192, %v2383
      %v2385 = vpop.f32.mrf.mxu0
      %v2386 = vadd.f32 %v2192, %v2385
      %2387 = vmatmul.bf16.gmra.mxu0 %v2246
      %v2388 = vpop.f32.mrf.mxu0
      %v2389 = vadd.f32 %v2192, %v2388
      %v2390 = vpop.f32.mrf.mxu0
      %v2391 = vadd.f32 %v2192, %v2390
      %2392 = vmatmul.bf16.gmra.mxu0 %v2249
      %v2393 = vpop.f32.mrf.mxu0
      %v2394 = vadd.f32 %v2192, %v2393
      %v2395 = vpop.f32.mrf.mxu0
      %v2396 = vadd.f32 %v2192, %v2395
      %2397 = vmatmul.bf16.gmra.mxu0 %v2252
      %v2398 = vpop.f32.mrf.mxu0
      %v2399 = vadd.f32 %v2192, %v2398
      %v2400 = vpop.f32.mrf.mxu0
      %v2401 = vadd.f32 %v2192, %v2400
      %2402 = vmatmul.bf16.gmra.mxu0 %v2255
      %v2403 = vpop.f32.mrf.mxu0
      %v2404 = vadd.f32 %v2192, %v2403
      %v2405 = vpop.f32.mrf.mxu0
      %v2406 = vadd.f32 %v2192, %v2405
      %2407 = vmatmul.bf16.gmra.mxu0 %v2258
      %v2408 = vpop.f32.mrf.mxu0
      %v2409 = vadd.f32 %v2192, %v2408
      %v2410 = vpop.f32.mrf.mxu0
      %v2411 = vadd.f32 %v2192, %v2410
      %2412 = vmatmul.bf16.gmra.mxu0 %v2261
      %v2413 = vpop.f32.mrf.mxu0
      %v2414 = vadd.f32 %v2192, %v2413
      %v2415 = vpop.f32.mrf.mxu0
      %v2416 = vadd.f32 %v2192, %v2415
      %2417 = vmatmul.bf16.gmra.mxu0 %v2264
      %v2418 = vpop.f32.mrf.mxu0
      %v2419 = vadd.f32 %v2192, %v2418
      %v2420 = vpop.f32.mrf.mxu0
      %v2421 = vadd.f32 %v2192, %v2420
      %2422 = vmatmul.bf16.gmra.mxu0 %v2267
      %v2423 = vpop.f32.mrf.mxu0
      %v2424 = vadd.f32 %v2192, %v2423
      %v2425 = vpop.f32.mrf.mxu0
      %v2426 = vadd.f32 %v2192, %v2425
      %2427 = vmatmul.bf16.gmra.mxu0 %v2270
      %v2428 = vpop.f32.mrf.mxu0
      %v2429 = vadd.f32 %v2192, %v2428
      %v2430 = vpop.f32.mrf.mxu0
      %v2431 = vadd.f32 %v2192, %v2430
      %2432 = vmatmul.bf16.gmra.mxu0 %v2273
      %v2433 = vpop.f32.mrf.mxu0
      %v2434 = vadd.f32 %v2192, %v2433
      %v2435 = vpop.f32.mrf.mxu0
      %v2436 = vadd.f32 %v2192, %v2435
      %2437 = vmatmul.bf16.gmra.mxu0 %v2276
      %v2438 = vpop.f32.mrf.mxu0
      %v2439 = vadd.f32 %v2192, %v2438
      %v2440 = vpop.f32.mrf.mxu0
      %v2441 = vadd.f32 %v2192, %v2440
      %2442 = vmatmul.bf16.gmra.mxu0 %v2279
      %v2443 = vpop.f32.mrf.mxu0
      %v2444 = vadd.f32 %v2192, %v2443
      %v2445 = vpop.f32.mrf.mxu0
      %v2446 = vadd.f32 %v2192, %v2445
      %2447 = vmatmul.bf16.gmra.mxu0 %v2282
      %v2448 = vpop.f32.mrf.mxu0
      %v2449 = vadd.f32 %v2192, %v2448
      %v2450 = vpop.f32.mrf.mxu0
      %v2451 = vadd.f32 %v2192, %v2450
      %2452 = vmatmul.bf16.gmra.mxu0 %v2285
      %v2453 = vpop.f32.mrf.mxu0
      %v2454 = vadd.f32 %v2192, %v2453
      %v2455 = vpop.f32.mrf.mxu0
      %v2456 = vadd.f32 %v2192, %v2455
      %2457 = vmatmul.bf16.gmra.mxu0 %v2288
      %v2458 = vpop.f32.mrf.mxu0
      %v2459 = vadd.f32 %v2192, %v2458
      %v2460 = vpop.f32.mrf.mxu0
      %v2461 = vadd.f32 %v2192, %v2460
      %2462 = vmatmul.bf16.gmra.mxu0 %v2291
      %v2463 = vpop.f32.mrf.mxu0
      %v2464 = vadd.f32 %v2192, %v2463
      %v2465 = vpop.f32.mrf.mxu0
      %v2466 = vadd.f32 %v2192, %v2465
      %2467 = vmatmul.bf16.gmra.mxu0 %v2294
      %v2468 = vpop.f32.mrf.mxu0
      %v2469 = vadd.f32 %v2192, %v2468
      %v2470 = vpop.f32.mrf.mxu0
      %v2471 = vadd.f32 %v2192, %v2470
      %2472 = vmatmul.bf16.gmra.mxu0 %v2297
      %v2473 = vpop.f32.mrf.mxu0
      %v2474 = vadd.f32 %v2192, %v2473
      %v2475 = vpop.f32.mrf.mxu0
      %v2476 = vadd.f32 %v2192, %v2475
      %2477 = vmatmul.bf16.gmra.mxu0 %v2300
      %v2478 = vpop.f32.mrf.mxu0
      %v2479 = vadd.f32 %v2192, %v2478
      %v2480 = vpop.f32.mrf.mxu0
      %v2481 = vadd.f32 %v2192, %v2480
      %2482 = vmatmul.bf16.gmra.mxu0 %v2303
      %v2483 = vpop.f32.mrf.mxu0
      %v2484 = vadd.f32 %v2192, %v2483
      %v2485 = vpop.f32.mrf.mxu0
      %v2486 = vadd.f32 %v2192, %v2485
      %2487 = vmatmul.bf16.gmra.mxu0 %v2306
      %v2488 = vpop.f32.mrf.mxu0
      %v2489 = vadd.f32 %v2192, %v2488
      %v2490 = vpop.f32.mrf.mxu0
      %v2491 = vadd.f32 %v2192, %v2490
      %2492 = vmatmul.bf16.gmra.mxu0 %v2309
      %v2493 = vpop.f32.mrf.mxu0
      %v2494 = vadd.f32 %v2192, %v2493
      %v2495 = vpop.f32.mrf.mxu0
      %v2496 = vadd.f32 %v2192, %v2495
      %2497 = vmatmul.bf16.gmra.mxu0 %v2312
      %v2498 = vpop.f32.mrf.mxu0
      %v2499 = vadd.f32 %v2192, %v2498
      %v2500 = vpop.f32.mrf.mxu0
      %v2501 = vadd.f32 %v2192, %v2500
      %2502 = vdwg.mxu0
      %v2503 = vadd.f32 %v2324, 3.0
      %v2504 = vadd.f32 %v2326, 3.0
      %v2505 = vadd.f32 %v2329, 3.0
      %v2506 = vadd.f32 %v2331, 3.0
      %v2507 = vadd.f32 %v2334, 3.0
      %v2508 = vadd.f32 %v2336, 3.0
      %v2509 = vadd.f32 %v2339, 3.0
      %v2510 = vadd.f32 %v2341, 3.0
      %v2511 = vadd.f32 %v2344, 3.0
      %v2512 = vadd.f32 %v2346, 3.0
      %v2513 = vadd.f32 %v2349, 3.0
      %v2514 = vadd.f32 %v2351, 3.0
      %v2515 = vadd.f32 %v2354, 3.0
      %v2516 = vadd.f32 %v2356, 3.0
      %v2517 = vadd.f32 %v2359, 3.0
      %v2518 = vadd.f32 %v2361, 3.0
      %v2519 = vadd.f32 %v2364, 3.0
      %v2520 = vadd.f32 %v2366, 3.0
      %v2521 = vadd.f32 %v2369, 3.0
      %v2522 = vadd.f32 %v2371, 3.0
      %v2523 = vadd.f32 %v2374, 3.0
      %v2524 = vadd.f32 %v2376, 3.0
      %v2525 = vadd.f32 %v2379, 3.0
      %v2526 = vadd.f32 %v2381, 3.0
      %v2527 = vadd.f32 %v2384, 3.0
      %v2528 = vadd.f32 %v2386, 3.0
      %v2529 = vadd.f32 %v2389, 3.0
      %v2530 = vadd.f32 %v2391, 3.0
      %v2531 = vadd.f32 %v2394, 3.0
      %v2532 = vadd.f32 %v2396, 3.0
      %v2533 = vadd.f32 %v2399, 3.0
      %v2534 = vadd.f32 %v2401, 3.0
      %v2535 = vadd.f32 %v2404, 3.0
      %v2536 = vadd.f32 %v2406, 3.0
      %v2537 = vadd.f32 %v2409, 3.0
      %v2538 = vadd.f32 %v2411, 3.0
      %v2539 = vadd.f32 %v2414, 3.0
      %v2540 = vadd.f32 %v2416, 3.0
      %v2541 = vadd.f32 %v2419, 3.0
      %v2542 = vadd.f32 %v2421, 3.0
      %v2543 = vadd.f32 %v2424, 3.0
      %v2544 = vadd.f32 %v2426, 3.0
      %v2545 = vadd.f32 %v2429, 3.0
      %v2546 = vadd.f32 %v2431, 3.0
      %v2547 = vadd.f32 %v2434, 3.0
      %v2548 = vadd.f32 %v2436, 3.0
      %v2549 = vadd.f32 %v2439, 3.0
      %v2550 = vadd.f32 %v2441, 3.0
      %v2551 = vadd.f32 %v2444, 3.0
      %v2552 = vadd.f32 %v2446, 3.0
      %v2553 = vadd.f32 %v2449, 3.0
      %v2554 = vadd.f32 %v2451, 3.0
      %v2555 = vadd.f32 %v2454, 3.0
      %v2556 = vadd.f32 %v2456, 3.0
      %v2557 = vadd.f32 %v2459, 3.0
      %v2558 = vadd.f32 %v2461, 3.0
      %v2559 = vadd.f32 %v2464, 3.0
      %v2560 = vadd.f32 %v2466, 3.0
      %v2561 = vadd.f32 %v2469, 3.0
      %v2562 = vadd.f32 %v2471, 3.0
      %v2563 = vadd.f32 %v2474, 3.0
      %v2564 = vadd.f32 %v2476, 3.0
      %v2565 = vadd.f32 %v2479, 3.0
      %v2566 = vadd.f32 %v2481, 3.0
      %v2567 = vadd.f32 %v2484, 3.0
      %v2568 = vadd.f32 %v2486, 3.0
      %v2569 = vadd.f32 %v2489, 3.0
      %v2570 = vadd.f32 %v2491, 3.0
      %v2571 = vadd.f32 %v2494, 3.0
      %v2572 = vadd.f32 %v2496, 3.0
      %v2573 = vadd.f32 %v2499, 3.0
      %v2574 = vadd.f32 %v2501, 3.0
      %v2575 = vmax.f32 %v2503, 0.0
      %v2576 = vmax.f32 %v2504, 0.0
      %v2577 = vmax.f32 %v2505, 0.0
      %v2578 = vmax.f32 %v2506, 0.0
      %v2579 = vmax.f32 %v2507, 0.0
      %v2580 = vmax.f32 %v2508, 0.0
      %v2581 = vmax.f32 %v2509, 0.0
      %v2582 = vmax.f32 %v2510, 0.0
      %v2583 = vmax.f32 %v2511, 0.0
      %v2584 = vmax.f32 %v2512, 0.0
      %v2585 = vmax.f32 %v2513, 0.0
      %v2586 = vmax.f32 %v2514, 0.0
      %v2587 = vmax.f32 %v2515, 0.0
      %v2588 = vmax.f32 %v2516, 0.0
      %v2589 = vmax.f32 %v2517, 0.0
      %v2590 = vmax.f32 %v2518, 0.0
      %v2591 = vmax.f32 %v2519, 0.0
      %v2592 = vmax.f32 %v2520, 0.0
      %v2593 = vmax.f32 %v2521, 0.0
      %v2594 = vmax.f32 %v2522, 0.0
      %v2595 = vmax.f32 %v2523, 0.0
      %v2596 = vmax.f32 %v2524, 0.0
      %v2597 = vmax.f32 %v2525, 0.0
      %v2598 = vmax.f32 %v2526, 0.0
      %v2599 = vmax.f32 %v2527, 0.0
      %v2600 = vmax.f32 %v2528, 0.0
      %v2601 = vmax.f32 %v2529, 0.0
      %v2602 = vmax.f32 %v2530, 0.0
      %v2603 = vmax.f32 %v2531, 0.0
      %v2604 = vmax.f32 %v2532, 0.0
      %v2605 = vmax.f32 %v2533, 0.0
      %v2606 = vmax.f32 %v2534, 0.0
      %v2607 = vmax.f32 %v2535, 0.0
      %v2608 = vmax.f32 %v2536, 0.0
      %v2609 = vmax.f32 %v2537, 0.0
      %v2610 = vmax.f32 %v2538, 0.0
      %v2611 = vmax.f32 %v2539, 0.0
      %v2612 = vmax.f32 %v2540, 0.0
      %v2613 = vmax.f32 %v2541, 0.0
      %v2614 = vmax.f32 %v2542, 0.0
      %v2615 = vmax.f32 %v2543, 0.0
      %v2616 = vmax.f32 %v2544, 0.0
      %v2617 = vmax.f32 %v2545, 0.0
      %v2618 = vmax.f32 %v2546, 0.0
      %v2619 = vmax.f32 %v2547, 0.0
      %v2620 = vmax.f32 %v2548, 0.0
      %v2621 = vmax.f32 %v2549, 0.0
      %v2622 = vmax.f32 %v2550, 0.0
      %v2623 = vmax.f32 %v2551, 0.0
      %v2624 = vmax.f32 %v2552, 0.0
      %v2625 = vmax.f32 %v2553, 0.0
      %v2626 = vmax.f32 %v2554, 0.0
      %v2627 = vmax.f32 %v2555, 0.0
      %v2628 = vmax.f32 %v2556, 0.0
      %v2629 = vmax.f32 %v2557, 0.0
      %v2630 = vmax.f32 %v2558, 0.0
      %v2631 = vmax.f32 %v2559, 0.0
      %v2632 = vmax.f32 %v2560, 0.0
      %v2633 = vmax.f32 %v2561, 0.0
      %v2634 = vmax.f32 %v2562, 0.0
      %v2635 = vmax.f32 %v2563, 0.0
      %v2636 = vmax.f32 %v2564, 0.0
      %v2637 = vmax.f32 %v2565, 0.0
      %v2638 = vmax.f32 %v2566, 0.0
      %v2639 = vmax.f32 %v2567, 0.0
      %v2640 = vmax.f32 %v2568, 0.0
      %v2641 = vmax.f32 %v2569, 0.0
      %v2642 = vmax.f32 %v2570, 0.0
      %v2643 = vmax.f32 %v2571, 0.0
      %v2644 = vmax.f32 %v2572, 0.0
      %v2645 = vmax.f32 %v2573, 0.0
      %v2646 = vmax.f32 %v2574, 0.0
      %v2647 = vmin.f32 %v2575, 6.0
      %v2648 = vmin.f32 %v2576, 6.0
      %v2649 = vmin.f32 %v2577, 6.0
      %v2650 = vmin.f32 %v2578, 6.0
      %v2651 = vmin.f32 %v2579, 6.0
      %v2652 = vmin.f32 %v2580, 6.0
      %v2653 = vmin.f32 %v2581, 6.0
      %v2654 = vmin.f32 %v2582, 6.0
      %v2655 = vmin.f32 %v2583, 6.0
      %v2656 = vmin.f32 %v2584, 6.0
      %v2657 = vmin.f32 %v2585, 6.0
      %v2658 = vmin.f32 %v2586, 6.0
      %v2659 = vmin.f32 %v2587, 6.0
      %v2660 = vmin.f32 %v2588, 6.0
      %v2661 = vmin.f32 %v2589, 6.0
      %v2662 = vmin.f32 %v2590, 6.0
      %v2663 = vmin.f32 %v2591, 6.0
      %v2664 = vmin.f32 %v2592, 6.0
      %v2665 = vmin.f32 %v2593, 6.0
      %v2666 = vmin.f32 %v2594, 6.0
      %v2667 = vmin.f32 %v2595, 6.0
      %v2668 = vmin.f32 %v2596, 6.0
      %v2669 = vmin.f32 %v2597, 6.0
      %v2670 = vmin.f32 %v2598, 6.0
      %v2671 = vmin.f32 %v2599, 6.0
      %v2672 = vmin.f32 %v2600, 6.0
      %v2673 = vmin.f32 %v2601, 6.0
      %v2674 = vmin.f32 %v2602, 6.0
      %v2675 = vmin.f32 %v2603, 6.0
      %v2676 = vmin.f32 %v2604, 6.0
      %v2677 = vmin.f32 %v2605, 6.0
      %v2678 = vmin.f32 %v2606, 6.0
      %v2679 = vmin.f32 %v2607, 6.0
      %v2680 = vmin.f32 %v2608, 6.0
      %v2681 = vmin.f32 %v2609, 6.0
      %v2682 = vmin.f32 %v2610, 6.0
      %v2683 = vmin.f32 %v2611, 6.0
      %v2684 = vmin.f32 %v2612, 6.0
      %v2685 = vmin.f32 %v2613, 6.0
      %v2686 = vmin.f32 %v2614, 6.0
      %v2687 = vmin.f32 %v2615, 6.0
      %v2688 = vmin.f32 %v2616, 6.0
      %v2689 = vmin.f32 %v2617, 6.0
      %v2690 = vmin.f32 %v2618, 6.0
      %v2691 = vmin.f32 %v2619, 6.0
      %v2692 = vmin.f32 %v2620, 6.0
      %v2693 = vmin.f32 %v2621, 6.0
      %v2694 = vmin.f32 %v2622, 6.0
      %v2695 = vmin.f32 %v2623, 6.0
      %v2696 = vmin.f32 %v2624, 6.0
      %v2697 = vmin.f32 %v2625, 6.0
      %v2698 = vmin.f32 %v2626, 6.0
      %v2699 = vmin.f32 %v2627, 6.0
      %v2700 = vmin.f32 %v2628, 6.0
      %v2701 = vmin.f32 %v2629, 6.0
      %v2702 = vmin.f32 %v2630, 6.0
      %v2703 = vmin.f32 %v2631, 6.0
      %v2704 = vmin.f32 %v2632, 6.0
      %v2705 = vmin.f32 %v2633, 6.0
      %v2706 = vmin.f32 %v2634, 6.0
      %v2707 = vmin.f32 %v2635, 6.0
      %v2708 = vmin.f32 %v2636, 6.0
      %v2709 = vmin.f32 %v2637, 6.0
      %v2710 = vmin.f32 %v2638, 6.0
      %v2711 = vmin.f32 %v2639, 6.0
      %v2712 = vmin.f32 %v2640, 6.0
      %v2713 = vmin.f32 %v2641, 6.0
      %v2714 = vmin.f32 %v2642, 6.0
      %v2715 = vmin.f32 %v2643, 6.0
      %v2716 = vmin.f32 %v2644, 6.0
      %v2717 = vmin.f32 %v2645, 6.0
      %v2718 = vmin.f32 %v2646, 6.0
      %v2719 = vmul.f32 %v2324, %v2647
      %v2720 = vmul.f32 %v2326, %v2648
      %v2721 = vmul.f32 %v2329, %v2649
      %v2722 = vmul.f32 %v2331, %v2650
      %v2723 = vmul.f32 %v2334, %v2651
      %v2724 = vmul.f32 %v2336, %v2652
      %v2725 = vmul.f32 %v2339, %v2653
      %v2726 = vmul.f32 %v2341, %v2654
      %v2727 = vmul.f32 %v2344, %v2655
      %v2728 = vmul.f32 %v2346, %v2656
      %v2729 = vmul.f32 %v2349, %v2657
      %v2730 = vmul.f32 %v2351, %v2658
      %v2731 = vmul.f32 %v2354, %v2659
      %v2732 = vmul.f32 %v2356, %v2660
      %v2733 = vmul.f32 %v2359, %v2661
      %v2734 = vmul.f32 %v2361, %v2662
      %v2735 = vmul.f32 %v2364, %v2663
      %v2736 = vmul.f32 %v2366, %v2664
      %v2737 = vmul.f32 %v2369, %v2665
      %v2738 = vmul.f32 %v2371, %v2666
      %v2739 = vmul.f32 %v2374, %v2667
      %v2740 = vmul.f32 %v2376, %v2668
      %v2741 = vmul.f32 %v2379, %v2669
      %v2742 = vmul.f32 %v2381, %v2670
      %v2743 = vmul.f32 %v2384, %v2671
      %v2744 = vmul.f32 %v2386, %v2672
      %v2745 = vmul.f32 %v2389, %v2673
      %v2746 = vmul.f32 %v2391, %v2674
      %v2747 = vmul.f32 %v2394, %v2675
      %v2748 = vmul.f32 %v2396, %v2676
      %v2749 = vmul.f32 %v2399, %v2677
      %v2750 = vmul.f32 %v2401, %v2678
      %v2751 = vmul.f32 %v2404, %v2679
      %v2752 = vmul.f32 %v2406, %v2680
      %v2753 = vmul.f32 %v2409, %v2681
      %v2754 = vmul.f32 %v2411, %v2682
      %v2755 = vmul.f32 %v2414, %v2683
      %v2756 = vmul.f32 %v2416, %v2684
      %v2757 = vmul.f32 %v2419, %v2685
      %v2758 = vmul.f32 %v2421, %v2686
      %v2759 = vmul.f32 %v2424, %v2687
      %v2760 = vmul.f32 %v2426, %v2688
      %v2761 = vmul.f32 %v2429, %v2689
      %v2762 = vmul.f32 %v2431, %v2690
      %v2763 = vmul.f32 %v2434, %v2691
      %v2764 = vmul.f32 %v2436, %v2692
      %v2765 = vmul.f32 %v2439, %v2693
      %v2766 = vmul.f32 %v2441, %v2694
      %v2767 = vmul.f32 %v2444, %v2695
      %v2768 = vmul.f32 %v2446, %v2696
      %v2769 = vmul.f32 %v2449, %v2697
      %v2770 = vmul.f32 %v2451, %v2698
      %v2771 = vmul.f32 %v2454, %v2699
      %v2772 = vmul.f32 %v2456, %v2700
      %v2773 = vmul.f32 %v2459, %v2701
      %v2774 = vmul.f32 %v2461, %v2702
      %v2775 = vmul.f32 %v2464, %v2703
      %v2776 = vmul.f32 %v2466, %v2704
      %v2777 = vmul.f32 %v2469, %v2705
      %v2778 = vmul.f32 %v2471, %v2706
      %v2779 = vmul.f32 %v2474, %v2707
      %v2780 = vmul.f32 %v2476, %v2708
      %v2781 = vmul.f32 %v2479, %v2709
      %v2782 = vmul.f32 %v2481, %v2710
      %v2783 = vmul.f32 %v2484, %v2711
      %v2784 = vmul.f32 %v2486, %v2712
      %v2785 = vmul.f32 %v2489, %v2713
      %v2786 = vmul.f32 %v2491, %v2714
      %v2787 = vmul.f32 %v2494, %v2715
      %v2788 = vmul.f32 %v2496, %v2716
      %v2789 = vmul.f32 %v2499, %v2717
      %v2790 = vmul.f32 %v2501, %v2718
      %v2791 = vmul.f32 %v2719, 0.16666667
      %v2792 = vmul.f32 %v2720, 0.16666667
      %v2793 = vmul.f32 %v2721, 0.16666667
      %v2794 = vmul.f32 %v2722, 0.16666667
      %v2795 = vmul.f32 %v2723, 0.16666667
      %v2796 = vmul.f32 %v2724, 0.16666667
      %v2797 = vmul.f32 %v2725, 0.16666667
      %v2798 = vmul.f32 %v2726, 0.16666667
      %v2799 = vmul.f32 %v2727, 0.16666667
      %v2800 = vmul.f32 %v2728, 0.16666667
      %v2801 = vmul.f32 %v2729, 0.16666667
      %v2802 = vmul.f32 %v2730, 0.16666667
      %v2803 = vmul.f32 %v2731, 0.16666667
      %v2804 = vmul.f32 %v2732, 0.16666667
      %v2805 = vmul.f32 %v2733, 0.16666667
      %v2806 = vmul.f32 %v2734, 0.16666667
      %v2807 = vmul.f32 %v2735, 0.16666667
      %v2808 = vmul.f32 %v2736, 0.16666667
      %v2809 = vmul.f32 %v2737, 0.16666667
      %v2810 = vmul.f32 %v2738, 0.16666667
      %v2811 = vmul.f32 %v2739, 0.16666667
      %v2812 = vmul.f32 %v2740, 0.16666667
      %v2813 = vmul.f32 %v2741, 0.16666667
      %v2814 = vmul.f32 %v2742, 0.16666667
      %v2815 = vmul.f32 %v2743, 0.16666667
      %v2816 = vmul.f32 %v2744, 0.16666667
      %v2817 = vmul.f32 %v2745, 0.16666667
      %v2818 = vmul.f32 %v2746, 0.16666667
      %v2819 = vmul.f32 %v2747, 0.16666667
      %v2820 = vmul.f32 %v2748, 0.16666667
      %v2821 = vmul.f32 %v2749, 0.16666667
      %v2822 = vmul.f32 %v2750, 0.16666667
      %v2823 = vmul.f32 %v2751, 0.16666667
      %v2824 = vmul.f32 %v2752, 0.16666667
      %v2825 = vmul.f32 %v2753, 0.16666667
      %v2826 = vmul.f32 %v2754, 0.16666667
      %v2827 = vmul.f32 %v2755, 0.16666667
      %v2828 = vmul.f32 %v2756, 0.16666667
      %v2829 = vmul.f32 %v2757, 0.16666667
      %v2830 = vmul.f32 %v2758, 0.16666667
      %v2831 = vmul.f32 %v2759, 0.16666667
      %v2832 = vmul.f32 %v2760, 0.16666667
      %v2833 = vmul.f32 %v2761, 0.16666667
      %v2834 = vmul.f32 %v2762, 0.16666667
      %v2835 = vmul.f32 %v2763, 0.16666667
      %v2836 = vmul.f32 %v2764, 0.16666667
      %v2837 = vmul.f32 %v2765, 0.16666667
      %v2838 = vmul.f32 %v2766, 0.16666667
      %v2839 = vmul.f32 %v2767, 0.16666667
      %v2840 = vmul.f32 %v2768, 0.16666667
      %v2841 = vmul.f32 %v2769, 0.16666667
      %v2842 = vmul.f32 %v2770, 0.16666667
      %v2843 = vmul.f32 %v2771, 0.16666667
      %v2844 = vmul.f32 %v2772, 0.16666667
      %v2845 = vmul.f32 %v2773, 0.16666667
      %v2846 = vmul.f32 %v2774, 0.16666667
      %v2847 = vmul.f32 %v2775, 0.16666667
      %v2848 = vmul.f32 %v2776, 0.16666667
      %v2849 = vmul.f32 %v2777, 0.16666667
      %v2850 = vmul.f32 %v2778, 0.16666667
      %v2851 = vmul.f32 %v2779, 0.16666667
      %v2852 = vmul.f32 %v2780, 0.16666667
      %v2853 = vmul.f32 %v2781, 0.16666667
      %v2854 = vmul.f32 %v2782, 0.16666667
      %v2855 = vmul.f32 %v2783, 0.16666667
      %v2856 = vmul.f32 %v2784, 0.16666667
      %v2857 = vmul.f32 %v2785, 0.16666667
      %v2858 = vmul.f32 %v2786, 0.16666667
      %v2859 = vmul.f32 %v2787, 0.16666667
      %v2860 = vmul.f32 %v2788, 0.16666667
      %v2861 = vmul.f32 %v2789, 0.16666667
      %v2862 = vmul.f32 %v2790, 0.16666667
      %2863 = vst [vmem:[#allocation2] sm:$0xff] 0.0
      %2864 = vst [vmem:[#allocation2 + $0x8] sm:$0xff] 0.0
      %2865 = vst [vmem:[#allocation2 + $0x10] sm:$0xff] 0.0
      %2866 = vst [vmem:[#allocation2 + $0x18] sm:$0xff] 0.0
      %2867 = vst [vmem:[#allocation2 + $0x20] sm:$0x1] 0.0
      %2868 = vst [vmem:[#allocation2 + $0x28] sm:$0xff] 0.0
      %2869 = vst [vmem:[#allocation2 + $0x30] sm:$0xff] 0.0
      %2870 = vst [vmem:[#allocation2 + $0x38] sm:$0xff] 0.0
      %2871 = vst [vmem:[#allocation2 + $0x40] sm:$0xff] 0.0
      %2872 = vst [vmem:[#allocation2 + $0x48] sm:$0x1] 0.0
      %2873 = vst [vmem:[#allocation2 + $0x50] sm:$0xff] 0.0
      %2874 = vst [vmem:[#allocation2 + $0x58] sm:$0xff] 0.0
      %2875 = vst [vmem:[#allocation2 + $0x60] sm:$0xff] 0.0
      %2876 = vst [vmem:[#allocation2 + $0x68] sm:$0xff] 0.0
      %2877 = vst [vmem:[#allocation2 + $0x70] sm:$0x1] 0.0
      %2878 = vst [vmem:[#allocation2 + $0x78] sm:$0xff] 0.0
      %2879 = vst [vmem:[#allocation2 + $0x80] sm:$0xff] 0.0
      %2880 = vst [vmem:[#allocation2 + $0x88] sm:$0xff] 0.0
      %2881 = vst [vmem:[#allocation2 + $0x90] sm:$0xff] 0.0
      %2882 = vst [vmem:[#allocation2 + $0x98] sm:$0x1] 0.0
      %2883 = vst [vmem:[#allocation2 + $0xa0] sm:$0xff] 0.0
      %2884 = vst [vmem:[#allocation2 + $0xa8] sm:$0xff] 0.0
      %2885 = vst [vmem:[#allocation2 + $0xb0] sm:$0xff] 0.0
      %2886 = vst [vmem:[#allocation2 + $0xb8] sm:$0xff] 0.0
      %2887 = vst [vmem:[#allocation2 + $0xc0] sm:$0x1] 0.0
      %2888 = vst [vmem:[#allocation2 + $0xc8] sm:$0xff] 0.0
      %2889 = vst [vmem:[#allocation2 + $0xd0] sm:$0xff] 0.0
      %2890 = vst [vmem:[#allocation2 + $0xd8] sm:$0xff] 0.0
      %2891 = vst [vmem:[#allocation2 + $0xe0] sm:$0xff] 0.0
      %2892 = vst [vmem:[#allocation2 + $0xe8] sm:$0x1] 0.0
      %2893 = vst [vmem:[#allocation2 + $0xf0] sm:$0xff] 0.0
      %2894 = vst [vmem:[#allocation2 + $0xf8] sm:$0xff] 0.0
      %2895 = vst [vmem:[#allocation2 + $0x100] sm:$0xff] 0.0
      %2896 = vst [vmem:[#allocation2 + $0x108] sm:$0xff] 0.0
      %2897 = vst [vmem:[#allocation2 + $0x110] sm:$0x1] 0.0
      %2898 = vst [vmem:[#allocation2 + $0x118] sm:$0xff] 0.0
      %2899 = vst [vmem:[#allocation2 + $0x120] sm:$0xff] 0.0
      %2900 = vst [vmem:[#allocation2 + $0x128] sm:$0xff] 0.0
      %2901 = vst [vmem:[#allocation2 + $0x130] sm:$0xff] 0.0
      %2902 = vst [vmem:[#allocation2 + $0x138] sm:$0x1] 0.0
      %2903 = vst [vmem:[#allocation2 + $0x140] sm:$0xff] 0.0
      %2904 = vst [vmem:[#allocation2 + $0x148] sm:$0xff] 0.0
      %2905 = vst [vmem:[#allocation2 + $0x150] sm:$0xff] 0.0
      %2906 = vst [vmem:[#allocation2 + $0x158] sm:$0xff] 0.0
      %2907 = vst [vmem:[#allocation2 + $0x160] sm:$0x1] 0.0
      %2908 = vst [vmem:[#allocation2 + $0x168] sm:$0xff] 0.0
      %2909 = vst [vmem:[#allocation2 + $0x170] sm:$0xff] 0.0
      %2910 = vst [vmem:[#allocation2 + $0x178] sm:$0xff] 0.0
      %2911 = vst [vmem:[#allocation2 + $0x180] sm:$0xff] 0.0
      %2912 = vst [vmem:[#allocation2 + $0x188] sm:$0x1] 0.0
      %2913 = vst [vmem:[#allocation2 + $0x190] sm:$0xff] 0.0
      %2914 = vst [vmem:[#allocation2 + $0x198] sm:$0xff] 0.0
      %2915 = vst [vmem:[#allocation2 + $0x1a0] sm:$0xff] 0.0
      %2916 = vst [vmem:[#allocation2 + $0x1a8] sm:$0xff] 0.0
      %2917 = vst [vmem:[#allocation2 + $0x1b0] sm:$0x1] 0.0
      %2918 = vst [vmem:[#allocation2 + $0x1b8] sm:$0xff] 0.0
      %2919 = vst [vmem:[#allocation2 + $0x1c0] sm:$0xff] 0.0
      %2920 = vst [vmem:[#allocation2 + $0x1c8] sm:$0xff] 0.0
      %2921 = vst [vmem:[#allocation2 + $0x1d0] sm:$0xff] 0.0
      %2922 = vst [vmem:[#allocation2 + $0x1d8] sm:$0x1] 0.0
      %2923 = vst [vmem:[#allocation2 + $0x1e0] sm:$0xff] 0.0
      %2924 = vst [vmem:[#allocation2 + $0x1e8] sm:$0xff] 0.0
      %2925 = vst [vmem:[#allocation2 + $0x1f0] sm:$0xff] 0.0
      %2926 = vst [vmem:[#allocation2 + $0x1f8] sm:$0xff] 0.0
      %2927 = vst [vmem:[#allocation2 + $0x200] sm:$0x1] 0.0
      %2928 = vst [vmem:[#allocation2 + $0x208] sm:$0xff] 0.0
      %2929 = vst [vmem:[#allocation2 + $0x210] sm:$0xff] 0.0
      %2930 = vst [vmem:[#allocation2 + $0x218] sm:$0xff] 0.0
      %2931 = vst [vmem:[#allocation2 + $0x220] sm:$0xff] 0.0
      %2932 = vst [vmem:[#allocation2 + $0x228] sm:$0x1] 0.0
      %2933 = vst [vmem:[#allocation2 + $0x230] sm:$0xff] 0.0
      %2934 = vst [vmem:[#allocation2 + $0x238] sm:$0xff] 0.0
      %2935 = vst [vmem:[#allocation2 + $0x240] sm:$0xff] 0.0
      %2936 = vst [vmem:[#allocation2 + $0x248] sm:$0xff] 0.0
      %2937 = vst [vmem:[#allocation2 + $0x250] sm:$0x1] 0.0
      %2938 = vst [vmem:[#allocation2 + $0x258] sm:$0xff] 0.0
      %2939 = vst [vmem:[#allocation2 + $0x260] sm:$0xff] 0.0
      %2940 = vst [vmem:[#allocation2 + $0x268] sm:$0xff] 0.0
      %2941 = vst [vmem:[#allocation2 + $0x270] sm:$0xff] 0.0
      %2942 = vst [vmem:[#allocation2 + $0x278] sm:$0x1] 0.0
      %2943 = vst [vmem:[#allocation2 + $0x280] sm:$0xff] 0.0
      %2944 = vst [vmem:[#allocation2 + $0x288] sm:$0xff] 0.0
      %2945 = vst [vmem:[#allocation2 + $0x290] sm:$0xff] 0.0
      %2946 = vst [vmem:[#allocation2 + $0x298] sm:$0xff] 0.0
      %2947 = vst [vmem:[#allocation2 + $0x2a0] sm:$0x1] 0.0
      %2948 = vst [vmem:[#allocation2 + $0x2a8] sm:$0xff] 0.0
      %2949 = vst [vmem:[#allocation2 + $0x2b0] sm:$0xff] 0.0
      %2950 = vst [vmem:[#allocation2 + $0x2b8] sm:$0xff] 0.0
      %2951 = vst [vmem:[#allocation2 + $0x2c0] sm:$0xff] 0.0
      %2952 = vst [vmem:[#allocation2 + $0x2c8] sm:$0x1] 0.0
      %2953 = vst [vmem:[#allocation2 + $0x2d0] sm:$0xff] 0.0
      %2954 = vst [vmem:[#allocation2 + $0x2d8] sm:$0xff] 0.0
      %2955 = vst [vmem:[#allocation2 + $0x2e0] sm:$0xff] 0.0
      %2956 = vst [vmem:[#allocation2 + $0x2e8] sm:$0xff] 0.0
      %2957 = vst [vmem:[#allocation2 + $0x2f0] sm:$0x1] 0.0
      %2958 = vst [vmem:[#allocation2 + $0x2f8] sm:$0xff] 0.0
      %2959 = vst [vmem:[#allocation2 + $0x300] sm:$0xff] 0.0
      %2960 = vst [vmem:[#allocation2 + $0x308] sm:$0xff] 0.0
      %2961 = vst [vmem:[#allocation2 + $0x310] sm:$0xff] 0.0
      %2962 = vst [vmem:[#allocation2 + $0x318] sm:$0x1] 0.0
      %2963 = vst [vmem:[#allocation2 + $0x320] sm:$0xff] 0.0
      %2964 = vst [vmem:[#allocation2 + $0x328] sm:$0xff] 0.0
      %2965 = vst [vmem:[#allocation2 + $0x330] sm:$0xff] 0.0
      %2966 = vst [vmem:[#allocation2 + $0x338] sm:$0xff] 0.0
      %2967 = vst [vmem:[#allocation2 + $0x340] sm:$0x1] 0.0
      %2968 = vst [vmem:[#allocation2 + $0x348] sm:$0xff] 0.0
      %2969 = vst [vmem:[#allocation2 + $0x350] sm:$0xff] 0.0
      %2970 = vst [vmem:[#allocation2 + $0x358] sm:$0xff] 0.0
      %2971 = vst [vmem:[#allocation2 + $0x360] sm:$0xff] 0.0
      %2972 = vst [vmem:[#allocation2 + $0x368] sm:$0x1] 0.0
      %2973 = vst [vmem:[#allocation2 + $0x370] sm:$0xff] 0.0
      %2974 = vst [vmem:[#allocation2 + $0x378] sm:$0xff] 0.0
      %2975 = vst [vmem:[#allocation2 + $0x380] sm:$0xff] 0.0
      %2976 = vst [vmem:[#allocation2 + $0x388] sm:$0xff] 0.0
      %2977 = vst [vmem:[#allocation2 + $0x390] sm:$0x1] 0.0
      %2978 = vst [vmem:[#allocation2 + $0x398] sm:$0xff] 0.0
      %2979 = vst [vmem:[#allocation2 + $0x3a0] sm:$0xff] 0.0
      %2980 = vst [vmem:[#allocation2 + $0x3a8] sm:$0xff] 0.0
      %2981 = vst [vmem:[#allocation2 + $0x3b0] sm:$0xff] 0.0
      %2982 = vst [vmem:[#allocation2 + $0x3b8] sm:$0x1] 0.0
      %2983 = vst [vmem:[#allocation2 + $0x3c0] sm:$0xff] 0.0
      %2984 = vst [vmem:[#allocation2 + $0x3c8] sm:$0xff] 0.0
      %2985 = vst [vmem:[#allocation2 + $0x3d0] sm:$0xff] 0.0
      %2986 = vst [vmem:[#allocation2 + $0x3d8] sm:$0xff] 0.0
      %2987 = vst [vmem:[#allocation2 + $0x3e0] sm:$0x1] 0.0
      %2988 = vst [vmem:[#allocation2 + $0x3e8] sm:$0xff] 0.0
      %2989 = vst [vmem:[#allocation2 + $0x3f0] sm:$0xff] 0.0
      %2990 = vst [vmem:[#allocation2 + $0x3f8] sm:$0xff] 0.0
      %2991 = vst [vmem:[#allocation2 + $0x400] sm:$0xff] 0.0
      %2992 = vst [vmem:[#allocation2 + $0x408] sm:$0x1] 0.0
      %s2993 = scalar_lea.vmem [#allocation2], 40
      %2994 = vst [vmem:[%s2993 + $0x8] sm:$0xff] %v2791
      %2995 = vst [vmem:[%s2993 + $0x10] sm:$0xff] %v2792
      %2996 = vst [vmem:[%s2993 + $0x18] sm:$0xff] %v2793
      %2997 = vst [vmem:[%s2993 + $0x30] sm:$0xff] %v2794
      %2998 = vst [vmem:[%s2993 + $0x38] sm:$0xff] %v2795
      %2999 = vst [vmem:[%s2993 + $0x40] sm:$0xff] %v2796
      %3000 = vst [vmem:[%s2993 + $0x58] sm:$0xff] %v2797
      %3001 = vst [vmem:[%s2993 + $0x60] sm:$0xff] %v2798
      %3002 = vst [vmem:[%s2993 + $0x68] sm:$0xff] %v2799
      %3003 = vst [vmem:[%s2993 + $0x80] sm:$0xff] %v2800
      %3004 = vst [vmem:[%s2993 + $0x88] sm:$0xff] %v2801
      %3005 = vst [vmem:[%s2993 + $0x90] sm:$0xff] %v2802
      %3006 = vst [vmem:[%s2993 + $0xa8] sm:$0xff] %v2803
      %3007 = vst [vmem:[%s2993 + $0xb0] sm:$0xff] %v2804
      %3008 = vst [vmem:[%s2993 + $0xb8] sm:$0xff] %v2805
      %3009 = vst [vmem:[%s2993 + $0xd0] sm:$0xff] %v2806
      %3010 = vst [vmem:[%s2993 + $0xd8] sm:$0xff] %v2807
      %3011 = vst [vmem:[%s2993 + $0xe0] sm:$0xff] %v2808
      %3012 = vst [vmem:[%s2993 + $0xf8] sm:$0xff] %v2809
      %3013 = vst [vmem:[%s2993 + $0x100] sm:$0xff] %v2810
      %3014 = vst [vmem:[%s2993 + $0x108] sm:$0xff] %v2811
      %3015 = vst [vmem:[%s2993 + $0x120] sm:$0xff] %v2812
      %3016 = vst [vmem:[%s2993 + $0x128] sm:$0xff] %v2813
      %3017 = vst [vmem:[%s2993 + $0x130] sm:$0xff] %v2814
      %3018 = vst [vmem:[%s2993 + $0x148] sm:$0xff] %v2815
      %3019 = vst [vmem:[%s2993 + $0x150] sm:$0xff] %v2816
      %3020 = vst [vmem:[%s2993 + $0x158] sm:$0xff] %v2817
      %3021 = vst [vmem:[%s2993 + $0x170] sm:$0xff] %v2818
      %3022 = vst [vmem:[%s2993 + $0x178] sm:$0xff] %v2819
      %3023 = vst [vmem:[%s2993 + $0x180] sm:$0xff] %v2820
      %3024 = vst [vmem:[%s2993 + $0x198] sm:$0xff] %v2821
      %3025 = vst [vmem:[%s2993 + $0x1a0] sm:$0xff] %v2822
      %3026 = vst [vmem:[%s2993 + $0x1a8] sm:$0xff] %v2823
      %3027 = vst [vmem:[%s2993 + $0x1c0] sm:$0xff] %v2824
      %3028 = vst [vmem:[%s2993 + $0x1c8] sm:$0xff] %v2825
      %3029 = vst [vmem:[%s2993 + $0x1d0] sm:$0xff] %v2826
      %3030 = vst [vmem:[%s2993 + $0x1e8] sm:$0xff] %v2827
      %3031 = vst [vmem:[%s2993 + $0x1f0] sm:$0xff] %v2828
      %3032 = vst [vmem:[%s2993 + $0x1f8] sm:$0xff] %v2829
      %3033 = vst [vmem:[%s2993 + $0x210] sm:$0xff] %v2830
      %3034 = vst [vmem:[%s2993 + $0x218] sm:$0xff] %v2831
      %3035 = vst [vmem:[%s2993 + $0x220] sm:$0xff] %v2832
      %3036 = vst [vmem:[%s2993 + $0x238] sm:$0xff] %v2833
      %3037 = vst [vmem:[%s2993 + $0x240] sm:$0xff] %v2834
      %3038 = vst [vmem:[%s2993 + $0x248] sm:$0xff] %v2835
      %3039 = vst [vmem:[%s2993 + $0x260] sm:$0xff] %v2836
      %3040 = vst [vmem:[%s2993 + $0x268] sm:$0xff] %v2837
      %3041 = vst [vmem:[%s2993 + $0x270] sm:$0xff] %v2838
      %3042 = vst [vmem:[%s2993 + $0x288] sm:$0xff] %v2839
      %3043 = vst [vmem:[%s2993 + $0x290] sm:$0xff] %v2840
      %3044 = vst [vmem:[%s2993 + $0x298] sm:$0xff] %v2841
      %3045 = vst [vmem:[%s2993 + $0x2b0] sm:$0xff] %v2842
      %3046 = vst [vmem:[%s2993 + $0x2b8] sm:$0xff] %v2843
      %3047 = vst [vmem:[%s2993 + $0x2c0] sm:$0xff] %v2844
      %3048 = vst [vmem:[%s2993 + $0x2d8] sm:$0xff] %v2845
      %3049 = vst [vmem:[%s2993 + $0x2e0] sm:$0xff] %v2846
      %3050 = vst [vmem:[%s2993 + $0x2e8] sm:$0xff] %v2847
      %3051 = vst [vmem:[%s2993 + $0x300] sm:$0xff] %v2848
      %3052 = vst [vmem:[%s2993 + $0x308] sm:$0xff] %v2849
      %3053 = vst [vmem:[%s2993 + $0x310] sm:$0xff] %v2850
      %3054 = vst [vmem:[%s2993 + $0x328] sm:$0xff] %v2851
      %3055 = vst [vmem:[%s2993 + $0x330] sm:$0xff] %v2852
      %3056 = vst [vmem:[%s2993 + $0x338] sm:$0xff] %v2853
      %3057 = vst [vmem:[%s2993 + $0x350] sm:$0xff] %v2854
      %3058 = vst [vmem:[%s2993 + $0x358] sm:$0xff] %v2855
      %3059 = vst [vmem:[%s2993 + $0x360] sm:$0xff] %v2856
      %3060 = vst [vmem:[%s2993 + $0x378] sm:$0xff] %v2857
      %3061 = vst [vmem:[%s2993 + $0x380] sm:$0xff] %v2858
      %3062 = vst [vmem:[%s2993 + $0x388] sm:$0xff] %v2859
      %3063 = vst [vmem:[%s2993 + $0x3a0] sm:$0xff] %v2860
      %3064 = vst [vmem:[%s2993 + $0x3a8] sm:$0xff] %v2861
      %3065 = vst [vmem:[%s2993 + $0x3b0] sm:$0xff] %v2862
      %v3066 = vld [vmem:[#allocation2 + $0x7] sm:$0xff]
      %v3067 = vld [vmem:[#allocation2 + $0xf] sm:$0xff]
      %v3068 = vld [vmem:[#allocation2 + $0x17] sm:$0xff]
      %v3069 = vld [vmem:[#allocation2 + $0x2f] sm:$0xff]
      %v3070 = vld [vmem:[#allocation2 + $0x37] sm:$0xff]
      %v3071 = vld [vmem:[#allocation2 + $0x3f] sm:$0xff]
      %v3072 = vld [vmem:[#allocation2 + $0x57] sm:$0xff]
      %v3073 = vld [vmem:[#allocation2 + $0x5f] sm:$0xff]
      %v3074 = vld [vmem:[#allocation2 + $0x67] sm:$0xff]
      %v3075 = vld [vmem:[#allocation2 + $0x7f] sm:$0xff]
      %v3076 = vld [vmem:[#allocation2 + $0x87] sm:$0xff]
      %v3077 = vld [vmem:[#allocation2 + $0x8f] sm:$0xff]
      %v3078 = vld [vmem:[#allocation2 + $0xa7] sm:$0xff]
      %v3079 = vld [vmem:[#allocation2 + $0xaf] sm:$0xff]
      %v3080 = vld [vmem:[#allocation2 + $0xb7] sm:$0xff]
      %v3081 = vld [vmem:[#allocation2 + $0xcf] sm:$0xff]
      %v3082 = vld [vmem:[#allocation2 + $0xd7] sm:$0xff]
      %v3083 = vld [vmem:[#allocation2 + $0xdf] sm:$0xff]
      %v3084 = vld [vmem:[#allocation2 + $0xf7] sm:$0xff]
      %v3085 = vld [vmem:[#allocation2 + $0xff] sm:$0xff]
      %v3086 = vld [vmem:[#allocation2 + $0x107] sm:$0xff]
      %v3087 = vld [vmem:[#allocation2 + $0x11f] sm:$0xff]
      %v3088 = vld [vmem:[#allocation2 + $0x127] sm:$0xff]
      %v3089 = vld [vmem:[#allocation2 + $0x12f] sm:$0xff]
      %v3090 = vld [vmem:[#allocation2 + $0x147] sm:$0xff]
      %v3091 = vld [vmem:[#allocation2 + $0x14f] sm:$0xff]
      %v3092 = vld [vmem:[#allocation2 + $0x157] sm:$0xff]
      %v3093 = vld [vmem:[#allocation2 + $0x16f] sm:$0xff]
      %v3094 = vld [vmem:[#allocation2 + $0x177] sm:$0xff]
      %v3095 = vld [vmem:[#allocation2 + $0x17f] sm:$0xff]
      %v3096 = vld [vmem:[#allocation2 + $0x197] sm:$0xff]
      %v3097 = vld [vmem:[#allocation2 + $0x19f] sm:$0xff]
      %v3098 = vld [vmem:[#allocation2 + $0x1a7] sm:$0xff]
      %v3099 = vld [vmem:[#allocation2 + $0x1bf] sm:$0xff]
      %v3100 = vld [vmem:[#allocation2 + $0x1c7] sm:$0xff]
      %v3101 = vld [vmem:[#allocation2 + $0x1cf] sm:$0xff]
      %v3102 = vld [vmem:[#allocation2 + $0x1e7] sm:$0xff]
      %v3103 = vld [vmem:[#allocation2 + $0x1ef] sm:$0xff]
      %v3104 = vld [vmem:[#allocation2 + $0x1f7] sm:$0xff]
      %v3105 = vld [vmem:[#allocation2 + $0x20f] sm:$0xff]
      %v3106 = vld [vmem:[#allocation2 + $0x217] sm:$0xff]
      %v3107 = vld [vmem:[#allocation2 + $0x21f] sm:$0xff]
      %v3108 = vld [vmem:[#allocation2 + $0x237] sm:$0xff]
      %v3109 = vld [vmem:[#allocation2 + $0x23f] sm:$0xff]
      %v3110 = vld [vmem:[#allocation2 + $0x247] sm:$0xff]
      %v3111 = vld [vmem:[#allocation2 + $0x25f] sm:$0xff]
      %v3112 = vld [vmem:[#allocation2 + $0x267] sm:$0xff]
      %v3113 = vld [vmem:[#allocation2 + $0x26f] sm:$0xff]
      %v3114 = vld [vmem:[#allocation2 + $0x287] sm:$0xff]
      %v3115 = vld [vmem:[#allocation2 + $0x28f] sm:$0xff]
      %v3116 = vld [vmem:[#allocation2 + $0x297] sm:$0xff]
      %v3117 = vld [vmem:[#allocation2 + $0x2af] sm:$0xff]
      %v3118 = vld [vmem:[#allocation2 + $0x2b7] sm:$0xff]
      %v3119 = vld [vmem:[#allocation2 + $0x2bf] sm:$0xff]
      %v3120 = vld [vmem:[#allocation2 + $0x2d7] sm:$0xff]
      %v3121 = vld [vmem:[#allocation2 + $0x2df] sm:$0xff]
      %v3122 = vld [vmem:[#allocation2 + $0x2e7] sm:$0xff]
      %v3123 = vld [vmem:[#allocation2 + $0x2ff] sm:$0xff]
      %v3124 = vld [vmem:[#allocation2 + $0x307] sm:$0xff]
      %v3125 = vld [vmem:[#allocation2 + $0x30f] sm:$0xff]
      %v3126 = vld [vmem:[#allocation2 + $0x327] sm:$0xff]
      %v3127 = vld [vmem:[#allocation2 + $0x32f] sm:$0xff]
      %v3128 = vld [vmem:[#allocation2 + $0x337] sm:$0xff]
      %v3129 = vld [vmem:[#allocation2 + $0x34f] sm:$0xff]
      %v3130 = vld [vmem:[#allocation2 + $0x357] sm:$0xff]
      %v3131 = vld [vmem:[#allocation2 + $0x35f] sm:$0xff]
      %v3132 = vld [vmem:[#allocation2 + $0x377] sm:$0xff]
      %v3133 = vld [vmem:[#allocation2 + $0x37f] sm:$0xff]
      %v3134 = vld [vmem:[#allocation2 + $0x387] sm:$0xff]
      %v3135 = vld [vmem:[#allocation2 + $0x39f] sm:$0xff]
      %v3136 = vld [vmem:[#allocation2 + $0x3a7] sm:$0xff]
      %v3137 = vld [vmem:[#allocation2 + $0x3af] sm:$0xff]
      %v3138 = vld [vmem:[#allocation2 + $0x3c7] sm:$0xff]
      %v3139 = vld [vmem:[#allocation2 + $0x3cf] sm:$0xff]
      %v3140 = vld [vmem:[#allocation2 + $0x3d7] sm:$0xff]
      %v3141 = vld [vmem:[#allocation2 + $0x3ef] sm:$0xff]
      %v3142 = vld [vmem:[#allocation2 + $0x3f7] sm:$0xff]
      %v3143 = vld [vmem:[#allocation2 + $0x3ff] sm:$0xff]
      %v3144 = vld [vmem:[#allocation2 + $0x8] sm:$0xff]
      %v3145 = vld [vmem:[#allocation2 + $0x10] sm:$0xff]
      %v3146 = vld [vmem:[#allocation2 + $0x18] sm:$0xff]
      %v3147 = vld [vmem:[#allocation2 + $0x30] sm:$0xff]
      %v3148 = vld [vmem:[#allocation2 + $0x38] sm:$0xff]
      %v3149 = vld [vmem:[#allocation2 + $0x40] sm:$0xff]
      %v3150 = vld [vmem:[#allocation2 + $0x58] sm:$0xff]
      %v3151 = vld [vmem:[#allocation2 + $0x60] sm:$0xff]
      %v3152 = vld [vmem:[#allocation2 + $0x68] sm:$0xff]
      %v3153 = vld [vmem:[#allocation2 + $0x80] sm:$0xff]
      %v3154 = vld [vmem:[#allocation2 + $0x88] sm:$0xff]
      %v3155 = vld [vmem:[#allocation2 + $0x90] sm:$0xff]
      %v3156 = vld [vmem:[#allocation2 + $0xa8] sm:$0xff]
      %v3157 = vld [vmem:[#allocation2 + $0xb0] sm:$0xff]
      %v3158 = vld [vmem:[#allocation2 + $0xb8] sm:$0xff]
      %v3159 = vld [vmem:[#allocation2 + $0xd0] sm:$0xff]
      %v3160 = vld [vmem:[#allocation2 + $0xd8] sm:$0xff]
      %v3161 = vld [vmem:[#allocation2 + $0xe0] sm:$0xff]
      %v3162 = vld [vmem:[#allocation2 + $0xf8] sm:$0xff]
      %v3163 = vld [vmem:[#allocation2 + $0x100] sm:$0xff]
      %v3164 = vld [vmem:[#allocation2 + $0x108] sm:$0xff]
      %v3165 = vld [vmem:[#allocation2 + $0x120] sm:$0xff]
      %v3166 = vld [vmem:[#allocation2 + $0x128] sm:$0xff]
      %v3167 = vld [vmem:[#allocation2 + $0x130] sm:$0xff]
      %v3168 = vld [vmem:[#allocation2 + $0x148] sm:$0xff]
      %v3169 = vld [vmem:[#allocation2 + $0x150] sm:$0xff]
      %v3170 = vld [vmem:[#allocation2 + $0x158] sm:$0xff]
      %v3171 = vld [vmem:[#allocation2 + $0x170] sm:$0xff]
      %v3172 = vld [vmem:[#allocation2 + $0x178] sm:$0xff]
      %v3173 = vld [vmem:[#allocation2 + $0x180] sm:$0xff]
      %v3174 = vld [vmem:[#allocation2 + $0x198] sm:$0xff]
      %v3175 = vld [vmem:[#allocation2 + $0x1a0] sm:$0xff]
      %v3176 = vld [vmem:[#allocation2 + $0x1a8] sm:$0xff]
      %v3177 = vld [vmem:[#allocation2 + $0x1c0] sm:$0xff]
      %v3178 = vld [vmem:[#allocation2 + $0x1c8] sm:$0xff]
      %v3179 = vld [vmem:[#allocation2 + $0x1d0] sm:$0xff]
      %v3180 = vld [vmem:[#allocation2 + $0x1e8] sm:$0xff]
      %v3181 = vld [vmem:[#allocation2 + $0x1f0] sm:$0xff]
      %v3182 = vld [vmem:[#allocation2 + $0x1f8] sm:$0xff]
      %v3183 = vld [vmem:[#allocation2 + $0x210] sm:$0xff]
      %v3184 = vld [vmem:[#allocation2 + $0x218] sm:$0xff]
      %v3185 = vld [vmem:[#allocation2 + $0x220] sm:$0xff]
      %v3186 = vld [vmem:[#allocation2 + $0x238] sm:$0xff]
      %v3187 = vld [vmem:[#allocation2 + $0x240] sm:$0xff]
      %v3188 = vld [vmem:[#allocation2 + $0x248] sm:$0xff]
      %v3189 = vld [vmem:[#allocation2 + $0x260] sm:$0xff]
      %v3190 = vld [vmem:[#allocation2 + $0x268] sm:$0xff]
      %v3191 = vld [vmem:[#allocation2 + $0x270] sm:$0xff]
      %v3192 = vld [vmem:[#allocation2 + $0x288] sm:$0xff]
      %v3193 = vld [vmem:[#allocation2 + $0x290] sm:$0xff]
      %v3194 = vld [vmem:[#allocation2 + $0x298] sm:$0xff]
      %v3195 = vld [vmem:[#allocation2 + $0x2b0] sm:$0xff]
      %v3196 = vld [vmem:[#allocation2 + $0x2b8] sm:$0xff]
      %v3197 = vld [vmem:[#allocation2 + $0x2c0] sm:$0xff]
      %v3198 = vld [vmem:[#allocation2 + $0x2d8] sm:$0xff]
      %v3199 = vld [vmem:[#allocation2 + $0x2e0] sm:$0xff]
      %v3200 = vld [vmem:[#allocation2 + $0x2e8] sm:$0xff]
      %v3201 = vld [vmem:[#allocation2 + $0x300] sm:$0xff]
      %v3202 = vld [vmem:[#allocation2 + $0x308] sm:$0xff]
      %v3203 = vld [vmem:[#allocation2 + $0x310] sm:$0xff]
      %v3204 = vld [vmem:[#allocation2 + $0x328] sm:$0xff]
      %v3205 = vld [vmem:[#allocation2 + $0x330] sm:$0xff]
      %v3206 = vld [vmem:[#allocation2 + $0x338] sm:$0xff]
      %v3207 = vld [vmem:[#allocation2 + $0x350] sm:$0xff]
      %v3208 = vld [vmem:[#allocation2 + $0x358] sm:$0xff]
      %v3209 = vld [vmem:[#allocation2 + $0x360] sm:$0xff]
      %v3210 = vld [vmem:[#allocation2 + $0x378] sm:$0xff]
      %v3211 = vld [vmem:[#allocation2 + $0x380] sm:$0xff]
      %v3212 = vld [vmem:[#allocation2 + $0x388] sm:$0xff]
      %v3213 = vld [vmem:[#allocation2 + $0x3a0] sm:$0xff]
      %v3214 = vld [vmem:[#allocation2 + $0x3a8] sm:$0xff]
      %v3215 = vld [vmem:[#allocation2 + $0x3b0] sm:$0xff]
      %v3216 = vld [vmem:[#allocation2 + $0x3c8] sm:$0xff]
      %v3217 = vld [vmem:[#allocation2 + $0x3d0] sm:$0xff]
      %v3218 = vld [vmem:[#allocation2 + $0x3d8] sm:$0xff]
      %v3219 = vld [vmem:[#allocation2 + $0x3f0] sm:$0xff]
      %v3220 = vld [vmem:[#allocation2 + $0x3f8] sm:$0xff]
      %v3221 = vld [vmem:[#allocation2 + $0x400] sm:$0xff]
      %v3222 = vld [vmem:[#allocation2 + $0x9] sm:$0xff]
      %v3223 = vld [vmem:[#allocation2 + $0x11] sm:$0xff]
      %v3224 = vld [vmem:[#allocation2 + $0x19] sm:$0xff]
      %v3225 = vld [vmem:[#allocation2 + $0x31] sm:$0xff]
      %v3226 = vld [vmem:[#allocation2 + $0x39] sm:$0xff]
      %v3227 = vld [vmem:[#allocation2 + $0x41] sm:$0xff]
      %v3228 = vld [vmem:[#allocation2 + $0x59] sm:$0xff]
      %v3229 = vld [vmem:[#allocation2 + $0x61] sm:$0xff]
      %v3230 = vld [vmem:[#allocation2 + $0x69] sm:$0xff]
      %v3231 = vld [vmem:[#allocation2 + $0x81] sm:$0xff]
      %v3232 = vld [vmem:[#allocation2 + $0x89] sm:$0xff]
      %v3233 = vld [vmem:[#allocation2 + $0x91] sm:$0xff]
      %v3234 = vld [vmem:[#allocation2 + $0xa9] sm:$0xff]
      %v3235 = vld [vmem:[#allocation2 + $0xb1] sm:$0xff]
      %v3236 = vld [vmem:[#allocation2 + $0xb9] sm:$0xff]
      %v3237 = vld [vmem:[#allocation2 + $0xd1] sm:$0xff]
      %v3238 = vld [vmem:[#allocation2 + $0xd9] sm:$0xff]
      %v3239 = vld [vmem:[#allocation2 + $0xe1] sm:$0xff]
      %v3240 = vld [vmem:[#allocation2 + $0xf9] sm:$0xff]
      %v3241 = vld [vmem:[#allocation2 + $0x101] sm:$0xff]
      %v3242 = vld [vmem:[#allocation2 + $0x109] sm:$0xff]
      %v3243 = vld [vmem:[#allocation2 + $0x121] sm:$0xff]
      %v3244 = vld [vmem:[#allocation2 + $0x129] sm:$0xff]
      %v3245 = vld [vmem:[#allocation2 + $0x131] sm:$0xff]
      %v3246 = vld [vmem:[#allocation2 + $0x149] sm:$0xff]
      %v3247 = vld [vmem:[#allocation2 + $0x151] sm:$0xff]
      %v3248 = vld [vmem:[#allocation2 + $0x159] sm:$0xff]
      %v3249 = vld [vmem:[#allocation2 + $0x171] sm:$0xff]
      %v3250 = vld [vmem:[#allocation2 + $0x179] sm:$0xff]
      %v3251 = vld [vmem:[#allocation2 + $0x181] sm:$0xff]
      %v3252 = vld [vmem:[#allocation2 + $0x199] sm:$0xff]
      %v3253 = vld [vmem:[#allocation2 + $0x1a1] sm:$0xff]
      %v3254 = vld [vmem:[#allocation2 + $0x1a9] sm:$0xff]
      %v3255 = vld [vmem:[#allocation2 + $0x1c1] sm:$0xff]
      %v3256 = vld [vmem:[#allocation2 + $0x1c9] sm:$0xff]
      %v3257 = vld [vmem:[#allocation2 + $0x1d1] sm:$0xff]
      %v3258 = vld [vmem:[#allocation2 + $0x1e9] sm:$0xff]
      %v3259 = vld [vmem:[#allocation2 + $0x1f1] sm:$0xff]
      %v3260 = vld [vmem:[#allocation2 + $0x1f9] sm:$0xff]
      %v3261 = vld [vmem:[#allocation2 + $0x211] sm:$0xff]
      %v3262 = vld [vmem:[#allocation2 + $0x219] sm:$0xff]
      %v3263 = vld [vmem:[#allocation2 + $0x221] sm:$0xff]
      %v3264 = vld [vmem:[#allocation2 + $0x239] sm:$0xff]
      %v3265 = vld [vmem:[#allocation2 + $0x241] sm:$0xff]
      %v3266 = vld [vmem:[#allocation2 + $0x249] sm:$0xff]
      %v3267 = vld [vmem:[#allocation2 + $0x261] sm:$0xff]
      %v3268 = vld [vmem:[#allocation2 + $0x269] sm:$0xff]
      %v3269 = vld [vmem:[#allocation2 + $0x271] sm:$0xff]
      %v3270 = vld [vmem:[#allocation2 + $0x289] sm:$0xff]
      %v3271 = vld [vmem:[#allocation2 + $0x291] sm:$0xff]
      %v3272 = vld [vmem:[#allocation2 + $0x299] sm:$0xff]
      %v3273 = vld [vmem:[#allocation2 + $0x2b1] sm:$0xff]
      %v3274 = vld [vmem:[#allocation2 + $0x2b9] sm:$0xff]
      %v3275 = vld [vmem:[#allocation2 + $0x2c1] sm:$0xff]
      %v3276 = vld [vmem:[#allocation2 + $0x2d9] sm:$0xff]
      %v3277 = vld [vmem:[#allocation2 + $0x2e1] sm:$0xff]
      %v3278 = vld [vmem:[#allocation2 + $0x2e9] sm:$0xff]
      %v3279 = vld [vmem:[#allocation2 + $0x301] sm:$0xff]
      %v3280 = vld [vmem:[#allocation2 + $0x309] sm:$0xff]
      %v3281 = vld [vmem:[#allocation2 + $0x311] sm:$0xff]
      %v3282 = vld [vmem:[#allocation2 + $0x329] sm:$0xff]
      %v3283 = vld [vmem:[#allocation2 + $0x331] sm:$0xff]
      %v3284 = vld [vmem:[#allocation2 + $0x339] sm:$0xff]
      %v3285 = vld [vmem:[#allocation2 + $0x351] sm:$0xff]
      %v3286 = vld [vmem:[#allocation2 + $0x359] sm:$0xff]
      %v3287 = vld [vmem:[#allocation2 + $0x361] sm:$0xff]
      %v3288 = vld [vmem:[#allocation2 + $0x379] sm:$0xff]
      %v3289 = vld [vmem:[#allocation2 + $0x381] sm:$0xff]
      %v3290 = vld [vmem:[#allocation2 + $0x389] sm:$0xff]
      %v3291 = vld [vmem:[#allocation2 + $0x3a1] sm:$0xff]
      %v3292 = vld [vmem:[#allocation2 + $0x3a9] sm:$0xff]
      %v3293 = vld [vmem:[#allocation2 + $0x3b1] sm:$0xff]
      %v3294 = vld [vmem:[#allocation2 + $0x3c9] sm:$0xff]
      %v3295 = vld [vmem:[#allocation2 + $0x3d1] sm:$0xff]
      %v3296 = vld [vmem:[#allocation2 + $0x3d9] sm:$0xff]
      %v3297 = vld [vmem:[#allocation2 + $0x3f1] sm:$0xff]
      %v3298 = vld [vmem:[#allocation2 + $0x3f9] sm:$0xff]
      %v3299 = vld [vmem:[#allocation2 + $0x401] sm:$0xff]
      %v3300 = vld [vmem:[%s5] sm:$0xff]
      %v3301 = vld [vmem:[%s5 + $0x8] sm:$0x1]
      %v3302 = vperm.slane %v3300, 0
      %v3303 = vmul.f32 %v3066, %v3302
      %v3304 = vmul.f32 %v3067, %v3302
      %v3305 = vmul.f32 %v3068, %v3302
      %v3306 = vmul.f32 %v3069, %v3302
      %v3307 = vmul.f32 %v3070, %v3302
      %v3308 = vmul.f32 %v3071, %v3302
      %v3309 = vmul.f32 %v3072, %v3302
      %v3310 = vmul.f32 %v3073, %v3302
      %v3311 = vmul.f32 %v3074, %v3302
      %v3312 = vmul.f32 %v3075, %v3302
      %v3313 = vmul.f32 %v3076, %v3302
      %v3314 = vmul.f32 %v3077, %v3302
      %v3315 = vmul.f32 %v3078, %v3302
      %v3316 = vmul.f32 %v3079, %v3302
      %v3317 = vmul.f32 %v3080, %v3302
      %v3318 = vmul.f32 %v3081, %v3302
      %v3319 = vmul.f32 %v3082, %v3302
      %v3320 = vmul.f32 %v3083, %v3302
      %v3321 = vmul.f32 %v3084, %v3302
      %v3322 = vmul.f32 %v3085, %v3302
      %v3323 = vmul.f32 %v3086, %v3302
      %v3324 = vmul.f32 %v3087, %v3302
      %v3325 = vmul.f32 %v3088, %v3302
      %v3326 = vmul.f32 %v3089, %v3302
      %v3327 = vmul.f32 %v3090, %v3302
      %v3328 = vmul.f32 %v3091, %v3302
      %v3329 = vmul.f32 %v3092, %v3302
      %v3330 = vmul.f32 %v3093, %v3302
      %v3331 = vmul.f32 %v3094, %v3302
      %v3332 = vmul.f32 %v3095, %v3302
      %v3333 = vmul.f32 %v3096, %v3302
      %v3334 = vmul.f32 %v3097, %v3302
      %v3335 = vmul.f32 %v3098, %v3302
      %v3336 = vmul.f32 %v3099, %v3302
      %v3337 = vmul.f32 %v3100, %v3302
      %v3338 = vmul.f32 %v3101, %v3302
      %v3339 = vmul.f32 %v3102, %v3302
      %v3340 = vmul.f32 %v3103, %v3302
      %v3341 = vmul.f32 %v3104, %v3302
      %v3342 = vmul.f32 %v3105, %v3302
      %v3343 = vmul.f32 %v3106, %v3302
      %v3344 = vmul.f32 %v3107, %v3302
      %v3345 = vmul.f32 %v3108, %v3302
      %v3346 = vmul.f32 %v3109, %v3302
      %v3347 = vmul.f32 %v3110, %v3302
      %v3348 = vmul.f32 %v3111, %v3302
      %v3349 = vmul.f32 %v3112, %v3302
      %v3350 = vmul.f32 %v3113, %v3302
      %v3351 = vmul.f32 %v3114, %v3302
      %v3352 = vmul.f32 %v3115, %v3302
      %v3353 = vmul.f32 %v3116, %v3302
      %v3354 = vmul.f32 %v3117, %v3302
      %v3355 = vmul.f32 %v3118, %v3302
      %v3356 = vmul.f32 %v3119, %v3302
      %v3357 = vmul.f32 %v3120, %v3302
      %v3358 = vmul.f32 %v3121, %v3302
      %v3359 = vmul.f32 %v3122, %v3302
      %v3360 = vmul.f32 %v3123, %v3302
      %v3361 = vmul.f32 %v3124, %v3302
      %v3362 = vmul.f32 %v3125, %v3302
      %v3363 = vmul.f32 %v3126, %v3302
      %v3364 = vmul.f32 %v3127, %v3302
      %v3365 = vmul.f32 %v3128, %v3302
      %v3366 = vmul.f32 %v3129, %v3302
      %v3367 = vmul.f32 %v3130, %v3302
      %v3368 = vmul.f32 %v3131, %v3302
      %v3369 = vmul.f32 %v3132, %v3302
      %v3370 = vmul.f32 %v3133, %v3302
      %v3371 = vmul.f32 %v3134, %v3302
      %v3372 = vmul.f32 %v3135, %v3302
      %v3373 = vmul.f32 %v3136, %v3302
      %v3374 = vmul.f32 %v3137, %v3302
      %v3375 = vadd.f32 %v3303, 0.0
      %v3376 = vadd.f32 %v3304, 0.0
      %v3377 = vadd.f32 %v3305, 0.0
      %v3378 = vadd.f32 %v3306, 0.0
      %v3379 = vadd.f32 %v3307, 0.0
      %v3380 = vadd.f32 %v3308, 0.0
      %v3381 = vadd.f32 %v3309, 0.0
      %v3382 = vadd.f32 %v3310, 0.0
      %v3383 = vadd.f32 %v3311, 0.0
      %v3384 = vadd.f32 %v3312, 0.0
      %v3385 = vadd.f32 %v3313, 0.0
      %v3386 = vadd.f32 %v3314, 0.0
      %v3387 = vadd.f32 %v3315, 0.0
      %v3388 = vadd.f32 %v3316, 0.0
      %v3389 = vadd.f32 %v3317, 0.0
      %v3390 = vadd.f32 %v3318, 0.0
      %v3391 = vadd.f32 %v3319, 0.0
      %v3392 = vadd.f32 %v3320, 0.0
      %v3393 = vadd.f32 %v3321, 0.0
      %v3394 = vadd.f32 %v3322, 0.0
      %v3395 = vadd.f32 %v3323, 0.0
      %v3396 = vadd.f32 %v3324, 0.0
      %v3397 = vadd.f32 %v3325, 0.0
      %v3398 = vadd.f32 %v3326, 0.0
      %v3399 = vadd.f32 %v3327, 0.0
      %v3400 = vadd.f32 %v3328, 0.0
      %v3401 = vadd.f32 %v3329, 0.0
      %v3402 = vadd.f32 %v3330, 0.0
      %v3403 = vadd.f32 %v3331, 0.0
      %v3404 = vadd.f32 %v3332, 0.0
      %v3405 = vadd.f32 %v3333, 0.0
      %v3406 = vadd.f32 %v3334, 0.0
      %v3407 = vadd.f32 %v3335, 0.0
      %v3408 = vadd.f32 %v3336, 0.0
      %v3409 = vadd.f32 %v3337, 0.0
      %v3410 = vadd.f32 %v3338, 0.0
      %v3411 = vadd.f32 %v3339, 0.0
      %v3412 = vadd.f32 %v3340, 0.0
      %v3413 = vadd.f32 %v3341, 0.0
      %v3414 = vadd.f32 %v3342, 0.0
      %v3415 = vadd.f32 %v3343, 0.0
      %v3416 = vadd.f32 %v3344, 0.0
      %v3417 = vadd.f32 %v3345, 0.0
      %v3418 = vadd.f32 %v3346, 0.0
      %v3419 = vadd.f32 %v3347, 0.0
      %v3420 = vadd.f32 %v3348, 0.0
      %v3421 = vadd.f32 %v3349, 0.0
      %v3422 = vadd.f32 %v3350, 0.0
      %v3423 = vadd.f32 %v3351, 0.0
      %v3424 = vadd.f32 %v3352, 0.0
      %v3425 = vadd.f32 %v3353, 0.0
      %v3426 = vadd.f32 %v3354, 0.0
      %v3427 = vadd.f32 %v3355, 0.0
      %v3428 = vadd.f32 %v3356, 0.0
      %v3429 = vadd.f32 %v3357, 0.0
      %v3430 = vadd.f32 %v3358, 0.0
      %v3431 = vadd.f32 %v3359, 0.0
      %v3432 = vadd.f32 %v3360, 0.0
      %v3433 = vadd.f32 %v3361, 0.0
      %v3434 = vadd.f32 %v3362, 0.0
      %v3435 = vadd.f32 %v3363, 0.0
      %v3436 = vadd.f32 %v3364, 0.0
      %v3437 = vadd.f32 %v3365, 0.0
      %v3438 = vadd.f32 %v3366, 0.0
      %v3439 = vadd.f32 %v3367, 0.0
      %v3440 = vadd.f32 %v3368, 0.0
      %v3441 = vadd.f32 %v3369, 0.0
      %v3442 = vadd.f32 %v3370, 0.0
      %v3443 = vadd.f32 %v3371, 0.0
      %v3444 = vadd.f32 %v3372, 0.0
      %v3445 = vadd.f32 %v3373, 0.0
      %v3446 = vadd.f32 %v3374, 0.0
      %v3447 = vperm.slane %v3300, 1
      %v3448 = vmul.f32 %v3144, %v3447
      %v3449 = vmul.f32 %v3145, %v3447
      %v3450 = vmul.f32 %v3146, %v3447
      %v3451 = vmul.f32 %v3147, %v3447
      %v3452 = vmul.f32 %v3148, %v3447
      %v3453 = vmul.f32 %v3149, %v3447
      %v3454 = vmul.f32 %v3150, %v3447
      %v3455 = vmul.f32 %v3151, %v3447
      %v3456 = vmul.f32 %v3152, %v3447
      %v3457 = vmul.f32 %v3153, %v3447
      %v3458 = vmul.f32 %v3154, %v3447
      %v3459 = vmul.f32 %v3155, %v3447
      %v3460 = vmul.f32 %v3156, %v3447
      %v3461 = vmul.f32 %v3157, %v3447
      %v3462 = vmul.f32 %v3158, %v3447
      %v3463 = vmul.f32 %v3159, %v3447
      %v3464 = vmul.f32 %v3160, %v3447
      %v3465 = vmul.f32 %v3161, %v3447
      %v3466 = vmul.f32 %v3162, %v3447
      %v3467 = vmul.f32 %v3163, %v3447
      %v3468 = vmul.f32 %v3164, %v3447
      %v3469 = vmul.f32 %v3165, %v3447
      %v3470 = vmul.f32 %v3166, %v3447
      %v3471 = vmul.f32 %v3167, %v3447
      %v3472 = vmul.f32 %v3168, %v3447
      %v3473 = vmul.f32 %v3169, %v3447
      %v3474 = vmul.f32 %v3170, %v3447
      %v3475 = vmul.f32 %v3171, %v3447
      %v3476 = vmul.f32 %v3172, %v3447
      %v3477 = vmul.f32 %v3173, %v3447
      %v3478 = vmul.f32 %v3174, %v3447
      %v3479 = vmul.f32 %v3175, %v3447
      %v3480 = vmul.f32 %v3176, %v3447
      %v3481 = vmul.f32 %v3177, %v3447
      %v3482 = vmul.f32 %v3178, %v3447
      %v3483 = vmul.f32 %v3179, %v3447
      %v3484 = vmul.f32 %v3180, %v3447
      %v3485 = vmul.f32 %v3181, %v3447
      %v3486 = vmul.f32 %v3182, %v3447
      %v3487 = vmul.f32 %v3183, %v3447
      %v3488 = vmul.f32 %v3184, %v3447
      %v3489 = vmul.f32 %v3185, %v3447
      %v3490 = vmul.f32 %v3186, %v3447
      %v3491 = vmul.f32 %v3187, %v3447
      %v3492 = vmul.f32 %v3188, %v3447
      %v3493 = vmul.f32 %v3189, %v3447
      %v3494 = vmul.f32 %v3190, %v3447
      %v3495 = vmul.f32 %v3191, %v3447
      %v3496 = vmul.f32 %v3192, %v3447
      %v3497 = vmul.f32 %v3193, %v3447
      %v3498 = vmul.f32 %v3194, %v3447
      %v3499 = vmul.f32 %v3195, %v3447
      %v3500 = vmul.f32 %v3196, %v3447
      %v3501 = vmul.f32 %v3197, %v3447
      %v3502 = vmul.f32 %v3198, %v3447
      %v3503 = vmul.f32 %v3199, %v3447
      %v3504 = vmul.f32 %v3200, %v3447
      %v3505 = vmul.f32 %v3201, %v3447
      %v3506 = vmul.f32 %v3202, %v3447
      %v3507 = vmul.f32 %v3203, %v3447
      %v3508 = vmul.f32 %v3204, %v3447
      %v3509 = vmul.f32 %v3205, %v3447
      %v3510 = vmul.f32 %v3206, %v3447
      %v3511 = vmul.f32 %v3207, %v3447
      %v3512 = vmul.f32 %v3208, %v3447
      %v3513 = vmul.f32 %v3209, %v3447
      %v3514 = vmul.f32 %v3210, %v3447
      %v3515 = vmul.f32 %v3211, %v3447
      %v3516 = vmul.f32 %v3212, %v3447
      %v3517 = vmul.f32 %v3213, %v3447
      %v3518 = vmul.f32 %v3214, %v3447
      %v3519 = vmul.f32 %v3215, %v3447
      %v3520 = vadd.f32 %v3375, %v3448
      %v3521 = vadd.f32 %v3376, %v3449
      %v3522 = vadd.f32 %v3377, %v3450
      %v3523 = vadd.f32 %v3378, %v3451
      %v3524 = vadd.f32 %v3379, %v3452
      %v3525 = vadd.f32 %v3380, %v3453
      %v3526 = vadd.f32 %v3381, %v3454
      %v3527 = vadd.f32 %v3382, %v3455
      %v3528 = vadd.f32 %v3383, %v3456
      %v3529 = vadd.f32 %v3384, %v3457
      %v3530 = vadd.f32 %v3385, %v3458
      %v3531 = vadd.f32 %v3386, %v3459
      %v3532 = vadd.f32 %v3387, %v3460
      %v3533 = vadd.f32 %v3388, %v3461
      %v3534 = vadd.f32 %v3389, %v3462
      %v3535 = vadd.f32 %v3390, %v3463
      %v3536 = vadd.f32 %v3391, %v3464
      %v3537 = vadd.f32 %v3392, %v3465
      %v3538 = vadd.f32 %v3393, %v3466
      %v3539 = vadd.f32 %v3394, %v3467
      %v3540 = vadd.f32 %v3395, %v3468
      %v3541 = vadd.f32 %v3396, %v3469
      %v3542 = vadd.f32 %v3397, %v3470
      %v3543 = vadd.f32 %v3398, %v3471
      %v3544 = vadd.f32 %v3399, %v3472
      %v3545 = vadd.f32 %v3400, %v3473
      %v3546 = vadd.f32 %v3401, %v3474
      %v3547 = vadd.f32 %v3402, %v3475
      %v3548 = vadd.f32 %v3403, %v3476
      %v3549 = vadd.f32 %v3404, %v3477
      %v3550 = vadd.f32 %v3405, %v3478
      %v3551 = vadd.f32 %v3406, %v3479
      %v3552 = vadd.f32 %v3407, %v3480
      %v3553 = vadd.f32 %v3408, %v3481
      %v3554 = vadd.f32 %v3409, %v3482
      %v3555 = vadd.f32 %v3410, %v3483
      %v3556 = vadd.f32 %v3411, %v3484
      %v3557 = vadd.f32 %v3412, %v3485
      %v3558 = vadd.f32 %v3413, %v3486
      %v3559 = vadd.f32 %v3414, %v3487
      %v3560 = vadd.f32 %v3415, %v3488
      %v3561 = vadd.f32 %v3416, %v3489
      %v3562 = vadd.f32 %v3417, %v3490
      %v3563 = vadd.f32 %v3418, %v3491
      %v3564 = vadd.f32 %v3419, %v3492
      %v3565 = vadd.f32 %v3420, %v3493
      %v3566 = vadd.f32 %v3421, %v3494
      %v3567 = vadd.f32 %v3422, %v3495
      %v3568 = vadd.f32 %v3423, %v3496
      %v3569 = vadd.f32 %v3424, %v3497
      %v3570 = vadd.f32 %v3425, %v3498
      %v3571 = vadd.f32 %v3426, %v3499
      %v3572 = vadd.f32 %v3427, %v3500
      %v3573 = vadd.f32 %v3428, %v3501
      %v3574 = vadd.f32 %v3429, %v3502
      %v3575 = vadd.f32 %v3430, %v3503
      %v3576 = vadd.f32 %v3431, %v3504
      %v3577 = vadd.f32 %v3432, %v3505
      %v3578 = vadd.f32 %v3433, %v3506
      %v3579 = vadd.f32 %v3434, %v3507
      %v3580 = vadd.f32 %v3435, %v3508
      %v3581 = vadd.f32 %v3436, %v3509
      %v3582 = vadd.f32 %v3437, %v3510
      %v3583 = vadd.f32 %v3438, %v3511
      %v3584 = vadd.f32 %v3439, %v3512
      %v3585 = vadd.f32 %v3440, %v3513
      %v3586 = vadd.f32 %v3441, %v3514
      %v3587 = vadd.f32 %v3442, %v3515
      %v3588 = vadd.f32 %v3443, %v3516
      %v3589 = vadd.f32 %v3444, %v3517
      %v3590 = vadd.f32 %v3445, %v3518
      %v3591 = vadd.f32 %v3446, %v3519
      %v3592 = vperm.slane %v3300, 2
      %v3593 = vmul.f32 %v3222, %v3592
      %v3594 = vmul.f32 %v3223, %v3592
      %v3595 = vmul.f32 %v3224, %v3592
      %v3596 = vmul.f32 %v3225, %v3592
      %v3597 = vmul.f32 %v3226, %v3592
      %v3598 = vmul.f32 %v3227, %v3592
      %v3599 = vmul.f32 %v3228, %v3592
      %v3600 = vmul.f32 %v3229, %v3592
      %v3601 = vmul.f32 %v3230, %v3592
      %v3602 = vmul.f32 %v3231, %v3592
      %v3603 = vmul.f32 %v3232, %v3592
      %v3604 = vmul.f32 %v3233, %v3592
      %v3605 = vmul.f32 %v3234, %v3592
      %v3606 = vmul.f32 %v3235, %v3592
      %v3607 = vmul.f32 %v3236, %v3592
      %v3608 = vmul.f32 %v3237, %v3592
      %v3609 = vmul.f32 %v3238, %v3592
      %v3610 = vmul.f32 %v3239, %v3592
      %v3611 = vmul.f32 %v3240, %v3592
      %v3612 = vmul.f32 %v3241, %v3592
      %v3613 = vmul.f32 %v3242, %v3592
      %v3614 = vmul.f32 %v3243, %v3592
      %v3615 = vmul.f32 %v3244, %v3592
      %v3616 = vmul.f32 %v3245, %v3592
      %v3617 = vmul.f32 %v3246, %v3592
      %v3618 = vmul.f32 %v3247, %v3592
      %v3619 = vmul.f32 %v3248, %v3592
      %v3620 = vmul.f32 %v3249, %v3592
      %v3621 = vmul.f32 %v3250, %v3592
      %v3622 = vmul.f32 %v3251, %v3592
      %v3623 = vmul.f32 %v3252, %v3592
      %v3624 = vmul.f32 %v3253, %v3592
      %v3625 = vmul.f32 %v3254, %v3592
      %v3626 = vmul.f32 %v3255, %v3592
      %v3627 = vmul.f32 %v3256, %v3592
      %v3628 = vmul.f32 %v3257, %v3592
      %v3629 = vmul.f32 %v3258, %v3592
      %v3630 = vmul.f32 %v3259, %v3592
      %v3631 = vmul.f32 %v3260, %v3592
      %v3632 = vmul.f32 %v3261, %v3592
      %v3633 = vmul.f32 %v3262, %v3592
      %v3634 = vmul.f32 %v3263, %v3592
      %v3635 = vmul.f32 %v3264, %v3592
      %v3636 = vmul.f32 %v3265, %v3592
      %v3637 = vmul.f32 %v3266, %v3592
      %v3638 = vmul.f32 %v3267, %v3592
      %v3639 = vmul.f32 %v3268, %v3592
      %v3640 = vmul.f32 %v3269, %v3592
      %v3641 = vmul.f32 %v3270, %v3592
      %v3642 = vmul.f32 %v3271, %v3592
      %v3643 = vmul.f32 %v3272, %v3592
      %v3644 = vmul.f32 %v3273, %v3592
      %v3645 = vmul.f32 %v3274, %v3592
      %v3646 = vmul.f32 %v3275, %v3592
      %v3647 = vmul.f32 %v3276, %v3592
      %v3648 = vmul.f32 %v3277, %v3592
      %v3649 = vmul.f32 %v3278, %v3592
      %v3650 = vmul.f32 %v3279, %v3592
      %v3651 = vmul.f32 %v3280, %v3592
      %v3652 = vmul.f32 %v3281, %v3592
      %v3653 = vmul.f32 %v3282, %v3592
      %v3654 = vmul.f32 %v3283, %v3592
      %v3655 = vmul.f32 %v3284, %v3592
      %v3656 = vmul.f32 %v3285, %v3592
      %v3657 = vmul.f32 %v3286, %v3592
      %v3658 = vmul.f32 %v3287, %v3592
      %v3659 = vmul.f32 %v3288, %v3592
      %v3660 = vmul.f32 %v3289, %v3592
      %v3661 = vmul.f32 %v3290, %v3592
      %v3662 = vmul.f32 %v3291, %v3592
      %v3663 = vmul.f32 %v3292, %v3592
      %v3664 = vmul.f32 %v3293, %v3592
      %v3665 = vadd.f32 %v3520, %v3593
      %v3666 = vadd.f32 %v3521, %v3594
      %v3667 = vadd.f32 %v3522, %v3595
      %v3668 = vadd.f32 %v3523, %v3596
      %v3669 = vadd.f32 %v3524, %v3597
      %v3670 = vadd.f32 %v3525, %v3598
      %v3671 = vadd.f32 %v3526, %v3599
      %v3672 = vadd.f32 %v3527, %v3600
      %v3673 = vadd.f32 %v3528, %v3601
      %v3674 = vadd.f32 %v3529, %v3602
      %v3675 = vadd.f32 %v3530, %v3603
      %v3676 = vadd.f32 %v3531, %v3604
      %v3677 = vadd.f32 %v3532, %v3605
      %v3678 = vadd.f32 %v3533, %v3606
      %v3679 = vadd.f32 %v3534, %v3607
      %v3680 = vadd.f32 %v3535, %v3608
      %v3681 = vadd.f32 %v3536, %v3609
      %v3682 = vadd.f32 %v3537, %v3610
      %v3683 = vadd.f32 %v3538, %v3611
      %v3684 = vadd.f32 %v3539, %v3612
      %v3685 = vadd.f32 %v3540, %v3613
      %v3686 = vadd.f32 %v3541, %v3614
      %v3687 = vadd.f32 %v3542, %v3615
      %v3688 = vadd.f32 %v3543, %v3616
      %v3689 = vadd.f32 %v3544, %v3617
      %v3690 = vadd.f32 %v3545, %v3618
      %v3691 = vadd.f32 %v3546, %v3619
      %v3692 = vadd.f32 %v3547, %v3620
      %v3693 = vadd.f32 %v3548, %v3621
      %v3694 = vadd.f32 %v3549, %v3622
      %v3695 = vadd.f32 %v3550, %v3623
      %v3696 = vadd.f32 %v3551, %v3624
      %v3697 = vadd.f32 %v3552, %v3625
      %v3698 = vadd.f32 %v3553, %v3626
      %v3699 = vadd.f32 %v3554, %v3627
      %v3700 = vadd.f32 %v3555, %v3628
      %v3701 = vadd.f32 %v3556, %v3629
      %v3702 = vadd.f32 %v3557, %v3630
      %v3703 = vadd.f32 %v3558, %v3631
      %v3704 = vadd.f32 %v3559, %v3632
      %v3705 = vadd.f32 %v3560, %v3633
      %v3706 = vadd.f32 %v3561, %v3634
      %v3707 = vadd.f32 %v3562, %v3635
      %v3708 = vadd.f32 %v3563, %v3636
      %v3709 = vadd.f32 %v3564, %v3637
      %v3710 = vadd.f32 %v3565, %v3638
      %v3711 = vadd.f32 %v3566, %v3639
      %v3712 = vadd.f32 %v3567, %v3640
      %v3713 = vadd.f32 %v3568, %v3641
      %v3714 = vadd.f32 %v3569, %v3642
      %v3715 = vadd.f32 %v3570, %v3643
      %v3716 = vadd.f32 %v3571, %v3644
      %v3717 = vadd.f32 %v3572, %v3645
      %v3718 = vadd.f32 %v3573, %v3646
      %v3719 = vadd.f32 %v3574, %v3647
      %v3720 = vadd.f32 %v3575, %v3648
      %v3721 = vadd.f32 %v3576, %v3649
      %v3722 = vadd.f32 %v3577, %v3650
      %v3723 = vadd.f32 %v3578, %v3651
      %v3724 = vadd.f32 %v3579, %v3652
      %v3725 = vadd.f32 %v3580, %v3653
      %v3726 = vadd.f32 %v3581, %v3654
      %v3727 = vadd.f32 %v3582, %v3655
      %v3728 = vadd.f32 %v3583, %v3656
      %v3729 = vadd.f32 %v3584, %v3657
      %v3730 = vadd.f32 %v3585, %v3658
      %v3731 = vadd.f32 %v3586, %v3659
      %v3732 = vadd.f32 %v3587, %v3660
      %v3733 = vadd.f32 %v3588, %v3661
      %v3734 = vadd.f32 %v3589, %v3662
      %v3735 = vadd.f32 %v3590, %v3663
      %v3736 = vadd.f32 %v3591, %v3664
      %v3737 = vperm.slane %v3300, 3
      %v3738 = vmul.f32 %v3069, %v3737
      %v3739 = vmul.f32 %v3070, %v3737
      %v3740 = vmul.f32 %v3071, %v3737
      %v3741 = vmul.f32 %v3072, %v3737
      %v3742 = vmul.f32 %v3073, %v3737
      %v3743 = vmul.f32 %v3074, %v3737
      %v3744 = vmul.f32 %v3075, %v3737
      %v3745 = vmul.f32 %v3076, %v3737
      %v3746 = vmul.f32 %v3077, %v3737
      %v3747 = vmul.f32 %v3078, %v3737
      %v3748 = vmul.f32 %v3079, %v3737
      %v3749 = vmul.f32 %v3080, %v3737
      %v3750 = vmul.f32 %v3081, %v3737
      %v3751 = vmul.f32 %v3082, %v3737
      %v3752 = vmul.f32 %v3083, %v3737
      %v3753 = vmul.f32 %v3084, %v3737
      %v3754 = vmul.f32 %v3085, %v3737
      %v3755 = vmul.f32 %v3086, %v3737
      %v3756 = vmul.f32 %v3087, %v3737
      %v3757 = vmul.f32 %v3088, %v3737
      %v3758 = vmul.f32 %v3089, %v3737
      %v3759 = vmul.f32 %v3090, %v3737
      %v3760 = vmul.f32 %v3091, %v3737
      %v3761 = vmul.f32 %v3092, %v3737
      %v3762 = vmul.f32 %v3093, %v3737
      %v3763 = vmul.f32 %v3094, %v3737
      %v3764 = vmul.f32 %v3095, %v3737
      %v3765 = vmul.f32 %v3096, %v3737
      %v3766 = vmul.f32 %v3097, %v3737
      %v3767 = vmul.f32 %v3098, %v3737
      %v3768 = vmul.f32 %v3099, %v3737
      %v3769 = vmul.f32 %v3100, %v3737
      %v3770 = vmul.f32 %v3101, %v3737
      %v3771 = vmul.f32 %v3102, %v3737
      %v3772 = vmul.f32 %v3103, %v3737
      %v3773 = vmul.f32 %v3104, %v3737
      %v3774 = vmul.f32 %v3105, %v3737
      %v3775 = vmul.f32 %v3106, %v3737
      %v3776 = vmul.f32 %v3107, %v3737
      %v3777 = vmul.f32 %v3108, %v3737
      %v3778 = vmul.f32 %v3109, %v3737
      %v3779 = vmul.f32 %v3110, %v3737
      %v3780 = vmul.f32 %v3111, %v3737
      %v3781 = vmul.f32 %v3112, %v3737
      %v3782 = vmul.f32 %v3113, %v3737
      %v3783 = vmul.f32 %v3114, %v3737
      %v3784 = vmul.f32 %v3115, %v3737
      %v3785 = vmul.f32 %v3116, %v3737
      %v3786 = vmul.f32 %v3117, %v3737
      %v3787 = vmul.f32 %v3118, %v3737
      %v3788 = vmul.f32 %v3119, %v3737
      %v3789 = vmul.f32 %v3120, %v3737
      %v3790 = vmul.f32 %v3121, %v3737
      %v3791 = vmul.f32 %v3122, %v3737
      %v3792 = vmul.f32 %v3123, %v3737
      %v3793 = vmul.f32 %v3124, %v3737
      %v3794 = vmul.f32 %v3125, %v3737
      %v3795 = vmul.f32 %v3126, %v3737
      %v3796 = vmul.f32 %v3127, %v3737
      %v3797 = vmul.f32 %v3128, %v3737
      %v3798 = vmul.f32 %v3129, %v3737
      %v3799 = vmul.f32 %v3130, %v3737
      %v3800 = vmul.f32 %v3131, %v3737
      %v3801 = vmul.f32 %v3132, %v3737
      %v3802 = vmul.f32 %v3133, %v3737
      %v3803 = vmul.f32 %v3134, %v3737
      %v3804 = vmul.f32 %v3135, %v3737
      %v3805 = vmul.f32 %v3136, %v3737
      %v3806 = vmul.f32 %v3137, %v3737
      %v3807 = vmul.f32 %v3138, %v3737
      %v3808 = vmul.f32 %v3139, %v3737
      %v3809 = vmul.f32 %v3140, %v3737
      %v3810 = vadd.f32 %v3665, %v3738
      %v3811 = vadd.f32 %v3666, %v3739
      %v3812 = vadd.f32 %v3667, %v3740
      %v3813 = vadd.f32 %v3668, %v3741
      %v3814 = vadd.f32 %v3669, %v3742
      %v3815 = vadd.f32 %v3670, %v3743
      %v3816 = vadd.f32 %v3671, %v3744
      %v3817 = vadd.f32 %v3672, %v3745
      %v3818 = vadd.f32 %v3673, %v3746
      %v3819 = vadd.f32 %v3674, %v3747
      %v3820 = vadd.f32 %v3675, %v3748
      %v3821 = vadd.f32 %v3676, %v3749
      %v3822 = vadd.f32 %v3677, %v3750
      %v3823 = vadd.f32 %v3678, %v3751
      %v3824 = vadd.f32 %v3679, %v3752
      %v3825 = vadd.f32 %v3680, %v3753
      %v3826 = vadd.f32 %v3681, %v3754
      %v3827 = vadd.f32 %v3682, %v3755
      %v3828 = vadd.f32 %v3683, %v3756
      %v3829 = vadd.f32 %v3684, %v3757
      %v3830 = vadd.f32 %v3685, %v3758
      %v3831 = vadd.f32 %v3686, %v3759
      %v3832 = vadd.f32 %v3687, %v3760
      %v3833 = vadd.f32 %v3688, %v3761
      %v3834 = vadd.f32 %v3689, %v3762
      %v3835 = vadd.f32 %v3690, %v3763
      %v3836 = vadd.f32 %v3691, %v3764
      %v3837 = vadd.f32 %v3692, %v3765
      %v3838 = vadd.f32 %v3693, %v3766
      %v3839 = vadd.f32 %v3694, %v3767
      %v3840 = vadd.f32 %v3695, %v3768
      %v3841 = vadd.f32 %v3696, %v3769
      %v3842 = vadd.f32 %v3697, %v3770
      %v3843 = vadd.f32 %v3698, %v3771
      %v3844 = vadd.f32 %v3699, %v3772
      %v3845 = vadd.f32 %v3700, %v3773
      %v3846 = vadd.f32 %v3701, %v3774
      %v3847 = vadd.f32 %v3702, %v3775
      %v3848 = vadd.f32 %v3703, %v3776
      %v3849 = vadd.f32 %v3704, %v3777
      %v3850 = vadd.f32 %v3705, %v3778
      %v3851 = vadd.f32 %v3706, %v3779
      %v3852 = vadd.f32 %v3707, %v3780
      %v3853 = vadd.f32 %v3708, %v3781
      %v3854 = vadd.f32 %v3709, %v3782
      %v3855 = vadd.f32 %v3710, %v3783
      %v3856 = vadd.f32 %v3711, %v3784
      %v3857 = vadd.f32 %v3712, %v3785
      %v3858 = vadd.f32 %v3713, %v3786
      %v3859 = vadd.f32 %v3714, %v3787
      %v3860 = vadd.f32 %v3715, %v3788
      %v3861 = vadd.f32 %v3716, %v3789
      %v3862 = vadd.f32 %v3717, %v3790
      %v3863 = vadd.f32 %v3718, %v3791
      %v3864 = vadd.f32 %v3719, %v3792
      %v3865 = vadd.f32 %v3720, %v3793
      %v3866 = vadd.f32 %v3721, %v3794
      %v3867 = vadd.f32 %v3722, %v3795
      %v3868 = vadd.f32 %v3723, %v3796
      %v3869 = vadd.f32 %v3724, %v3797
      %v3870 = vadd.f32 %v3725, %v3798
      %v3871 = vadd.f32 %v3726, %v3799
      %v3872 = vadd.f32 %v3727, %v3800
      %v3873 = vadd.f32 %v3728, %v3801
      %v3874 = vadd.f32 %v3729, %v3802
      %v3875 = vadd.f32 %v3730, %v3803
      %v3876 = vadd.f32 %v3731, %v3804
      %v3877 = vadd.f32 %v3732, %v3805
      %v3878 = vadd.f32 %v3733, %v3806
      %v3879 = vadd.f32 %v3734, %v3807
      %v3880 = vadd.f32 %v3735, %v3808
      %v3881 = vadd.f32 %v3736, %v3809
      %v3882 = vperm.slane %v3300, 4
      %v3883 = vmul.f32 %v3147, %v3882
      %v3884 = vmul.f32 %v3148, %v3882
      %v3885 = vmul.f32 %v3149, %v3882
      %v3886 = vmul.f32 %v3150, %v3882
      %v3887 = vmul.f32 %v3151, %v3882
      %v3888 = vmul.f32 %v3152, %v3882
      %v3889 = vmul.f32 %v3153, %v3882
      %v3890 = vmul.f32 %v3154, %v3882
      %v3891 = vmul.f32 %v3155, %v3882
      %v3892 = vmul.f32 %v3156, %v3882
      %v3893 = vmul.f32 %v3157, %v3882
      %v3894 = vmul.f32 %v3158, %v3882
      %v3895 = vmul.f32 %v3159, %v3882
      %v3896 = vmul.f32 %v3160, %v3882
      %v3897 = vmul.f32 %v3161, %v3882
      %v3898 = vmul.f32 %v3162, %v3882
      %v3899 = vmul.f32 %v3163, %v3882
      %v3900 = vmul.f32 %v3164, %v3882
      %v3901 = vmul.f32 %v3165, %v3882
      %v3902 = vmul.f32 %v3166, %v3882
      %v3903 = vmul.f32 %v3167, %v3882
      %v3904 = vmul.f32 %v3168, %v3882
      %v3905 = vmul.f32 %v3169, %v3882
      %v3906 = vmul.f32 %v3170, %v3882
      %v3907 = vmul.f32 %v3171, %v3882
      %v3908 = vmul.f32 %v3172, %v3882
      %v3909 = vmul.f32 %v3173, %v3882
      %v3910 = vmul.f32 %v3174, %v3882
      %v3911 = vmul.f32 %v3175, %v3882
      %v3912 = vmul.f32 %v3176, %v3882
      %v3913 = vmul.f32 %v3177, %v3882
      %v3914 = vmul.f32 %v3178, %v3882
      %v3915 = vmul.f32 %v3179, %v3882
      %v3916 = vmul.f32 %v3180, %v3882
      %v3917 = vmul.f32 %v3181, %v3882
      %v3918 = vmul.f32 %v3182, %v3882
      %v3919 = vmul.f32 %v3183, %v3882
      %v3920 = vmul.f32 %v3184, %v3882
      %v3921 = vmul.f32 %v3185, %v3882
      %v3922 = vmul.f32 %v3186, %v3882
      %v3923 = vmul.f32 %v3187, %v3882
      %v3924 = vmul.f32 %v3188, %v3882
      %v3925 = vmul.f32 %v3189, %v3882
      %v3926 = vmul.f32 %v3190, %v3882
      %v3927 = vmul.f32 %v3191, %v3882
      %v3928 = vmul.f32 %v3192, %v3882
      %v3929 = vmul.f32 %v3193, %v3882
      %v3930 = vmul.f32 %v3194, %v3882
      %v3931 = vmul.f32 %v3195, %v3882
      %v3932 = vmul.f32 %v3196, %v3882
      %v3933 = vmul.f32 %v3197, %v3882
      %v3934 = vmul.f32 %v3198, %v3882
      %v3935 = vmul.f32 %v3199, %v3882
      %v3936 = vmul.f32 %v3200, %v3882
      %v3937 = vmul.f32 %v3201, %v3882
      %v3938 = vmul.f32 %v3202, %v3882
      %v3939 = vmul.f32 %v3203, %v3882
      %v3940 = vmul.f32 %v3204, %v3882
      %v3941 = vmul.f32 %v3205, %v3882
      %v3942 = vmul.f32 %v3206, %v3882
      %v3943 = vmul.f32 %v3207, %v3882
      %v3944 = vmul.f32 %v3208, %v3882
      %v3945 = vmul.f32 %v3209, %v3882
      %v3946 = vmul.f32 %v3210, %v3882
      %v3947 = vmul.f32 %v3211, %v3882
      %v3948 = vmul.f32 %v3212, %v3882
      %v3949 = vmul.f32 %v3213, %v3882
      %v3950 = vmul.f32 %v3214, %v3882
      %v3951 = vmul.f32 %v3215, %v3882
      %v3952 = vmul.f32 %v3216, %v3882
      %v3953 = vmul.f32 %v3217, %v3882
      %v3954 = vmul.f32 %v3218, %v3882
      %v3955 = vadd.f32 %v3810, %v3883
      %v3956 = vadd.f32 %v3811, %v3884
      %v3957 = vadd.f32 %v3812, %v3885
      %v3958 = vadd.f32 %v3813, %v3886
      %v3959 = vadd.f32 %v3814, %v3887
      %v3960 = vadd.f32 %v3815, %v3888
      %v3961 = vadd.f32 %v3816, %v3889
      %v3962 = vadd.f32 %v3817, %v3890
      %v3963 = vadd.f32 %v3818, %v3891
      %v3964 = vadd.f32 %v3819, %v3892
      %v3965 = vadd.f32 %v3820, %v3893
      %v3966 = vadd.f32 %v3821, %v3894
      %v3967 = vadd.f32 %v3822, %v3895
      %v3968 = vadd.f32 %v3823, %v3896
      %v3969 = vadd.f32 %v3824, %v3897
      %v3970 = vadd.f32 %v3825, %v3898
      %v3971 = vadd.f32 %v3826, %v3899
      %v3972 = vadd.f32 %v3827, %v3900
      %v3973 = vadd.f32 %v3828, %v3901
      %v3974 = vadd.f32 %v3829, %v3902
      %v3975 = vadd.f32 %v3830, %v3903
      %v3976 = vadd.f32 %v3831, %v3904
      %v3977 = vadd.f32 %v3832, %v3905
      %v3978 = vadd.f32 %v3833, %v3906
      %v3979 = vadd.f32 %v3834, %v3907
      %v3980 = vadd.f32 %v3835, %v3908
      %v3981 = vadd.f32 %v3836, %v3909
      %v3982 = vadd.f32 %v3837, %v3910
      %v3983 = vadd.f32 %v3838, %v3911
      %v3984 = vadd.f32 %v3839, %v3912
      %v3985 = vadd.f32 %v3840, %v3913
      %v3986 = vadd.f32 %v3841, %v3914
      %v3987 = vadd.f32 %v3842, %v3915
      %v3988 = vadd.f32 %v3843, %v3916
      %v3989 = vadd.f32 %v3844, %v3917
      %v3990 = vadd.f32 %v3845, %v3918
      %v3991 = vadd.f32 %v3846, %v3919
      %v3992 = vadd.f32 %v3847, %v3920
      %v3993 = vadd.f32 %v3848, %v3921
      %v3994 = vadd.f32 %v3849, %v3922
      %v3995 = vadd.f32 %v3850, %v3923
      %v3996 = vadd.f32 %v3851, %v3924
      %v3997 = vadd.f32 %v3852, %v3925
      %v3998 = vadd.f32 %v3853, %v3926
      %v3999 = vadd.f32 %v3854, %v3927
      %v4000 = vadd.f32 %v3855, %v3928
      %v4001 = vadd.f32 %v3856, %v3929
      %v4002 = vadd.f32 %v3857, %v3930
      %v4003 = vadd.f32 %v3858, %v3931
      %v4004 = vadd.f32 %v3859, %v3932
      %v4005 = vadd.f32 %v3860, %v3933
      %v4006 = vadd.f32 %v3861, %v3934
      %v4007 = vadd.f32 %v3862, %v3935
      %v4008 = vadd.f32 %v3863, %v3936
      %v4009 = vadd.f32 %v3864, %v3937
      %v4010 = vadd.f32 %v3865, %v3938
      %v4011 = vadd.f32 %v3866, %v3939
      %v4012 = vadd.f32 %v3867, %v3940
      %v4013 = vadd.f32 %v3868, %v3941
      %v4014 = vadd.f32 %v3869, %v3942
      %v4015 = vadd.f32 %v3870, %v3943
      %v4016 = vadd.f32 %v3871, %v3944
      %v4017 = vadd.f32 %v3872, %v3945
      %v4018 = vadd.f32 %v3873, %v3946
      %v4019 = vadd.f32 %v3874, %v3947
      %v4020 = vadd.f32 %v3875, %v3948
      %v4021 = vadd.f32 %v3876, %v3949
      %v4022 = vadd.f32 %v3877, %v3950
      %v4023 = vadd.f32 %v3878, %v3951
      %v4024 = vadd.f32 %v3879, %v3952
      %v4025 = vadd.f32 %v3880, %v3953
      %v4026 = vadd.f32 %v3881, %v3954
      %v4027 = vperm.slane %v3300, 5
      %v4028 = vmul.f32 %v3225, %v4027
      %v4029 = vmul.f32 %v3226, %v4027
      %v4030 = vmul.f32 %v3227, %v4027
      %v4031 = vmul.f32 %v3228, %v4027
      %v4032 = vmul.f32 %v3229, %v4027
      %v4033 = vmul.f32 %v3230, %v4027
      %v4034 = vmul.f32 %v3231, %v4027
      %v4035 = vmul.f32 %v3232, %v4027
      %v4036 = vmul.f32 %v3233, %v4027
      %v4037 = vmul.f32 %v3234, %v4027
      %v4038 = vmul.f32 %v3235, %v4027
      %v4039 = vmul.f32 %v3236, %v4027
      %v4040 = vmul.f32 %v3237, %v4027
      %v4041 = vmul.f32 %v3238, %v4027
      %v4042 = vmul.f32 %v3239, %v4027
      %v4043 = vmul.f32 %v3240, %v4027
      %v4044 = vmul.f32 %v3241, %v4027
      %v4045 = vmul.f32 %v3242, %v4027
      %v4046 = vmul.f32 %v3243, %v4027
      %v4047 = vmul.f32 %v3244, %v4027
      %v4048 = vmul.f32 %v3245, %v4027
      %v4049 = vmul.f32 %v3246, %v4027
      %v4050 = vmul.f32 %v3247, %v4027
      %v4051 = vmul.f32 %v3248, %v4027
      %v4052 = vmul.f32 %v3249, %v4027
      %v4053 = vmul.f32 %v3250, %v4027
      %v4054 = vmul.f32 %v3251, %v4027
      %v4055 = vmul.f32 %v3252, %v4027
      %v4056 = vmul.f32 %v3253, %v4027
      %v4057 = vmul.f32 %v3254, %v4027
      %v4058 = vmul.f32 %v3255, %v4027
      %v4059 = vmul.f32 %v3256, %v4027
      %v4060 = vmul.f32 %v3257, %v4027
      %v4061 = vmul.f32 %v3258, %v4027
      %v4062 = vmul.f32 %v3259, %v4027
      %v4063 = vmul.f32 %v3260, %v4027
      %v4064 = vmul.f32 %v3261, %v4027
      %v4065 = vmul.f32 %v3262, %v4027
      %v4066 = vmul.f32 %v3263, %v4027
      %v4067 = vmul.f32 %v3264, %v4027
      %v4068 = vmul.f32 %v3265, %v4027
      %v4069 = vmul.f32 %v3266, %v4027
      %v4070 = vmul.f32 %v3267, %v4027
      %v4071 = vmul.f32 %v3268, %v4027
      %v4072 = vmul.f32 %v3269, %v4027
      %v4073 = vmul.f32 %v3270, %v4027
      %v4074 = vmul.f32 %v3271, %v4027
      %v4075 = vmul.f32 %v3272, %v4027
      %v4076 = vmul.f32 %v3273, %v4027
      %v4077 = vmul.f32 %v3274, %v4027
      %v4078 = vmul.f32 %v3275, %v4027
      %v4079 = vmul.f32 %v3276, %v4027
      %v4080 = vmul.f32 %v3277, %v4027
      %v4081 = vmul.f32 %v3278, %v4027
      %v4082 = vmul.f32 %v3279, %v4027
      %v4083 = vmul.f32 %v3280, %v4027
      %v4084 = vmul.f32 %v3281, %v4027
      %v4085 = vmul.f32 %v3282, %v4027
      %v4086 = vmul.f32 %v3283, %v4027
      %v4087 = vmul.f32 %v3284, %v4027
      %v4088 = vmul.f32 %v3285, %v4027
      %v4089 = vmul.f32 %v3286, %v4027
      %v4090 = vmul.f32 %v3287, %v4027
      %v4091 = vmul.f32 %v3288, %v4027
      %v4092 = vmul.f32 %v3289, %v4027
      %v4093 = vmul.f32 %v3290, %v4027
      %v4094 = vmul.f32 %v3291, %v4027
      %v4095 = vmul.f32 %v3292, %v4027
      %v4096 = vmul.f32 %v3293, %v4027
      %v4097 = vmul.f32 %v3294, %v4027
      %v4098 = vmul.f32 %v3295, %v4027
      %v4099 = vmul.f32 %v3296, %v4027
      %v4100 = vadd.f32 %v3955, %v4028
      %v4101 = vadd.f32 %v3956, %v4029
      %v4102 = vadd.f32 %v3957, %v4030
      %v4103 = vadd.f32 %v3958, %v4031
      %v4104 = vadd.f32 %v3959, %v4032
      %v4105 = vadd.f32 %v3960, %v4033
      %v4106 = vadd.f32 %v3961, %v4034
      %v4107 = vadd.f32 %v3962, %v4035
      %v4108 = vadd.f32 %v3963, %v4036
      %v4109 = vadd.f32 %v3964, %v4037
      %v4110 = vadd.f32 %v3965, %v4038
      %v4111 = vadd.f32 %v3966, %v4039
      %v4112 = vadd.f32 %v3967, %v4040
      %v4113 = vadd.f32 %v3968, %v4041
      %v4114 = vadd.f32 %v3969, %v4042
      %v4115 = vadd.f32 %v3970, %v4043
      %v4116 = vadd.f32 %v3971, %v4044
      %v4117 = vadd.f32 %v3972, %v4045
      %v4118 = vadd.f32 %v3973, %v4046
      %v4119 = vadd.f32 %v3974, %v4047
      %v4120 = vadd.f32 %v3975, %v4048
      %v4121 = vadd.f32 %v3976, %v4049
      %v4122 = vadd.f32 %v3977, %v4050
      %v4123 = vadd.f32 %v3978, %v4051
      %v4124 = vadd.f32 %v3979, %v4052
      %v4125 = vadd.f32 %v3980, %v4053
      %v4126 = vadd.f32 %v3981, %v4054
      %v4127 = vadd.f32 %v3982, %v4055
      %v4128 = vadd.f32 %v3983, %v4056
      %v4129 = vadd.f32 %v3984, %v4057
      %v4130 = vadd.f32 %v3985, %v4058
      %v4131 = vadd.f32 %v3986, %v4059
      %v4132 = vadd.f32 %v3987, %v4060
      %v4133 = vadd.f32 %v3988, %v4061
      %v4134 = vadd.f32 %v3989, %v4062
      %v4135 = vadd.f32 %v3990, %v4063
      %v4136 = vadd.f32 %v3991, %v4064
      %v4137 = vadd.f32 %v3992, %v4065
      %v4138 = vadd.f32 %v3993, %v4066
      %v4139 = vadd.f32 %v3994, %v4067
      %v4140 = vadd.f32 %v3995, %v4068
      %v4141 = vadd.f32 %v3996, %v4069
      %v4142 = vadd.f32 %v3997, %v4070
      %v4143 = vadd.f32 %v3998, %v4071
      %v4144 = vadd.f32 %v3999, %v4072
      %v4145 = vadd.f32 %v4000, %v4073
      %v4146 = vadd.f32 %v4001, %v4074
      %v4147 = vadd.f32 %v4002, %v4075
      %v4148 = vadd.f32 %v4003, %v4076
      %v4149 = vadd.f32 %v4004, %v4077
      %v4150 = vadd.f32 %v4005, %v4078
      %v4151 = vadd.f32 %v4006, %v4079
      %v4152 = vadd.f32 %v4007, %v4080
      %v4153 = vadd.f32 %v4008, %v4081
      %v4154 = vadd.f32 %v4009, %v4082
      %v4155 = vadd.f32 %v4010, %v4083
      %v4156 = vadd.f32 %v4011, %v4084
      %v4157 = vadd.f32 %v4012, %v4085
      %v4158 = vadd.f32 %v4013, %v4086
      %v4159 = vadd.f32 %v4014, %v4087
      %v4160 = vadd.f32 %v4015, %v4088
      %v4161 = vadd.f32 %v4016, %v4089
      %v4162 = vadd.f32 %v4017, %v4090
      %v4163 = vadd.f32 %v4018, %v4091
      %v4164 = vadd.f32 %v4019, %v4092
      %v4165 = vadd.f32 %v4020, %v4093
      %v4166 = vadd.f32 %v4021, %v4094
      %v4167 = vadd.f32 %v4022, %v4095
      %v4168 = vadd.f32 %v4023, %v4096
      %v4169 = vadd.f32 %v4024, %v4097
      %v4170 = vadd.f32 %v4025, %v4098
      %v4171 = vadd.f32 %v4026, %v4099
      %v4172 = vperm.slane %v3300, 6
      %v4173 = vmul.f32 %v3072, %v4172
      %v4174 = vmul.f32 %v3073, %v4172
      %v4175 = vmul.f32 %v3074, %v4172
      %v4176 = vmul.f32 %v3075, %v4172
      %v4177 = vmul.f32 %v3076, %v4172
      %v4178 = vmul.f32 %v3077, %v4172
      %v4179 = vmul.f32 %v3078, %v4172
      %v4180 = vmul.f32 %v3079, %v4172
      %v4181 = vmul.f32 %v3080, %v4172
      %v4182 = vmul.f32 %v3081, %v4172
      %v4183 = vmul.f32 %v3082, %v4172
      %v4184 = vmul.f32 %v3083, %v4172
      %v4185 = vmul.f32 %v3084, %v4172
      %v4186 = vmul.f32 %v3085, %v4172
      %v4187 = vmul.f32 %v3086, %v4172
      %v4188 = vmul.f32 %v3087, %v4172
      %v4189 = vmul.f32 %v3088, %v4172
      %v4190 = vmul.f32 %v3089, %v4172
      %v4191 = vmul.f32 %v3090, %v4172
      %v4192 = vmul.f32 %v3091, %v4172
      %v4193 = vmul.f32 %v3092, %v4172
      %v4194 = vmul.f32 %v3093, %v4172
      %v4195 = vmul.f32 %v3094, %v4172
      %v4196 = vmul.f32 %v3095, %v4172
      %v4197 = vmul.f32 %v3096, %v4172
      %v4198 = vmul.f32 %v3097, %v4172
      %v4199 = vmul.f32 %v3098, %v4172
      %v4200 = vmul.f32 %v3099, %v4172
      %v4201 = vmul.f32 %v3100, %v4172
      %v4202 = vmul.f32 %v3101, %v4172
      %v4203 = vmul.f32 %v3102, %v4172
      %v4204 = vmul.f32 %v3103, %v4172
      %v4205 = vmul.f32 %v3104, %v4172
      %v4206 = vmul.f32 %v3105, %v4172
      %v4207 = vmul.f32 %v3106, %v4172
      %v4208 = vmul.f32 %v3107, %v4172
      %v4209 = vmul.f32 %v3108, %v4172
      %v4210 = vmul.f32 %v3109, %v4172
      %v4211 = vmul.f32 %v3110, %v4172
      %v4212 = vmul.f32 %v3111, %v4172
      %v4213 = vmul.f32 %v3112, %v4172
      %v4214 = vmul.f32 %v3113, %v4172
      %v4215 = vmul.f32 %v3114, %v4172
      %v4216 = vmul.f32 %v3115, %v4172
      %v4217 = vmul.f32 %v3116, %v4172
      %v4218 = vmul.f32 %v3117, %v4172
      %v4219 = vmul.f32 %v3118, %v4172
      %v4220 = vmul.f32 %v3119, %v4172
      %v4221 = vmul.f32 %v3120, %v4172
      %v4222 = vmul.f32 %v3121, %v4172
      %v4223 = vmul.f32 %v3122, %v4172
      %v4224 = vmul.f32 %v3123, %v4172
      %v4225 = vmul.f32 %v3124, %v4172
      %v4226 = vmul.f32 %v3125, %v4172
      %v4227 = vmul.f32 %v3126, %v4172
      %v4228 = vmul.f32 %v3127, %v4172
      %v4229 = vmul.f32 %v3128, %v4172
      %v4230 = vmul.f32 %v3129, %v4172
      %v4231 = vmul.f32 %v3130, %v4172
      %v4232 = vmul.f32 %v3131, %v4172
      %v4233 = vmul.f32 %v3132, %v4172
      %v4234 = vmul.f32 %v3133, %v4172
      %v4235 = vmul.f32 %v3134, %v4172
      %v4236 = vmul.f32 %v3135, %v4172
      %v4237 = vmul.f32 %v3136, %v4172
      %v4238 = vmul.f32 %v3137, %v4172
      %v4239 = vmul.f32 %v3138, %v4172
      %v4240 = vmul.f32 %v3139, %v4172
      %v4241 = vmul.f32 %v3140, %v4172
      %v4242 = vmul.f32 %v3141, %v4172
      %v4243 = vmul.f32 %v3142, %v4172
      %v4244 = vmul.f32 %v3143, %v4172
      %v4245 = vadd.f32 %v4100, %v4173
      %v4246 = vadd.f32 %v4101, %v4174
      %v4247 = vadd.f32 %v4102, %v4175
      %v4248 = vadd.f32 %v4103, %v4176
      %v4249 = vadd.f32 %v4104, %v4177
      %v4250 = vadd.f32 %v4105, %v4178
      %v4251 = vadd.f32 %v4106, %v4179
      %v4252 = vadd.f32 %v4107, %v4180
      %v4253 = vadd.f32 %v4108, %v4181
      %v4254 = vadd.f32 %v4109, %v4182
      %v4255 = vadd.f32 %v4110, %v4183
      %v4256 = vadd.f32 %v4111, %v4184
      %v4257 = vadd.f32 %v4112, %v4185
      %v4258 = vadd.f32 %v4113, %v4186
      %v4259 = vadd.f32 %v4114, %v4187
      %v4260 = vadd.f32 %v4115, %v4188
      %v4261 = vadd.f32 %v4116, %v4189
      %v4262 = vadd.f32 %v4117, %v4190
      %v4263 = vadd.f32 %v4118, %v4191
      %v4264 = vadd.f32 %v4119, %v4192
      %v4265 = vadd.f32 %v4120, %v4193
      %v4266 = vadd.f32 %v4121, %v4194
      %v4267 = vadd.f32 %v4122, %v4195
      %v4268 = vadd.f32 %v4123, %v4196
      %v4269 = vadd.f32 %v4124, %v4197
      %v4270 = vadd.f32 %v4125, %v4198
      %v4271 = vadd.f32 %v4126, %v4199
      %v4272 = vadd.f32 %v4127, %v4200
      %v4273 = vadd.f32 %v4128, %v4201
      %v4274 = vadd.f32 %v4129, %v4202
      %v4275 = vadd.f32 %v4130, %v4203
      %v4276 = vadd.f32 %v4131, %v4204
      %v4277 = vadd.f32 %v4132, %v4205
      %v4278 = vadd.f32 %v4133, %v4206
      %v4279 = vadd.f32 %v4134, %v4207
      %v4280 = vadd.f32 %v4135, %v4208
      %v4281 = vadd.f32 %v4136, %v4209
      %v4282 = vadd.f32 %v4137, %v4210
      %v4283 = vadd.f32 %v4138, %v4211
      %v4284 = vadd.f32 %v4139, %v4212
      %v4285 = vadd.f32 %v4140, %v4213
      %v4286 = vadd.f32 %v4141, %v4214
      %v4287 = vadd.f32 %v4142, %v4215
      %v4288 = vadd.f32 %v4143, %v4216
      %v4289 = vadd.f32 %v4144, %v4217
      %v4290 = vadd.f32 %v4145, %v4218
      %v4291 = vadd.f32 %v4146, %v4219
      %v4292 = vadd.f32 %v4147, %v4220
      %v4293 = vadd.f32 %v4148, %v4221
      %v4294 = vadd.f32 %v4149, %v4222
      %v4295 = vadd.f32 %v4150, %v4223
      %v4296 = vadd.f32 %v4151, %v4224
      %v4297 = vadd.f32 %v4152, %v4225
      %v4298 = vadd.f32 %v4153, %v4226
      %v4299 = vadd.f32 %v4154, %v4227
      %v4300 = vadd.f32 %v4155, %v4228
      %v4301 = vadd.f32 %v4156, %v4229
      %v4302 = vadd.f32 %v4157, %v4230
      %v4303 = vadd.f32 %v4158, %v4231
      %v4304 = vadd.f32 %v4159, %v4232
      %v4305 = vadd.f32 %v4160, %v4233
      %v4306 = vadd.f32 %v4161, %v4234
      %v4307 = vadd.f32 %v4162, %v4235
      %v4308 = vadd.f32 %v4163, %v4236
      %v4309 = vadd.f32 %v4164, %v4237
      %v4310 = vadd.f32 %v4165, %v4238
      %v4311 = vadd.f32 %v4166, %v4239
      %v4312 = vadd.f32 %v4167, %v4240
      %v4313 = vadd.f32 %v4168, %v4241
      %v4314 = vadd.f32 %v4169, %v4242
      %v4315 = vadd.f32 %v4170, %v4243
      %v4316 = vadd.f32 %v4171, %v4244
      %v4317 = vperm.slane %v3300, 7
      %v4318 = vmul.f32 %v3150, %v4317
      %v4319 = vmul.f32 %v3151, %v4317
      %v4320 = vmul.f32 %v3152, %v4317
      %v4321 = vmul.f32 %v3153, %v4317
      %v4322 = vmul.f32 %v3154, %v4317
      %v4323 = vmul.f32 %v3155, %v4317
      %v4324 = vmul.f32 %v3156, %v4317
      %v4325 = vmul.f32 %v3157, %v4317
      %v4326 = vmul.f32 %v3158, %v4317
      %v4327 = vmul.f32 %v3159, %v4317
      %v4328 = vmul.f32 %v3160, %v4317
      %v4329 = vmul.f32 %v3161, %v4317
      %v4330 = vmul.f32 %v3162, %v4317
      %v4331 = vmul.f32 %v3163, %v4317
      %v4332 = vmul.f32 %v3164, %v4317
      %v4333 = vmul.f32 %v3165, %v4317
      %v4334 = vmul.f32 %v3166, %v4317
      %v4335 = vmul.f32 %v3167, %v4317
      %v4336 = vmul.f32 %v3168, %v4317
      %v4337 = vmul.f32 %v3169, %v4317
      %v4338 = vmul.f32 %v3170, %v4317
      %v4339 = vmul.f32 %v3171, %v4317
      %v4340 = vmul.f32 %v3172, %v4317
      %v4341 = vmul.f32 %v3173, %v4317
      %v4342 = vmul.f32 %v3174, %v4317
      %v4343 = vmul.f32 %v3175, %v4317
      %v4344 = vmul.f32 %v3176, %v4317
      %v4345 = vmul.f32 %v3177, %v4317
      %v4346 = vmul.f32 %v3178, %v4317
      %v4347 = vmul.f32 %v3179, %v4317
      %v4348 = vmul.f32 %v3180, %v4317
      %v4349 = vmul.f32 %v3181, %v4317
      %v4350 = vmul.f32 %v3182, %v4317
      %v4351 = vmul.f32 %v3183, %v4317
      %v4352 = vmul.f32 %v3184, %v4317
      %v4353 = vmul.f32 %v3185, %v4317
      %v4354 = vmul.f32 %v3186, %v4317
      %v4355 = vmul.f32 %v3187, %v4317
      %v4356 = vmul.f32 %v3188, %v4317
      %v4357 = vmul.f32 %v3189, %v4317
      %v4358 = vmul.f32 %v3190, %v4317
      %v4359 = vmul.f32 %v3191, %v4317
      %v4360 = vmul.f32 %v3192, %v4317
      %v4361 = vmul.f32 %v3193, %v4317
      %v4362 = vmul.f32 %v3194, %v4317
      %v4363 = vmul.f32 %v3195, %v4317
      %v4364 = vmul.f32 %v3196, %v4317
      %v4365 = vmul.f32 %v3197, %v4317
      %v4366 = vmul.f32 %v3198, %v4317
      %v4367 = vmul.f32 %v3199, %v4317
      %v4368 = vmul.f32 %v3200, %v4317
      %v4369 = vmul.f32 %v3201, %v4317
      %v4370 = vmul.f32 %v3202, %v4317
      %v4371 = vmul.f32 %v3203, %v4317
      %v4372 = vmul.f32 %v3204, %v4317
      %v4373 = vmul.f32 %v3205, %v4317
      %v4374 = vmul.f32 %v3206, %v4317
      %v4375 = vmul.f32 %v3207, %v4317
      %v4376 = vmul.f32 %v3208, %v4317
      %v4377 = vmul.f32 %v3209, %v4317
      %v4378 = vmul.f32 %v3210, %v4317
      %v4379 = vmul.f32 %v3211, %v4317
      %v4380 = vmul.f32 %v3212, %v4317
      %v4381 = vmul.f32 %v3213, %v4317
      %v4382 = vmul.f32 %v3214, %v4317
      %v4383 = vmul.f32 %v3215, %v4317
      %v4384 = vmul.f32 %v3216, %v4317
      %v4385 = vmul.f32 %v3217, %v4317
      %v4386 = vmul.f32 %v3218, %v4317
      %v4387 = vmul.f32 %v3219, %v4317
      %v4388 = vmul.f32 %v3220, %v4317
      %v4389 = vmul.f32 %v3221, %v4317
      %v4390 = vadd.f32 %v4245, %v4318
      %v4391 = vadd.f32 %v4246, %v4319
      %v4392 = vadd.f32 %v4247, %v4320
      %v4393 = vadd.f32 %v4248, %v4321
      %v4394 = vadd.f32 %v4249, %v4322
      %v4395 = vadd.f32 %v4250, %v4323
      %v4396 = vadd.f32 %v4251, %v4324
      %v4397 = vadd.f32 %v4252, %v4325
      %v4398 = vadd.f32 %v4253, %v4326
      %v4399 = vadd.f32 %v4254, %v4327
      %v4400 = vadd.f32 %v4255, %v4328
      %v4401 = vadd.f32 %v4256, %v4329
      %v4402 = vadd.f32 %v4257, %v4330
      %v4403 = vadd.f32 %v4258, %v4331
      %v4404 = vadd.f32 %v4259, %v4332
      %v4405 = vadd.f32 %v4260, %v4333
      %v4406 = vadd.f32 %v4261, %v4334
      %v4407 = vadd.f32 %v4262, %v4335
      %v4408 = vadd.f32 %v4263, %v4336
      %v4409 = vadd.f32 %v4264, %v4337
      %v4410 = vadd.f32 %v4265, %v4338
      %v4411 = vadd.f32 %v4266, %v4339
      %v4412 = vadd.f32 %v4267, %v4340
      %v4413 = vadd.f32 %v4268, %v4341
      %v4414 = vadd.f32 %v4269, %v4342
      %v4415 = vadd.f32 %v4270, %v4343
      %v4416 = vadd.f32 %v4271, %v4344
      %v4417 = vadd.f32 %v4272, %v4345
      %v4418 = vadd.f32 %v4273, %v4346
      %v4419 = vadd.f32 %v4274, %v4347
      %v4420 = vadd.f32 %v4275, %v4348
      %v4421 = vadd.f32 %v4276, %v4349
      %v4422 = vadd.f32 %v4277, %v4350
      %v4423 = vadd.f32 %v4278, %v4351
      %v4424 = vadd.f32 %v4279, %v4352
      %v4425 = vadd.f32 %v4280, %v4353
      %v4426 = vadd.f32 %v4281, %v4354
      %v4427 = vadd.f32 %v4282, %v4355
      %v4428 = vadd.f32 %v4283, %v4356
      %v4429 = vadd.f32 %v4284, %v4357
      %v4430 = vadd.f32 %v4285, %v4358
      %v4431 = vadd.f32 %v4286, %v4359
      %v4432 = vadd.f32 %v4287, %v4360
      %v4433 = vadd.f32 %v4288, %v4361
      %v4434 = vadd.f32 %v4289, %v4362
      %v4435 = vadd.f32 %v4290, %v4363
      %v4436 = vadd.f32 %v4291, %v4364
      %v4437 = vadd.f32 %v4292, %v4365
      %v4438 = vadd.f32 %v4293, %v4366
      %v4439 = vadd.f32 %v4294, %v4367
      %v4440 = vadd.f32 %v4295, %v4368
      %v4441 = vadd.f32 %v4296, %v4369
      %v4442 = vadd.f32 %v4297, %v4370
      %v4443 = vadd.f32 %v4298, %v4371
      %v4444 = vadd.f32 %v4299, %v4372
      %v4445 = vadd.f32 %v4300, %v4373
      %v4446 = vadd.f32 %v4301, %v4374
      %v4447 = vadd.f32 %v4302, %v4375
      %v4448 = vadd.f32 %v4303, %v4376
      %v4449 = vadd.f32 %v4304, %v4377
      %v4450 = vadd.f32 %v4305, %v4378
      %v4451 = vadd.f32 %v4306, %v4379
      %v4452 = vadd.f32 %v4307, %v4380
      %v4453 = vadd.f32 %v4308, %v4381
      %v4454 = vadd.f32 %v4309, %v4382
      %v4455 = vadd.f32 %v4310, %v4383
      %v4456 = vadd.f32 %v4311, %v4384
      %v4457 = vadd.f32 %v4312, %v4385
      %v4458 = vadd.f32 %v4313, %v4386
      %v4459 = vadd.f32 %v4314, %v4387
      %v4460 = vadd.f32 %v4315, %v4388
      %v4461 = vadd.f32 %v4316, %v4389
      %v4462 = vperm.slane %v3301, 0
      %v4463 = vmul.f32 %v3228, %v4462
      %v4464 = vmul.f32 %v3229, %v4462
      %v4465 = vmul.f32 %v3230, %v4462
      %v4466 = vmul.f32 %v3231, %v4462
      %v4467 = vmul.f32 %v3232, %v4462
      %v4468 = vmul.f32 %v3233, %v4462
      %v4469 = vmul.f32 %v3234, %v4462
      %v4470 = vmul.f32 %v3235, %v4462
      %v4471 = vmul.f32 %v3236, %v4462
      %v4472 = vmul.f32 %v3237, %v4462
      %v4473 = vmul.f32 %v3238, %v4462
      %v4474 = vmul.f32 %v3239, %v4462
      %v4475 = vmul.f32 %v3240, %v4462
      %v4476 = vmul.f32 %v3241, %v4462
      %v4477 = vmul.f32 %v3242, %v4462
      %v4478 = vmul.f32 %v3243, %v4462
      %v4479 = vmul.f32 %v3244, %v4462
      %v4480 = vmul.f32 %v3245, %v4462
      %v4481 = vmul.f32 %v3246, %v4462
      %v4482 = vmul.f32 %v3247, %v4462
      %v4483 = vmul.f32 %v3248, %v4462
      %v4484 = vmul.f32 %v3249, %v4462
      %v4485 = vmul.f32 %v3250, %v4462
      %v4486 = vmul.f32 %v3251, %v4462
      %v4487 = vmul.f32 %v3252, %v4462
      %v4488 = vmul.f32 %v3253, %v4462
      %v4489 = vmul.f32 %v3254, %v4462
      %v4490 = vmul.f32 %v3255, %v4462
      %v4491 = vmul.f32 %v3256, %v4462
      %v4492 = vmul.f32 %v3257, %v4462
      %v4493 = vmul.f32 %v3258, %v4462
      %v4494 = vmul.f32 %v3259, %v4462
      %v4495 = vmul.f32 %v3260, %v4462
      %v4496 = vmul.f32 %v3261, %v4462
      %v4497 = vmul.f32 %v3262, %v4462
      %v4498 = vmul.f32 %v3263, %v4462
      %v4499 = vmul.f32 %v3264, %v4462
      %v4500 = vmul.f32 %v3265, %v4462
      %v4501 = vmul.f32 %v3266, %v4462
      %v4502 = vmul.f32 %v3267, %v4462
      %v4503 = vmul.f32 %v3268, %v4462
      %v4504 = vmul.f32 %v3269, %v4462
      %v4505 = vmul.f32 %v3270, %v4462
      %v4506 = vmul.f32 %v3271, %v4462
      %v4507 = vmul.f32 %v3272, %v4462
      %v4508 = vmul.f32 %v3273, %v4462
      %v4509 = vmul.f32 %v3274, %v4462
      %v4510 = vmul.f32 %v3275, %v4462
      %v4511 = vmul.f32 %v3276, %v4462
      %v4512 = vmul.f32 %v3277, %v4462
      %v4513 = vmul.f32 %v3278, %v4462
      %v4514 = vmul.f32 %v3279, %v4462
      %v4515 = vmul.f32 %v3280, %v4462
      %v4516 = vmul.f32 %v3281, %v4462
      %v4517 = vmul.f32 %v3282, %v4462
      %v4518 = vmul.f32 %v3283, %v4462
      %v4519 = vmul.f32 %v3284, %v4462
      %v4520 = vmul.f32 %v3285, %v4462
      %v4521 = vmul.f32 %v3286, %v4462
      %v4522 = vmul.f32 %v3287, %v4462
      %v4523 = vmul.f32 %v3288, %v4462
      %v4524 = vmul.f32 %v3289, %v4462
      %v4525 = vmul.f32 %v3290, %v4462
      %v4526 = vmul.f32 %v3291, %v4462
      %v4527 = vmul.f32 %v3292, %v4462
      %v4528 = vmul.f32 %v3293, %v4462
      %v4529 = vmul.f32 %v3294, %v4462
      %v4530 = vmul.f32 %v3295, %v4462
      %v4531 = vmul.f32 %v3296, %v4462
      %v4532 = vmul.f32 %v3297, %v4462
      %v4533 = vmul.f32 %v3298, %v4462
      %v4534 = vmul.f32 %v3299, %v4462
      %v4535 = vadd.f32 %v4390, %v4463
      %v4536 = vadd.f32 %v4391, %v4464
      %v4537 = vadd.f32 %v4392, %v4465
      %v4538 = vadd.f32 %v4393, %v4466
      %v4539 = vadd.f32 %v4394, %v4467
      %v4540 = vadd.f32 %v4395, %v4468
      %v4541 = vadd.f32 %v4396, %v4469
      %v4542 = vadd.f32 %v4397, %v4470
      %v4543 = vadd.f32 %v4398, %v4471
      %v4544 = vadd.f32 %v4399, %v4472
      %v4545 = vadd.f32 %v4400, %v4473
      %v4546 = vadd.f32 %v4401, %v4474
      %v4547 = vadd.f32 %v4402, %v4475
      %v4548 = vadd.f32 %v4403, %v4476
      %v4549 = vadd.f32 %v4404, %v4477
      %v4550 = vadd.f32 %v4405, %v4478
      %v4551 = vadd.f32 %v4406, %v4479
      %v4552 = vadd.f32 %v4407, %v4480
      %v4553 = vadd.f32 %v4408, %v4481
      %v4554 = vadd.f32 %v4409, %v4482
      %v4555 = vadd.f32 %v4410, %v4483
      %v4556 = vadd.f32 %v4411, %v4484
      %v4557 = vadd.f32 %v4412, %v4485
      %v4558 = vadd.f32 %v4413, %v4486
      %v4559 = vadd.f32 %v4414, %v4487
      %v4560 = vadd.f32 %v4415, %v4488
      %v4561 = vadd.f32 %v4416, %v4489
      %v4562 = vadd.f32 %v4417, %v4490
      %v4563 = vadd.f32 %v4418, %v4491
      %v4564 = vadd.f32 %v4419, %v4492
      %v4565 = vadd.f32 %v4420, %v4493
      %v4566 = vadd.f32 %v4421, %v4494
      %v4567 = vadd.f32 %v4422, %v4495
      %v4568 = vadd.f32 %v4423, %v4496
      %v4569 = vadd.f32 %v4424, %v4497
      %v4570 = vadd.f32 %v4425, %v4498
      %v4571 = vadd.f32 %v4426, %v4499
      %v4572 = vadd.f32 %v4427, %v4500
      %v4573 = vadd.f32 %v4428, %v4501
      %v4574 = vadd.f32 %v4429, %v4502
      %v4575 = vadd.f32 %v4430, %v4503
      %v4576 = vadd.f32 %v4431, %v4504
      %v4577 = vadd.f32 %v4432, %v4505
      %v4578 = vadd.f32 %v4433, %v4506
      %v4579 = vadd.f32 %v4434, %v4507
      %v4580 = vadd.f32 %v4435, %v4508
      %v4581 = vadd.f32 %v4436, %v4509
      %v4582 = vadd.f32 %v4437, %v4510
      %v4583 = vadd.f32 %v4438, %v4511
      %v4584 = vadd.f32 %v4439, %v4512
      %v4585 = vadd.f32 %v4440, %v4513
      %v4586 = vadd.f32 %v4441, %v4514
      %v4587 = vadd.f32 %v4442, %v4515
      %v4588 = vadd.f32 %v4443, %v4516
      %v4589 = vadd.f32 %v4444, %v4517
      %v4590 = vadd.f32 %v4445, %v4518
      %v4591 = vadd.f32 %v4446, %v4519
      %v4592 = vadd.f32 %v4447, %v4520
      %v4593 = vadd.f32 %v4448, %v4521
      %v4594 = vadd.f32 %v4449, %v4522
      %v4595 = vadd.f32 %v4450, %v4523
      %v4596 = vadd.f32 %v4451, %v4524
      %v4597 = vadd.f32 %v4452, %v4525
      %v4598 = vadd.f32 %v4453, %v4526
      %v4599 = vadd.f32 %v4454, %v4527
      %v4600 = vadd.f32 %v4455, %v4528
      %v4601 = vadd.f32 %v4456, %v4529
      %v4602 = vadd.f32 %v4457, %v4530
      %v4603 = vadd.f32 %v4458, %v4531
      %v4604 = vadd.f32 %v4459, %v4532
      %v4605 = vadd.f32 %v4460, %v4533
      %v4606 = vadd.f32 %v4461, %v4534
      %v4607 = vld [vmem:[%s6] sm:$0x1]
      %v4609 = vperm.slane %v4607, 0
      %v4611 = vadd.f32 %v4535, %v4609
      %v4612 = vadd.f32 %v4536, %v4609
      %v4613 = vadd.f32 %v4537, %v4609
      %v4614 = vadd.f32 %v4538, %v4609
      %v4615 = vadd.f32 %v4539, %v4609
      %v4616 = vadd.f32 %v4540, %v4609
      %v4617 = vadd.f32 %v4541, %v4609
      %v4618 = vadd.f32 %v4542, %v4609
      %v4619 = vadd.f32 %v4543, %v4609
      %v4620 = vadd.f32 %v4544, %v4609
      %v4621 = vadd.f32 %v4545, %v4609
      %v4622 = vadd.f32 %v4546, %v4609
      %v4623 = vadd.f32 %v4547, %v4609
      %v4624 = vadd.f32 %v4548, %v4609
      %v4625 = vadd.f32 %v4549, %v4609
      %v4626 = vadd.f32 %v4550, %v4609
      %v4627 = vadd.f32 %v4551, %v4609
      %v4628 = vadd.f32 %v4552, %v4609
      %v4629 = vadd.f32 %v4553, %v4609
      %v4630 = vadd.f32 %v4554, %v4609
      %v4631 = vadd.f32 %v4555, %v4609
      %v4632 = vadd.f32 %v4556, %v4609
      %v4633 = vadd.f32 %v4557, %v4609
      %v4634 = vadd.f32 %v4558, %v4609
      %v4635 = vadd.f32 %v4559, %v4609
      %v4636 = vadd.f32 %v4560, %v4609
      %v4637 = vadd.f32 %v4561, %v4609
      %v4638 = vadd.f32 %v4562, %v4609
      %v4639 = vadd.f32 %v4563, %v4609
      %v4640 = vadd.f32 %v4564, %v4609
      %v4641 = vadd.f32 %v4565, %v4609
      %v4642 = vadd.f32 %v4566, %v4609
      %v4643 = vadd.f32 %v4567, %v4609
      %v4644 = vadd.f32 %v4568, %v4609
      %v4645 = vadd.f32 %v4569, %v4609
      %v4646 = vadd.f32 %v4570, %v4609
      %v4647 = vadd.f32 %v4571, %v4609
      %v4648 = vadd.f32 %v4572, %v4609
      %v4649 = vadd.f32 %v4573, %v4609
      %v4650 = vadd.f32 %v4574, %v4609
      %v4651 = vadd.f32 %v4575, %v4609
      %v4652 = vadd.f32 %v4576, %v4609
      %v4653 = vadd.f32 %v4577, %v4609
      %v4654 = vadd.f32 %v4578, %v4609
      %v4655 = vadd.f32 %v4579, %v4609
      %v4656 = vadd.f32 %v4580, %v4609
      %v4657 = vadd.f32 %v4581, %v4609
      %v4658 = vadd.f32 %v4582, %v4609
      %v4659 = vadd.f32 %v4583, %v4609
      %v4660 = vadd.f32 %v4584, %v4609
      %v4661 = vadd.f32 %v4585, %v4609
      %v4662 = vadd.f32 %v4586, %v4609
      %v4663 = vadd.f32 %v4587, %v4609
      %v4664 = vadd.f32 %v4588, %v4609
      %v4665 = vadd.f32 %v4589, %v4609
      %v4666 = vadd.f32 %v4590, %v4609
      %v4667 = vadd.f32 %v4591, %v4609
      %v4668 = vadd.f32 %v4592, %v4609
      %v4669 = vadd.f32 %v4593, %v4609
      %v4670 = vadd.f32 %v4594, %v4609
      %v4671 = vadd.f32 %v4595, %v4609
      %v4672 = vadd.f32 %v4596, %v4609
      %v4673 = vadd.f32 %v4597, %v4609
      %v4674 = vadd.f32 %v4598, %v4609
      %v4675 = vadd.f32 %v4599, %v4609
      %v4676 = vadd.f32 %v4600, %v4609
      %v4677 = vadd.f32 %v4601, %v4609
      %v4678 = vadd.f32 %v4602, %v4609
      %v4679 = vadd.f32 %v4603, %v4609
      %v4680 = vadd.f32 %v4604, %v4609
      %v4681 = vadd.f32 %v4605, %v4609
      %v4682 = vadd.f32 %v4606, %v4609
      %v4683 = vadd.f32 %v4611, 3.0
      %v4684 = vadd.f32 %v4612, 3.0
      %v4685 = vadd.f32 %v4613, 3.0
      %v4686 = vadd.f32 %v4614, 3.0
      %v4687 = vadd.f32 %v4615, 3.0
      %v4688 = vadd.f32 %v4616, 3.0
      %v4689 = vadd.f32 %v4617, 3.0
      %v4690 = vadd.f32 %v4618, 3.0
      %v4691 = vadd.f32 %v4619, 3.0
      %v4692 = vadd.f32 %v4620, 3.0
      %v4693 = vadd.f32 %v4621, 3.0
      %v4694 = vadd.f32 %v4622, 3.0
      %v4695 = vadd.f32 %v4623, 3.0
      %v4696 = vadd.f32 %v4624, 3.0
      %v4697 = vadd.f32 %v4625, 3.0
      %v4698 = vadd.f32 %v4626, 3.0
      %v4699 = vadd.f32 %v4627, 3.0
      %v4700 = vadd.f32 %v4628, 3.0
      %v4701 = vadd.f32 %v4629, 3.0
      %v4702 = vadd.f32 %v4630, 3.0
      %v4703 = vadd.f32 %v4631, 3.0
      %v4704 = vadd.f32 %v4632, 3.0
      %v4705 = vadd.f32 %v4633, 3.0
      %v4706 = vadd.f32 %v4634, 3.0
      %v4707 = vadd.f32 %v4635, 3.0
      %v4708 = vadd.f32 %v4636, 3.0
      %v4709 = vadd.f32 %v4637, 3.0
      %v4710 = vadd.f32 %v4638, 3.0
      %v4711 = vadd.f32 %v4639, 3.0
      %v4712 = vadd.f32 %v4640, 3.0
      %v4713 = vadd.f32 %v4641, 3.0
      %v4714 = vadd.f32 %v4642, 3.0
      %v4715 = vadd.f32 %v4643, 3.0
      %v4716 = vadd.f32 %v4644, 3.0
      %v4717 = vadd.f32 %v4645, 3.0
      %v4718 = vadd.f32 %v4646, 3.0
      %v4719 = vadd.f32 %v4647, 3.0
      %v4720 = vadd.f32 %v4648, 3.0
      %v4721 = vadd.f32 %v4649, 3.0
      %v4722 = vadd.f32 %v4650, 3.0
      %v4723 = vadd.f32 %v4651, 3.0
      %v4724 = vadd.f32 %v4652, 3.0
      %v4725 = vadd.f32 %v4653, 3.0
      %v4726 = vadd.f32 %v4654, 3.0
      %v4727 = vadd.f32 %v4655, 3.0
      %v4728 = vadd.f32 %v4656, 3.0
      %v4729 = vadd.f32 %v4657, 3.0
      %v4730 = vadd.f32 %v4658, 3.0
      %v4731 = vadd.f32 %v4659, 3.0
      %v4732 = vadd.f32 %v4660, 3.0
      %v4733 = vadd.f32 %v4661, 3.0
      %v4734 = vadd.f32 %v4662, 3.0
      %v4735 = vadd.f32 %v4663, 3.0
      %v4736 = vadd.f32 %v4664, 3.0
      %v4737 = vadd.f32 %v4665, 3.0
      %v4738 = vadd.f32 %v4666, 3.0
      %v4739 = vadd.f32 %v4667, 3.0
      %v4740 = vadd.f32 %v4668, 3.0
      %v4741 = vadd.f32 %v4669, 3.0
      %v4742 = vadd.f32 %v4670, 3.0
      %v4743 = vadd.f32 %v4671, 3.0
      %v4744 = vadd.f32 %v4672, 3.0
      %v4745 = vadd.f32 %v4673, 3.0
      %v4746 = vadd.f32 %v4674, 3.0
      %v4747 = vadd.f32 %v4675, 3.0
      %v4748 = vadd.f32 %v4676, 3.0
      %v4749 = vadd.f32 %v4677, 3.0
      %v4750 = vadd.f32 %v4678, 3.0
      %v4751 = vadd.f32 %v4679, 3.0
      %v4752 = vadd.f32 %v4680, 3.0
      %v4753 = vadd.f32 %v4681, 3.0
      %v4754 = vadd.f32 %v4682, 3.0
      %v4755 = vmax.f32 %v4683, 0.0
      %v4756 = vmax.f32 %v4684, 0.0
      %v4757 = vmax.f32 %v4685, 0.0
      %v4758 = vmax.f32 %v4686, 0.0
      %v4759 = vmax.f32 %v4687, 0.0
      %v4760 = vmax.f32 %v4688, 0.0
      %v4761 = vmax.f32 %v4689, 0.0
      %v4762 = vmax.f32 %v4690, 0.0
      %v4763 = vmax.f32 %v4691, 0.0
      %v4764 = vmax.f32 %v4692, 0.0
      %v4765 = vmax.f32 %v4693, 0.0
      %v4766 = vmax.f32 %v4694, 0.0
      %v4767 = vmax.f32 %v4695, 0.0
      %v4768 = vmax.f32 %v4696, 0.0
      %v4769 = vmax.f32 %v4697, 0.0
      %v4770 = vmax.f32 %v4698, 0.0
      %v4771 = vmax.f32 %v4699, 0.0
      %v4772 = vmax.f32 %v4700, 0.0
      %v4773 = vmax.f32 %v4701, 0.0
      %v4774 = vmax.f32 %v4702, 0.0
      %v4775 = vmax.f32 %v4703, 0.0
      %v4776 = vmax.f32 %v4704, 0.0
      %v4777 = vmax.f32 %v4705, 0.0
      %v4778 = vmax.f32 %v4706, 0.0
      %v4779 = vmax.f32 %v4707, 0.0
      %v4780 = vmax.f32 %v4708, 0.0
      %v4781 = vmax.f32 %v4709, 0.0
      %v4782 = vmax.f32 %v4710, 0.0
      %v4783 = vmax.f32 %v4711, 0.0
      %v4784 = vmax.f32 %v4712, 0.0
      %v4785 = vmax.f32 %v4713, 0.0
      %v4786 = vmax.f32 %v4714, 0.0
      %v4787 = vmax.f32 %v4715, 0.0
      %v4788 = vmax.f32 %v4716, 0.0
      %v4789 = vmax.f32 %v4717, 0.0
      %v4790 = vmax.f32 %v4718, 0.0
      %v4791 = vmax.f32 %v4719, 0.0
      %v4792 = vmax.f32 %v4720, 0.0
      %v4793 = vmax.f32 %v4721, 0.0
      %v4794 = vmax.f32 %v4722, 0.0
      %v4795 = vmax.f32 %v4723, 0.0
      %v4796 = vmax.f32 %v4724, 0.0
      %v4797 = vmax.f32 %v4725, 0.0
      %v4798 = vmax.f32 %v4726, 0.0
      %v4799 = vmax.f32 %v4727, 0.0
      %v4800 = vmax.f32 %v4728, 0.0
      %v4801 = vmax.f32 %v4729, 0.0
      %v4802 = vmax.f32 %v4730, 0.0
      %v4803 = vmax.f32 %v4731, 0.0
      %v4804 = vmax.f32 %v4732, 0.0
      %v4805 = vmax.f32 %v4733, 0.0
      %v4806 = vmax.f32 %v4734, 0.0
      %v4807 = vmax.f32 %v4735, 0.0
      %v4808 = vmax.f32 %v4736, 0.0
      %v4809 = vmax.f32 %v4737, 0.0
      %v4810 = vmax.f32 %v4738, 0.0
      %v4811 = vmax.f32 %v4739, 0.0
      %v4812 = vmax.f32 %v4740, 0.0
      %v4813 = vmax.f32 %v4741, 0.0
      %v4814 = vmax.f32 %v4742, 0.0
      %v4815 = vmax.f32 %v4743, 0.0
      %v4816 = vmax.f32 %v4744, 0.0
      %v4817 = vmax.f32 %v4745, 0.0
      %v4818 = vmax.f32 %v4746, 0.0
      %v4819 = vmax.f32 %v4747, 0.0
      %v4820 = vmax.f32 %v4748, 0.0
      %v4821 = vmax.f32 %v4749, 0.0
      %v4822 = vmax.f32 %v4750, 0.0
      %v4823 = vmax.f32 %v4751, 0.0
      %v4824 = vmax.f32 %v4752, 0.0
      %v4825 = vmax.f32 %v4753, 0.0
      %v4826 = vmax.f32 %v4754, 0.0
      %v4827 = vmin.f32 %v4755, 6.0
      %v4828 = vmin.f32 %v4756, 6.0
      %v4829 = vmin.f32 %v4757, 6.0
      %v4830 = vmin.f32 %v4758, 6.0
      %v4831 = vmin.f32 %v4759, 6.0
      %v4832 = vmin.f32 %v4760, 6.0
      %v4833 = vmin.f32 %v4761, 6.0
      %v4834 = vmin.f32 %v4762, 6.0
      %v4835 = vmin.f32 %v4763, 6.0
      %v4836 = vmin.f32 %v4764, 6.0
      %v4837 = vmin.f32 %v4765, 6.0
      %v4838 = vmin.f32 %v4766, 6.0
      %v4839 = vmin.f32 %v4767, 6.0
      %v4840 = vmin.f32 %v4768, 6.0
      %v4841 = vmin.f32 %v4769, 6.0
      %v4842 = vmin.f32 %v4770, 6.0
      %v4843 = vmin.f32 %v4771, 6.0
      %v4844 = vmin.f32 %v4772, 6.0
      %v4845 = vmin.f32 %v4773, 6.0
      %v4846 = vmin.f32 %v4774, 6.0
      %v4847 = vmin.f32 %v4775, 6.0
      %v4848 = vmin.f32 %v4776, 6.0
      %v4849 = vmin.f32 %v4777, 6.0
      %v4850 = vmin.f32 %v4778, 6.0
      %v4851 = vmin.f32 %v4779, 6.0
      %v4852 = vmin.f32 %v4780, 6.0
      %v4853 = vmin.f32 %v4781, 6.0
      %v4854 = vmin.f32 %v4782, 6.0
      %v4855 = vmin.f32 %v4783, 6.0
      %v4856 = vmin.f32 %v4784, 6.0
      %v4857 = vmin.f32 %v4785, 6.0
      %v4858 = vmin.f32 %v4786, 6.0
      %v4859 = vmin.f32 %v4787, 6.0
      %v4860 = vmin.f32 %v4788, 6.0
      %v4861 = vmin.f32 %v4789, 6.0
      %v4862 = vmin.f32 %v4790, 6.0
      %v4863 = vmin.f32 %v4791, 6.0
      %v4864 = vmin.f32 %v4792, 6.0
      %v4865 = vmin.f32 %v4793, 6.0
      %v4866 = vmin.f32 %v4794, 6.0
      %v4867 = vmin.f32 %v4795, 6.0
      %v4868 = vmin.f32 %v4796, 6.0
      %v4869 = vmin.f32 %v4797, 6.0
      %v4870 = vmin.f32 %v4798, 6.0
      %v4871 = vmin.f32 %v4799, 6.0
      %v4872 = vmin.f32 %v4800, 6.0
      %v4873 = vmin.f32 %v4801, 6.0
      %v4874 = vmin.f32 %v4802, 6.0
      %v4875 = vmin.f32 %v4803, 6.0
      %v4876 = vmin.f32 %v4804, 6.0
      %v4877 = vmin.f32 %v4805, 6.0
      %v4878 = vmin.f32 %v4806, 6.0
      %v4879 = vmin.f32 %v4807, 6.0
      %v4880 = vmin.f32 %v4808, 6.0
      %v4881 = vmin.f32 %v4809, 6.0
      %v4882 = vmin.f32 %v4810, 6.0
      %v4883 = vmin.f32 %v4811, 6.0
      %v4884 = vmin.f32 %v4812, 6.0
      %v4885 = vmin.f32 %v4813, 6.0
      %v4886 = vmin.f32 %v4814, 6.0
      %v4887 = vmin.f32 %v4815, 6.0
      %v4888 = vmin.f32 %v4816, 6.0
      %v4889 = vmin.f32 %v4817, 6.0
      %v4890 = vmin.f32 %v4818, 6.0
      %v4891 = vmin.f32 %v4819, 6.0
      %v4892 = vmin.f32 %v4820, 6.0
      %v4893 = vmin.f32 %v4821, 6.0
      %v4894 = vmin.f32 %v4822, 6.0
      %v4895 = vmin.f32 %v4823, 6.0
      %v4896 = vmin.f32 %v4824, 6.0
      %v4897 = vmin.f32 %v4825, 6.0
      %v4898 = vmin.f32 %v4826, 6.0
      %v4899 = vmul.f32 %v4611, %v4827
      %v4900 = vmul.f32 %v4612, %v4828
      %v4901 = vmul.f32 %v4613, %v4829
      %v4902 = vmul.f32 %v4614, %v4830
      %v4903 = vmul.f32 %v4615, %v4831
      %v4904 = vmul.f32 %v4616, %v4832
      %v4905 = vmul.f32 %v4617, %v4833
      %v4906 = vmul.f32 %v4618, %v4834
      %v4907 = vmul.f32 %v4619, %v4835
      %v4908 = vmul.f32 %v4620, %v4836
      %v4909 = vmul.f32 %v4621, %v4837
      %v4910 = vmul.f32 %v4622, %v4838
      %v4911 = vmul.f32 %v4623, %v4839
      %v4912 = vmul.f32 %v4624, %v4840
      %v4913 = vmul.f32 %v4625, %v4841
      %v4914 = vmul.f32 %v4626, %v4842
      %v4915 = vmul.f32 %v4627, %v4843
      %v4916 = vmul.f32 %v4628, %v4844
      %v4917 = vmul.f32 %v4629, %v4845
      %v4918 = vmul.f32 %v4630, %v4846
      %v4919 = vmul.f32 %v4631, %v4847
      %v4920 = vmul.f32 %v4632, %v4848
      %v4921 = vmul.f32 %v4633, %v4849
      %v4922 = vmul.f32 %v4634, %v4850
      %v4923 = vmul.f32 %v4635, %v4851
      %v4924 = vmul.f32 %v4636, %v4852
      %v4925 = vmul.f32 %v4637, %v4853
      %v4926 = vmul.f32 %v4638, %v4854
      %v4927 = vmul.f32 %v4639, %v4855
      %v4928 = vmul.f32 %v4640, %v4856
      %v4929 = vmul.f32 %v4641, %v4857
      %v4930 = vmul.f32 %v4642, %v4858
      %v4931 = vmul.f32 %v4643, %v4859
      %v4932 = vmul.f32 %v4644, %v4860
      %v4933 = vmul.f32 %v4645, %v4861
      %v4934 = vmul.f32 %v4646, %v4862
      %v4935 = vmul.f32 %v4647, %v4863
      %v4936 = vmul.f32 %v4648, %v4864
      %v4937 = vmul.f32 %v4649, %v4865
      %v4938 = vmul.f32 %v4650, %v4866
      %v4939 = vmul.f32 %v4651, %v4867
      %v4940 = vmul.f32 %v4652, %v4868
      %v4941 = vmul.f32 %v4653, %v4869
      %v4942 = vmul.f32 %v4654, %v4870
      %v4943 = vmul.f32 %v4655, %v4871
      %v4944 = vmul.f32 %v4656, %v4872
      %v4945 = vmul.f32 %v4657, %v4873
      %v4946 = vmul.f32 %v4658, %v4874
      %v4947 = vmul.f32 %v4659, %v4875
      %v4948 = vmul.f32 %v4660, %v4876
      %v4949 = vmul.f32 %v4661, %v4877
      %v4950 = vmul.f32 %v4662, %v4878
      %v4951 = vmul.f32 %v4663, %v4879
      %v4952 = vmul.f32 %v4664, %v4880
      %v4953 = vmul.f32 %v4665, %v4881
      %v4954 = vmul.f32 %v4666, %v4882
      %v4955 = vmul.f32 %v4667, %v4883
      %v4956 = vmul.f32 %v4668, %v4884
      %v4957 = vmul.f32 %v4669, %v4885
      %v4958 = vmul.f32 %v4670, %v4886
      %v4959 = vmul.f32 %v4671, %v4887
      %v4960 = vmul.f32 %v4672, %v4888
      %v4961 = vmul.f32 %v4673, %v4889
      %v4962 = vmul.f32 %v4674, %v4890
      %v4963 = vmul.f32 %v4675, %v4891
      %v4964 = vmul.f32 %v4676, %v4892
      %v4965 = vmul.f32 %v4677, %v4893
      %v4966 = vmul.f32 %v4678, %v4894
      %v4967 = vmul.f32 %v4679, %v4895
      %v4968 = vmul.f32 %v4680, %v4896
      %v4969 = vmul.f32 %v4681, %v4897
      %v4970 = vmul.f32 %v4682, %v4898
      %v4971 = vmul.f32 %v4899, 0.16666667
      %v4972 = vmul.f32 %v4900, 0.16666667
      %v4973 = vmul.f32 %v4901, 0.16666667
      %v4974 = vmul.f32 %v4902, 0.16666667
      %v4975 = vmul.f32 %v4903, 0.16666667
      %v4976 = vmul.f32 %v4904, 0.16666667
      %v4977 = vmul.f32 %v4905, 0.16666667
      %v4978 = vmul.f32 %v4906, 0.16666667
      %v4979 = vmul.f32 %v4907, 0.16666667
      %v4980 = vmul.f32 %v4908, 0.16666667
      %v4981 = vmul.f32 %v4909, 0.16666667
      %v4982 = vmul.f32 %v4910, 0.16666667
      %v4983 = vmul.f32 %v4911, 0.16666667
      %v4984 = vmul.f32 %v4912, 0.16666667
      %v4985 = vmul.f32 %v4913, 0.16666667
      %v4986 = vmul.f32 %v4914, 0.16666667
      %v4987 = vmul.f32 %v4915, 0.16666667
      %v4988 = vmul.f32 %v4916, 0.16666667
      %v4989 = vmul.f32 %v4917, 0.16666667
      %v4990 = vmul.f32 %v4918, 0.16666667
      %v4991 = vmul.f32 %v4919, 0.16666667
      %v4992 = vmul.f32 %v4920, 0.16666667
      %v4993 = vmul.f32 %v4921, 0.16666667
      %v4994 = vmul.f32 %v4922, 0.16666667
      %v4995 = vmul.f32 %v4923, 0.16666667
      %v4996 = vmul.f32 %v4924, 0.16666667
      %v4997 = vmul.f32 %v4925, 0.16666667
      %v4998 = vmul.f32 %v4926, 0.16666667
      %v4999 = vmul.f32 %v4927, 0.16666667
      %v5000 = vmul.f32 %v4928, 0.16666667
      %v5001 = vmul.f32 %v4929, 0.16666667
      %v5002 = vmul.f32 %v4930, 0.16666667
      %v5003 = vmul.f32 %v4931, 0.16666667
      %v5004 = vmul.f32 %v4932, 0.16666667
      %v5005 = vmul.f32 %v4933, 0.16666667
      %v5006 = vmul.f32 %v4934, 0.16666667
      %v5007 = vmul.f32 %v4935, 0.16666667
      %v5008 = vmul.f32 %v4936, 0.16666667
      %v5009 = vmul.f32 %v4937, 0.16666667
      %v5010 = vmul.f32 %v4938, 0.16666667
      %v5011 = vmul.f32 %v4939, 0.16666667
      %v5012 = vmul.f32 %v4940, 0.16666667
      %v5013 = vmul.f32 %v4941, 0.16666667
      %v5014 = vmul.f32 %v4942, 0.16666667
      %v5015 = vmul.f32 %v4943, 0.16666667
      %v5016 = vmul.f32 %v4944, 0.16666667
      %v5017 = vmul.f32 %v4945, 0.16666667
      %v5018 = vmul.f32 %v4946, 0.16666667
      %v5019 = vmul.f32 %v4947, 0.16666667
      %v5020 = vmul.f32 %v4948, 0.16666667
      %v5021 = vmul.f32 %v4949, 0.16666667
      %v5022 = vmul.f32 %v4950, 0.16666667
      %v5023 = vmul.f32 %v4951, 0.16666667
      %v5024 = vmul.f32 %v4952, 0.16666667
      %v5025 = vmul.f32 %v4953, 0.16666667
      %v5026 = vmul.f32 %v4954, 0.16666667
      %v5027 = vmul.f32 %v4955, 0.16666667
      %v5028 = vmul.f32 %v4956, 0.16666667
      %v5029 = vmul.f32 %v4957, 0.16666667
      %v5030 = vmul.f32 %v4958, 0.16666667
      %v5031 = vmul.f32 %v4959, 0.16666667
      %v5032 = vmul.f32 %v4960, 0.16666667
      %v5033 = vmul.f32 %v4961, 0.16666667
      %v5034 = vmul.f32 %v4962, 0.16666667
      %v5035 = vmul.f32 %v4963, 0.16666667
      %v5036 = vmul.f32 %v4964, 0.16666667
      %v5037 = vmul.f32 %v4965, 0.16666667
      %v5038 = vmul.f32 %v4966, 0.16666667
      %v5039 = vmul.f32 %v4967, 0.16666667
      %v5040 = vmul.f32 %v4968, 0.16666667
      %v5041 = vmul.f32 %v4969, 0.16666667
      %v5042 = vmul.f32 %v4970, 0.16666667
      %v5043 = vpack.c.bf16 %v4972, %v4971
      %v5044 = vpack.c.bf16 %v4974, %v4973
      %v5045 = vpack.c.bf16 %v4976, %v4975
      %v5046 = vpack.c.bf16 %v4978, %v4977
      %v5047 = vpack.c.bf16 %v4980, %v4979
      %v5048 = vpack.c.bf16 %v4982, %v4981
      %v5049 = vpack.c.bf16 %v4984, %v4983
      %v5050 = vpack.c.bf16 %v4986, %v4985
      %v5051 = vpack.c.bf16 %v4988, %v4987
      %v5052 = vpack.c.bf16 %v4990, %v4989
      %v5053 = vpack.c.bf16 %v4992, %v4991
      %v5054 = vpack.c.bf16 %v4994, %v4993
      %v5055 = vpack.c.bf16 %v4996, %v4995
      %v5056 = vpack.c.bf16 %v4998, %v4997
      %v5057 = vpack.c.bf16 %v5000, %v4999
      %v5058 = vpack.c.bf16 %v5002, %v5001
      %v5059 = vpack.c.bf16 %v5004, %v5003
      %v5060 = vpack.c.bf16 %v5006, %v5005
      %v5061 = vpack.c.bf16 %v5008, %v5007
      %v5062 = vpack.c.bf16 %v5010, %v5009
      %v5063 = vpack.c.bf16 %v5012, %v5011
      %v5064 = vpack.c.bf16 %v5014, %v5013
      %v5065 = vpack.c.bf16 %v5016, %v5015
      %v5066 = vpack.c.bf16 %v5018, %v5017
      %v5067 = vpack.c.bf16 %v5020, %v5019
      %v5068 = vpack.c.bf16 %v5022, %v5021
      %v5069 = vpack.c.bf16 %v5024, %v5023
      %v5070 = vpack.c.bf16 %v5026, %v5025
      %v5071 = vpack.c.bf16 %v5028, %v5027
      %v5072 = vpack.c.bf16 %v5030, %v5029
      %v5073 = vpack.c.bf16 %v5032, %v5031
      %v5074 = vpack.c.bf16 %v5034, %v5033
      %v5075 = vpack.c.bf16 %v5036, %v5035
      %v5076 = vpack.c.bf16 %v5038, %v5037
      %v5077 = vpack.c.bf16 %v5040, %v5039
      %v5078 = vpack.c.bf16 %v5042, %v5041
      %v5079 = vld [vmem:[%s7] sm:$0xf]
      %v5080 = vld [vmem:[%s7 + $0x4] sm:$0xf]
      %v5081 = vld [vmem:[%s7 + $0x8] sm:$0xf]
      %v5082 = vld [vmem:[%s7 + $0xc] sm:$0xf]
      %v5083 = vld [vmem:[%s7 + $0x10] sm:$0xf]
      %v5084 = vld [vmem:[%s7 + $0x14] sm:$0xf]
      %v5085 = vld [vmem:[%s7 + $0x18] sm:$0xf]
      %v5086 = vld [vmem:[%s7 + $0x1c] sm:$0xf]
      %v5087 = vld [vmem:[%s7 + $0x20] sm:$0xf]
      %v5088 = vld [vmem:[%s7 + $0x24] sm:$0xf]
      %v5089 = vld [vmem:[%s7 + $0x28] sm:$0xf]
      %v5090 = vld [vmem:[%s7 + $0x2c] sm:$0xf]
      %v5091 = vld [vmem:[%s7 + $0x30] sm:$0xf]
      %v5092 = vld [vmem:[%s7 + $0x34] sm:$0xf]
      %v5093 = vld [vmem:[%s7 + $0x38] sm:$0xf]
      %v5094 = vld [vmem:[%s7 + $0x3c] sm:$0xf]
      %v5095 = vld [vmem:[%s8] sm:$0x1]
      %v5097 = vperm.slane %v5095, 0
      %v5115 = vunpack.c.l.b16 %v5079
      %v5116 = vunpack.c.l.b16 %v5080
      %v5117 = vunpack.c.l.b16 %v5081
      %v5118 = vunpack.c.l.b16 %v5082
      %v5119 = vunpack.c.l.b16 %v5083
      %v5120 = vunpack.c.l.b16 %v5084
      %v5121 = vunpack.c.l.b16 %v5085
      %v5122 = vunpack.c.l.b16 %v5086
      %v5123 = vunpack.c.l.b16 %v5087
      %v5124 = vunpack.c.l.b16 %v5088
      %v5125 = vunpack.c.l.b16 %v5089
      %v5126 = vunpack.c.l.b16 %v5090
      %v5127 = vunpack.c.l.b16 %v5091
      %v5128 = vunpack.c.l.b16 %v5092
      %v5129 = vunpack.c.l.b16 %v5093
      %v5130 = vunpack.c.l.b16 %v5094
      %v5131 = vpack.c.b16 %v5116, %v5115
      %v5132 = vpack.c.b16 %v5118, %v5117
      %v5133 = vpack.c.b16 %v5120, %v5119
      %v5134 = vpack.c.b16 %v5122, %v5121
      %v5135 = vpack.c.b16 %v5124, %v5123
      %v5136 = vpack.c.b16 %v5126, %v5125
      %v5137 = vpack.c.b16 %v5128, %v5127
      %v5138 = vpack.c.b16 %v5130, %v5129
      %5147 = vmatpush.bf16.msra.mxu0 %v5138
      %5148 = vmatpush.bf16.msra.mxu0 %v5137
      %5149 = vmatpush.bf16.msra.mxu0 %v5136
      %5150 = vmatpush.bf16.msra.mxu0 %v5135
      %5151 = vmatpush.bf16.msra.mxu0 %v5134
      %5152 = vmatpush.bf16.msra.mxu0 %v5133
      %5153 = vmatpush.bf16.msra.mxu0 %v5132
      %5154 = vmatpush.bf16.msra.mxu0 %v5131
      %5155 = vmatmul.bf16.gmra.mxu0 %v5043
      %v5156 = vpop.f32.mrf.mxu0
      %v5157 = vadd.f32 %v5097, %v5156
      %v5158 = vpop.f32.mrf.mxu0
      %v5159 = vadd.f32 %v5097, %v5158
      %5160 = vmatmul.bf16.gmra.mxu0 %v5044
      %v5161 = vpop.f32.mrf.mxu0
      %v5162 = vadd.f32 %v5097, %v5161
      %v5163 = vpop.f32.mrf.mxu0
      %v5164 = vadd.f32 %v5097, %v5163
      %5165 = vmatmul.bf16.gmra.mxu0 %v5045
      %v5166 = vpop.f32.mrf.mxu0
      %v5167 = vadd.f32 %v5097, %v5166
      %v5168 = vpop.f32.mrf.mxu0
      %v5169 = vadd.f32 %v5097, %v5168
      %5170 = vmatmul.bf16.gmra.mxu0 %v5046
      %v5171 = vpop.f32.mrf.mxu0
      %v5172 = vadd.f32 %v5097, %v5171
      %v5173 = vpop.f32.mrf.mxu0
      %v5174 = vadd.f32 %v5097, %v5173
      %5175 = vmatmul.bf16.gmra.mxu0 %v5047
      %v5176 = vpop.f32.mrf.mxu0
      %v5177 = vadd.f32 %v5097, %v5176
      %v5178 = vpop.f32.mrf.mxu0
      %v5179 = vadd.f32 %v5097, %v5178
      %5180 = vmatmul.bf16.gmra.mxu0 %v5048
      %v5181 = vpop.f32.mrf.mxu0
      %v5182 = vadd.f32 %v5097, %v5181
      %v5183 = vpop.f32.mrf.mxu0
      %v5184 = vadd.f32 %v5097, %v5183
      %5185 = vmatmul.bf16.gmra.mxu0 %v5049
      %v5186 = vpop.f32.mrf.mxu0
      %v5187 = vadd.f32 %v5097, %v5186
      %v5188 = vpop.f32.mrf.mxu0
      %v5189 = vadd.f32 %v5097, %v5188
      %5190 = vmatmul.bf16.gmra.mxu0 %v5050
      %v5191 = vpop.f32.mrf.mxu0
      %v5192 = vadd.f32 %v5097, %v5191
      %v5193 = vpop.f32.mrf.mxu0
      %v5194 = vadd.f32 %v5097, %v5193
      %5195 = vmatmul.bf16.gmra.mxu0 %v5051
      %v5196 = vpop.f32.mrf.mxu0
      %v5197 = vadd.f32 %v5097, %v5196
      %v5198 = vpop.f32.mrf.mxu0
      %v5199 = vadd.f32 %v5097, %v5198
      %5200 = vmatmul.bf16.gmra.mxu0 %v5052
      %v5201 = vpop.f32.mrf.mxu0
      %v5202 = vadd.f32 %v5097, %v5201
      %v5203 = vpop.f32.mrf.mxu0
      %v5204 = vadd.f32 %v5097, %v5203
      %5205 = vmatmul.bf16.gmra.mxu0 %v5053
      %v5206 = vpop.f32.mrf.mxu0
      %v5207 = vadd.f32 %v5097, %v5206
      %v5208 = vpop.f32.mrf.mxu0
      %v5209 = vadd.f32 %v5097, %v5208
      %5210 = vmatmul.bf16.gmra.mxu0 %v5054
      %v5211 = vpop.f32.mrf.mxu0
      %v5212 = vadd.f32 %v5097, %v5211
      %v5213 = vpop.f32.mrf.mxu0
      %v5214 = vadd.f32 %v5097, %v5213
      %5215 = vmatmul.bf16.gmra.mxu0 %v5055
      %v5216 = vpop.f32.mrf.mxu0
      %v5217 = vadd.f32 %v5097, %v5216
      %v5218 = vpop.f32.mrf.mxu0
      %v5219 = vadd.f32 %v5097, %v5218
      %5220 = vmatmul.bf16.gmra.mxu0 %v5056
      %v5221 = vpop.f32.mrf.mxu0
      %v5222 = vadd.f32 %v5097, %v5221
      %v5223 = vpop.f32.mrf.mxu0
      %v5224 = vadd.f32 %v5097, %v5223
      %5225 = vmatmul.bf16.gmra.mxu0 %v5057
      %v5226 = vpop.f32.mrf.mxu0
      %v5227 = vadd.f32 %v5097, %v5226
      %v5228 = vpop.f32.mrf.mxu0
      %v5229 = vadd.f32 %v5097, %v5228
      %5230 = vmatmul.bf16.gmra.mxu0 %v5058
      %v5231 = vpop.f32.mrf.mxu0
      %v5232 = vadd.f32 %v5097, %v5231
      %v5233 = vpop.f32.mrf.mxu0
      %v5234 = vadd.f32 %v5097, %v5233
      %5235 = vmatmul.bf16.gmra.mxu0 %v5059
      %v5236 = vpop.f32.mrf.mxu0
      %v5237 = vadd.f32 %v5097, %v5236
      %v5238 = vpop.f32.mrf.mxu0
      %v5239 = vadd.f32 %v5097, %v5238
      %5240 = vmatmul.bf16.gmra.mxu0 %v5060
      %v5241 = vpop.f32.mrf.mxu0
      %v5242 = vadd.f32 %v5097, %v5241
      %v5243 = vpop.f32.mrf.mxu0
      %v5244 = vadd.f32 %v5097, %v5243
      %5245 = vmatmul.bf16.gmra.mxu0 %v5061
      %v5246 = vpop.f32.mrf.mxu0
      %v5247 = vadd.f32 %v5097, %v5246
      %v5248 = vpop.f32.mrf.mxu0
      %v5249 = vadd.f32 %v5097, %v5248
      %5250 = vmatmul.bf16.gmra.mxu0 %v5062
      %v5251 = vpop.f32.mrf.mxu0
      %v5252 = vadd.f32 %v5097, %v5251
      %v5253 = vpop.f32.mrf.mxu0
      %v5254 = vadd.f32 %v5097, %v5253
      %5255 = vmatmul.bf16.gmra.mxu0 %v5063
      %v5256 = vpop.f32.mrf.mxu0
      %v5257 = vadd.f32 %v5097, %v5256
      %v5258 = vpop.f32.mrf.mxu0
      %v5259 = vadd.f32 %v5097, %v5258
      %5260 = vmatmul.bf16.gmra.mxu0 %v5064
      %v5261 = vpop.f32.mrf.mxu0
      %v5262 = vadd.f32 %v5097, %v5261
      %v5263 = vpop.f32.mrf.mxu0
      %v5264 = vadd.f32 %v5097, %v5263
      %5265 = vmatmul.bf16.gmra.mxu0 %v5065
      %v5266 = vpop.f32.mrf.mxu0
      %v5267 = vadd.f32 %v5097, %v5266
      %v5268 = vpop.f32.mrf.mxu0
      %v5269 = vadd.f32 %v5097, %v5268
      %5270 = vmatmul.bf16.gmra.mxu0 %v5066
      %v5271 = vpop.f32.mrf.mxu0
      %v5272 = vadd.f32 %v5097, %v5271
      %v5273 = vpop.f32.mrf.mxu0
      %v5274 = vadd.f32 %v5097, %v5273
      %5275 = vmatmul.bf16.gmra.mxu0 %v5067
      %v5276 = vpop.f32.mrf.mxu0
      %v5277 = vadd.f32 %v5097, %v5276
      %v5278 = vpop.f32.mrf.mxu0
      %v5279 = vadd.f32 %v5097, %v5278
      %5280 = vmatmul.bf16.gmra.mxu0 %v5068
      %v5281 = vpop.f32.mrf.mxu0
      %v5282 = vadd.f32 %v5097, %v5281
      %v5283 = vpop.f32.mrf.mxu0
      %v5284 = vadd.f32 %v5097, %v5283
      %5285 = vmatmul.bf16.gmra.mxu0 %v5069
      %v5286 = vpop.f32.mrf.mxu0
      %v5287 = vadd.f32 %v5097, %v5286
      %v5288 = vpop.f32.mrf.mxu0
      %v5289 = vadd.f32 %v5097, %v5288
      %5290 = vmatmul.bf16.gmra.mxu0 %v5070
      %v5291 = vpop.f32.mrf.mxu0
      %v5292 = vadd.f32 %v5097, %v5291
      %v5293 = vpop.f32.mrf.mxu0
      %v5294 = vadd.f32 %v5097, %v5293
      %5295 = vmatmul.bf16.gmra.mxu0 %v5071
      %v5296 = vpop.f32.mrf.mxu0
      %v5297 = vadd.f32 %v5097, %v5296
      %v5298 = vpop.f32.mrf.mxu0
      %v5299 = vadd.f32 %v5097, %v5298
      %5300 = vmatmul.bf16.gmra.mxu0 %v5072
      %v5301 = vpop.f32.mrf.mxu0
      %v5302 = vadd.f32 %v5097, %v5301
      %v5303 = vpop.f32.mrf.mxu0
      %v5304 = vadd.f32 %v5097, %v5303
      %5305 = vmatmul.bf16.gmra.mxu0 %v5073
      %v5306 = vpop.f32.mrf.mxu0
      %v5307 = vadd.f32 %v5097, %v5306
      %v5308 = vpop.f32.mrf.mxu0
      %v5309 = vadd.f32 %v5097, %v5308
      %5310 = vmatmul.bf16.gmra.mxu0 %v5074
      %v5311 = vpop.f32.mrf.mxu0
      %v5312 = vadd.f32 %v5097, %v5311
      %v5313 = vpop.f32.mrf.mxu0
      %v5314 = vadd.f32 %v5097, %v5313
      %5315 = vmatmul.bf16.gmra.mxu0 %v5075
      %v5316 = vpop.f32.mrf.mxu0
      %v5317 = vadd.f32 %v5097, %v5316
      %v5318 = vpop.f32.mrf.mxu0
      %v5319 = vadd.f32 %v5097, %v5318
      %5320 = vmatmul.bf16.gmra.mxu0 %v5076
      %v5321 = vpop.f32.mrf.mxu0
      %v5322 = vadd.f32 %v5097, %v5321
      %v5323 = vpop.f32.mrf.mxu0
      %v5324 = vadd.f32 %v5097, %v5323
      %5325 = vmatmul.bf16.gmra.mxu0 %v5077
      %v5326 = vpop.f32.mrf.mxu0
      %v5327 = vadd.f32 %v5097, %v5326
      %v5328 = vpop.f32.mrf.mxu0
      %v5329 = vadd.f32 %v5097, %v5328
      %5330 = vmatmul.bf16.gmra.mxu0 %v5078
      %v5331 = vpop.f32.mrf.mxu0
      %v5332 = vadd.f32 %v5097, %v5331
      %v5333 = vpop.f32.mrf.mxu0
      %v5334 = vadd.f32 %v5097, %v5333
      %5335 = vdwg.mxu0
      %v5336 = vadd.f32 %v5157, %v334
      %v5337 = vadd.f32 %v5159, %v335
      %v5338 = vadd.f32 %v5162, %v336
      %v5339 = vadd.f32 %v5164, %v337
      %v5340 = vadd.f32 %v5167, %v338
      %v5341 = vadd.f32 %v5169, %v339
      %v5342 = vadd.f32 %v5172, %v340
      %v5343 = vadd.f32 %v5174, %v341
      %v5344 = vadd.f32 %v5177, %v342
      %v5345 = vadd.f32 %v5179, %v343
      %v5346 = vadd.f32 %v5182, %v344
      %v5347 = vadd.f32 %v5184, %v345
      %v5348 = vadd.f32 %v5187, %v346
      %v5349 = vadd.f32 %v5189, %v347
      %v5350 = vadd.f32 %v5192, %v348
      %v5351 = vadd.f32 %v5194, %v349
      %v5352 = vadd.f32 %v5197, %v350
      %v5353 = vadd.f32 %v5199, %v351
      %v5354 = vadd.f32 %v5202, %v352
      %v5355 = vadd.f32 %v5204, %v353
      %v5356 = vadd.f32 %v5207, %v354
      %v5357 = vadd.f32 %v5209, %v355
      %v5358 = vadd.f32 %v5212, %v356
      %v5359 = vadd.f32 %v5214, %v357
      %v5360 = vadd.f32 %v5217, %v358
      %v5361 = vadd.f32 %v5219, %v359
      %v5362 = vadd.f32 %v5222, %v360
      %v5363 = vadd.f32 %v5224, %v361
      %v5364 = vadd.f32 %v5227, %v362
      %v5365 = vadd.f32 %v5229, %v363
      %v5366 = vadd.f32 %v5232, %v364
      %v5367 = vadd.f32 %v5234, %v365
      %v5368 = vadd.f32 %v5237, %v366
      %v5369 = vadd.f32 %v5239, %v367
      %v5370 = vadd.f32 %v5242, %v368
      %v5371 = vadd.f32 %v5244, %v369
      %v5372 = vadd.f32 %v5247, %v370
      %v5373 = vadd.f32 %v5249, %v371
      %v5374 = vadd.f32 %v5252, %v372
      %v5375 = vadd.f32 %v5254, %v373
      %v5376 = vadd.f32 %v5257, %v374
      %v5377 = vadd.f32 %v5259, %v375
      %v5378 = vadd.f32 %v5262, %v376
      %v5379 = vadd.f32 %v5264, %v377
      %v5380 = vadd.f32 %v5267, %v378
      %v5381 = vadd.f32 %v5269, %v379
      %v5382 = vadd.f32 %v5272, %v380
      %v5383 = vadd.f32 %v5274, %v381
      %v5384 = vadd.f32 %v5277, %v382
      %v5385 = vadd.f32 %v5279, %v383
      %v5386 = vadd.f32 %v5282, %v384
      %v5387 = vadd.f32 %v5284, %v385
      %v5388 = vadd.f32 %v5287, %v386
      %v5389 = vadd.f32 %v5289, %v387
      %v5390 = vadd.f32 %v5292, %v388
      %v5391 = vadd.f32 %v5294, %v389
      %v5392 = vadd.f32 %v5297, %v390
      %v5393 = vadd.f32 %v5299, %v391
      %v5394 = vadd.f32 %v5302, %v392
      %v5395 = vadd.f32 %v5304, %v393
      %v5396 = vadd.f32 %v5307, %v394
      %v5397 = vadd.f32 %v5309, %v395
      %v5398 = vadd.f32 %v5312, %v396
      %v5399 = vadd.f32 %v5314, %v397
      %v5400 = vadd.f32 %v5317, %v398
      %v5401 = vadd.f32 %v5319, %v399
      %v5402 = vadd.f32 %v5322, %v400
      %v5403 = vadd.f32 %v5324, %v401
      %v5404 = vadd.f32 %v5327, %v402
      %v5405 = vadd.f32 %v5329, %v403
      %v5406 = vadd.f32 %v5332, %v404
      %v5407 = vadd.f32 %v5334, %v405
      %5408 = vst.msk [vmem:[%s332] sm:$0xff] %vm408, %v5336
      %5409 = vst.msk [vmem:[%s332 + $0x8] sm:$0xff] %vm408, %v5337
      %5410 = vst.msk [vmem:[%s332 + $0x10] sm:$0xff] %vm408, %v5338
      %5411 = vst.msk [vmem:[%s332 + $0x18] sm:$0xff] %vm408, %v5339
      %5412 = vst.msk [vmem:[%s332 + $0x20] sm:$0xff] %vm408, %v5340
      %5413 = vst.msk [vmem:[%s332 + $0x28] sm:$0xff] %vm408, %v5341
      %5414 = vst.msk [vmem:[%s332 + $0x30] sm:$0xff] %vm408, %v5342
      %5415 = vst.msk [vmem:[%s332 + $0x38] sm:$0xff] %vm408, %v5343
      %5416 = vst.msk [vmem:[%s332 + $0x40] sm:$0xff] %vm408, %v5344
      %5417 = vst.msk [vmem:[%s332 + $0x48] sm:$0xff] %vm408, %v5345
      %5418 = vst.msk [vmem:[%s332 + $0x50] sm:$0xff] %vm408, %v5346
      %5419 = vst.msk [vmem:[%s332 + $0x58] sm:$0xff] %vm408, %v5347
      %5420 = vst.msk [vmem:[%s332 + $0x60] sm:$0xff] %vm408, %v5348
      %5421 = vst.msk [vmem:[%s332 + $0x68] sm:$0xff] %vm408, %v5349
      %5422 = vst.msk [vmem:[%s332 + $0x70] sm:$0xff] %vm408, %v5350
      %5423 = vst.msk [vmem:[%s332 + $0x78] sm:$0xff] %vm408, %v5351
      %5424 = vst.msk [vmem:[%s332 + $0x80] sm:$0xff] %vm408, %v5352
      %5425 = vst.msk [vmem:[%s332 + $0x88] sm:$0xff] %vm408, %v5353
      %5426 = vst.msk [vmem:[%s332 + $0x90] sm:$0xff] %vm408, %v5354
      %5427 = vst.msk [vmem:[%s332 + $0x98] sm:$0xff] %vm408, %v5355
      %5428 = vst.msk [vmem:[%s332 + $0xa0] sm:$0xff] %vm408, %v5356
      %5429 = vst.msk [vmem:[%s332 + $0xa8] sm:$0xff] %vm408, %v5357
      %5430 = vst.msk [vmem:[%s332 + $0xb0] sm:$0xff] %vm408, %v5358
      %5431 = vst.msk [vmem:[%s332 + $0xb8] sm:$0xff] %vm408, %v5359
      %5432 = vst.msk [vmem:[%s332 + $0xc0] sm:$0xff] %vm408, %v5360
      %5433 = vst.msk [vmem:[%s332 + $0xc8] sm:$0xff] %vm408, %v5361
      %5434 = vst.msk [vmem:[%s332 + $0xd0] sm:$0xff] %vm408, %v5362
      %5435 = vst.msk [vmem:[%s332 + $0xd8] sm:$0xff] %vm408, %v5363
      %5436 = vst.msk [vmem:[%s332 + $0xe0] sm:$0xff] %vm408, %v5364
      %5437 = vst.msk [vmem:[%s332 + $0xe8] sm:$0xff] %vm408, %v5365
      %5438 = vst.msk [vmem:[%s332 + $0xf0] sm:$0xff] %vm408, %v5366
      %5439 = vst.msk [vmem:[%s332 + $0xf8] sm:$0xff] %vm408, %v5367
      %5440 = vst.msk [vmem:[%s332 + $0x100] sm:$0xff] %vm408, %v5368
      %5441 = vst.msk [vmem:[%s332 + $0x108] sm:$0xff] %vm408, %v5369
      %5442 = vst.msk [vmem:[%s332 + $0x110] sm:$0xff] %vm408, %v5370
      %5443 = vst.msk [vmem:[%s332 + $0x118] sm:$0xff] %vm408, %v5371
      %5444 = vst.msk [vmem:[%s332 + $0x120] sm:$0xff] %vm408, %v5372
      %5445 = vst.msk [vmem:[%s332 + $0x128] sm:$0xff] %vm408, %v5373
      %5446 = vst.msk [vmem:[%s332 + $0x130] sm:$0xff] %vm408, %v5374
      %5447 = vst.msk [vmem:[%s332 + $0x138] sm:$0xff] %vm408, %v5375
      %5448 = vst.msk [vmem:[%s332 + $0x140] sm:$0xff] %vm408, %v5376
      %5449 = vst.msk [vmem:[%s332 + $0x148] sm:$0xff] %vm408, %v5377
      %5450 = vst.msk [vmem:[%s332 + $0x150] sm:$0xff] %vm408, %v5378
      %5451 = vst.msk [vmem:[%s332 + $0x158] sm:$0xff] %vm408, %v5379
      %5452 = vst.msk [vmem:[%s332 + $0x160] sm:$0xff] %vm408, %v5380
      %5453 = vst.msk [vmem:[%s332 + $0x168] sm:$0xff] %vm408, %v5381
      %5454 = vst.msk [vmem:[%s332 + $0x170] sm:$0xff] %vm408, %v5382
      %5455 = vst.msk [vmem:[%s332 + $0x178] sm:$0xff] %vm408, %v5383
      %5456 = vst.msk [vmem:[%s332 + $0x180] sm:$0xff] %vm408, %v5384
      %5457 = vst.msk [vmem:[%s332 + $0x188] sm:$0xff] %vm408, %v5385
      %5458 = vst.msk [vmem:[%s332 + $0x190] sm:$0xff] %vm408, %v5386
      %5459 = vst.msk [vmem:[%s332 + $0x198] sm:$0xff] %vm408, %v5387
      %5460 = vst.msk [vmem:[%s332 + $0x1a0] sm:$0xff] %vm408, %v5388
      %5461 = vst.msk [vmem:[%s332 + $0x1a8] sm:$0xff] %vm408, %v5389
      %5462 = vst.msk [vmem:[%s332 + $0x1b0] sm:$0xff] %vm408, %v5390
      %5463 = vst.msk [vmem:[%s332 + $0x1b8] sm:$0xff] %vm408, %v5391
      %5464 = vst.msk [vmem:[%s332 + $0x1c0] sm:$0xff] %vm408, %v5392
      %5465 = vst.msk [vmem:[%s332 + $0x1c8] sm:$0xff] %vm408, %v5393
      %5466 = vst.msk [vmem:[%s332 + $0x1d0] sm:$0xff] %vm408, %v5394
      %5467 = vst.msk [vmem:[%s332 + $0x1d8] sm:$0xff] %vm408, %v5395
      %5468 = vst.msk [vmem:[%s332 + $0x1e0] sm:$0xff] %vm408, %v5396
      %5469 = vst.msk [vmem:[%s332 + $0x1e8] sm:$0xff] %vm408, %v5397
      %5470 = vst.msk [vmem:[%s332 + $0x1f0] sm:$0xff] %vm408, %v5398
      %5471 = vst.msk [vmem:[%s332 + $0x1f8] sm:$0xff] %vm408, %v5399
      %5472 = vst.msk [vmem:[%s332 + $0x200] sm:$0xff] %vm408, %v5400
      %5473 = vst.msk [vmem:[%s332 + $0x208] sm:$0xff] %vm408, %v5401
      %5474 = vst.msk [vmem:[%s332 + $0x210] sm:$0xff] %vm408, %v5402
      %5475 = vst.msk [vmem:[%s332 + $0x218] sm:$0xff] %vm408, %v5403
      %5476 = vst.msk [vmem:[%s332 + $0x220] sm:$0xff] %vm408, %v5404
      %5477 = vst.msk [vmem:[%s332 + $0x228] sm:$0xff] %vm408, %v5405
      %5478 = vst.msk [vmem:[%s332 + $0x230] sm:$0xff] %vm408, %v5406
      %5479 = vst.msk [vmem:[%s332 + $0x238] sm:$0xff] %vm408, %v5407
      %p5480 = scmp.lt.s32.totalorder %s20, 1
      %s5481 = scalar_select %p5480, %s20, 1
      %s5482 = smul.addr %s5481, 72
      %s5483 = smul.addr %s5482, 8
      %s5484 = scalar_lea.vmem %s9, %s5483
      // Predicated region
      $region57: #{_lambda_.5} parent=55 // pred_check
        %p5485 = pneg %p232
      $region58: #{_lambda_.5} parent=55 // pred_check_branch
        %5487 = sbr.rel (%p5485) target = $region60
      $region59: #{_lambda_.5} parent=55 // pred_region
        _
      $region60: #{_lambda_.5} parent=55 // pred_fallthru
        _
    $region56: #{_lambda_.5} parent=5 // pred_fallthru
      _
    %p5488 = scmp.le.s32.totalorder 2, %s15
    // Predicated region
    $region61: #{_lambda_.5} parent=5 // pred_check
      %p5489 = pneg %p5488
    $region62: #{_lambda_.5} parent=5 // pred_check_branch
      %5491 = sbr.rel (%p5489) target = $region64
    $region63: #{_lambda_.5} parent=5 // pred_region
      %s5492 = ssub.s32 %s15, 2
      // Predicated region
      $region65: #{_lambda_.5} parent=63 // pred_check
        %p5493 = pneg %p238
      $region66: #{_lambda_.5} parent=63 // pred_check_branch
        %5495 = sbr.rel (%p5493) target = $region68
      $region67: #{_lambda_.5} parent=63 // pred_region
        %p5496 = scmp.lt.s32.totalorder %s21, 1
        %s5497 = scalar_select %p5496, %s21, 1
        %s5498 = smul.addr %s5497, 72
        %s5499 = smul.addr %s5498, 8
        %s5500 = scalar_lea.vmem %s9, %s5499
      $region68: #{_lambda_.5} parent=63 // pred_fallthru
        _
    $region64: #{_lambda_.5} parent=5 // pred_fallthru
      _
  $region6: #{_lambda_.5} parent=0 // loop_footer
    %s19 = sadd.s32 1, %s15
  $region7: #{_lambda_.5} parent=0 // loop_footer_branch
    %14 = sbr.rel target = $region3
  $region8: #{_lambda_.5} parent=0 // loop_exit
    _

</llo_original>
